<compile_context>
chip_gen: v7x
topology: tpu7x:2x2x1
jax: 0.10.0
libtpu: 0.0.40
codegen_flags: <defaults>
</compile_context>

<pallas_src>
import jax
import jax.numpy as jnp
import numpy as np
from jax.experimental import pallas as pl
from jax.experimental.pallas import tpu as pltpu

# joint groupings (as in the PyTorch module)
LEFT_ARM = (11, 12, 13)
LEFT_LEG = (4, 5, 6)
RIGHT_ARM = (14, 15, 16)
RIGHT_LEG = (1, 2, 3)
TRUNK = (0, 7, 8, 9, 10)

DIM_P, DIM_P1, DIM_K, OUT_DIM = 16, 51, 30, 256
N_PARTS, N_JOINTS = 5, 17
FEAT = DIM_K * N_JOINTS          # 510 real features
PADP = 128                       # padded per-part lane stride
FPAD = N_PARTS * PADP            # 640 padded features
H1 = N_PARTS * DIM_P             # 80 hidden units of the first part-MLP layer
EPS = 1e-6

PAIRS = [(i, j) for i in range(N_PARTS) for j in range(i + 1, N_PARTS)]
N_PAIRS = len(PAIRS)             # 10 undirected edges
NPP = 16                         # padded pair-lane count
PAIR_IDX = {pair: idx for idx, pair in enumerate(PAIRS)}


# ---------------------------------------------------------------------------
# kernel
# ---------------------------------------------------------------------------
def sparse_graph_kernel(xk_ref, wa_ref, w2_ref, wpair_ref, wout_ref, consts_ref,
                        out_ref):
    f32 = jnp.float32
    cd = wa_ref.dtype                                   # MXU operand dtype
    tn = xk_ref.shape[0]

    xk = xk_ref[...].astype(cd)                         # (tn, 34)

    # keys-encoder + first part-MLP layer fused into a single (34 -> 720) matmul
    ya = jnp.dot(xk, wa_ref[...], preferred_element_type=f32)   # (tn, 720)
    keys_enc = ya[:, :FPAD]                             # (tn, 640) padded layout
    h = jnp.maximum(ya[:, FPAD:FPAD + H1], 0.0)         # (tn, 80)

    # second part-MLP layer (block-diagonal); parts are written to BOTH 64-lane
    # halves of each 128-lane part block, so the graph features can later be
    # placed in the upper half without any lane rotation.
    b2 = consts_ref[0:1, :]
    pe = consts_ref[1:2, :]
    parts = jnp.tanh(
        jnp.dot(h.astype(cd), w2_ref[...], preferred_element_type=f32) + b2
    ) + pe                                              # (tn, 640)

    # all 10 pair logits in one widened matmul: z_p = conv_w.(ps_i + ps_j) + cb
    parts_cd = parts.astype(cd)
    zfull = jnp.dot(parts_cd, wpair_ref[...], preferred_element_type=f32)  # (tn,128)
    z = zfull[:, :NPP] + consts_ref[4:5, :NPP]          # (tn, 16); lanes [0,10) valid
    a = 1.0 / (1.0 + jnp.exp(-z))                       # one wide sigmoid

    # hoisted lane-broadcasts of the adjacency coefficients (each reused twice)
    ab = [jnp.broadcast_to(a[:, p:p + 1], (tn, PADP)) for p in range(N_PAIRS)]
    blk = [parts[:, i * PADP:(i + 1) * PADP] for i in range(N_PARTS)]

    # graph aggregation; diagonal a_ii = 1 cancels the "- ps_i" of relu(A@ps-ps)
    gblocks = []
    for i in range(N_PARTS):
        acc = None
        for j in range(N_PARTS):
            if j == i:
                continue
            t = ab[PAIR_IDX[(min(i, j), max(i, j))]] * blk[j]
            acc = t if acc is None else acc + t
        gblocks.append(jnp.maximum(acc, 0.0))
    G = jnp.concatenate(gblocks, axis=1)                # (tn, 640)

    # assemble: parts stay in lanes [0,51), graph goes to lanes [64,115) of
    # each 128-lane block (hi-mask select), then add the keys encoding.
    hi = consts_ref[5:6, :]
    x = parts + hi * (G - parts) + keys_enc             # (tn, 640); pad lanes == 0

    # LayerNorm statistics over the 510 real lanes (two-pass, unbiased std);
    # the affine (ln_a, ln_b) is folded into W_out / the output bias.
    mask = consts_ref[2:3, :]
    mean = jnp.sum(x, axis=-1, keepdims=True) * (1.0 / FEAT)
    xc = x - mean * mask                                # pad lanes stay 0
    var = jnp.sum(xc * xc, axis=-1, keepdims=True) * (1.0 / (FEAT - 1))
    inv = 1.0 / (jnp.sqrt(var) + EPS)                   # (tn, 1)

    # output projection with folded LayerNorm affine; per-row 1/(std+eps) is
    # applied on the 256-wide output instead of the 640-wide features.
    y = jnp.dot(xc.astype(cd), wout_ref[...], preferred_element_type=f32)  # (tn,256)
    out_ref[...] = (inv * y + consts_ref[3:4, :OUT_DIM]).astype(out_ref.dtype)


# ---------------------------------------------------------------------------
# parameter construction / packing
# ---------------------------------------------------------------------------
def make_params(key):
    ks = jax.random.split(key, 12)
    p = {}
    p['W_limbs'] = jax.random.normal(ks[0], (6, DIM_P), jnp.float32) * 0.3
    p['W_limbs_1'] = jax.random.normal(ks[1], (DIM_P, DIM_P1), jnp.float32) * 0.2
    p['b_limbs_1'] = jax.random.normal(ks[2], (DIM_P1,), jnp.float32) * 0.1
    p['W_trunk'] = jax.random.normal(ks[3], (10, DIM_P), jnp.float32) * 0.3
    p['W_trunk_1'] = jax.random.normal(ks[4], (DIM_P, DIM_P1), jnp.float32) * 0.2
    p['b_trunk_1'] = jax.random.normal(ks[5], (DIM_P1,), jnp.float32) * 0.1
    p['W_keys'] = jax.random.normal(ks[6], (2, DIM_K), jnp.float32) * 0.3
    p['parts_embed'] = jax.random.normal(ks[7], (1, N_PARTS, DIM_P1), jnp.float32)
    p['conv_w'] = jax.random.normal(ks[8], (DIM_P1,), jnp.float32) * 0.1
    p['conv_b'] = jnp.float32(0.05)
    p['ln_a'] = 1.0 + 0.1 * jax.random.normal(ks[9], (FEAT,), jnp.float32)
    p['ln_b'] = 0.1 * jax.random.normal(ks[10], (FEAT,), jnp.float32)
    p['W_out'] = jax.random.normal(ks[11], (FEAT, OUT_DIM), jnp.float32) * 0.05
    return p


def _feature_permutation():
    """torch feature f = part*102 + w  ->  padded lane column (128-stride)."""
    perm = np.empty((FEAT,), np.int32)
    for i in range(N_PARTS):
        for w in range(2 * DIM_P1):
            f = i * 2 * DIM_P1 + w
            if w < DIM_P1:                     # graph half -> upper 64-lane block
                perm[f] = i * PADP + 64 + w
            else:                              # parts half -> lower 64-lane block
                perm[f] = i * PADP + (w - DIM_P1)
    return perm


def build_packed_weights(p, compute_dtype=jnp.bfloat16):
    f32 = jnp.float32

    # first part-MLP layer, block-diagonal over the 5 part groups, with the
    # joint-group gather folded into the rows (x_parts == x_keys[:, row_perm])
    W1 = jnp.zeros((2 * N_JOINTS, H1), f32)
    for i in range(4):
        W1 = W1.at[i * 6:(i + 1) * 6, i * DIM_P:(i + 1) * DIM_P].set(p['W_limbs'])
    W1 = W1.at[24:34, 4 * DIM_P:5 * DIM_P].set(p['W_trunk'])
    joint_order = LEFT_ARM + LEFT_LEG + RIGHT_ARM + RIGHT_LEG + TRUNK
    row_perm = np.array([2 * j + c for j in joint_order for c in (0, 1)], np.int32)
    W1p = jnp.zeros_like(W1).at[row_perm, :].set(W1)

    perm = _feature_permutation()

    # keys encoder (17 x Linear(2,30), shared weight), permuted into padded lanes
    Wk = jnp.zeros((2 * N_JOINTS, FEAT), f32)
    for j in range(N_JOINTS):
        Wk = Wk.at[2 * j:2 * j + 2, DIM_K * j:DIM_K * (j + 1)].set(p['W_keys'])
    Wk_pad = jnp.zeros((2 * N_JOINTS, FPAD), f32).at[:, perm].set(Wk)
    WA = jnp.concatenate([Wk_pad, W1p], axis=1)                 # (34, 720)

    # second part-MLP layer: parts duplicated into both 64-lane halves of each
    # 128-lane block so the graph features can be assembled with a mask only.
    W2p = jnp.zeros((H1, FPAD), f32)
    consts = jnp.zeros((6, FPAD), f32)   # rows: b2, pe, real-mask, bout, conv_b, hi-mask
    for i in range(N_PARTS):
        w2 = p['W_limbs_1'] if i < 4 else p['W_trunk_1']
        b2 = p['b_limbs_1'] if i < 4 else p['b_trunk_1']
        c0 = i * PADP
        for off in (0, 64):
            W2p = W2p.at[i * DIM_P:(i + 1) * DIM_P,
                         c0 + off:c0 + off + DIM_P1].set(w2)
            consts = consts.at[0, c0 + off:c0 + off + DIM_P1].set(b2)
            consts = consts.at[1, c0 + off:c0 + off + DIM_P1].set(
                p['parts_embed'][0, i])
        consts = consts.at[5, c0 + 64:c0 + PADP].set(1.0)       # hi-half mask

    # pairwise-incidence conv weights: column p gives conv_w.(ps_i + ps_j);
    # rows taken only from the lower half so each part is counted once.
    Wpair = jnp.zeros((FPAD, PADP), f32)
    for pidx, (i, j) in enumerate(PAIRS):
        Wpair = Wpair.at[i * PADP:i * PADP + DIM_P1, pidx].set(p['conv_w'])
        Wpair = Wpair.at[j * PADP:j * PADP + DIM_P1, pidx].set(p['conv_w'])
    consts = consts.at[4, 0:NPP].set(p['conv_b'])

    # LayerNorm: real-feature lane mask; affine folded into the output matmul
    consts = consts.at[2, perm].set(1.0)
    Wout_p = jnp.zeros((FPAD, OUT_DIM), f32).at[perm, :].set(
        p['ln_a'][:, None] * p['W_out'])
    consts = consts.at[3, 0:OUT_DIM].set(p['ln_b'] @ p['W_out'])

    cd = compute_dtype
    return WA.astype(cd), W2p.astype(cd), Wpair.astype(cd), Wout_p.astype(cd), consts


# ---------------------------------------------------------------------------
# wrapper
# ---------------------------------------------------------------------------
def sparse_graph_forward(x, params, tn=512, compute_dtype=jnp.bfloat16):
    bs, T, J, C = x.shape
    assert J == N_JOINTS and C == 2
    N = bs * T

    # keep >=2 grid steps when possible (v7x has 2 TensorCores fed through the
    # single "parallel" grid axis); tile must be a multiple of 8 sublanes.
    if N <= tn:
        tn = max(8, (((N + 1) // 2) + 7) // 8 * 8)
    n_pad = pl.cdiv(N, tn) * tn

    # only the flat joint coordinates are fed to the kernel; the joint-group
    # gather is folded into the packed W1 rows.
    x_keys = x.reshape(N, 2 * N_JOINTS).astype(jnp.float32)
    if n_pad != N:
        x_keys = jnp.pad(x_keys, ((0, n_pad - N), (0, 0)))

    WA, W2p, Wpair, Wout_p, consts = build_packed_weights(params, compute_dtype)

    def full2(arr):
        return pl.BlockSpec(arr.shape, lambda i: (0, 0))

    out = pl.pallas_call(
        sparse_graph_kernel,
        out_shape=jax.ShapeDtypeStruct((n_pad, OUT_DIM), jnp.float32),
        grid=(n_pad // tn,),
        in_specs=[
            pl.BlockSpec((tn, 2 * N_JOINTS), lambda i: (i, 0)),
            full2(WA), full2(W2p), full2(Wpair), full2(Wout_p), full2(consts),
        ],
        out_specs=pl.BlockSpec((tn, OUT_DIM), lambda i: (i, 0)),
        compiler_params=pltpu.CompilerParams(
            dimension_semantics=("parallel",),
            vmem_limit_bytes=32 * 1024 * 1024),
    )(x_keys, WA, W2p, Wpair, Wout_p, consts)
    return out[:N].reshape(bs, T, OUT_DIM)


# ---------------------------------------------------------------------------
# pure-JAX reference (replica of the PyTorch forward) for verification
# ---------------------------------------------------------------------------
def reference_forward(x, p):
    bs, T, _, _ = x.shape

    def limb(keys):
        v = x[:, :, jnp.array(keys), :].reshape(bs, T, -1)
        h = jax.nn.relu(v @ p['W_limbs'])
        return jnp.tanh(h @ p['W_limbs_1'] + p['b_limbs_1'])

    v_tr = x[:, :, jnp.array(TRUNK), :].reshape(bs, T, -1)
    tr = jnp.tanh(jax.nn.relu(v_tr @ p['W_trunk']) @ p['W_trunk_1'] + p['b_trunk_1'])
    parts = jnp.stack([limb(LEFT_ARM), limb(LEFT_LEG), limb(RIGHT_ARM),
                       limb(RIGHT_LEG), tr], axis=2)                    # (bs,T,5,51)
    keys_enc = x @ p['W_keys']                                          # (bs,T,17,30)

    ps = parts.reshape(-1, N_PARTS, DIM_P1) + p['parts_embed']
    A = jnp.einsum('nijc,c->nij',
                   ps[:, :, None, :] + ps[:, None, :, :], p['conv_w']) + p['conv_b']
    A = jax.nn.sigmoid(A)
    A = jnp.where(jnp.eye(N_PARTS, dtype=bool)[None], 1.0, A)
    graph = jax.nn.relu(jnp.einsum('nij,njc->nic', A, ps) - ps)
    out = jnp.concatenate([graph, ps], axis=-1).reshape(bs, T, FEAT)
    out = out + keys_enc.reshape(bs, T, FEAT)
    mean = out.mean(-1, keepdims=True)
    std = jnp.sqrt(jnp.sum((out - mean) ** 2, -1, keepdims=True) / (FEAT - 1))
    out = p['ln_a'] * (out - mean) / (std + EPS) + p['ln_b']
    return out @ p['W_out']


if __name__ == "__main__":
    key = jax.random.PRNGKey(0)
    k_param, k_x = jax.random.split(key)
    params = make_params(k_param)

    bs, T = 4, 128                       # N = 512 rows -> 2 grid steps
    x = jax.random.normal(k_x, (bs, T, N_JOINTS, 2), jnp.float32)

    ref = jax.block_until_ready(reference_forward(x, params))

    # default path: bf16 MXU operands, f32 accumulation / statistics
    out_bf = jax.block_until_ready(sparse_graph_forward(x, params))
    assert out_bf.shape == (bs, T, OUT_DIM), out_bf.shape
    err_bf = float(jnp.max(jnp.abs(out_bf - ref)))
    assert err_bf < 1.5e-1, f"bf16 mismatch vs reference: {err_bf}"

    # full-f32 path for a tight numerical check
    out32 = jax.block_until_ready(
        sparse_graph_forward(x, params, compute_dtype=jnp.float32))
    err32 = float(jnp.max(jnp.abs(out32 - ref)))
    assert err32 < 2e-3, f"f32 mismatch vs reference: {err32}"

    print("KERNEL_OK")
</pallas_src>

<mosaic_0001>
module attributes {stable_mosaic.version = 11 : i64} {
  func.func @sparse_graph_kernel(%arg0: i32, %arg1: memref<256x34xf32, #tpu.memory_space<vmem>>, %arg2: memref<34x720xbf16, #tpu.memory_space<vmem>>, %arg3: memref<80x640xbf16, #tpu.memory_space<vmem>>, %arg4: memref<640x128xbf16, #tpu.memory_space<vmem>>, %arg5: memref<640x256xbf16, #tpu.memory_space<vmem>>, %arg6: memref<6x640xf32, #tpu.memory_space<vmem>>, %arg7: memref<256x256xf32, #tpu.memory_space<vmem>>) attributes {dimension_semantics = [#tpu.dimension_semantics<parallel>], iteration_bounds = array<i64: 2>, scalar_prefetch = 0 : i64, scratch_operands = 0 : i64, tpu.core_type = #tpu.core_type<tc>, window_params = [{transform_indices = @transform_0, window_bounds = array<i64: 256, 34>}, {pipeline_mode = #tpu.pipeline_mode<synchronous>, transform_indices = @transform_1, window_bounds = array<i64: 34, 720>}, {pipeline_mode = #tpu.pipeline_mode<synchronous>, transform_indices = @transform_2, window_bounds = array<i64: 80, 640>}, {pipeline_mode = #tpu.pipeline_mode<synchronous>, transform_indices = @transform_3, window_bounds = array<i64: 640, 128>}, {pipeline_mode = #tpu.pipeline_mode<synchronous>, transform_indices = @transform_4, window_bounds = array<i64: 640, 256>}, {pipeline_mode = #tpu.pipeline_mode<synchronous>, transform_indices = @transform_5, window_bounds = array<i64: 6, 640>}, {transform_indices = @transform_6, window_bounds = array<i64: 256, 256>}]} {
    %c0 = arith.constant 0 : index
    %c0_0 = arith.constant 0 : index
    %0 = vector.load %arg1[%c0, %c0_0] : memref<256x34xf32, #tpu.memory_space<vmem>>, vector<256x34xf32>
    %1 = arith.truncf %0 : vector<256x34xf32> to vector<256x34xbf16>
    %c0_1 = arith.constant 0 : index
    %c0_2 = arith.constant 0 : index
    %2 = vector.load %arg2[%c0_1, %c0_2] : memref<34x720xbf16, #tpu.memory_space<vmem>>, vector<34x720xbf16>
    %cst = arith.constant dense<0.000000e+00> : vector<256x720xf32>
    %3 = tpu.matmul %1, %2, %cst {dimension_numbers = #tpu.dot_dimension_numbers<[1], [0], [0], [1], [0, 0, 1, 1], [], []>} : vector<256x34xbf16>, vector<34x720xbf16>, vector<256x720xf32> -> vector<256x720xf32>
    %4 = vector.extract_strided_slice %3 {offsets = [0, 0], sizes = [256, 640], strides = [1, 1]} : vector<256x720xf32> to vector<256x640xf32>
    %5 = vector.extract_strided_slice %3 {offsets = [0, 640], sizes = [256, 80], strides = [1, 1]} : vector<256x720xf32> to vector<256x80xf32>
    %cst_3 = arith.constant 0.000000e+00 : f32
    %6 = vector.broadcast %cst_3 : f32 to vector<256x80xf32>
    %7 = arith.maximumf %5, %6 : vector<256x80xf32>
    %c0_4 = arith.constant 0 : index
    %c0_5 = arith.constant 0 : index
    %8 = vector.load %arg6[%c0_4, %c0_5] : memref<6x640xf32, #tpu.memory_space<vmem>>, vector<1x640xf32>
    %c1 = arith.constant 1 : index
    %c0_6 = arith.constant 0 : index
    %9 = vector.load %arg6[%c1, %c0_6] : memref<6x640xf32, #tpu.memory_space<vmem>>, vector<1x640xf32>
    %10 = arith.truncf %7 : vector<256x80xf32> to vector<256x80xbf16>
    %c0_7 = arith.constant 0 : index
    %c0_8 = arith.constant 0 : index
    %11 = vector.load %arg3[%c0_7, %c0_8] : memref<80x640xbf16, #tpu.memory_space<vmem>>, vector<80x640xbf16>
    %cst_9 = arith.constant dense<0.000000e+00> : vector<256x640xf32>
    %12 = tpu.matmul %10, %11, %cst_9 {dimension_numbers = #tpu.dot_dimension_numbers<[1], [0], [0], [1], [0, 0, 1, 1], [], []>} : vector<256x80xbf16>, vector<80x640xbf16>, vector<256x640xf32> -> vector<256x640xf32>
    %13 = vector.broadcast %8 : vector<1x640xf32> to vector<256x640xf32>
    %14 = arith.addf %12, %13 : vector<256x640xf32>
    %15 = math.tanh %14 : vector<256x640xf32>
    %16 = vector.broadcast %9 : vector<1x640xf32> to vector<256x640xf32>
    %17 = arith.addf %15, %16 : vector<256x640xf32>
    %18 = arith.truncf %17 : vector<256x640xf32> to vector<256x640xbf16>
    %c0_10 = arith.constant 0 : index
    %c0_11 = arith.constant 0 : index
    %19 = vector.load %arg4[%c0_10, %c0_11] : memref<640x128xbf16, #tpu.memory_space<vmem>>, vector<640x128xbf16>
    %cst_12 = arith.constant dense<0.000000e+00> : vector<256x128xf32>
    %20 = tpu.matmul %18, %19, %cst_12 {dimension_numbers = #tpu.dot_dimension_numbers<[1], [0], [0], [1], [0, 0, 1, 1], [], []>} : vector<256x640xbf16>, vector<640x128xbf16>, vector<256x128xf32> -> vector<256x128xf32>
    %21 = vector.extract_strided_slice %20 {offsets = [0, 0], sizes = [256, 16], strides = [1, 1]} : vector<256x128xf32> to vector<256x16xf32>
    %c4 = arith.constant 4 : index
    %c0_13 = arith.constant 0 : index
    %22 = vector.load %arg6[%c4, %c0_13] : memref<6x640xf32, #tpu.memory_space<vmem>>, vector<1x16xf32>
    %23 = vector.broadcast %22 : vector<1x16xf32> to vector<256x16xf32>
    %24 = arith.addf %21, %23 : vector<256x16xf32>
    %cst_14 = arith.constant 0.000000e+00 : f32
    %25 = vector.broadcast %cst_14 : f32 to vector<256x16xf32>
    %26 = arith.subf %25, %24 : vector<256x16xf32>
    %27 = math.exp %26 : vector<256x16xf32>
    %cst_15 = arith.constant 1.000000e+00 : f32
    %28 = vector.broadcast %cst_15 : f32 to vector<256x16xf32>
    %29 = arith.addf %28, %27 : vector<256x16xf32>
    %cst_16 = arith.constant 1.000000e+00 : f32
    %30 = vector.broadcast %cst_16 : f32 to vector<256x16xf32>
    %31 = arith.divf %30, %29 : vector<256x16xf32>
    %32 = vector.extract_strided_slice %31 {offsets = [0, 0], sizes = [256, 1], strides = [1, 1]} : vector<256x16xf32> to vector<256x1xf32>
    %33 = vector.shape_cast %32 : vector<256x1xf32> to vector<256x1xf32>
    %34 = vector.broadcast %33 : vector<256x1xf32> to vector<256x128xf32>
    %35 = vector.extract_strided_slice %31 {offsets = [0, 1], sizes = [256, 1], strides = [1, 1]} : vector<256x16xf32> to vector<256x1xf32>
    %36 = vector.shape_cast %35 : vector<256x1xf32> to vector<256x1xf32>
    %37 = vector.broadcast %36 : vector<256x1xf32> to vector<256x128xf32>
    %38 = vector.extract_strided_slice %31 {offsets = [0, 2], sizes = [256, 1], strides = [1, 1]} : vector<256x16xf32> to vector<256x1xf32>
    %39 = vector.shape_cast %38 : vector<256x1xf32> to vector<256x1xf32>
    %40 = vector.broadcast %39 : vector<256x1xf32> to vector<256x128xf32>
    %41 = vector.extract_strided_slice %31 {offsets = [0, 3], sizes = [256, 1], strides = [1, 1]} : vector<256x16xf32> to vector<256x1xf32>
    %42 = vector.shape_cast %41 : vector<256x1xf32> to vector<256x1xf32>
    %43 = vector.broadcast %42 : vector<256x1xf32> to vector<256x128xf32>
    %44 = vector.extract_strided_slice %31 {offsets = [0, 4], sizes = [256, 1], strides = [1, 1]} : vector<256x16xf32> to vector<256x1xf32>
    %45 = vector.shape_cast %44 : vector<256x1xf32> to vector<256x1xf32>
    %46 = vector.broadcast %45 : vector<256x1xf32> to vector<256x128xf32>
    %47 = vector.extract_strided_slice %31 {offsets = [0, 5], sizes = [256, 1], strides = [1, 1]} : vector<256x16xf32> to vector<256x1xf32>
    %48 = vector.shape_cast %47 : vector<256x1xf32> to vector<256x1xf32>
    %49 = vector.broadcast %48 : vector<256x1xf32> to vector<256x128xf32>
    %50 = vector.extract_strided_slice %31 {offsets = [0, 6], sizes = [256, 1], strides = [1, 1]} : vector<256x16xf32> to vector<256x1xf32>
    %51 = vector.shape_cast %50 : vector<256x1xf32> to vector<256x1xf32>
    %52 = vector.broadcast %51 : vector<256x1xf32> to vector<256x128xf32>
    %53 = vector.extract_strided_slice %31 {offsets = [0, 7], sizes = [256, 1], strides = [1, 1]} : vector<256x16xf32> to vector<256x1xf32>
    %54 = vector.shape_cast %53 : vector<256x1xf32> to vector<256x1xf32>
    %55 = vector.broadcast %54 : vector<256x1xf32> to vector<256x128xf32>
    %56 = vector.extract_strided_slice %31 {offsets = [0, 8], sizes = [256, 1], strides = [1, 1]} : vector<256x16xf32> to vector<256x1xf32>
    %57 = vector.shape_cast %56 : vector<256x1xf32> to vector<256x1xf32>
    %58 = vector.broadcast %57 : vector<256x1xf32> to vector<256x128xf32>
    %59 = vector.extract_strided_slice %31 {offsets = [0, 9], sizes = [256, 1], strides = [1, 1]} : vector<256x16xf32> to vector<256x1xf32>
    %60 = vector.shape_cast %59 : vector<256x1xf32> to vector<256x1xf32>
    %61 = vector.broadcast %60 : vector<256x1xf32> to vector<256x128xf32>
    %62 = vector.extract_strided_slice %17 {offsets = [0, 0], sizes = [256, 128], strides = [1, 1]} : vector<256x640xf32> to vector<256x128xf32>
    %63 = vector.extract_strided_slice %17 {offsets = [0, 128], sizes = [256, 128], strides = [1, 1]} : vector<256x640xf32> to vector<256x128xf32>
    %64 = vector.extract_strided_slice %17 {offsets = [0, 256], sizes = [256, 128], strides = [1, 1]} : vector<256x640xf32> to vector<256x128xf32>
    %65 = vector.extract_strided_slice %17 {offsets = [0, 384], sizes = [256, 128], strides = [1, 1]} : vector<256x640xf32> to vector<256x128xf32>
    %66 = vector.extract_strided_slice %17 {offsets = [0, 512], sizes = [256, 128], strides = [1, 1]} : vector<256x640xf32> to vector<256x128xf32>
    %67 = arith.mulf %34, %63 : vector<256x128xf32>
    %68 = arith.mulf %37, %64 : vector<256x128xf32>
    %69 = arith.addf %67, %68 : vector<256x128xf32>
    %70 = arith.mulf %40, %65 : vector<256x128xf32>
    %71 = arith.addf %69, %70 : vector<256x128xf32>
    %72 = arith.mulf %43, %66 : vector<256x128xf32>
    %73 = arith.addf %71, %72 : vector<256x128xf32>
    %cst_17 = arith.constant 0.000000e+00 : f32
    %74 = vector.broadcast %cst_17 : f32 to vector<256x128xf32>
    %75 = arith.maximumf %73, %74 : vector<256x128xf32>
    %76 = arith.mulf %34, %62 : vector<256x128xf32>
    %77 = arith.mulf %46, %64 : vector<256x128xf32>
    %78 = arith.addf %76, %77 : vector<256x128xf32>
    %79 = arith.mulf %49, %65 : vector<256x128xf32>
    %80 = arith.addf %78, %79 : vector<256x128xf32>
    %81 = arith.mulf %52, %66 : vector<256x128xf32>
    %82 = arith.addf %80, %81 : vector<256x128xf32>
    %cst_18 = arith.constant 0.000000e+00 : f32
    %83 = vector.broadcast %cst_18 : f32 to vector<256x128xf32>
    %84 = arith.maximumf %82, %83 : vector<256x128xf32>
    %85 = arith.mulf %37, %62 : vector<256x128xf32>
    %86 = arith.mulf %46, %63 : vector<256x128xf32>
    %87 = arith.addf %85, %86 : vector<256x128xf32>
    %88 = arith.mulf %55, %65 : vector<256x128xf32>
    %89 = arith.addf %87, %88 : vector<256x128xf32>
    %90 = arith.mulf %58, %66 : vector<256x128xf32>
    %91 = arith.addf %89, %90 : vector<256x128xf32>
    %cst_19 = arith.constant 0.000000e+00 : f32
    %92 = vector.broadcast %cst_19 : f32 to vector<256x128xf32>
    %93 = arith.maximumf %91, %92 : vector<256x128xf32>
    %94 = arith.mulf %40, %62 : vector<256x128xf32>
    %95 = arith.mulf %49, %63 : vector<256x128xf32>
    %96 = arith.addf %94, %95 : vector<256x128xf32>
    %97 = arith.mulf %55, %64 : vector<256x128xf32>
    %98 = arith.addf %96, %97 : vector<256x128xf32>
    %99 = arith.mulf %61, %66 : vector<256x128xf32>
    %100 = arith.addf %98, %99 : vector<256x128xf32>
    %cst_20 = arith.constant 0.000000e+00 : f32
    %101 = vector.broadcast %cst_20 : f32 to vector<256x128xf32>
    %102 = arith.maximumf %100, %101 : vector<256x128xf32>
    %103 = arith.mulf %43, %62 : vector<256x128xf32>
    %104 = arith.mulf %52, %63 : vector<256x128xf32>
    %105 = arith.addf %103, %104 : vector<256x128xf32>
    %106 = arith.mulf %58, %64 : vector<256x128xf32>
    %107 = arith.addf %105, %106 : vector<256x128xf32>
    %108 = arith.mulf %61, %65 : vector<256x128xf32>
    %109 = arith.addf %107, %108 : vector<256x128xf32>
    %cst_21 = arith.constant 0.000000e+00 : f32
    %110 = vector.broadcast %cst_21 : f32 to vector<256x128xf32>
    %111 = arith.maximumf %109, %110 : vector<256x128xf32>
    %112 = tpu.concatenate %75, %84, %93, %102, %111 in 1 : vector<256x128xf32>, vector<256x128xf32>, vector<256x128xf32>, vector<256x128xf32>, vector<256x128xf32> -> vector<256x640xf32>
    %c5 = arith.constant 5 : index
    %c0_22 = arith.constant 0 : index
    %113 = vector.load %arg6[%c5, %c0_22] : memref<6x640xf32, #tpu.memory_space<vmem>>, vector<1x640xf32>
    %114 = arith.subf %112, %17 : vector<256x640xf32>
    %115 = vector.broadcast %113 : vector<1x640xf32> to vector<256x640xf32>
    %116 = arith.mulf %115, %114 : vector<256x640xf32>
    %117 = arith.addf %17, %116 : vector<256x640xf32>
    %118 = arith.addf %117, %4 : vector<256x640xf32>
    %c2 = arith.constant 2 : index
    %c0_23 = arith.constant 0 : index
    %119 = vector.load %arg6[%c2, %c0_23] : memref<6x640xf32, #tpu.memory_space<vmem>>, vector<1x640xf32>
    %cst_24 = arith.constant dense<0.000000e+00> : vector<256xf32>
    %120 = vector.multi_reduction <add>, %118, %cst_24 [1] : vector<256x640xf32> to vector<256xf32>
    %121 = vector.shape_cast %120 : vector<256xf32> to vector<256x1xf32>
    %cst_25 = arith.constant 0.00196078443 : f32
    %122 = vector.broadcast %cst_25 : f32 to vector<256x1xf32>
    %123 = arith.mulf %121, %122 : vector<256x1xf32>
    %124 = vector.broadcast %123 : vector<256x1xf32> to vector<256x640xf32>
    %125 = vector.broadcast %119 : vector<1x640xf32> to vector<256x640xf32>
    %126 = arith.mulf %124, %125 : vector<256x640xf32>
    %127 = arith.subf %118, %126 : vector<256x640xf32>
    %128 = arith.mulf %127, %127 : vector<256x640xf32>
    %cst_26 = arith.constant dense<0.000000e+00> : vector<256xf32>
    %129 = vector.multi_reduction <add>, %128, %cst_26 [1] : vector<256x640xf32> to vector<256xf32>
    %130 = vector.shape_cast %129 : vector<256xf32> to vector<256x1xf32>
    %cst_27 = arith.constant 0.00196463661 : f32
    %131 = vector.broadcast %cst_27 : f32 to vector<256x1xf32>
    %132 = arith.mulf %130, %131 : vector<256x1xf32>
    %133 = math.sqrt %132 : vector<256x1xf32>
    %cst_28 = arith.constant 9.99999997E-7 : f32
    %134 = vector.broadcast %cst_28 : f32 to vector<256x1xf32>
    %135 = arith.addf %133, %134 : vector<256x1xf32>
    %cst_29 = arith.constant 1.000000e+00 : f32
    %136 = vector.broadcast %cst_29 : f32 to vector<256x1xf32>
    %137 = arith.divf %136, %135 : vector<256x1xf32>
    %138 = arith.truncf %127 : vector<256x640xf32> to vector<256x640xbf16>
    %c0_30 = arith.constant 0 : index
    %c0_31 = arith.constant 0 : index
    %139 = vector.load %arg5[%c0_30, %c0_31] : memref<640x256xbf16, #tpu.memory_space<vmem>>, vector<640x256xbf16>
    %cst_32 = arith.constant dense<0.000000e+00> : vector<256x256xf32>
    %140 = tpu.matmul %138, %139, %cst_32 {dimension_numbers = #tpu.dot_dimension_numbers<[1], [0], [0], [1], [0, 0, 1, 1], [], []>} : vector<256x640xbf16>, vector<640x256xbf16>, vector<256x256xf32> -> vector<256x256xf32>
    %141 = vector.broadcast %137 : vector<256x1xf32> to vector<256x256xf32>
    %142 = arith.mulf %141, %140 : vector<256x256xf32>
    %c3 = arith.constant 3 : index
    %c0_33 = arith.constant 0 : index
    %143 = vector.load %arg6[%c3, %c0_33] : memref<6x640xf32, #tpu.memory_space<vmem>>, vector<1x256xf32>
    %144 = vector.broadcast %143 : vector<1x256xf32> to vector<256x256xf32>
    %145 = arith.addf %142, %144 : vector<256x256xf32>
    %c0_34 = arith.constant 0 : index
    %c0_35 = arith.constant 0 : index
    %146 = vector.load %arg7[%c0_34, %c0_35] : memref<256x256xf32, #tpu.memory_space<vmem>>, vector<256x256xf32>
    tpu.vector_store %arg7[%c0_34, %c0_35], %145 {strides = array<i32>} : memref<256x256xf32, #tpu.memory_space<vmem>>, vector<256x256xf32>,
    return
  }
  func.func @transform_0(%arg0: i32) -> (i32, i32) {
    %c0_i32 = arith.constant 0 : i32
    %c0_i32_0 = arith.constant 0 : i32
    return %arg0, %c0_i32 : i32, i32
  }
  func.func @transform_1(%arg0: i32) -> (i32, i32) {
    %c0_i32 = arith.constant 0 : i32
    %c0_i32_0 = arith.constant 0 : i32
    %c0_i32_1 = arith.constant 0 : i32
    return %c0_i32, %c0_i32_0 : i32, i32
  }
  func.func @transform_2(%arg0: i32) -> (i32, i32) {
    %c0_i32 = arith.constant 0 : i32
    %c0_i32_0 = arith.constant 0 : i32
    %c0_i32_1 = arith.constant 0 : i32
    return %c0_i32, %c0_i32_0 : i32, i32
  }
  func.func @transform_3(%arg0: i32) -> (i32, i32) {
    %c0_i32 = arith.constant 0 : i32
    %c0_i32_0 = arith.constant 0 : i32
    %c0_i32_1 = arith.constant 0 : i32
    return %c0_i32, %c0_i32_0 : i32, i32
  }
  func.func @transform_4(%arg0: i32) -> (i32, i32) {
    %c0_i32 = arith.constant 0 : i32
    %c0_i32_0 = arith.constant 0 : i32
    %c0_i32_1 = arith.constant 0 : i32
    return %c0_i32, %c0_i32_0 : i32, i32
  }
  func.func @transform_5(%arg0: i32) -> (i32, i32) {
    %c0_i32 = arith.constant 0 : i32
    %c0_i32_0 = arith.constant 0 : i32
    %c0_i32_1 = arith.constant 0 : i32
    return %c0_i32, %c0_i32_0 : i32, i32
  }
  func.func @transform_6(%arg0: i32) -> (i32, i32) {
    %c0_i32 = arith.constant 0 : i32
    %c0_i32_0 = arith.constant 0 : i32
    return %arg0, %c0_i32 : i32, i32
  }
}

</mosaic_0001>

<llo_original>
// kernel: tpu_custom_call.1
$region0: #{tpu_custom_call.1}
  #allocation0 [shape = 'u32[]', space=smem, size = 0x4, offset = 0x4, fixed_abs, tag = 'smem constant byte address 0x4 - core index']
  #allocation1 [shape = 'u32[144,128]{1,0:T(1,128)}', space=vmem, size = 0x12000, scoped, tag = 'internal scratch']
  %s0 = inlined_call_operand.vmem [shape: f32[512,34], index: 0, kind: input, shape index: {}]
  %s1 = inlined_call_operand.hbm [shape: bf16[34,720], index: 1, kind: input, shape index: {}]
  %s2 = inlined_call_operand.hbm [shape: bf16[80,640], index: 2, kind: input, shape index: {}]
  %s3 = inlined_call_operand.hbm [shape: bf16[640,128], index: 3, kind: input, shape index: {}]
  %s4 = inlined_call_operand.vmem [shape: bf16[640,256], index: 4, kind: input, shape index: {}]
  %s5 = inlined_call_operand.vmem [shape: f32[6,640], index: 5, kind: input, shape index: {}]
  %s6 = inlined_call_operand.hbm [shape: f32[512,256], index: 6, kind: output, shape index: {}]
  %s7 = sld [smem:[#allocation0]]
  $region69: #{tpu_custom_call.1} parent=0
    _
  %s9 = ssub.s32 1, %s7
  %s10 = scalar_select 0, %s9, %s7
  $region1: #{tpu_custom_call.1} parent=0
    #allocation2 [shape = 'u8[61440]{0}', space=vmem, size = 0xf000, scoped, tag = 'input window, operand 1, single buffered']
    #allocation3 [shape = 's32[2]{0}', space=sflag, size = 0x8, scoped, tag = 'scoped memory for tpu_custom_call.1']
    #allocation4 [shape = 's32[2]{0}', space=sflag, size = 0x8, scoped, tag = 'scoped memory for tpu_custom_call.1']
    #allocation5 [shape = 'u8[102400]{0}', space=vmem, size = 0x19000, scoped, tag = 'input window, operand 2, single buffered']
    #allocation6 [shape = 's32[1]{0}', space=sflag, size = 0x4, scoped, tag = 'scoped memory for tpu_custom_call.1']
    #allocation7 [shape = 'u8[163840]{0}', space=vmem, size = 0x28000, scoped, tag = 'input window, operand 3, single buffered']
    #allocation8 [shape = 'u8[524288]{0}', space=vmem, size = 0x80000, scoped, tag = 'output window, operand 0']
    %11 = vsyncpa [#allocation3], 0
    %12 = vsyncpa [#allocation6], 0
    %13 = vsyncpa [#allocation4], 0
    %s14 = scalar_lea.sflag [#allocation4], 1
    %15 = vsyncpa %s14, 0
    loop: start=0, step=1, limit=4
    $region2: #{tpu_custom_call.1} parent=1 // loop_pre_header
      _
    $region3: #{tpu_custom_call.1} parent=1 // loop_header
      %s17 = sphi 0, %s21
      %p18 = scmp.ge.s32.totalorder %s17, 4
      %s27 = sphi 0, %s29
      %s30 = sphi 0, %s27
      %s31 = sphi 0, %s30
      %s47 = sphi 0, %s31
      %s51 = sphi 0, %s51
      %s53 = sphi 0, %s51
      %s54 = sphi 0, %s53
      %s68 = sphi 0, %s54
      %s72 = sphi 0, %s72
      %s74 = sphi 0, %s72
      %s75 = sphi 0, %s74
      %s89 = sphi 0, %s75
      %s93 = sphi 0, %s93
      %s95 = sphi 0, %s93
      %s96 = sphi 0, %s95
      %s110 = sphi 0, %s96
      %s114 = sphi 0, %s114
      %s116 = sphi 0, %s114
      %s117 = sphi 0, %s116
      %s131 = sphi 0, %s117
      %s135 = sphi 0, %s135
      %s137 = sphi 0, %s135
      %s138 = sphi 0, %s137
      %s152 = sphi 0, %s138
      %s158 = sphi 0, %s160
      %s161 = sphi 0, %s158
      %s162 = sphi 0, %s161
      %s178 = sphi 0, %s162
    $region4: #{tpu_custom_call.1} parent=1 // loop_header_branch
      %20 = sbr.rel (%p18) target = $region8
    $region5: #{tpu_custom_call.1} parent=1 // loop_body
      %s22 = ssub.s32 %s17, 1
      %s23 = ssub.s32 %s17, 2
      %s24 = sadd.s32 %s17, 1
      %s25 = ssub.s32 %s17, %s24
      %p26 = scmp.eq.s32.totalorder %s25, 0
      %s28 = sadd.s32 %s27, 1
      %s29 = scalar_select %p26, %s27, %s28
      %p32 = pneg %p26
      %p33 = scmp.eq.s32.totalorder %s17, 1
      %p34 = por %p32, %p33
      %p35 = scmp.ne.s32.totalorder %s27, %s30
      %p36 = scmp.eq.s32.totalorder %s17, 0
      %p37 = por %p35, %p36
      %p38 = scmp.ne.s32.totalorder %s27, %s30
      %p39 = scmp.eq.s32.totalorder %s22, 1
      %p40 = por %p38, %p39
      %p41 = scmp.ne.s32.totalorder %s30, %s31
      %p42 = scmp.eq.s32.totalorder %s22, 0
      %p43 = por %p41, %p42
      %p44 = scmp.ne.s32.totalorder %s30, %s31
      %p45 = scmp.eq.s32.totalorder %s23, 1
      %p46 = por %p44, %p45
      %p48 = scmp.ne.s32.totalorder %s31, %s47
      %p49 = scmp.eq.s32.totalorder %s23, 0
      %p50 = por %p48, %p49
      %s52 = sadd.s32 %s51, 1
      %p55 = scmp.eq.s32.totalorder %s17, 1
      %p56 = scmp.ne.s32.totalorder %s51, %s53
      %p57 = scmp.eq.s32.totalorder %s17, 0
      %p58 = por %p56, %p57
      %p59 = scmp.ne.s32.totalorder %s51, %s53
      %p60 = scmp.eq.s32.totalorder %s22, 1
      %p61 = por %p59, %p60
      %p62 = scmp.ne.s32.totalorder %s53, %s54
      %p63 = scmp.eq.s32.totalorder %s22, 0
      %p64 = por %p62, %p63
      %p65 = scmp.ne.s32.totalorder %s53, %s54
      %p66 = scmp.eq.s32.totalorder %s23, 1
      %p67 = por %p65, %p66
      %p69 = scmp.ne.s32.totalorder %s54, %s68
      %p70 = scmp.eq.s32.totalorder %s23, 0
      %p71 = por %p69, %p70
      %s73 = sadd.s32 %s72, 1
      %p76 = scmp.eq.s32.totalorder %s17, 1
      %p77 = scmp.ne.s32.totalorder %s72, %s74
      %p78 = scmp.eq.s32.totalorder %s17, 0
      %p79 = por %p77, %p78
      %p80 = scmp.ne.s32.totalorder %s72, %s74
      %p81 = scmp.eq.s32.totalorder %s22, 1
      %p82 = por %p80, %p81
      %p83 = scmp.ne.s32.totalorder %s74, %s75
      %p84 = scmp.eq.s32.totalorder %s22, 0
      %p85 = por %p83, %p84
      %p86 = scmp.ne.s32.totalorder %s74, %s75
      %p87 = scmp.eq.s32.totalorder %s23, 1
      %p88 = por %p86, %p87
      %p90 = scmp.ne.s32.totalorder %s75, %s89
      %p91 = scmp.eq.s32.totalorder %s23, 0
      %p92 = por %p90, %p91
      %s94 = sadd.s32 %s93, 1
      %p97 = scmp.eq.s32.totalorder %s17, 1
      %p98 = scmp.ne.s32.totalorder %s93, %s95
      %p99 = scmp.eq.s32.totalorder %s17, 0
      %p100 = por %p98, %p99
      %p101 = scmp.ne.s32.totalorder %s93, %s95
      %p102 = scmp.eq.s32.totalorder %s22, 1
      %p103 = por %p101, %p102
      %p104 = scmp.ne.s32.totalorder %s95, %s96
      %p105 = scmp.eq.s32.totalorder %s22, 0
      %p106 = por %p104, %p105
      %p107 = scmp.ne.s32.totalorder %s95, %s96
      %p108 = scmp.eq.s32.totalorder %s23, 1
      %p109 = por %p107, %p108
      %p111 = scmp.ne.s32.totalorder %s96, %s110
      %p112 = scmp.eq.s32.totalorder %s23, 0
      %p113 = por %p111, %p112
      %s115 = sadd.s32 %s114, 1
      %p118 = scmp.eq.s32.totalorder %s17, 1
      %p119 = scmp.ne.s32.totalorder %s114, %s116
      %p120 = scmp.eq.s32.totalorder %s17, 0
      %p121 = por %p119, %p120
      %p122 = scmp.ne.s32.totalorder %s114, %s116
      %p123 = scmp.eq.s32.totalorder %s22, 1
      %p124 = por %p122, %p123
      %p125 = scmp.ne.s32.totalorder %s116, %s117
      %p126 = scmp.eq.s32.totalorder %s22, 0
      %p127 = por %p125, %p126
      %p128 = scmp.ne.s32.totalorder %s116, %s117
      %p129 = scmp.eq.s32.totalorder %s23, 1
      %p130 = por %p128, %p129
      %p132 = scmp.ne.s32.totalorder %s117, %s131
      %p133 = scmp.eq.s32.totalorder %s23, 0
      %p134 = por %p132, %p133
      %s136 = sadd.s32 %s135, 1
      %p139 = scmp.eq.s32.totalorder %s17, 1
      %p140 = scmp.ne.s32.totalorder %s135, %s137
      %p141 = scmp.eq.s32.totalorder %s17, 0
      %p142 = por %p140, %p141
      %p143 = scmp.ne.s32.totalorder %s135, %s137
      %p144 = scmp.eq.s32.totalorder %s22, 1
      %p145 = por %p143, %p144
      %p146 = scmp.ne.s32.totalorder %s137, %s138
      %p147 = scmp.eq.s32.totalorder %s22, 0
      %p148 = por %p146, %p147
      %p149 = scmp.ne.s32.totalorder %s137, %s138
      %p150 = scmp.eq.s32.totalorder %s23, 1
      %p151 = por %p149, %p150
      %p153 = scmp.ne.s32.totalorder %s138, %s152
      %p154 = scmp.eq.s32.totalorder %s23, 0
      %p155 = por %p153, %p154
      %s156 = ssub.s32 %s17, %s24
      %p157 = scmp.eq.s32.totalorder %s156, 0
      %s159 = sadd.s32 %s158, 1
      %s160 = scalar_select %p157, %s158, %s159
      %p163 = pneg %p157
      %p164 = scmp.eq.s32.totalorder %s17, 1
      %p165 = por %p163, %p164
      %p166 = scmp.ne.s32.totalorder %s158, %s161
      %p167 = scmp.eq.s32.totalorder %s17, 0
      %p168 = por %p166, %p167
      %p169 = scmp.ne.s32.totalorder %s158, %s161
      %p170 = scmp.eq.s32.totalorder %s22, 1
      %p171 = por %p169, %p170
      %p172 = scmp.ne.s32.totalorder %s161, %s162
      %p173 = scmp.eq.s32.totalorder %s22, 0
      %p174 = por %p172, %p173
      %p175 = scmp.ne.s32.totalorder %s161, %s162
      %p176 = scmp.eq.s32.totalorder %s23, 1
      %p177 = por %p175, %p176
      %p179 = scmp.ne.s32.totalorder %s162, %s178
      %p180 = scmp.eq.s32.totalorder %s23, 0
      %p181 = por %p179, %p180
      %p182 = scmp.le.s32.totalorder 1, %s17
      %p183 = scmp.lt.s32.totalorder %s17, 3
      %p184 = pnand %p182, %p183
      %p185 = pneg %p184
      // Predicated region
      $region9: #{tpu_custom_call.1} parent=5 // pred_check
        _
      $region10: #{tpu_custom_call.1} parent=5 // pred_check_branch
        %187 = sbr.rel (%p184) target = $region12
      $region11: #{tpu_custom_call.1} parent=5 // pred_region
        %s188 = ssub.s32 %s17, 1
        // Predicated region
        $region13: #{tpu_custom_call.1} parent=11 // pred_check
          %p189 = pneg %p64
        $region14: #{tpu_custom_call.1} parent=11 // pred_check_branch
          %191 = sbr.rel (%p189) target = $region16
        $region15: #{tpu_custom_call.1} parent=11 // pred_region
          %s193 = ssub.s32 1920, 1920
          %194 = vsyncadd [#allocation3], %s193
          %s195 = sshll.u32 [#allocation2], 4
          %s196 = int_to_ptr.vmem [resolvable:$true] %s195
          %201 = dma.hbm_to_vmem [thread:$0]  %s1, 1920, %s196, [#allocation3], 384, 384, 24
        $region16: #{tpu_custom_call.1} parent=11 // pred_fallthru
          _
        // Predicated region
        $region17: #{tpu_custom_call.1} parent=11 // pred_check
          %p202 = pneg %p85
        $region18: #{tpu_custom_call.1} parent=11 // pred_check_branch
          %204 = sbr.rel (%p202) target = $region20
        $region19: #{tpu_custom_call.1} parent=11 // pred_region
          %s206 = ssub.s32 3200, 3200
          %207 = vsyncadd [#allocation6], %s206
          %s208 = sshll.u32 [#allocation5], 4
          %s209 = int_to_ptr.vmem [resolvable:$true] %s208
          %214 = dma.hbm_to_vmem [thread:$0]  %s2, 3200, %s209, [#allocation6], 320, 320, 20
        $region20: #{tpu_custom_call.1} parent=11 // pred_fallthru
          _
        // Predicated region
        $region21: #{tpu_custom_call.1} parent=11 // pred_check
          %p215 = pneg %p106
        $region22: #{tpu_custom_call.1} parent=11 // pred_check_branch
          %217 = sbr.rel (%p215) target = $region24
        $region23: #{tpu_custom_call.1} parent=11 // pred_region
          %s219 = ssub.s32 5120, 5120
          %220 = vsyncadd [#allocation6], %s219
          %s221 = sshll.u32 [#allocation7], 4
          %s222 = int_to_ptr.vmem [resolvable:$true] %s221
          %227 = dma.hbm_to_vmem [thread:$0]  %s3, 5120, %s222, [#allocation6], 64, 64, 4
        $region24: #{tpu_custom_call.1} parent=11 // pred_fallthru
          _
        // Predicated region
        $region25: #{tpu_custom_call.1} parent=11 // pred_check
          %p228 = pneg %p127
        $region26: #{tpu_custom_call.1} parent=11 // pred_check_branch
          %230 = sbr.rel (%p228) target = $region28
        $region27: #{tpu_custom_call.1} parent=11 // pred_region
          _
        $region28: #{tpu_custom_call.1} parent=11 // pred_fallthru
          _
        // Predicated region
        $region29: #{tpu_custom_call.1} parent=11 // pred_check
          %p231 = pneg %p148
        $region30: #{tpu_custom_call.1} parent=11 // pred_check_branch
          %233 = sbr.rel (%p231) target = $region32
        $region31: #{tpu_custom_call.1} parent=11 // pred_region
          _
        $region32: #{tpu_custom_call.1} parent=11 // pred_fallthru
          _
      $region12: #{tpu_custom_call.1} parent=5 // pred_fallthru
        _
      %p234 = scmp.lt.s32.totalorder %s17, 2
      // Predicated region
      $region33: #{tpu_custom_call.1} parent=5 // pred_check
        %p235 = pneg %p234
      $region34: #{tpu_custom_call.1} parent=5 // pred_check_branch
        %237 = sbr.rel (%p235) target = $region36
      $region35: #{tpu_custom_call.1} parent=5 // pred_region
        // Predicated region
        $region37: #{tpu_custom_call.1} parent=35 // pred_check
          %p238 = pneg %p37
        $region38: #{tpu_custom_call.1} parent=35 // pred_check_branch
          %240 = sbr.rel (%p238) target = $region40
        $region39: #{tpu_custom_call.1} parent=35 // pred_region
          %s241 = smul.u32 32, %s17
          %p242 = scmp.lt.s32.totalorder %s241, 63
          %s243 = scalar_select %p242, %s241, 63
          %s244 = smul.addr %s243, 8
          %s245 = scalar_lea.vmem %s0, %s244
          %s246 = smul.u32 32, %s17
        $region40: #{tpu_custom_call.1} parent=35 // pred_fallthru
          _
      $region36: #{tpu_custom_call.1} parent=5 // pred_fallthru
        _
      %p247 = scmp.le.s32.totalorder 1, %s17
      %p248 = scmp.lt.s32.totalorder %s17, 3
      %p249 = pnand %p247, %p248
      %p250 = pneg %p249
      // Predicated region
      $region41: #{tpu_custom_call.1} parent=5 // pred_check
        _
      $region42: #{tpu_custom_call.1} parent=5 // pred_check_branch
        %252 = sbr.rel (%p249) target = $region44
      $region43: #{tpu_custom_call.1} parent=5 // pred_region
        %s253 = ssub.s32 %s17, 1
        // Predicated region
        $region45: #{tpu_custom_call.1} parent=43 // pred_check
          %p254 = pneg %p64
        $region46: #{tpu_custom_call.1} parent=43 // pred_check_branch
          %256 = sbr.rel (%p254) target = $region48
        $region47: #{tpu_custom_call.1} parent=43 // pred_region
          %257 = dma.done [#allocation3], 1920
        $region48: #{tpu_custom_call.1} parent=43 // pred_fallthru
          _
        // Predicated region
        $region49: #{tpu_custom_call.1} parent=43 // pred_check
          %p258 = pneg %p85
        $region50: #{tpu_custom_call.1} parent=43 // pred_check_branch
          %260 = sbr.rel (%p258) target = $region52
        $region51: #{tpu_custom_call.1} parent=43 // pred_region
          %261 = dma.done [#allocation6], 3200
        $region52: #{tpu_custom_call.1} parent=43 // pred_fallthru
          _
        // Predicated region
        $region53: #{tpu_custom_call.1} parent=43 // pred_check
          %p262 = pneg %p106
        $region54: #{tpu_custom_call.1} parent=43 // pred_check_branch
          %264 = sbr.rel (%p262) target = $region56
        $region55: #{tpu_custom_call.1} parent=43 // pred_region
          %265 = dma.done [#allocation6], 5120
        $region56: #{tpu_custom_call.1} parent=43 // pred_fallthru
          _
        %s266 = smul.u32 32, %s22
        %p267 = scmp.lt.s32.totalorder %s266, 63
        %s268 = scalar_select %p267, %s266, 63
        %s269 = smul.addr %s268, 8
        %s270 = scalar_lea.vmem %s0, %s269
        %p271 = pneg %p43
        %p272 = pneg %p40
        %p273 = pneg %p64
        %p274 = pneg %p61
        %p275 = pneg %p85
        %p276 = pneg %p82
        %p277 = pneg %p106
        %p278 = pneg %p103
        %p279 = pneg %p127
        %p280 = pneg %p124
        %p281 = pneg %p148
        %p282 = pneg %p145
        %p283 = pneg %p174
        %p284 = pneg %p171
        %s285 = sand.u32 %s161, 1
        %s286 = scalar_lea.sflag [#allocation4], %s285
        %s287 = sand.u32 %s161, 1
        %s288 = smul.addr %s287, 512
        %s289 = scalar_lea.vmem [#allocation8], %s288
        %s290 = smul.u32 32, %s22
        %p291 = scmp.lt.s32.totalorder %s290, 63
        %s292 = scalar_select %p291, %s290, 63
        %s293 = smul.addr %s292, 8
        %s294 = scalar_lea.vmem %s0, %s293
        %s295 = smul.u32 32, %s22
        %s296 = smul.u32 32, %s22
        %v298 = vld [vmem:[%s294] sm:$0xff]
        %v299 = vld [vmem:[%s294 + $0x8] sm:$0xff]
        %v300 = vld [vmem:[%s294 + $0x10] sm:$0xff]
        %v301 = vld [vmem:[%s294 + $0x18] sm:$0xff]
        %v302 = vld [vmem:[%s294 + $0x20] sm:$0xff]
        %v303 = vld [vmem:[%s294 + $0x28] sm:$0xff]
        %v304 = vld [vmem:[%s294 + $0x30] sm:$0xff]
        %v305 = vld [vmem:[%s294 + $0x38] sm:$0xff]
        %v306 = vld [vmem:[%s294 + $0x40] sm:$0xff]
        %v307 = vld [vmem:[%s294 + $0x48] sm:$0xff]
        %v308 = vld [vmem:[%s294 + $0x50] sm:$0xff]
        %v309 = vld [vmem:[%s294 + $0x58] sm:$0xff]
        %v310 = vld [vmem:[%s294 + $0x60] sm:$0xff]
        %v311 = vld [vmem:[%s294 + $0x68] sm:$0xff]
        %v312 = vld [vmem:[%s294 + $0x70] sm:$0xff]
        %v313 = vld [vmem:[%s294 + $0x78] sm:$0xff]
        %v314 = vld [vmem:[%s294 + $0x80] sm:$0xff]
        %v315 = vld [vmem:[%s294 + $0x88] sm:$0xff]
        %v316 = vld [vmem:[%s294 + $0x90] sm:$0xff]
        %v317 = vld [vmem:[%s294 + $0x98] sm:$0xff]
        %v318 = vld [vmem:[%s294 + $0xa0] sm:$0xff]
        %v319 = vld [vmem:[%s294 + $0xa8] sm:$0xff]
        %v320 = vld [vmem:[%s294 + $0xb0] sm:$0xff]
        %v321 = vld [vmem:[%s294 + $0xb8] sm:$0xff]
        %v322 = vld [vmem:[%s294 + $0xc0] sm:$0xff]
        %v323 = vld [vmem:[%s294 + $0xc8] sm:$0xff]
        %v324 = vld [vmem:[%s294 + $0xd0] sm:$0xff]
        %v325 = vld [vmem:[%s294 + $0xd8] sm:$0xff]
        %v326 = vld [vmem:[%s294 + $0xe0] sm:$0xff]
        %v327 = vld [vmem:[%s294 + $0xe8] sm:$0xff]
        %v328 = vld [vmem:[%s294 + $0xf0] sm:$0xff]
        %v329 = vld [vmem:[%s294 + $0xf8] sm:$0xff]
        %v330 = vpack.c.bf16 %v299, %v298
        %v331 = vpack.c.bf16 %v301, %v300
        %v332 = vpack.c.bf16 %v303, %v302
        %v333 = vpack.c.bf16 %v305, %v304
        %v334 = vpack.c.bf16 %v307, %v306
        %v335 = vpack.c.bf16 %v309, %v308
        %v336 = vpack.c.bf16 %v311, %v310
        %v337 = vpack.c.bf16 %v313, %v312
        %v338 = vpack.c.bf16 %v315, %v314
        %v339 = vpack.c.bf16 %v317, %v316
        %v340 = vpack.c.bf16 %v319, %v318
        %v341 = vpack.c.bf16 %v321, %v320
        %v342 = vpack.c.bf16 %v323, %v322
        %v343 = vpack.c.bf16 %v325, %v324
        %v344 = vpack.c.bf16 %v327, %v326
        %v345 = vpack.c.bf16 %v329, %v328
        %v346 = vld [vmem:[#allocation2] sm:$0xff]
        %v347 = vld [vmem:[#allocation2 + $0x8] sm:$0xff]
        %v348 = vld [vmem:[#allocation2 + $0x10] sm:$0xff]
        %v349 = vld [vmem:[#allocation2 + $0x18] sm:$0xff]
        %v350 = vld [vmem:[#allocation2 + $0x20] sm:$0xff]
        %v351 = vld [vmem:[#allocation2 + $0x28] sm:$0xff]
        %v352 = vld [vmem:[#allocation2 + $0x30] sm:$0xff]
        %v353 = vld [vmem:[#allocation2 + $0x38] sm:$0xff]
        %v354 = vld [vmem:[#allocation2 + $0x40] sm:$0xff]
        %v355 = vld [vmem:[#allocation2 + $0x48] sm:$0xff]
        %v356 = vld [vmem:[#allocation2 + $0x50] sm:$0xff]
        %v357 = vld [vmem:[#allocation2 + $0x58] sm:$0xff]
        %v358 = vld [vmem:[#allocation2 + $0x60] sm:$0x11]
        %v359 = vld [vmem:[#allocation2 + $0x68] sm:$0x11]
        %v360 = vld [vmem:[#allocation2 + $0x70] sm:$0x11]
        %v376 = vunpack.c.l.b16 %v346
        %v377 = vunpack.c.h.b16 %v346
        %v378 = vunpack.c.l.b16 %v347
        %v379 = vunpack.c.h.b16 %v347
        %v380 = vunpack.c.l.b16 %v348
        %v381 = vunpack.c.h.b16 %v348
        %v382 = vunpack.c.l.b16 %v349
        %v383 = vunpack.c.h.b16 %v349
        %v384 = vunpack.c.l.b16 %v350
        %v385 = vunpack.c.h.b16 %v350
        %v386 = vunpack.c.l.b16 %v351
        %v387 = vunpack.c.h.b16 %v351
        %v388 = vunpack.c.l.b16 %v352
        %v389 = vunpack.c.h.b16 %v352
        %v390 = vunpack.c.l.b16 %v353
        %v391 = vunpack.c.h.b16 %v353
        %v392 = vunpack.c.l.b16 %v354
        %v393 = vunpack.c.h.b16 %v354
        %v394 = vunpack.c.l.b16 %v355
        %v395 = vunpack.c.h.b16 %v355
        %v396 = vunpack.c.l.b16 %v356
        %v397 = vunpack.c.h.b16 %v356
        %v398 = vunpack.c.l.b16 %v357
        %v399 = vunpack.c.h.b16 %v357
        %v400 = vunpack.c.l.b16 %v358
        %v401 = vunpack.c.h.b16 %v358
        %v402 = vunpack.c.l.b16 %v359
        %v403 = vunpack.c.h.b16 %v359
        %v404 = vunpack.c.l.b16 %v360
        %v405 = vunpack.c.h.b16 %v360
        %v406 = vpack.c.b16 %v382, %v376
        %v407 = vpack.c.b16 %v383, %v377
        %v408 = vpack.c.b16 %v384, %v378
        %v409 = vpack.c.b16 %v385, %v379
        %v410 = vpack.c.b16 %v386, %v380
        %v411 = vpack.c.b16 %v387, %v381
        %v412 = vpack.c.b16 %v394, %v388
        %v413 = vpack.c.b16 %v395, %v389
        %v414 = vpack.c.b16 %v396, %v390
        %v415 = vpack.c.b16 %v397, %v391
        %v416 = vpack.c.b16 %v398, %v392
        %v417 = vpack.c.b16 %v399, %v393
        %v418 = vpack.c.b16 %v400, %v400
        %v419 = vpack.c.b16 %v401, %v401
        %v420 = vpack.c.b16 %v402, %v402
        %v421 = vpack.c.b16 %v403, %v403
        %v422 = vpack.c.b16 %v404, %v404
        %v423 = vpack.c.b16 %v405, %v405
        %vm436 = vcmask 277504
        %v438 = vsel %vm436, %v330, 0
        %v441 = vsel %vm436, %v331, 0
        %v444 = vsel %vm436, %v332, 0
        %v447 = vsel %vm436, %v333, 0
        %v450 = vsel %vm436, %v334, 0
        %v453 = vsel %vm436, %v335, 0
        %v456 = vsel %vm436, %v336, 0
        %v459 = vsel %vm436, %v337, 0
        %v462 = vsel %vm436, %v338, 0
        %v465 = vsel %vm436, %v339, 0
        %v468 = vsel %vm436, %v340, 0
        %v471 = vsel %vm436, %v341, 0
        %v474 = vsel %vm436, %v342, 0
        %v477 = vsel %vm436, %v343, 0
        %v480 = vsel %vm436, %v344, 0
        %v483 = vsel %vm436, %v345, 0
        %vm485 = vcmask 1040384
        %v487 = vsel %vm485, %v418, 0
        %v490 = vsel %vm485, %v419, 0
        %v493 = vsel %vm485, %v420, 0
        %v496 = vsel %vm485, %v421, 0
        %v499 = vsel %vm485, %v422, 0
        %v502 = vsel %vm485, %v423, 0
        %504 = vmatprep.subr.bf16.mxu0 %v407
        %505 = vmatpush1.bf16.msra.mxu0 %v406
        %506 = vmatprep.subr.bf16.mxu0 %v413
        %507 = vmatpush1.bf16.msra.mxu0 %v412
        %508 = vmatprep.subr.bf16.mxu0 %v490
        %509 = vmatpush1.bf16.msra.mxu0 %v487
        %510 = vmatprep.subr.bf16.mxu0 0
        %511 = vmatpush1.bf16.msra.mxu0 0
        %512 = vmatprep.subr.bf16.mxu0 0
        %513 = vmatpush1.bf16.msra.mxu0 0
        %514 = vmatprep.subr.bf16.mxu0 0
        %515 = vmatpush1.bf16.msra.mxu0 0
        %516 = vmatprep.subr.bf16.mxu0 0
        %517 = vmatpush1.bf16.msra.mxu0 0
        %518 = vmatprep.subr.bf16.mxu0 0
        %519 = vmatpush1.bf16.msra.mxu0 0
        %520 = vmatprep.subr.bf16.mxu0 0
        %521 = vmatpush1.bf16.msra.mxu0 0
        %522 = vmatprep.subr.bf16.mxu0 0
        %523 = vmatpush1.bf16.msra.mxu0 0
        %524 = vmatprep.subr.bf16.mxu0 0
        %525 = vmatpush1.bf16.msra.mxu0 0
        %526 = vmatprep.subr.bf16.mxu0 0
        %527 = vmatpush1.bf16.msra.mxu0 0
        %528 = vmatprep.subr.bf16.mxu0 0
        %529 = vmatpush1.bf16.msra.mxu0 0
        %530 = vmatprep.subr.bf16.mxu0 0
        %531 = vmatpush1.bf16.msra.mxu0 0
        %532 = vmatprep.subr.bf16.mxu0 0
        %533 = vmatpush1.bf16.msra.mxu0 0
        %534 = vmatprep.subr.bf16.mxu0 0
        %535 = vmatpush1.bf16.msra.mxu0 0
        %536 = vmatprep.mubr.bf16.mxu0 0
        %537 = vmatmul.mubr.bf16.gmra.mrb[0].mxu0 %v438
        %v538 = vpop.f32.mrb[0].mxu0
        %v539 = vadd.f32 0.0, %v538
        %v540 = vpop.f32.mrb[0].mxu0
        %v541 = vadd.f32 0.0, %v540
        %v542 = vpop.f32.mrb[0].mxu0
        %v543 = vadd.f32 0.0, %v542
        %v544 = vpop.f32.mrb[0].mxu0
        %v545 = vadd.f32 0.0, %v544
        %546 = vmatprep.mubr.bf16.mxu0 0
        %547 = vmatmul.mubr.bf16.gmra.mrb[0].mxu0 %v441
        %v548 = vpop.f32.mrb[0].mxu0
        %v549 = vadd.f32 0.0, %v548
        %v550 = vpop.f32.mrb[0].mxu0
        %v551 = vadd.f32 0.0, %v550
        %v552 = vpop.f32.mrb[0].mxu0
        %v553 = vadd.f32 0.0, %v552
        %v554 = vpop.f32.mrb[0].mxu0
        %v555 = vadd.f32 0.0, %v554
        %556 = vmatprep.mubr.bf16.mxu0 0
        %557 = vmatmul.mubr.bf16.gmra.mrb[0].mxu0 %v444
        %v558 = vpop.f32.mrb[0].mxu0
        %v559 = vadd.f32 0.0, %v558
        %v560 = vpop.f32.mrb[0].mxu0
        %v561 = vadd.f32 0.0, %v560
        %v562 = vpop.f32.mrb[0].mxu0
        %v563 = vadd.f32 0.0, %v562
        %v564 = vpop.f32.mrb[0].mxu0
        %v565 = vadd.f32 0.0, %v564
        %566 = vmatprep.mubr.bf16.mxu0 0
        %567 = vmatmul.mubr.bf16.gmra.mrb[0].mxu0 %v447
        %v568 = vpop.f32.mrb[0].mxu0
        %v569 = vadd.f32 0.0, %v568
        %v570 = vpop.f32.mrb[0].mxu0
        %v571 = vadd.f32 0.0, %v570
        %v572 = vpop.f32.mrb[0].mxu0
        %v573 = vadd.f32 0.0, %v572
        %v574 = vpop.f32.mrb[0].mxu0
        %v575 = vadd.f32 0.0, %v574
        %576 = vmatprep.mubr.bf16.mxu0 0
        %577 = vmatmul.mubr.bf16.gmra.mrb[0].mxu0 %v450
        %v578 = vpop.f32.mrb[0].mxu0
        %v579 = vadd.f32 0.0, %v578
        %v580 = vpop.f32.mrb[0].mxu0
        %v581 = vadd.f32 0.0, %v580
        %v582 = vpop.f32.mrb[0].mxu0
        %v583 = vadd.f32 0.0, %v582
        %v584 = vpop.f32.mrb[0].mxu0
        %v585 = vadd.f32 0.0, %v584
        %586 = vmatprep.mubr.bf16.mxu0 0
        %587 = vmatmul.mubr.bf16.gmra.mrb[0].mxu0 %v453
        %v588 = vpop.f32.mrb[0].mxu0
        %v589 = vadd.f32 0.0, %v588
        %v590 = vpop.f32.mrb[0].mxu0
        %v591 = vadd.f32 0.0, %v590
        %v592 = vpop.f32.mrb[0].mxu0
        %v593 = vadd.f32 0.0, %v592
        %v594 = vpop.f32.mrb[0].mxu0
        %v595 = vadd.f32 0.0, %v594
        %596 = vmatprep.mubr.bf16.mxu0 0
        %597 = vmatmul.mubr.bf16.gmra.mrb[0].mxu0 %v456
        %v598 = vpop.f32.mrb[0].mxu0
        %v599 = vadd.f32 0.0, %v598
        %v600 = vpop.f32.mrb[0].mxu0
        %v601 = vadd.f32 0.0, %v600
        %v602 = vpop.f32.mrb[0].mxu0
        %v603 = vadd.f32 0.0, %v602
        %v604 = vpop.f32.mrb[0].mxu0
        %v605 = vadd.f32 0.0, %v604
        %606 = vmatprep.mubr.bf16.mxu0 0
        %607 = vmatmul.mubr.bf16.gmra.mrb[0].mxu0 %v459
        %v608 = vpop.f32.mrb[0].mxu0
        %v609 = vadd.f32 0.0, %v608
        %v610 = vpop.f32.mrb[0].mxu0
        %v611 = vadd.f32 0.0, %v610
        %v612 = vpop.f32.mrb[0].mxu0
        %v613 = vadd.f32 0.0, %v612
        %v614 = vpop.f32.mrb[0].mxu0
        %v615 = vadd.f32 0.0, %v614
        %616 = vmatprep.mubr.bf16.mxu0 0
        %617 = vmatmul.mubr.bf16.gmra.mrb[0].mxu0 %v462
        %v618 = vpop.f32.mrb[0].mxu0
        %v619 = vadd.f32 0.0, %v618
        %v620 = vpop.f32.mrb[0].mxu0
        %v621 = vadd.f32 0.0, %v620
        %v622 = vpop.f32.mrb[0].mxu0
        %v623 = vadd.f32 0.0, %v622
        %v624 = vpop.f32.mrb[0].mxu0
        %v625 = vadd.f32 0.0, %v624
        %626 = vmatprep.mubr.bf16.mxu0 0
        %627 = vmatmul.mubr.bf16.gmra.mrb[0].mxu0 %v465
        %v628 = vpop.f32.mrb[0].mxu0
        %v629 = vadd.f32 0.0, %v628
        %v630 = vpop.f32.mrb[0].mxu0
        %v631 = vadd.f32 0.0, %v630
        %v632 = vpop.f32.mrb[0].mxu0
        %v633 = vadd.f32 0.0, %v632
        %v634 = vpop.f32.mrb[0].mxu0
        %v635 = vadd.f32 0.0, %v634
        %636 = vmatprep.mubr.bf16.mxu0 0
        %637 = vmatmul.mubr.bf16.gmra.mrb[0].mxu0 %v468
        %v638 = vpop.f32.mrb[0].mxu0
        %v639 = vadd.f32 0.0, %v638
        %v640 = vpop.f32.mrb[0].mxu0
        %v641 = vadd.f32 0.0, %v640
        %v642 = vpop.f32.mrb[0].mxu0
        %v643 = vadd.f32 0.0, %v642
        %v644 = vpop.f32.mrb[0].mxu0
        %v645 = vadd.f32 0.0, %v644
        %646 = vmatprep.mubr.bf16.mxu0 0
        %647 = vmatmul.mubr.bf16.gmra.mrb[0].mxu0 %v471
        %v648 = vpop.f32.mrb[0].mxu0
        %v649 = vadd.f32 0.0, %v648
        %v650 = vpop.f32.mrb[0].mxu0
        %v651 = vadd.f32 0.0, %v650
        %v652 = vpop.f32.mrb[0].mxu0
        %v653 = vadd.f32 0.0, %v652
        %v654 = vpop.f32.mrb[0].mxu0
        %v655 = vadd.f32 0.0, %v654
        %656 = vmatprep.mubr.bf16.mxu0 0
        %657 = vmatmul.mubr.bf16.gmra.mrb[0].mxu0 %v474
        %v658 = vpop.f32.mrb[0].mxu0
        %v659 = vadd.f32 0.0, %v658
        %v660 = vpop.f32.mrb[0].mxu0
        %v661 = vadd.f32 0.0, %v660
        %v662 = vpop.f32.mrb[0].mxu0
        %v663 = vadd.f32 0.0, %v662
        %v664 = vpop.f32.mrb[0].mxu0
        %v665 = vadd.f32 0.0, %v664
        %666 = vmatprep.mubr.bf16.mxu0 0
        %667 = vmatmul.mubr.bf16.gmra.mrb[0].mxu0 %v477
        %v668 = vpop.f32.mrb[0].mxu0
        %v669 = vadd.f32 0.0, %v668
        %v670 = vpop.f32.mrb[0].mxu0
        %v671 = vadd.f32 0.0, %v670
        %v672 = vpop.f32.mrb[0].mxu0
        %v673 = vadd.f32 0.0, %v672
        %v674 = vpop.f32.mrb[0].mxu0
        %v675 = vadd.f32 0.0, %v674
        %676 = vmatprep.mubr.bf16.mxu0 0
        %677 = vmatmul.mubr.bf16.gmra.mrb[0].mxu0 %v480
        %v678 = vpop.f32.mrb[0].mxu0
        %v679 = vadd.f32 0.0, %v678
        %v680 = vpop.f32.mrb[0].mxu0
        %v681 = vadd.f32 0.0, %v680
        %v682 = vpop.f32.mrb[0].mxu0
        %v683 = vadd.f32 0.0, %v682
        %v684 = vpop.f32.mrb[0].mxu0
        %v685 = vadd.f32 0.0, %v684
        %686 = vmatprep.mubr.bf16.mxu0 0
        %687 = vmatmul.mubr.bf16.gmra.mrb[0].mxu0 %v483
        %v688 = vpop.f32.mrb[0].mxu0
        %v689 = vadd.f32 0.0, %v688
        %v690 = vpop.f32.mrb[0].mxu0
        %v691 = vadd.f32 0.0, %v690
        %v692 = vpop.f32.mrb[0].mxu0
        %v693 = vadd.f32 0.0, %v692
        %v694 = vpop.f32.mrb[0].mxu0
        %v695 = vadd.f32 0.0, %v694
        %696 = vdwg.mxu0
        %697 = vmatprep.subr.bf16.mxu0 %v409
        %698 = vmatpush1.bf16.msra.mxu0 %v408
        %699 = vmatprep.subr.bf16.mxu0 %v415
        %700 = vmatpush1.bf16.msra.mxu0 %v414
        %701 = vmatprep.subr.bf16.mxu0 %v496
        %702 = vmatpush1.bf16.msra.mxu0 %v493
        %703 = vmatprep.subr.bf16.mxu0 0
        %704 = vmatpush1.bf16.msra.mxu0 0
        %705 = vmatprep.subr.bf16.mxu0 0
        %706 = vmatpush1.bf16.msra.mxu0 0
        %707 = vmatprep.subr.bf16.mxu0 0
        %708 = vmatpush1.bf16.msra.mxu0 0
        %709 = vmatprep.subr.bf16.mxu0 0
        %710 = vmatpush1.bf16.msra.mxu0 0
        %711 = vmatprep.subr.bf16.mxu0 0
        %712 = vmatpush1.bf16.msra.mxu0 0
        %713 = vmatprep.subr.bf16.mxu0 0
        %714 = vmatpush1.bf16.msra.mxu0 0
        %715 = vmatprep.subr.bf16.mxu0 0
        %716 = vmatpush1.bf16.msra.mxu0 0
        %717 = vmatprep.subr.bf16.mxu0 0
        %718 = vmatpush1.bf16.msra.mxu0 0
        %719 = vmatprep.subr.bf16.mxu0 0
        %720 = vmatpush1.bf16.msra.mxu0 0
        %721 = vmatprep.subr.bf16.mxu0 0
        %722 = vmatpush1.bf16.msra.mxu0 0
        %723 = vmatprep.subr.bf16.mxu0 0
        %724 = vmatpush1.bf16.msra.mxu0 0
        %725 = vmatprep.subr.bf16.mxu0 0
        %726 = vmatpush1.bf16.msra.mxu0 0
        %727 = vmatprep.subr.bf16.mxu0 0
        %728 = vmatpush1.bf16.msra.mxu0 0
        %729 = vmatprep.mubr.bf16.mxu0 0
        %730 = vmatmul.mubr.bf16.gmra.mrb[0].mxu0 %v438
        %v731 = vpop.f32.mrb[0].mxu0
        %v732 = vadd.f32 0.0, %v731
        %v733 = vpop.f32.mrb[0].mxu0
        %v734 = vadd.f32 0.0, %v733
        %v735 = vpop.f32.mrb[0].mxu0
        %v736 = vadd.f32 0.0, %v735
        %v737 = vpop.f32.mrb[0].mxu0
        %v738 = vadd.f32 0.0, %v737
        %739 = vmatprep.mubr.bf16.mxu0 0
        %740 = vmatmul.mubr.bf16.gmra.mrb[0].mxu0 %v441
        %v741 = vpop.f32.mrb[0].mxu0
        %v742 = vadd.f32 0.0, %v741
        %v743 = vpop.f32.mrb[0].mxu0
        %v744 = vadd.f32 0.0, %v743
        %v745 = vpop.f32.mrb[0].mxu0
        %v746 = vadd.f32 0.0, %v745
        %v747 = vpop.f32.mrb[0].mxu0
        %v748 = vadd.f32 0.0, %v747
        %749 = vmatprep.mubr.bf16.mxu0 0
        %750 = vmatmul.mubr.bf16.gmra.mrb[0].mxu0 %v444
        %v751 = vpop.f32.mrb[0].mxu0
        %v752 = vadd.f32 0.0, %v751
        %v753 = vpop.f32.mrb[0].mxu0
        %v754 = vadd.f32 0.0, %v753
        %v755 = vpop.f32.mrb[0].mxu0
        %v756 = vadd.f32 0.0, %v755
        %v757 = vpop.f32.mrb[0].mxu0
        %v758 = vadd.f32 0.0, %v757
        %759 = vmatprep.mubr.bf16.mxu0 0
        %760 = vmatmul.mubr.bf16.gmra.mrb[0].mxu0 %v447
        %v761 = vpop.f32.mrb[0].mxu0
        %v762 = vadd.f32 0.0, %v761
        %v763 = vpop.f32.mrb[0].mxu0
        %v764 = vadd.f32 0.0, %v763
        %v765 = vpop.f32.mrb[0].mxu0
        %v766 = vadd.f32 0.0, %v765
        %v767 = vpop.f32.mrb[0].mxu0
        %v768 = vadd.f32 0.0, %v767
        %769 = vmatprep.mubr.bf16.mxu0 0
        %770 = vmatmul.mubr.bf16.gmra.mrb[0].mxu0 %v450
        %v771 = vpop.f32.mrb[0].mxu0
        %v772 = vadd.f32 0.0, %v771
        %v773 = vpop.f32.mrb[0].mxu0
        %v774 = vadd.f32 0.0, %v773
        %v775 = vpop.f32.mrb[0].mxu0
        %v776 = vadd.f32 0.0, %v775
        %v777 = vpop.f32.mrb[0].mxu0
        %v778 = vadd.f32 0.0, %v777
        %779 = vmatprep.mubr.bf16.mxu0 0
        %780 = vmatmul.mubr.bf16.gmra.mrb[0].mxu0 %v453
        %v781 = vpop.f32.mrb[0].mxu0
        %v782 = vadd.f32 0.0, %v781
        %v783 = vpop.f32.mrb[0].mxu0
        %v784 = vadd.f32 0.0, %v783
        %v785 = vpop.f32.mrb[0].mxu0
        %v786 = vadd.f32 0.0, %v785
        %v787 = vpop.f32.mrb[0].mxu0
        %v788 = vadd.f32 0.0, %v787
        %789 = vmatprep.mubr.bf16.mxu0 0
        %790 = vmatmul.mubr.bf16.gmra.mrb[0].mxu0 %v456
        %v791 = vpop.f32.mrb[0].mxu0
        %v792 = vadd.f32 0.0, %v791
        %v793 = vpop.f32.mrb[0].mxu0
        %v794 = vadd.f32 0.0, %v793
        %v795 = vpop.f32.mrb[0].mxu0
        %v796 = vadd.f32 0.0, %v795
        %v797 = vpop.f32.mrb[0].mxu0
        %v798 = vadd.f32 0.0, %v797
        %799 = vmatprep.mubr.bf16.mxu0 0
        %800 = vmatmul.mubr.bf16.gmra.mrb[0].mxu0 %v459
        %v801 = vpop.f32.mrb[0].mxu0
        %v802 = vadd.f32 0.0, %v801
        %v803 = vpop.f32.mrb[0].mxu0
        %v804 = vadd.f32 0.0, %v803
        %v805 = vpop.f32.mrb[0].mxu0
        %v806 = vadd.f32 0.0, %v805
        %v807 = vpop.f32.mrb[0].mxu0
        %v808 = vadd.f32 0.0, %v807
        %809 = vmatprep.mubr.bf16.mxu0 0
        %810 = vmatmul.mubr.bf16.gmra.mrb[0].mxu0 %v462
        %v811 = vpop.f32.mrb[0].mxu0
        %v812 = vadd.f32 0.0, %v811
        %v813 = vpop.f32.mrb[0].mxu0
        %v814 = vadd.f32 0.0, %v813
        %v815 = vpop.f32.mrb[0].mxu0
        %v816 = vadd.f32 0.0, %v815
        %v817 = vpop.f32.mrb[0].mxu0
        %v818 = vadd.f32 0.0, %v817
        %819 = vmatprep.mubr.bf16.mxu0 0
        %820 = vmatmul.mubr.bf16.gmra.mrb[0].mxu0 %v465
        %v821 = vpop.f32.mrb[0].mxu0
        %v822 = vadd.f32 0.0, %v821
        %v823 = vpop.f32.mrb[0].mxu0
        %v824 = vadd.f32 0.0, %v823
        %v825 = vpop.f32.mrb[0].mxu0
        %v826 = vadd.f32 0.0, %v825
        %v827 = vpop.f32.mrb[0].mxu0
        %v828 = vadd.f32 0.0, %v827
        %829 = vmatprep.mubr.bf16.mxu0 0
        %830 = vmatmul.mubr.bf16.gmra.mrb[0].mxu0 %v468
        %v831 = vpop.f32.mrb[0].mxu0
        %v832 = vadd.f32 0.0, %v831
        %v833 = vpop.f32.mrb[0].mxu0
        %v834 = vadd.f32 0.0, %v833
        %v835 = vpop.f32.mrb[0].mxu0
        %v836 = vadd.f32 0.0, %v835
        %v837 = vpop.f32.mrb[0].mxu0
        %v838 = vadd.f32 0.0, %v837
        %839 = vmatprep.mubr.bf16.mxu0 0
        %840 = vmatmul.mubr.bf16.gmra.mrb[0].mxu0 %v471
        %v841 = vpop.f32.mrb[0].mxu0
        %v842 = vadd.f32 0.0, %v841
        %v843 = vpop.f32.mrb[0].mxu0
        %v844 = vadd.f32 0.0, %v843
        %v845 = vpop.f32.mrb[0].mxu0
        %v846 = vadd.f32 0.0, %v845
        %v847 = vpop.f32.mrb[0].mxu0
        %v848 = vadd.f32 0.0, %v847
        %849 = vmatprep.mubr.bf16.mxu0 0
        %850 = vmatmul.mubr.bf16.gmra.mrb[0].mxu0 %v474
        %v851 = vpop.f32.mrb[0].mxu0
        %v852 = vadd.f32 0.0, %v851
        %v853 = vpop.f32.mrb[0].mxu0
        %v854 = vadd.f32 0.0, %v853
        %v855 = vpop.f32.mrb[0].mxu0
        %v856 = vadd.f32 0.0, %v855
        %v857 = vpop.f32.mrb[0].mxu0
        %v858 = vadd.f32 0.0, %v857
        %859 = vmatprep.mubr.bf16.mxu0 0
        %860 = vmatmul.mubr.bf16.gmra.mrb[0].mxu0 %v477
        %v861 = vpop.f32.mrb[0].mxu0
        %v862 = vadd.f32 0.0, %v861
        %v863 = vpop.f32.mrb[0].mxu0
        %v864 = vadd.f32 0.0, %v863
        %v865 = vpop.f32.mrb[0].mxu0
        %v866 = vadd.f32 0.0, %v865
        %v867 = vpop.f32.mrb[0].mxu0
        %v868 = vadd.f32 0.0, %v867
        %869 = vmatprep.mubr.bf16.mxu0 0
        %870 = vmatmul.mubr.bf16.gmra.mrb[0].mxu0 %v480
        %v871 = vpop.f32.mrb[0].mxu0
        %v872 = vadd.f32 0.0, %v871
        %v873 = vpop.f32.mrb[0].mxu0
        %v874 = vadd.f32 0.0, %v873
        %v875 = vpop.f32.mrb[0].mxu0
        %v876 = vadd.f32 0.0, %v875
        %v877 = vpop.f32.mrb[0].mxu0
        %v878 = vadd.f32 0.0, %v877
        %879 = vmatprep.mubr.bf16.mxu0 0
        %880 = vmatmul.mubr.bf16.gmra.mrb[0].mxu0 %v483
        %v881 = vpop.f32.mrb[0].mxu0
        %v882 = vadd.f32 0.0, %v881
        %v883 = vpop.f32.mrb[0].mxu0
        %v884 = vadd.f32 0.0, %v883
        %v885 = vpop.f32.mrb[0].mxu0
        %v886 = vadd.f32 0.0, %v885
        %v887 = vpop.f32.mrb[0].mxu0
        %v888 = vadd.f32 0.0, %v887
        %889 = vdwg.mxu0
        %890 = vmatprep.subr.bf16.mxu0 %v411
        %891 = vmatpush1.bf16.msra.mxu0 %v410
        %892 = vmatprep.subr.bf16.mxu0 %v417
        %893 = vmatpush1.bf16.msra.mxu0 %v416
        %894 = vmatprep.subr.bf16.mxu0 %v502
        %895 = vmatpush1.bf16.msra.mxu0 %v499
        %896 = vmatprep.subr.bf16.mxu0 0
        %897 = vmatpush1.bf16.msra.mxu0 0
        %898 = vmatprep.subr.bf16.mxu0 0
        %899 = vmatpush1.bf16.msra.mxu0 0
        %900 = vmatprep.subr.bf16.mxu0 0
        %901 = vmatpush1.bf16.msra.mxu0 0
        %902 = vmatprep.subr.bf16.mxu0 0
        %903 = vmatpush1.bf16.msra.mxu0 0
        %904 = vmatprep.subr.bf16.mxu0 0
        %905 = vmatpush1.bf16.msra.mxu0 0
        %906 = vmatprep.subr.bf16.mxu0 0
        %907 = vmatpush1.bf16.msra.mxu0 0
        %908 = vmatprep.subr.bf16.mxu0 0
        %909 = vmatpush1.bf16.msra.mxu0 0
        %910 = vmatprep.subr.bf16.mxu0 0
        %911 = vmatpush1.bf16.msra.mxu0 0
        %912 = vmatprep.subr.bf16.mxu0 0
        %913 = vmatpush1.bf16.msra.mxu0 0
        %914 = vmatprep.subr.bf16.mxu0 0
        %915 = vmatpush1.bf16.msra.mxu0 0
        %916 = vmatprep.subr.bf16.mxu0 0
        %917 = vmatpush1.bf16.msra.mxu0 0
        %918 = vmatprep.subr.bf16.mxu0 0
        %919 = vmatpush1.bf16.msra.mxu0 0
        %920 = vmatprep.subr.bf16.mxu0 0
        %921 = vmatpush1.bf16.msra.mxu0 0
        %922 = vmatprep.mubr.bf16.mxu0 0
        %923 = vmatmul.mubr.bf16.gmra.mrb[0].mxu0 %v438
        %v924 = vpop.f32.mrb[0].mxu0
        %v925 = vadd.f32 0.0, %v924
        %v926 = vpop.f32.mrb[0].mxu0
        %v927 = vadd.f32 0.0, %v926
        %v928 = vpop.f32.mrb[0].mxu0
        %v929 = vadd.f32 0.0, %v928
        %v930 = vpop.f32.mrb[0].mxu0
        %v931 = vadd.f32 0.0, %v930
        %932 = vmatprep.mubr.bf16.mxu0 0
        %933 = vmatmul.mubr.bf16.gmra.mrb[0].mxu0 %v441
        %v934 = vpop.f32.mrb[0].mxu0
        %v935 = vadd.f32 0.0, %v934
        %v936 = vpop.f32.mrb[0].mxu0
        %v937 = vadd.f32 0.0, %v936
        %v938 = vpop.f32.mrb[0].mxu0
        %v939 = vadd.f32 0.0, %v938
        %v940 = vpop.f32.mrb[0].mxu0
        %v941 = vadd.f32 0.0, %v940
        %942 = vmatprep.mubr.bf16.mxu0 0
        %943 = vmatmul.mubr.bf16.gmra.mrb[0].mxu0 %v444
        %v944 = vpop.f32.mrb[0].mxu0
        %v945 = vadd.f32 0.0, %v944
        %v946 = vpop.f32.mrb[0].mxu0
        %v947 = vadd.f32 0.0, %v946
        %v948 = vpop.f32.mrb[0].mxu0
        %v949 = vadd.f32 0.0, %v948
        %v950 = vpop.f32.mrb[0].mxu0
        %v951 = vadd.f32 0.0, %v950
        %952 = vmatprep.mubr.bf16.mxu0 0
        %953 = vmatmul.mubr.bf16.gmra.mrb[0].mxu0 %v447
        %v954 = vpop.f32.mrb[0].mxu0
        %v955 = vadd.f32 0.0, %v954
        %v956 = vpop.f32.mrb[0].mxu0
        %v957 = vadd.f32 0.0, %v956
        %v958 = vpop.f32.mrb[0].mxu0
        %v959 = vadd.f32 0.0, %v958
        %v960 = vpop.f32.mrb[0].mxu0
        %v961 = vadd.f32 0.0, %v960
        %962 = vmatprep.mubr.bf16.mxu0 0
        %963 = vmatmul.mubr.bf16.gmra.mrb[0].mxu0 %v450
        %v964 = vpop.f32.mrb[0].mxu0
        %v965 = vadd.f32 0.0, %v964
        %v966 = vpop.f32.mrb[0].mxu0
        %v967 = vadd.f32 0.0, %v966
        %v968 = vpop.f32.mrb[0].mxu0
        %v969 = vadd.f32 0.0, %v968
        %v970 = vpop.f32.mrb[0].mxu0
        %v971 = vadd.f32 0.0, %v970
        %972 = vmatprep.mubr.bf16.mxu0 0
        %973 = vmatmul.mubr.bf16.gmra.mrb[0].mxu0 %v453
        %v974 = vpop.f32.mrb[0].mxu0
        %v975 = vadd.f32 0.0, %v974
        %v976 = vpop.f32.mrb[0].mxu0
        %v977 = vadd.f32 0.0, %v976
        %v978 = vpop.f32.mrb[0].mxu0
        %v979 = vadd.f32 0.0, %v978
        %v980 = vpop.f32.mrb[0].mxu0
        %v981 = vadd.f32 0.0, %v980
        %982 = vmatprep.mubr.bf16.mxu0 0
        %983 = vmatmul.mubr.bf16.gmra.mrb[0].mxu0 %v456
        %v984 = vpop.f32.mrb[0].mxu0
        %v985 = vadd.f32 0.0, %v984
        %v986 = vpop.f32.mrb[0].mxu0
        %v987 = vadd.f32 0.0, %v986
        %v988 = vpop.f32.mrb[0].mxu0
        %v989 = vadd.f32 0.0, %v988
        %v990 = vpop.f32.mrb[0].mxu0
        %v991 = vadd.f32 0.0, %v990
        %992 = vmatprep.mubr.bf16.mxu0 0
        %993 = vmatmul.mubr.bf16.gmra.mrb[0].mxu0 %v459
        %v994 = vpop.f32.mrb[0].mxu0
        %v995 = vadd.f32 0.0, %v994
        %v996 = vpop.f32.mrb[0].mxu0
        %v997 = vadd.f32 0.0, %v996
        %v998 = vpop.f32.mrb[0].mxu0
        %v999 = vadd.f32 0.0, %v998
        %v1000 = vpop.f32.mrb[0].mxu0
        %v1001 = vadd.f32 0.0, %v1000
        %1002 = vmatprep.mubr.bf16.mxu0 0
        %1003 = vmatmul.mubr.bf16.gmra.mrb[0].mxu0 %v462
        %v1004 = vpop.f32.mrb[0].mxu0
        %v1005 = vadd.f32 0.0, %v1004
        %v1006 = vpop.f32.mrb[0].mxu0
        %v1007 = vadd.f32 0.0, %v1006
        %v1008 = vpop.f32.mrb[0].mxu0
        %v1009 = vadd.f32 0.0, %v1008
        %v1010 = vpop.f32.mrb[0].mxu0
        %v1011 = vadd.f32 0.0, %v1010
        %1012 = vmatprep.mubr.bf16.mxu0 0
        %1013 = vmatmul.mubr.bf16.gmra.mrb[0].mxu0 %v465
        %v1014 = vpop.f32.mrb[0].mxu0
        %v1015 = vadd.f32 0.0, %v1014
        %v1016 = vpop.f32.mrb[0].mxu0
        %v1017 = vadd.f32 0.0, %v1016
        %v1018 = vpop.f32.mrb[0].mxu0
        %v1019 = vadd.f32 0.0, %v1018
        %v1020 = vpop.f32.mrb[0].mxu0
        %v1021 = vadd.f32 0.0, %v1020
        %1022 = vmatprep.mubr.bf16.mxu0 0
        %1023 = vmatmul.mubr.bf16.gmra.mrb[0].mxu0 %v468
        %v1024 = vpop.f32.mrb[0].mxu0
        %v1025 = vadd.f32 0.0, %v1024
        %v1026 = vpop.f32.mrb[0].mxu0
        %v1027 = vadd.f32 0.0, %v1026
        %v1028 = vpop.f32.mrb[0].mxu0
        %v1029 = vadd.f32 0.0, %v1028
        %v1030 = vpop.f32.mrb[0].mxu0
        %v1031 = vadd.f32 0.0, %v1030
        %1032 = vmatprep.mubr.bf16.mxu0 0
        %1033 = vmatmul.mubr.bf16.gmra.mrb[0].mxu0 %v471
        %v1034 = vpop.f32.mrb[0].mxu0
        %v1035 = vadd.f32 0.0, %v1034
        %v1036 = vpop.f32.mrb[0].mxu0
        %v1037 = vadd.f32 0.0, %v1036
        %v1038 = vpop.f32.mrb[0].mxu0
        %v1039 = vadd.f32 0.0, %v1038
        %v1040 = vpop.f32.mrb[0].mxu0
        %v1041 = vadd.f32 0.0, %v1040
        %1042 = vmatprep.mubr.bf16.mxu0 0
        %1043 = vmatmul.mubr.bf16.gmra.mrb[0].mxu0 %v474
        %v1044 = vpop.f32.mrb[0].mxu0
        %v1045 = vadd.f32 0.0, %v1044
        %v1046 = vpop.f32.mrb[0].mxu0
        %v1047 = vadd.f32 0.0, %v1046
        %v1048 = vpop.f32.mrb[0].mxu0
        %v1049 = vadd.f32 0.0, %v1048
        %v1050 = vpop.f32.mrb[0].mxu0
        %v1051 = vadd.f32 0.0, %v1050
        %1052 = vmatprep.mubr.bf16.mxu0 0
        %1053 = vmatmul.mubr.bf16.gmra.mrb[0].mxu0 %v477
        %v1054 = vpop.f32.mrb[0].mxu0
        %v1055 = vadd.f32 0.0, %v1054
        %v1056 = vpop.f32.mrb[0].mxu0
        %v1057 = vadd.f32 0.0, %v1056
        %v1058 = vpop.f32.mrb[0].mxu0
        %v1059 = vadd.f32 0.0, %v1058
        %v1060 = vpop.f32.mrb[0].mxu0
        %v1061 = vadd.f32 0.0, %v1060
        %1062 = vmatprep.mubr.bf16.mxu0 0
        %1063 = vmatmul.mubr.bf16.gmra.mrb[0].mxu0 %v480
        %v1064 = vpop.f32.mrb[0].mxu0
        %v1065 = vadd.f32 0.0, %v1064
        %v1066 = vpop.f32.mrb[0].mxu0
        %v1067 = vadd.f32 0.0, %v1066
        %v1068 = vpop.f32.mrb[0].mxu0
        %v1069 = vadd.f32 0.0, %v1068
        %v1070 = vpop.f32.mrb[0].mxu0
        %v1071 = vadd.f32 0.0, %v1070
        %1072 = vmatprep.mubr.bf16.mxu0 0
        %1073 = vmatmul.mubr.bf16.gmra.mrb[0].mxu0 %v483
        %v1074 = vpop.f32.mrb[0].mxu0
        %v1075 = vadd.f32 0.0, %v1074
        %v1076 = vpop.f32.mrb[0].mxu0
        %v1077 = vadd.f32 0.0, %v1076
        %v1078 = vpop.f32.mrb[0].mxu0
        %v1079 = vadd.f32 0.0, %v1078
        %v1080 = vpop.f32.mrb[0].mxu0
        %v1081 = vadd.f32 0.0, %v1080
        %1082 = vdwg.mxu0
        %v1083 = vmax.f32 %v927, 0.0
        %v1084 = vmax.f32 %v931, 0.0
        %v1085 = vmax.f32 %v937, 0.0
        %v1086 = vmax.f32 %v941, 0.0
        %v1087 = vmax.f32 %v947, 0.0
        %v1088 = vmax.f32 %v951, 0.0
        %v1089 = vmax.f32 %v957, 0.0
        %v1090 = vmax.f32 %v961, 0.0
        %v1091 = vmax.f32 %v967, 0.0
        %v1092 = vmax.f32 %v971, 0.0
        %v1093 = vmax.f32 %v977, 0.0
        %v1094 = vmax.f32 %v981, 0.0
        %v1095 = vmax.f32 %v987, 0.0
        %v1096 = vmax.f32 %v991, 0.0
        %v1097 = vmax.f32 %v997, 0.0
        %v1098 = vmax.f32 %v1001, 0.0
        %v1099 = vmax.f32 %v1007, 0.0
        %v1100 = vmax.f32 %v1011, 0.0
        %v1101 = vmax.f32 %v1017, 0.0
        %v1102 = vmax.f32 %v1021, 0.0
        %v1103 = vmax.f32 %v1027, 0.0
        %v1104 = vmax.f32 %v1031, 0.0
        %v1105 = vmax.f32 %v1037, 0.0
        %v1106 = vmax.f32 %v1041, 0.0
        %v1107 = vmax.f32 %v1047, 0.0
        %v1108 = vmax.f32 %v1051, 0.0
        %v1109 = vmax.f32 %v1057, 0.0
        %v1110 = vmax.f32 %v1061, 0.0
        %v1111 = vmax.f32 %v1067, 0.0
        %v1112 = vmax.f32 %v1071, 0.0
        %v1113 = vmax.f32 %v1077, 0.0
        %v1114 = vmax.f32 %v1081, 0.0
        %v1115 = vld [vmem:[%s5] ss:$8 sm:$0xf]
        %v1116 = vld [vmem:[%s5] ss:$8 sm:$0x10]
        %v1117 = vor.u32 %v1115, %v1116
        %s1118 = scalar_lea.vmem %s5, 1
        %v1119 = vld [vmem:[%s1118] ss:$8 sm:$0xf]
        %v1120 = vld [vmem:[%s1118] ss:$8 sm:$0x10]
        %v1121 = vor.u32 %v1119, %v1120
        %v1122 = vpack.c.bf16 %v1084, %v1083
        %v1123 = vpack.c.bf16 %v1086, %v1085
        %v1124 = vpack.c.bf16 %v1088, %v1087
        %v1125 = vpack.c.bf16 %v1090, %v1089
        %v1126 = vpack.c.bf16 %v1092, %v1091
        %v1127 = vpack.c.bf16 %v1094, %v1093
        %v1128 = vpack.c.bf16 %v1096, %v1095
        %v1129 = vpack.c.bf16 %v1098, %v1097
        %v1130 = vpack.c.bf16 %v1100, %v1099
        %v1131 = vpack.c.bf16 %v1102, %v1101
        %v1132 = vpack.c.bf16 %v1104, %v1103
        %v1133 = vpack.c.bf16 %v1106, %v1105
        %v1134 = vpack.c.bf16 %v1108, %v1107
        %v1135 = vpack.c.bf16 %v1110, %v1109
        %v1136 = vpack.c.bf16 %v1112, %v1111
        %v1137 = vpack.c.bf16 %v1114, %v1113
        %v1138 = vld [vmem:[#allocation5] sm:$0xff]
        %v1139 = vld [vmem:[#allocation5 + $0x8] sm:$0xff]
        %v1140 = vld [vmem:[#allocation5 + $0x10] sm:$0xf]
        %v1141 = vld [vmem:[#allocation5 + $0x14] sm:$0xff]
        %v1142 = vld [vmem:[#allocation5 + $0x1c] sm:$0xff]
        %v1143 = vld [vmem:[#allocation5 + $0x24] sm:$0xf]
        %v1144 = vld [vmem:[#allocation5 + $0x28] sm:$0xff]
        %v1145 = vld [vmem:[#allocation5 + $0x30] sm:$0xff]
        %v1146 = vld [vmem:[#allocation5 + $0x38] sm:$0xf]
        %v1147 = vld [vmem:[#allocation5 + $0x3c] sm:$0xff]
        %v1148 = vld [vmem:[#allocation5 + $0x44] sm:$0xff]
        %v1149 = vld [vmem:[#allocation5 + $0x4c] sm:$0xf]
        %v1150 = vld [vmem:[#allocation5 + $0x50] sm:$0xff]
        %v1151 = vld [vmem:[#allocation5 + $0x58] sm:$0xff]
        %v1152 = vld [vmem:[#allocation5 + $0x60] sm:$0xf]
        %v1153 = vld [vmem:[#allocation5 + $0x64] sm:$0xff]
        %v1154 = vld [vmem:[#allocation5 + $0x6c] sm:$0xff]
        %v1155 = vld [vmem:[#allocation5 + $0x74] sm:$0xf]
        %v1156 = vld [vmem:[#allocation5 + $0x78] sm:$0xff]
        %v1157 = vld [vmem:[#allocation5 + $0x80] sm:$0xff]
        %v1158 = vld [vmem:[#allocation5 + $0x88] sm:$0xf]
        %v1159 = vld [vmem:[#allocation5 + $0x8c] sm:$0xff]
        %v1160 = vld [vmem:[#allocation5 + $0x94] sm:$0xff]
        %v1161 = vld [vmem:[#allocation5 + $0x9c] sm:$0xf]
        %v1162 = vld [vmem:[#allocation5 + $0xa0] sm:$0xff]
        %v1163 = vld [vmem:[#allocation5 + $0xa8] sm:$0xff]
        %v1164 = vld [vmem:[#allocation5 + $0xb0] sm:$0xf]
        %v1165 = vld [vmem:[#allocation5 + $0xb4] sm:$0xff]
        %v1166 = vld [vmem:[#allocation5 + $0xbc] sm:$0xff]
        %v1167 = vld [vmem:[#allocation5 + $0xc4] sm:$0xf]
        %v1169 = vlaneseq
        %v1170 = vshrl.u32 %v1169, 7
        %v1171 = vsub.s32 0, %v1170
        %v1172 = vrot.slane %v1117, %v1171
        %v1173 = vlaneseq
        %v1174 = vshrl.u32 %v1173, 7
        %v1175 = vsub.s32 1, %v1174
        %v1176 = vrot.slane %v1117, %v1175
        %v1177 = vlaneseq
        %v1178 = vshrl.u32 %v1177, 7
        %v1179 = vsub.s32 2, %v1178
        %v1180 = vrot.slane %v1117, %v1179
        %v1181 = vlaneseq
        %v1182 = vshrl.u32 %v1181, 7
        %v1183 = vsub.s32 3, %v1182
        %v1184 = vrot.slane %v1117, %v1183
        %v1185 = vlaneseq
        %v1186 = vshrl.u32 %v1185, 7
        %v1187 = vsub.s32 4, %v1186
        %v1188 = vrot.slane %v1117, %v1187
        %v1224 = vunpack.c.l.b16 %v1138
        %v1225 = vunpack.c.h.b16 %v1138
        %v1226 = vunpack.c.l.b16 %v1139
        %v1227 = vunpack.c.h.b16 %v1139
        %v1228 = vunpack.c.l.b16 %v1140
        %v1229 = vunpack.c.l.b16 %v1141
        %v1230 = vunpack.c.h.b16 %v1141
        %v1231 = vunpack.c.l.b16 %v1142
        %v1232 = vunpack.c.h.b16 %v1142
        %v1233 = vunpack.c.l.b16 %v1143
        %v1234 = vunpack.c.l.b16 %v1144
        %v1235 = vunpack.c.h.b16 %v1144
        %v1236 = vunpack.c.l.b16 %v1145
        %v1237 = vunpack.c.h.b16 %v1145
        %v1238 = vunpack.c.l.b16 %v1146
        %v1239 = vunpack.c.l.b16 %v1147
        %v1240 = vunpack.c.h.b16 %v1147
        %v1241 = vunpack.c.l.b16 %v1148
        %v1242 = vunpack.c.h.b16 %v1148
        %v1243 = vunpack.c.l.b16 %v1149
        %v1244 = vunpack.c.l.b16 %v1150
        %v1245 = vunpack.c.h.b16 %v1150
        %v1246 = vunpack.c.l.b16 %v1151
        %v1247 = vunpack.c.h.b16 %v1151
        %v1248 = vunpack.c.l.b16 %v1152
        %v1249 = vunpack.c.l.b16 %v1153
        %v1250 = vunpack.c.h.b16 %v1153
        %v1251 = vunpack.c.l.b16 %v1154
        %v1252 = vunpack.c.h.b16 %v1154
        %v1253 = vunpack.c.l.b16 %v1155
        %v1254 = vunpack.c.l.b16 %v1156
        %v1255 = vunpack.c.h.b16 %v1156
        %v1256 = vunpack.c.l.b16 %v1157
        %v1257 = vunpack.c.h.b16 %v1157
        %v1258 = vunpack.c.l.b16 %v1158
        %v1259 = vunpack.c.l.b16 %v1159
        %v1260 = vunpack.c.h.b16 %v1159
        %v1261 = vunpack.c.l.b16 %v1160
        %v1262 = vunpack.c.h.b16 %v1160
        %v1263 = vunpack.c.l.b16 %v1161
        %v1264 = vunpack.c.l.b16 %v1162
        %v1265 = vunpack.c.h.b16 %v1162
        %v1266 = vunpack.c.l.b16 %v1163
        %v1267 = vunpack.c.h.b16 %v1163
        %v1268 = vunpack.c.l.b16 %v1164
        %v1269 = vunpack.c.l.b16 %v1165
        %v1270 = vunpack.c.h.b16 %v1165
        %v1271 = vunpack.c.l.b16 %v1166
        %v1272 = vunpack.c.h.b16 %v1166
        %v1273 = vunpack.c.l.b16 %v1167
        %v1274 = vpack.c.b16 %v1229, %v1224
        %v1275 = vpack.c.b16 %v1230, %v1225
        %v1276 = vpack.c.b16 %v1231, %v1226
        %v1277 = vpack.c.b16 %v1232, %v1227
        %v1278 = vpack.c.b16 %v1233, %v1228
        %v1279 = vpack.c.b16 %v1239, %v1234
        %v1280 = vpack.c.b16 %v1240, %v1235
        %v1281 = vpack.c.b16 %v1241, %v1236
        %v1282 = vpack.c.b16 %v1242, %v1237
        %v1283 = vpack.c.b16 %v1243, %v1238
        %v1284 = vpack.c.b16 %v1249, %v1244
        %v1285 = vpack.c.b16 %v1250, %v1245
        %v1286 = vpack.c.b16 %v1251, %v1246
        %v1287 = vpack.c.b16 %v1252, %v1247
        %v1288 = vpack.c.b16 %v1253, %v1248
        %v1289 = vpack.c.b16 %v1259, %v1254
        %v1290 = vpack.c.b16 %v1260, %v1255
        %v1291 = vpack.c.b16 %v1261, %v1256
        %v1292 = vpack.c.b16 %v1262, %v1257
        %v1293 = vpack.c.b16 %v1263, %v1258
        %v1294 = vpack.c.b16 %v1269, %v1264
        %v1295 = vpack.c.b16 %v1270, %v1265
        %v1296 = vpack.c.b16 %v1271, %v1266
        %v1297 = vpack.c.b16 %v1272, %v1267
        %v1298 = vpack.c.b16 %v1273, %v1268
        %vm1324 = vcmask 654336
        %v1326 = vsel %vm1324, %v1122, 0
        %v1329 = vsel %vm1324, %v1123, 0
        %v1332 = vsel %vm1324, %v1124, 0
        %v1335 = vsel %vm1324, %v1125, 0
        %v1338 = vsel %vm1324, %v1126, 0
        %v1341 = vsel %vm1324, %v1127, 0
        %v1344 = vsel %vm1324, %v1128, 0
        %v1347 = vsel %vm1324, %v1129, 0
        %v1350 = vsel %vm1324, %v1130, 0
        %v1353 = vsel %vm1324, %v1131, 0
        %v1356 = vsel %vm1324, %v1132, 0
        %v1359 = vsel %vm1324, %v1133, 0
        %v1362 = vsel %vm1324, %v1134, 0
        %v1365 = vsel %vm1324, %v1135, 0
        %v1368 = vsel %vm1324, %v1136, 0
        %v1371 = vsel %vm1324, %v1137, 0
        %1373 = vmatprep.subr.bf16.mxu0 %v1275
        %1374 = vmatpush1.bf16.msra.mxu0 %v1274
        %1375 = vmatprep.subr.bf16.mxu0 %v1280
        %1376 = vmatpush1.bf16.msra.mxu0 %v1279
        %1377 = vmatprep.subr.bf16.mxu0 %v1285
        %1378 = vmatpush1.bf16.msra.mxu0 %v1284
        %1379 = vmatprep.subr.bf16.mxu0 %v1290
        %1380 = vmatpush1.bf16.msra.mxu0 %v1289
        %1381 = vmatprep.subr.bf16.mxu0 %v1295
        %1382 = vmatpush1.bf16.msra.mxu0 %v1294
        %1383 = vmatprep.subr.bf16.mxu0 0
        %1384 = vmatpush1.bf16.msra.mxu0 0
        %1385 = vmatprep.subr.bf16.mxu0 0
        %1386 = vmatpush1.bf16.msra.mxu0 0
        %1387 = vmatprep.subr.bf16.mxu0 0
        %1388 = vmatpush1.bf16.msra.mxu0 0
        %1389 = vmatprep.subr.bf16.mxu0 0
        %1390 = vmatpush1.bf16.msra.mxu0 0
        %1391 = vmatprep.subr.bf16.mxu0 0
        %1392 = vmatpush1.bf16.msra.mxu0 0
        %1393 = vmatprep.subr.bf16.mxu0 0
        %1394 = vmatpush1.bf16.msra.mxu0 0
        %1395 = vmatprep.subr.bf16.mxu0 0
        %1396 = vmatpush1.bf16.msra.mxu0 0
        %1397 = vmatprep.subr.bf16.mxu0 0
        %1398 = vmatpush1.bf16.msra.mxu0 0
        %1399 = vmatprep.subr.bf16.mxu0 0
        %1400 = vmatpush1.bf16.msra.mxu0 0
        %1401 = vmatprep.subr.bf16.mxu0 0
        %1402 = vmatpush1.bf16.msra.mxu0 0
        %1403 = vmatprep.subr.bf16.mxu0 0
        %1404 = vmatpush1.bf16.msra.mxu0 0
        %1405 = vmatprep.mubr.bf16.mxu0 0
        %1406 = vmatmul.mubr.bf16.gmra.mrb[0].mxu0 %v1326
        %v1407 = vpop.f32.mrb[0].mxu0
        %v1408 = vadd.f32 %v1172, %v1407
        %v1409 = vpop.f32.mrb[0].mxu0
        %v1410 = vadd.f32 %v1176, %v1409
        %v1411 = vpop.f32.mrb[0].mxu0
        %v1412 = vadd.f32 %v1172, %v1411
        %v1413 = vpop.f32.mrb[0].mxu0
        %v1414 = vadd.f32 %v1176, %v1413
        %1415 = vmatprep.mubr.bf16.mxu0 0
        %1416 = vmatmul.mubr.bf16.gmra.mrb[0].mxu0 %v1329
        %v1417 = vpop.f32.mrb[0].mxu0
        %v1418 = vadd.f32 %v1172, %v1417
        %v1419 = vpop.f32.mrb[0].mxu0
        %v1420 = vadd.f32 %v1176, %v1419
        %v1421 = vpop.f32.mrb[0].mxu0
        %v1422 = vadd.f32 %v1172, %v1421
        %v1423 = vpop.f32.mrb[0].mxu0
        %v1424 = vadd.f32 %v1176, %v1423
        %1425 = vmatprep.mubr.bf16.mxu0 0
        %1426 = vmatmul.mubr.bf16.gmra.mrb[0].mxu0 %v1332
        %v1427 = vpop.f32.mrb[0].mxu0
        %v1428 = vadd.f32 %v1172, %v1427
        %v1429 = vpop.f32.mrb[0].mxu0
        %v1430 = vadd.f32 %v1176, %v1429
        %v1431 = vpop.f32.mrb[0].mxu0
        %v1432 = vadd.f32 %v1172, %v1431
        %v1433 = vpop.f32.mrb[0].mxu0
        %v1434 = vadd.f32 %v1176, %v1433
        %1435 = vmatprep.mubr.bf16.mxu0 0
        %1436 = vmatmul.mubr.bf16.gmra.mrb[0].mxu0 %v1335
        %v1437 = vpop.f32.mrb[0].mxu0
        %v1438 = vadd.f32 %v1172, %v1437
        %v1439 = vpop.f32.mrb[0].mxu0
        %v1440 = vadd.f32 %v1176, %v1439
        %v1441 = vpop.f32.mrb[0].mxu0
        %v1442 = vadd.f32 %v1172, %v1441
        %v1443 = vpop.f32.mrb[0].mxu0
        %v1444 = vadd.f32 %v1176, %v1443
        %1445 = vmatprep.mubr.bf16.mxu0 0
        %1446 = vmatmul.mubr.bf16.gmra.mrb[0].mxu0 %v1338
        %v1447 = vpop.f32.mrb[0].mxu0
        %v1448 = vadd.f32 %v1172, %v1447
        %v1449 = vpop.f32.mrb[0].mxu0
        %v1450 = vadd.f32 %v1176, %v1449
        %v1451 = vpop.f32.mrb[0].mxu0
        %v1452 = vadd.f32 %v1172, %v1451
        %v1453 = vpop.f32.mrb[0].mxu0
        %v1454 = vadd.f32 %v1176, %v1453
        %1455 = vmatprep.mubr.bf16.mxu0 0
        %1456 = vmatmul.mubr.bf16.gmra.mrb[0].mxu0 %v1341
        %v1457 = vpop.f32.mrb[0].mxu0
        %v1458 = vadd.f32 %v1172, %v1457
        %v1459 = vpop.f32.mrb[0].mxu0
        %v1460 = vadd.f32 %v1176, %v1459
        %v1461 = vpop.f32.mrb[0].mxu0
        %v1462 = vadd.f32 %v1172, %v1461
        %v1463 = vpop.f32.mrb[0].mxu0
        %v1464 = vadd.f32 %v1176, %v1463
        %1465 = vmatprep.mubr.bf16.mxu0 0
        %1466 = vmatmul.mubr.bf16.gmra.mrb[0].mxu0 %v1344
        %v1467 = vpop.f32.mrb[0].mxu0
        %v1468 = vadd.f32 %v1172, %v1467
        %v1469 = vpop.f32.mrb[0].mxu0
        %v1470 = vadd.f32 %v1176, %v1469
        %v1471 = vpop.f32.mrb[0].mxu0
        %v1472 = vadd.f32 %v1172, %v1471
        %v1473 = vpop.f32.mrb[0].mxu0
        %v1474 = vadd.f32 %v1176, %v1473
        %1475 = vmatprep.mubr.bf16.mxu0 0
        %1476 = vmatmul.mubr.bf16.gmra.mrb[0].mxu0 %v1347
        %v1477 = vpop.f32.mrb[0].mxu0
        %v1478 = vadd.f32 %v1172, %v1477
        %v1479 = vpop.f32.mrb[0].mxu0
        %v1480 = vadd.f32 %v1176, %v1479
        %v1481 = vpop.f32.mrb[0].mxu0
        %v1482 = vadd.f32 %v1172, %v1481
        %v1483 = vpop.f32.mrb[0].mxu0
        %v1484 = vadd.f32 %v1176, %v1483
        %1485 = vmatprep.mubr.bf16.mxu0 0
        %1486 = vmatmul.mubr.bf16.gmra.mrb[0].mxu0 %v1350
        %v1487 = vpop.f32.mrb[0].mxu0
        %v1488 = vadd.f32 %v1172, %v1487
        %v1489 = vpop.f32.mrb[0].mxu0
        %v1490 = vadd.f32 %v1176, %v1489
        %v1491 = vpop.f32.mrb[0].mxu0
        %v1492 = vadd.f32 %v1172, %v1491
        %v1493 = vpop.f32.mrb[0].mxu0
        %v1494 = vadd.f32 %v1176, %v1493
        %1495 = vmatprep.mubr.bf16.mxu0 0
        %1496 = vmatmul.mubr.bf16.gmra.mrb[0].mxu0 %v1353
        %v1497 = vpop.f32.mrb[0].mxu0
        %v1498 = vadd.f32 %v1172, %v1497
        %v1499 = vpop.f32.mrb[0].mxu0
        %v1500 = vadd.f32 %v1176, %v1499
        %v1501 = vpop.f32.mrb[0].mxu0
        %v1502 = vadd.f32 %v1172, %v1501
        %v1503 = vpop.f32.mrb[0].mxu0
        %v1504 = vadd.f32 %v1176, %v1503
        %1505 = vmatprep.mubr.bf16.mxu0 0
        %1506 = vmatmul.mubr.bf16.gmra.mrb[0].mxu0 %v1356
        %v1507 = vpop.f32.mrb[0].mxu0
        %v1508 = vadd.f32 %v1172, %v1507
        %v1509 = vpop.f32.mrb[0].mxu0
        %v1510 = vadd.f32 %v1176, %v1509
        %v1511 = vpop.f32.mrb[0].mxu0
        %v1512 = vadd.f32 %v1172, %v1511
        %v1513 = vpop.f32.mrb[0].mxu0
        %v1514 = vadd.f32 %v1176, %v1513
        %1515 = vmatprep.mubr.bf16.mxu0 0
        %1516 = vmatmul.mubr.bf16.gmra.mrb[0].mxu0 %v1359
        %v1517 = vpop.f32.mrb[0].mxu0
        %v1518 = vadd.f32 %v1172, %v1517
        %v1519 = vpop.f32.mrb[0].mxu0
        %v1520 = vadd.f32 %v1176, %v1519
        %v1521 = vpop.f32.mrb[0].mxu0
        %v1522 = vadd.f32 %v1172, %v1521
        %v1523 = vpop.f32.mrb[0].mxu0
        %v1524 = vadd.f32 %v1176, %v1523
        %1525 = vmatprep.mubr.bf16.mxu0 0
        %1526 = vmatmul.mubr.bf16.gmra.mrb[0].mxu0 %v1362
        %v1527 = vpop.f32.mrb[0].mxu0
        %v1528 = vadd.f32 %v1172, %v1527
        %v1529 = vpop.f32.mrb[0].mxu0
        %v1530 = vadd.f32 %v1176, %v1529
        %v1531 = vpop.f32.mrb[0].mxu0
        %v1532 = vadd.f32 %v1172, %v1531
        %v1533 = vpop.f32.mrb[0].mxu0
        %v1534 = vadd.f32 %v1176, %v1533
        %1535 = vmatprep.mubr.bf16.mxu0 0
        %1536 = vmatmul.mubr.bf16.gmra.mrb[0].mxu0 %v1365
        %v1537 = vpop.f32.mrb[0].mxu0
        %v1538 = vadd.f32 %v1172, %v1537
        %v1539 = vpop.f32.mrb[0].mxu0
        %v1540 = vadd.f32 %v1176, %v1539
        %v1541 = vpop.f32.mrb[0].mxu0
        %v1542 = vadd.f32 %v1172, %v1541
        %v1543 = vpop.f32.mrb[0].mxu0
        %v1544 = vadd.f32 %v1176, %v1543
        %1545 = vmatprep.mubr.bf16.mxu0 0
        %1546 = vmatmul.mubr.bf16.gmra.mrb[0].mxu0 %v1368
        %v1547 = vpop.f32.mrb[0].mxu0
        %v1548 = vadd.f32 %v1172, %v1547
        %v1549 = vpop.f32.mrb[0].mxu0
        %v1550 = vadd.f32 %v1176, %v1549
        %v1551 = vpop.f32.mrb[0].mxu0
        %v1552 = vadd.f32 %v1172, %v1551
        %v1553 = vpop.f32.mrb[0].mxu0
        %v1554 = vadd.f32 %v1176, %v1553
        %1555 = vmatprep.mubr.bf16.mxu0 0
        %1556 = vmatmul.mubr.bf16.gmra.mrb[0].mxu0 %v1371
        %v1557 = vpop.f32.mrb[0].mxu0
        %v1558 = vadd.f32 %v1172, %v1557
        %v1559 = vpop.f32.mrb[0].mxu0
        %v1560 = vadd.f32 %v1176, %v1559
        %v1561 = vpop.f32.mrb[0].mxu0
        %v1562 = vadd.f32 %v1172, %v1561
        %v1563 = vpop.f32.mrb[0].mxu0
        %v1564 = vadd.f32 %v1176, %v1563
        %1565 = vdwg.mxu0
        %1566 = vmatprep.subr.bf16.mxu0 %v1277
        %1567 = vmatpush1.bf16.msra.mxu0 %v1276
        %1568 = vmatprep.subr.bf16.mxu0 %v1282
        %1569 = vmatpush1.bf16.msra.mxu0 %v1281
        %1570 = vmatprep.subr.bf16.mxu0 %v1287
        %1571 = vmatpush1.bf16.msra.mxu0 %v1286
        %1572 = vmatprep.subr.bf16.mxu0 %v1292
        %1573 = vmatpush1.bf16.msra.mxu0 %v1291
        %1574 = vmatprep.subr.bf16.mxu0 %v1297
        %1575 = vmatpush1.bf16.msra.mxu0 %v1296
        %1576 = vmatprep.subr.bf16.mxu0 0
        %1577 = vmatpush1.bf16.msra.mxu0 0
        %1578 = vmatprep.subr.bf16.mxu0 0
        %1579 = vmatpush1.bf16.msra.mxu0 0
        %1580 = vmatprep.subr.bf16.mxu0 0
        %1581 = vmatpush1.bf16.msra.mxu0 0
        %1582 = vmatprep.subr.bf16.mxu0 0
        %1583 = vmatpush1.bf16.msra.mxu0 0
        %1584 = vmatprep.subr.bf16.mxu0 0
        %1585 = vmatpush1.bf16.msra.mxu0 0
        %1586 = vmatprep.subr.bf16.mxu0 0
        %1587 = vmatpush1.bf16.msra.mxu0 0
        %1588 = vmatprep.subr.bf16.mxu0 0
        %1589 = vmatpush1.bf16.msra.mxu0 0
        %1590 = vmatprep.subr.bf16.mxu0 0
        %1591 = vmatpush1.bf16.msra.mxu0 0
        %1592 = vmatprep.subr.bf16.mxu0 0
        %1593 = vmatpush1.bf16.msra.mxu0 0
        %1594 = vmatprep.subr.bf16.mxu0 0
        %1595 = vmatpush1.bf16.msra.mxu0 0
        %1596 = vmatprep.subr.bf16.mxu0 0
        %1597 = vmatpush1.bf16.msra.mxu0 0
        %1598 = vmatprep.mubr.bf16.mxu0 0
        %1599 = vmatmul.mubr.bf16.gmra.mrb[0].mxu0 %v1326
        %v1600 = vpop.f32.mrb[0].mxu0
        %v1601 = vadd.f32 %v1180, %v1600
        %v1602 = vpop.f32.mrb[0].mxu0
        %v1603 = vadd.f32 %v1184, %v1602
        %v1604 = vpop.f32.mrb[0].mxu0
        %v1605 = vadd.f32 %v1180, %v1604
        %v1606 = vpop.f32.mrb[0].mxu0
        %v1607 = vadd.f32 %v1184, %v1606
        %1608 = vmatprep.mubr.bf16.mxu0 0
        %1609 = vmatmul.mubr.bf16.gmra.mrb[0].mxu0 %v1329
        %v1610 = vpop.f32.mrb[0].mxu0
        %v1611 = vadd.f32 %v1180, %v1610
        %v1612 = vpop.f32.mrb[0].mxu0
        %v1613 = vadd.f32 %v1184, %v1612
        %v1614 = vpop.f32.mrb[0].mxu0
        %v1615 = vadd.f32 %v1180, %v1614
        %v1616 = vpop.f32.mrb[0].mxu0
        %v1617 = vadd.f32 %v1184, %v1616
        %1618 = vmatprep.mubr.bf16.mxu0 0
        %1619 = vmatmul.mubr.bf16.gmra.mrb[0].mxu0 %v1332
        %v1620 = vpop.f32.mrb[0].mxu0
        %v1621 = vadd.f32 %v1180, %v1620
        %v1622 = vpop.f32.mrb[0].mxu0
        %v1623 = vadd.f32 %v1184, %v1622
        %v1624 = vpop.f32.mrb[0].mxu0
        %v1625 = vadd.f32 %v1180, %v1624
        %v1626 = vpop.f32.mrb[0].mxu0
        %v1627 = vadd.f32 %v1184, %v1626
        %1628 = vmatprep.mubr.bf16.mxu0 0
        %1629 = vmatmul.mubr.bf16.gmra.mrb[0].mxu0 %v1335
        %v1630 = vpop.f32.mrb[0].mxu0
        %v1631 = vadd.f32 %v1180, %v1630
        %v1632 = vpop.f32.mrb[0].mxu0
        %v1633 = vadd.f32 %v1184, %v1632
        %v1634 = vpop.f32.mrb[0].mxu0
        %v1635 = vadd.f32 %v1180, %v1634
        %v1636 = vpop.f32.mrb[0].mxu0
        %v1637 = vadd.f32 %v1184, %v1636
        %1638 = vmatprep.mubr.bf16.mxu0 0
        %1639 = vmatmul.mubr.bf16.gmra.mrb[0].mxu0 %v1338
        %v1640 = vpop.f32.mrb[0].mxu0
        %v1641 = vadd.f32 %v1180, %v1640
        %v1642 = vpop.f32.mrb[0].mxu0
        %v1643 = vadd.f32 %v1184, %v1642
        %v1644 = vpop.f32.mrb[0].mxu0
        %v1645 = vadd.f32 %v1180, %v1644
        %v1646 = vpop.f32.mrb[0].mxu0
        %v1647 = vadd.f32 %v1184, %v1646
        %1648 = vmatprep.mubr.bf16.mxu0 0
        %1649 = vmatmul.mubr.bf16.gmra.mrb[0].mxu0 %v1341
        %v1650 = vpop.f32.mrb[0].mxu0
        %v1651 = vadd.f32 %v1180, %v1650
        %v1652 = vpop.f32.mrb[0].mxu0
        %v1653 = vadd.f32 %v1184, %v1652
        %v1654 = vpop.f32.mrb[0].mxu0
        %v1655 = vadd.f32 %v1180, %v1654
        %v1656 = vpop.f32.mrb[0].mxu0
        %v1657 = vadd.f32 %v1184, %v1656
        %1658 = vmatprep.mubr.bf16.mxu0 0
        %1659 = vmatmul.mubr.bf16.gmra.mrb[0].mxu0 %v1344
        %v1660 = vpop.f32.mrb[0].mxu0
        %v1661 = vadd.f32 %v1180, %v1660
        %v1662 = vpop.f32.mrb[0].mxu0
        %v1663 = vadd.f32 %v1184, %v1662
        %v1664 = vpop.f32.mrb[0].mxu0
        %v1665 = vadd.f32 %v1180, %v1664
        %v1666 = vpop.f32.mrb[0].mxu0
        %v1667 = vadd.f32 %v1184, %v1666
        %1668 = vmatprep.mubr.bf16.mxu0 0
        %1669 = vmatmul.mubr.bf16.gmra.mrb[0].mxu0 %v1347
        %v1670 = vpop.f32.mrb[0].mxu0
        %v1671 = vadd.f32 %v1180, %v1670
        %v1672 = vpop.f32.mrb[0].mxu0
        %v1673 = vadd.f32 %v1184, %v1672
        %v1674 = vpop.f32.mrb[0].mxu0
        %v1675 = vadd.f32 %v1180, %v1674
        %v1676 = vpop.f32.mrb[0].mxu0
        %v1677 = vadd.f32 %v1184, %v1676
        %1678 = vmatprep.mubr.bf16.mxu0 0
        %1679 = vmatmul.mubr.bf16.gmra.mrb[0].mxu0 %v1350
        %v1680 = vpop.f32.mrb[0].mxu0
        %v1681 = vadd.f32 %v1180, %v1680
        %v1682 = vpop.f32.mrb[0].mxu0
        %v1683 = vadd.f32 %v1184, %v1682
        %v1684 = vpop.f32.mrb[0].mxu0
        %v1685 = vadd.f32 %v1180, %v1684
        %v1686 = vpop.f32.mrb[0].mxu0
        %v1687 = vadd.f32 %v1184, %v1686
        %1688 = vmatprep.mubr.bf16.mxu0 0
        %1689 = vmatmul.mubr.bf16.gmra.mrb[0].mxu0 %v1353
        %v1690 = vpop.f32.mrb[0].mxu0
        %v1691 = vadd.f32 %v1180, %v1690
        %v1692 = vpop.f32.mrb[0].mxu0
        %v1693 = vadd.f32 %v1184, %v1692
        %v1694 = vpop.f32.mrb[0].mxu0
        %v1695 = vadd.f32 %v1180, %v1694
        %v1696 = vpop.f32.mrb[0].mxu0
        %v1697 = vadd.f32 %v1184, %v1696
        %1698 = vmatprep.mubr.bf16.mxu0 0
        %1699 = vmatmul.mubr.bf16.gmra.mrb[0].mxu0 %v1356
        %v1700 = vpop.f32.mrb[0].mxu0
        %v1701 = vadd.f32 %v1180, %v1700
        %v1702 = vpop.f32.mrb[0].mxu0
        %v1703 = vadd.f32 %v1184, %v1702
        %v1704 = vpop.f32.mrb[0].mxu0
        %v1705 = vadd.f32 %v1180, %v1704
        %v1706 = vpop.f32.mrb[0].mxu0
        %v1707 = vadd.f32 %v1184, %v1706
        %1708 = vmatprep.mubr.bf16.mxu0 0
        %1709 = vmatmul.mubr.bf16.gmra.mrb[0].mxu0 %v1359
        %v1710 = vpop.f32.mrb[0].mxu0
        %v1711 = vadd.f32 %v1180, %v1710
        %v1712 = vpop.f32.mrb[0].mxu0
        %v1713 = vadd.f32 %v1184, %v1712
        %v1714 = vpop.f32.mrb[0].mxu0
        %v1715 = vadd.f32 %v1180, %v1714
        %v1716 = vpop.f32.mrb[0].mxu0
        %v1717 = vadd.f32 %v1184, %v1716
        %1718 = vmatprep.mubr.bf16.mxu0 0
        %1719 = vmatmul.mubr.bf16.gmra.mrb[0].mxu0 %v1362
        %v1720 = vpop.f32.mrb[0].mxu0
        %v1721 = vadd.f32 %v1180, %v1720
        %v1722 = vpop.f32.mrb[0].mxu0
        %v1723 = vadd.f32 %v1184, %v1722
        %v1724 = vpop.f32.mrb[0].mxu0
        %v1725 = vadd.f32 %v1180, %v1724
        %v1726 = vpop.f32.mrb[0].mxu0
        %v1727 = vadd.f32 %v1184, %v1726
        %1728 = vmatprep.mubr.bf16.mxu0 0
        %1729 = vmatmul.mubr.bf16.gmra.mrb[0].mxu0 %v1365
        %v1730 = vpop.f32.mrb[0].mxu0
        %v1731 = vadd.f32 %v1180, %v1730
        %v1732 = vpop.f32.mrb[0].mxu0
        %v1733 = vadd.f32 %v1184, %v1732
        %v1734 = vpop.f32.mrb[0].mxu0
        %v1735 = vadd.f32 %v1180, %v1734
        %v1736 = vpop.f32.mrb[0].mxu0
        %v1737 = vadd.f32 %v1184, %v1736
        %1738 = vmatprep.mubr.bf16.mxu0 0
        %1739 = vmatmul.mubr.bf16.gmra.mrb[0].mxu0 %v1368
        %v1740 = vpop.f32.mrb[0].mxu0
        %v1741 = vadd.f32 %v1180, %v1740
        %v1742 = vpop.f32.mrb[0].mxu0
        %v1743 = vadd.f32 %v1184, %v1742
        %v1744 = vpop.f32.mrb[0].mxu0
        %v1745 = vadd.f32 %v1180, %v1744
        %v1746 = vpop.f32.mrb[0].mxu0
        %v1747 = vadd.f32 %v1184, %v1746
        %1748 = vmatprep.mubr.bf16.mxu0 0
        %1749 = vmatmul.mubr.bf16.gmra.mrb[0].mxu0 %v1371
        %v1750 = vpop.f32.mrb[0].mxu0
        %v1751 = vadd.f32 %v1180, %v1750
        %v1752 = vpop.f32.mrb[0].mxu0
        %v1753 = vadd.f32 %v1184, %v1752
        %v1754 = vpop.f32.mrb[0].mxu0
        %v1755 = vadd.f32 %v1180, %v1754
        %v1756 = vpop.f32.mrb[0].mxu0
        %v1757 = vadd.f32 %v1184, %v1756
        %1758 = vdwg.mxu0
        %1759 = vmatprep.subr.bf16.mxu0 0
        %1760 = vmatpush1.bf16.msra.mxu0 %v1278
        %1761 = vmatprep.subr.bf16.mxu0 0
        %1762 = vmatpush1.bf16.msra.mxu0 %v1283
        %1763 = vmatprep.subr.bf16.mxu0 0
        %1764 = vmatpush1.bf16.msra.mxu0 %v1288
        %1765 = vmatprep.subr.bf16.mxu0 0
        %1766 = vmatpush1.bf16.msra.mxu0 %v1293
        %1767 = vmatprep.subr.bf16.mxu0 0
        %1768 = vmatpush1.bf16.msra.mxu0 %v1298
        %1769 = vmatprep.subr.bf16.mxu0 0
        %1770 = vmatpush1.bf16.msra.mxu0 0
        %1771 = vmatprep.subr.bf16.mxu0 0
        %1772 = vmatpush1.bf16.msra.mxu0 0
        %1773 = vmatprep.subr.bf16.mxu0 0
        %1774 = vmatpush1.bf16.msra.mxu0 0
        %1775 = vmatprep.subr.bf16.mxu0 0
        %1776 = vmatpush1.bf16.msra.mxu0 0
        %1777 = vmatprep.subr.bf16.mxu0 0
        %1778 = vmatpush1.bf16.msra.mxu0 0
        %1779 = vmatprep.subr.bf16.mxu0 0
        %1780 = vmatpush1.bf16.msra.mxu0 0
        %1781 = vmatprep.subr.bf16.mxu0 0
        %1782 = vmatpush1.bf16.msra.mxu0 0
        %1783 = vmatprep.subr.bf16.mxu0 0
        %1784 = vmatpush1.bf16.msra.mxu0 0
        %1785 = vmatprep.subr.bf16.mxu0 0
        %1786 = vmatpush1.bf16.msra.mxu0 0
        %1787 = vmatprep.subr.bf16.mxu0 0
        %1788 = vmatpush1.bf16.msra.mxu0 0
        %1789 = vmatprep.subr.bf16.mxu0 0
        %1790 = vmatpush1.bf16.msra.mxu0 0
        %1791 = vmatprep.mubr.bf16.mxu0 0
        %1792 = vmatmul.mubr.bf16.gmra.mrb[0].mxu0 %v1326
        %v1793 = vpop.f32.mrb[0].mxu0
        %v1794 = vadd.f32 %v1188, %v1793
        %v1795 = vpop.f32.mrb[0].mxu0
        %v1796 = vpop.f32.mrb[0].mxu0
        %v1797 = vadd.f32 %v1188, %v1796
        %v1798 = vpop.f32.mrb[0].mxu0
        %1799 = vmatprep.mubr.bf16.mxu0 0
        %1800 = vmatmul.mubr.bf16.gmra.mrb[0].mxu0 %v1329
        %v1801 = vpop.f32.mrb[0].mxu0
        %v1802 = vadd.f32 %v1188, %v1801
        %v1803 = vpop.f32.mrb[0].mxu0
        %v1804 = vpop.f32.mrb[0].mxu0
        %v1805 = vadd.f32 %v1188, %v1804
        %v1806 = vpop.f32.mrb[0].mxu0
        %1807 = vmatprep.mubr.bf16.mxu0 0
        %1808 = vmatmul.mubr.bf16.gmra.mrb[0].mxu0 %v1332
        %v1809 = vpop.f32.mrb[0].mxu0
        %v1810 = vadd.f32 %v1188, %v1809
        %v1811 = vpop.f32.mrb[0].mxu0
        %v1812 = vpop.f32.mrb[0].mxu0
        %v1813 = vadd.f32 %v1188, %v1812
        %v1814 = vpop.f32.mrb[0].mxu0
        %1815 = vmatprep.mubr.bf16.mxu0 0
        %1816 = vmatmul.mubr.bf16.gmra.mrb[0].mxu0 %v1335
        %v1817 = vpop.f32.mrb[0].mxu0
        %v1818 = vadd.f32 %v1188, %v1817
        %v1819 = vpop.f32.mrb[0].mxu0
        %v1820 = vpop.f32.mrb[0].mxu0
        %v1821 = vadd.f32 %v1188, %v1820
        %v1822 = vpop.f32.mrb[0].mxu0
        %1823 = vmatprep.mubr.bf16.mxu0 0
        %1824 = vmatmul.mubr.bf16.gmra.mrb[0].mxu0 %v1338
        %v1825 = vpop.f32.mrb[0].mxu0
        %v1826 = vadd.f32 %v1188, %v1825
        %v1827 = vpop.f32.mrb[0].mxu0
        %v1828 = vpop.f32.mrb[0].mxu0
        %v1829 = vadd.f32 %v1188, %v1828
        %v1830 = vpop.f32.mrb[0].mxu0
        %1831 = vmatprep.mubr.bf16.mxu0 0
        %1832 = vmatmul.mubr.bf16.gmra.mrb[0].mxu0 %v1341
        %v1833 = vpop.f32.mrb[0].mxu0
        %v1834 = vadd.f32 %v1188, %v1833
        %v1835 = vpop.f32.mrb[0].mxu0
        %v1836 = vpop.f32.mrb[0].mxu0
        %v1837 = vadd.f32 %v1188, %v1836
        %v1838 = vpop.f32.mrb[0].mxu0
        %1839 = vmatprep.mubr.bf16.mxu0 0
        %1840 = vmatmul.mubr.bf16.gmra.mrb[0].mxu0 %v1344
        %v1841 = vpop.f32.mrb[0].mxu0
        %v1842 = vadd.f32 %v1188, %v1841
        %v1843 = vpop.f32.mrb[0].mxu0
        %v1844 = vpop.f32.mrb[0].mxu0
        %v1845 = vadd.f32 %v1188, %v1844
        %v1846 = vpop.f32.mrb[0].mxu0
        %1847 = vmatprep.mubr.bf16.mxu0 0
        %1848 = vmatmul.mubr.bf16.gmra.mrb[0].mxu0 %v1347
        %v1849 = vpop.f32.mrb[0].mxu0
        %v1850 = vadd.f32 %v1188, %v1849
        %v1851 = vpop.f32.mrb[0].mxu0
        %v1852 = vpop.f32.mrb[0].mxu0
        %v1853 = vadd.f32 %v1188, %v1852
        %v1854 = vpop.f32.mrb[0].mxu0
        %1855 = vmatprep.mubr.bf16.mxu0 0
        %1856 = vmatmul.mubr.bf16.gmra.mrb[0].mxu0 %v1350
        %v1857 = vpop.f32.mrb[0].mxu0
        %v1858 = vadd.f32 %v1188, %v1857
        %v1859 = vpop.f32.mrb[0].mxu0
        %v1860 = vpop.f32.mrb[0].mxu0
        %v1861 = vadd.f32 %v1188, %v1860
        %v1862 = vpop.f32.mrb[0].mxu0
        %1863 = vmatprep.mubr.bf16.mxu0 0
        %1864 = vmatmul.mubr.bf16.gmra.mrb[0].mxu0 %v1353
        %v1865 = vpop.f32.mrb[0].mxu0
        %v1866 = vadd.f32 %v1188, %v1865
        %v1867 = vpop.f32.mrb[0].mxu0
        %v1868 = vpop.f32.mrb[0].mxu0
        %v1869 = vadd.f32 %v1188, %v1868
        %v1870 = vpop.f32.mrb[0].mxu0
        %1871 = vmatprep.mubr.bf16.mxu0 0
        %1872 = vmatmul.mubr.bf16.gmra.mrb[0].mxu0 %v1356
        %v1873 = vpop.f32.mrb[0].mxu0
        %v1874 = vadd.f32 %v1188, %v1873
        %v1875 = vpop.f32.mrb[0].mxu0
        %v1876 = vpop.f32.mrb[0].mxu0
        %v1877 = vadd.f32 %v1188, %v1876
        %v1878 = vpop.f32.mrb[0].mxu0
        %1879 = vmatprep.mubr.bf16.mxu0 0
        %1880 = vmatmul.mubr.bf16.gmra.mrb[0].mxu0 %v1359
        %v1881 = vpop.f32.mrb[0].mxu0
        %v1882 = vadd.f32 %v1188, %v1881
        %v1883 = vpop.f32.mrb[0].mxu0
        %v1884 = vpop.f32.mrb[0].mxu0
        %v1885 = vadd.f32 %v1188, %v1884
        %v1886 = vpop.f32.mrb[0].mxu0
        %1887 = vmatprep.mubr.bf16.mxu0 0
        %1888 = vmatmul.mubr.bf16.gmra.mrb[0].mxu0 %v1362
        %v1889 = vpop.f32.mrb[0].mxu0
        %v1890 = vadd.f32 %v1188, %v1889
        %v1891 = vpop.f32.mrb[0].mxu0
        %v1892 = vpop.f32.mrb[0].mxu0
        %v1893 = vadd.f32 %v1188, %v1892
        %v1894 = vpop.f32.mrb[0].mxu0
        %1895 = vmatprep.mubr.bf16.mxu0 0
        %1896 = vmatmul.mubr.bf16.gmra.mrb[0].mxu0 %v1365
        %v1897 = vpop.f32.mrb[0].mxu0
        %v1898 = vadd.f32 %v1188, %v1897
        %v1899 = vpop.f32.mrb[0].mxu0
        %v1900 = vpop.f32.mrb[0].mxu0
        %v1901 = vadd.f32 %v1188, %v1900
        %v1902 = vpop.f32.mrb[0].mxu0
        %1903 = vmatprep.mubr.bf16.mxu0 0
        %1904 = vmatmul.mubr.bf16.gmra.mrb[0].mxu0 %v1368
        %v1905 = vpop.f32.mrb[0].mxu0
        %v1906 = vadd.f32 %v1188, %v1905
        %v1907 = vpop.f32.mrb[0].mxu0
        %v1908 = vpop.f32.mrb[0].mxu0
        %v1909 = vadd.f32 %v1188, %v1908
        %v1910 = vpop.f32.mrb[0].mxu0
        %1911 = vmatprep.mubr.bf16.mxu0 0
        %1912 = vmatmul.mubr.bf16.gmra.mrb[0].mxu0 %v1371
        %v1913 = vpop.f32.mrb[0].mxu0
        %v1914 = vadd.f32 %v1188, %v1913
        %v1915 = vpop.f32.mrb[0].mxu0
        %v1916 = vpop.f32.mrb[0].mxu0
        %v1917 = vadd.f32 %v1188, %v1916
        %v1918 = vpop.f32.mrb[0].mxu0
        %1919 = vdwg.mxu0
        %v1920 = vtanh.pop %v1408
        %v1921 = vtanh.pop %v1410
        %v1922 = vtanh.pop %v1601
        %v1923 = vtanh.pop %v1603
        %v1924 = vtanh.pop %v1794
        %v1925 = vtanh.pop %v1412
        %v1926 = vtanh.pop %v1414
        %v1927 = vtanh.pop %v1605
        %v1928 = vtanh.pop %v1607
        %v1929 = vtanh.pop %v1797
        %v1930 = vtanh.pop %v1418
        %v1931 = vtanh.pop %v1420
        %v1932 = vtanh.pop %v1611
        %v1933 = vtanh.pop %v1613
        %v1934 = vtanh.pop %v1802
        %v1935 = vtanh.pop %v1422
        %v1936 = vtanh.pop %v1424
        %v1937 = vtanh.pop %v1615
        %v1938 = vtanh.pop %v1617
        %v1939 = vtanh.pop %v1805
        %v1940 = vtanh.pop %v1428
        %v1941 = vtanh.pop %v1430
        %v1942 = vtanh.pop %v1621
        %v1943 = vtanh.pop %v1623
        %v1944 = vtanh.pop %v1810
        %v1945 = vtanh.pop %v1432
        %v1946 = vtanh.pop %v1434
        %v1947 = vtanh.pop %v1625
        %v1948 = vtanh.pop %v1627
        %v1949 = vtanh.pop %v1813
        %v1950 = vtanh.pop %v1438
        %v1951 = vtanh.pop %v1440
        %v1952 = vtanh.pop %v1631
        %v1953 = vtanh.pop %v1633
        %v1954 = vtanh.pop %v1818
        %v1955 = vtanh.pop %v1442
        %v1956 = vtanh.pop %v1444
        %v1957 = vtanh.pop %v1635
        %v1958 = vtanh.pop %v1637
        %v1959 = vtanh.pop %v1821
        %v1960 = vtanh.pop %v1448
        %v1961 = vtanh.pop %v1450
        %v1962 = vtanh.pop %v1641
        %v1963 = vtanh.pop %v1643
        %v1964 = vtanh.pop %v1826
        %v1965 = vtanh.pop %v1452
        %v1966 = vtanh.pop %v1454
        %v1967 = vtanh.pop %v1645
        %v1968 = vtanh.pop %v1647
        %v1969 = vtanh.pop %v1829
        %v1970 = vtanh.pop %v1458
        %v1971 = vtanh.pop %v1460
        %v1972 = vtanh.pop %v1651
        %v1973 = vtanh.pop %v1653
        %v1974 = vtanh.pop %v1834
        %v1975 = vtanh.pop %v1462
        %v1976 = vtanh.pop %v1464
        %v1977 = vtanh.pop %v1655
        %v1978 = vtanh.pop %v1657
        %v1979 = vtanh.pop %v1837
        %v1980 = vtanh.pop %v1468
        %v1981 = vtanh.pop %v1470
        %v1982 = vtanh.pop %v1661
        %v1983 = vtanh.pop %v1663
        %v1984 = vtanh.pop %v1842
        %v1985 = vtanh.pop %v1472
        %v1986 = vtanh.pop %v1474
        %v1987 = vtanh.pop %v1665
        %v1988 = vtanh.pop %v1667
        %v1989 = vtanh.pop %v1845
        %v1990 = vtanh.pop %v1478
        %v1991 = vtanh.pop %v1480
        %v1992 = vtanh.pop %v1671
        %v1993 = vtanh.pop %v1673
        %v1994 = vtanh.pop %v1850
        %v1995 = vtanh.pop %v1482
        %v1996 = vtanh.pop %v1484
        %v1997 = vtanh.pop %v1675
        %v1998 = vtanh.pop %v1677
        %v1999 = vtanh.pop %v1853
        %v2000 = vtanh.pop %v1488
        %v2001 = vtanh.pop %v1490
        %v2002 = vtanh.pop %v1681
        %v2003 = vtanh.pop %v1683
        %v2004 = vtanh.pop %v1858
        %v2005 = vtanh.pop %v1492
        %v2006 = vtanh.pop %v1494
        %v2007 = vtanh.pop %v1685
        %v2008 = vtanh.pop %v1687
        %v2009 = vtanh.pop %v1861
        %v2010 = vtanh.pop %v1498
        %v2011 = vtanh.pop %v1500
        %v2012 = vtanh.pop %v1691
        %v2013 = vtanh.pop %v1693
        %v2014 = vtanh.pop %v1866
        %v2015 = vtanh.pop %v1502
        %v2016 = vtanh.pop %v1504
        %v2017 = vtanh.pop %v1695
        %v2018 = vtanh.pop %v1697
        %v2019 = vtanh.pop %v1869
        %v2020 = vtanh.pop %v1508
        %v2021 = vtanh.pop %v1510
        %v2022 = vtanh.pop %v1701
        %v2023 = vtanh.pop %v1703
        %v2024 = vtanh.pop %v1874
        %v2025 = vtanh.pop %v1512
        %v2026 = vtanh.pop %v1514
        %v2027 = vtanh.pop %v1705
        %v2028 = vtanh.pop %v1707
        %v2029 = vtanh.pop %v1877
        %v2030 = vtanh.pop %v1518
        %v2031 = vtanh.pop %v1520
        %v2032 = vtanh.pop %v1711
        %v2033 = vtanh.pop %v1713
        %v2034 = vtanh.pop %v1882
        %v2035 = vtanh.pop %v1522
        %v2036 = vtanh.pop %v1524
        %v2037 = vtanh.pop %v1715
        %v2038 = vtanh.pop %v1717
        %v2039 = vtanh.pop %v1885
        %v2040 = vtanh.pop %v1528
        %v2041 = vtanh.pop %v1530
        %v2042 = vtanh.pop %v1721
        %v2043 = vtanh.pop %v1723
        %v2044 = vtanh.pop %v1890
        %v2045 = vtanh.pop %v1532
        %v2046 = vtanh.pop %v1534
        %v2047 = vtanh.pop %v1725
        %v2048 = vtanh.pop %v1727
        %v2049 = vtanh.pop %v1893
        %v2050 = vtanh.pop %v1538
        %v2051 = vtanh.pop %v1540
        %v2052 = vtanh.pop %v1731
        %v2053 = vtanh.pop %v1733
        %v2054 = vtanh.pop %v1898
        %v2055 = vtanh.pop %v1542
        %v2056 = vtanh.pop %v1544
        %v2057 = vtanh.pop %v1735
        %v2058 = vtanh.pop %v1737
        %v2059 = vtanh.pop %v1901
        %v2060 = vtanh.pop %v1548
        %v2061 = vtanh.pop %v1550
        %v2062 = vtanh.pop %v1741
        %v2063 = vtanh.pop %v1743
        %v2064 = vtanh.pop %v1906
        %v2065 = vtanh.pop %v1552
        %v2066 = vtanh.pop %v1554
        %v2067 = vtanh.pop %v1745
        %v2068 = vtanh.pop %v1747
        %v2069 = vtanh.pop %v1909
        %v2070 = vtanh.pop %v1558
        %v2071 = vtanh.pop %v1560
        %v2072 = vtanh.pop %v1751
        %v2073 = vtanh.pop %v1753
        %v2074 = vtanh.pop %v1914
        %v2075 = vtanh.pop %v1562
        %v2076 = vtanh.pop %v1564
        %v2077 = vtanh.pop %v1755
        %v2078 = vtanh.pop %v1757
        %v2079 = vtanh.pop %v1917
        %v2081 = vlaneseq
        %v2082 = vshrl.u32 %v2081, 7
        %v2083 = vsub.s32 0, %v2082
        %v2084 = vrot.slane %v1121, %v2083
        %v2085 = vlaneseq
        %v2086 = vshrl.u32 %v2085, 7
        %v2087 = vsub.s32 1, %v2086
        %v2088 = vrot.slane %v1121, %v2087
        %v2089 = vlaneseq
        %v2090 = vshrl.u32 %v2089, 7
        %v2091 = vsub.s32 2, %v2090
        %v2092 = vrot.slane %v1121, %v2091
        %v2093 = vlaneseq
        %v2094 = vshrl.u32 %v2093, 7
        %v2095 = vsub.s32 3, %v2094
        %v2096 = vrot.slane %v1121, %v2095
        %v2097 = vlaneseq
        %v2098 = vshrl.u32 %v2097, 7
        %v2099 = vsub.s32 4, %v2098
        %v2100 = vrot.slane %v1121, %v2099
        %v2106 = vadd.f32 %v1920, %v2084
        %v2107 = vadd.f32 %v1921, %v2088
        %v2108 = vadd.f32 %v1922, %v2092
        %v2109 = vadd.f32 %v1923, %v2096
        %v2110 = vadd.f32 %v1924, %v2100
        %v2111 = vadd.f32 %v1925, %v2084
        %v2112 = vadd.f32 %v1926, %v2088
        %v2113 = vadd.f32 %v1927, %v2092
        %v2114 = vadd.f32 %v1928, %v2096
        %v2115 = vadd.f32 %v1929, %v2100
        %v2116 = vadd.f32 %v1930, %v2084
        %v2117 = vadd.f32 %v1931, %v2088
        %v2118 = vadd.f32 %v1932, %v2092
        %v2119 = vadd.f32 %v1933, %v2096
        %v2120 = vadd.f32 %v1934, %v2100
        %v2121 = vadd.f32 %v1935, %v2084
        %v2122 = vadd.f32 %v1936, %v2088
        %v2123 = vadd.f32 %v1937, %v2092
        %v2124 = vadd.f32 %v1938, %v2096
        %v2125 = vadd.f32 %v1939, %v2100
        %v2126 = vadd.f32 %v1940, %v2084
        %v2127 = vadd.f32 %v1941, %v2088
        %v2128 = vadd.f32 %v1942, %v2092
        %v2129 = vadd.f32 %v1943, %v2096
        %v2130 = vadd.f32 %v1944, %v2100
        %v2131 = vadd.f32 %v1945, %v2084
        %v2132 = vadd.f32 %v1946, %v2088
        %v2133 = vadd.f32 %v1947, %v2092
        %v2134 = vadd.f32 %v1948, %v2096
        %v2135 = vadd.f32 %v1949, %v2100
        %v2136 = vadd.f32 %v1950, %v2084
        %v2137 = vadd.f32 %v1951, %v2088
        %v2138 = vadd.f32 %v1952, %v2092
        %v2139 = vadd.f32 %v1953, %v2096
        %v2140 = vadd.f32 %v1954, %v2100
        %v2141 = vadd.f32 %v1955, %v2084
        %v2142 = vadd.f32 %v1956, %v2088
        %v2143 = vadd.f32 %v1957, %v2092
        %v2144 = vadd.f32 %v1958, %v2096
        %v2145 = vadd.f32 %v1959, %v2100
        %v2146 = vadd.f32 %v1960, %v2084
        %v2147 = vadd.f32 %v1961, %v2088
        %v2148 = vadd.f32 %v1962, %v2092
        %v2149 = vadd.f32 %v1963, %v2096
        %v2150 = vadd.f32 %v1964, %v2100
        %v2151 = vadd.f32 %v1965, %v2084
        %v2152 = vadd.f32 %v1966, %v2088
        %v2153 = vadd.f32 %v1967, %v2092
        %v2154 = vadd.f32 %v1968, %v2096
        %v2155 = vadd.f32 %v1969, %v2100
        %v2156 = vadd.f32 %v1970, %v2084
        %v2157 = vadd.f32 %v1971, %v2088
        %v2158 = vadd.f32 %v1972, %v2092
        %v2159 = vadd.f32 %v1973, %v2096
        %v2160 = vadd.f32 %v1974, %v2100
        %v2161 = vadd.f32 %v1975, %v2084
        %v2162 = vadd.f32 %v1976, %v2088
        %v2163 = vadd.f32 %v1977, %v2092
        %v2164 = vadd.f32 %v1978, %v2096
        %v2165 = vadd.f32 %v1979, %v2100
        %v2166 = vadd.f32 %v1980, %v2084
        %v2167 = vadd.f32 %v1981, %v2088
        %v2168 = vadd.f32 %v1982, %v2092
        %v2169 = vadd.f32 %v1983, %v2096
        %v2170 = vadd.f32 %v1984, %v2100
        %v2171 = vadd.f32 %v1985, %v2084
        %v2172 = vadd.f32 %v1986, %v2088
        %v2173 = vadd.f32 %v1987, %v2092
        %v2174 = vadd.f32 %v1988, %v2096
        %v2175 = vadd.f32 %v1989, %v2100
        %v2176 = vadd.f32 %v1990, %v2084
        %v2177 = vadd.f32 %v1991, %v2088
        %v2178 = vadd.f32 %v1992, %v2092
        %v2179 = vadd.f32 %v1993, %v2096
        %v2180 = vadd.f32 %v1994, %v2100
        %v2181 = vadd.f32 %v1995, %v2084
        %v2182 = vadd.f32 %v1996, %v2088
        %v2183 = vadd.f32 %v1997, %v2092
        %v2184 = vadd.f32 %v1998, %v2096
        %v2185 = vadd.f32 %v1999, %v2100
        %v2186 = vadd.f32 %v2000, %v2084
        %v2187 = vadd.f32 %v2001, %v2088
        %v2188 = vadd.f32 %v2002, %v2092
        %v2189 = vadd.f32 %v2003, %v2096
        %v2190 = vadd.f32 %v2004, %v2100
        %v2191 = vadd.f32 %v2005, %v2084
        %v2192 = vadd.f32 %v2006, %v2088
        %v2193 = vadd.f32 %v2007, %v2092
        %v2194 = vadd.f32 %v2008, %v2096
        %v2195 = vadd.f32 %v2009, %v2100
        %v2196 = vadd.f32 %v2010, %v2084
        %v2197 = vadd.f32 %v2011, %v2088
        %v2198 = vadd.f32 %v2012, %v2092
        %v2199 = vadd.f32 %v2013, %v2096
        %v2200 = vadd.f32 %v2014, %v2100
        %v2201 = vadd.f32 %v2015, %v2084
        %v2202 = vadd.f32 %v2016, %v2088
        %v2203 = vadd.f32 %v2017, %v2092
        %v2204 = vadd.f32 %v2018, %v2096
        %v2205 = vadd.f32 %v2019, %v2100
        %v2206 = vadd.f32 %v2020, %v2084
        %v2207 = vadd.f32 %v2021, %v2088
        %v2208 = vadd.f32 %v2022, %v2092
        %v2209 = vadd.f32 %v2023, %v2096
        %v2210 = vadd.f32 %v2024, %v2100
        %v2211 = vadd.f32 %v2025, %v2084
        %v2212 = vadd.f32 %v2026, %v2088
        %v2213 = vadd.f32 %v2027, %v2092
        %v2214 = vadd.f32 %v2028, %v2096
        %v2215 = vadd.f32 %v2029, %v2100
        %v2216 = vadd.f32 %v2030, %v2084
        %v2217 = vadd.f32 %v2031, %v2088
        %v2218 = vadd.f32 %v2032, %v2092
        %v2219 = vadd.f32 %v2033, %v2096
        %v2220 = vadd.f32 %v2034, %v2100
        %v2221 = vadd.f32 %v2035, %v2084
        %v2222 = vadd.f32 %v2036, %v2088
        %v2223 = vadd.f32 %v2037, %v2092
        %v2224 = vadd.f32 %v2038, %v2096
        %v2225 = vadd.f32 %v2039, %v2100
        %v2226 = vadd.f32 %v2040, %v2084
        %v2227 = vadd.f32 %v2041, %v2088
        %v2228 = vadd.f32 %v2042, %v2092
        %v2229 = vadd.f32 %v2043, %v2096
        %v2230 = vadd.f32 %v2044, %v2100
        %v2231 = vadd.f32 %v2045, %v2084
        %v2232 = vadd.f32 %v2046, %v2088
        %v2233 = vadd.f32 %v2047, %v2092
        %v2234 = vadd.f32 %v2048, %v2096
        %v2235 = vadd.f32 %v2049, %v2100
        %v2236 = vadd.f32 %v2050, %v2084
        %v2237 = vadd.f32 %v2051, %v2088
        %v2238 = vadd.f32 %v2052, %v2092
        %v2239 = vadd.f32 %v2053, %v2096
        %v2240 = vadd.f32 %v2054, %v2100
        %v2241 = vadd.f32 %v2055, %v2084
        %v2242 = vadd.f32 %v2056, %v2088
        %v2243 = vadd.f32 %v2057, %v2092
        %v2244 = vadd.f32 %v2058, %v2096
        %v2245 = vadd.f32 %v2059, %v2100
        %v2246 = vadd.f32 %v2060, %v2084
        %v2247 = vadd.f32 %v2061, %v2088
        %v2248 = vadd.f32 %v2062, %v2092
        %v2249 = vadd.f32 %v2063, %v2096
        %v2250 = vadd.f32 %v2064, %v2100
        %v2251 = vadd.f32 %v2065, %v2084
        %v2252 = vadd.f32 %v2066, %v2088
        %v2253 = vadd.f32 %v2067, %v2092
        %v2254 = vadd.f32 %v2068, %v2096
        %v2255 = vadd.f32 %v2069, %v2100
        %v2256 = vadd.f32 %v2070, %v2084
        %v2257 = vadd.f32 %v2071, %v2088
        %v2258 = vadd.f32 %v2072, %v2092
        %v2259 = vadd.f32 %v2073, %v2096
        %v2260 = vadd.f32 %v2074, %v2100
        %v2261 = vadd.f32 %v2075, %v2084
        %v2262 = vadd.f32 %v2076, %v2088
        %v2263 = vadd.f32 %v2077, %v2092
        %v2264 = vadd.f32 %v2078, %v2096
        %v2265 = vadd.f32 %v2079, %v2100
        %v2266 = vpack.c.bf16 %v2111, %v2106
        %v2267 = vpack.c.bf16 %v2112, %v2107
        %v2268 = vpack.c.bf16 %v2113, %v2108
        %v2269 = vpack.c.bf16 %v2114, %v2109
        %v2270 = vpack.c.bf16 %v2115, %v2110
        %v2271 = vpack.c.bf16 %v2121, %v2116
        %v2272 = vpack.c.bf16 %v2122, %v2117
        %v2273 = vpack.c.bf16 %v2123, %v2118
        %v2274 = vpack.c.bf16 %v2124, %v2119
        %v2275 = vpack.c.bf16 %v2125, %v2120
        %v2276 = vpack.c.bf16 %v2131, %v2126
        %v2277 = vpack.c.bf16 %v2132, %v2127
        %v2278 = vpack.c.bf16 %v2133, %v2128
        %v2279 = vpack.c.bf16 %v2134, %v2129
        %v2280 = vpack.c.bf16 %v2135, %v2130
        %v2281 = vpack.c.bf16 %v2141, %v2136
        %v2282 = vpack.c.bf16 %v2142, %v2137
        %v2283 = vpack.c.bf16 %v2143, %v2138
        %v2284 = vpack.c.bf16 %v2144, %v2139
        %v2285 = vpack.c.bf16 %v2145, %v2140
        %v2286 = vpack.c.bf16 %v2151, %v2146
        %v2287 = vpack.c.bf16 %v2152, %v2147
        %v2288 = vpack.c.bf16 %v2153, %v2148
        %v2289 = vpack.c.bf16 %v2154, %v2149
        %v2290 = vpack.c.bf16 %v2155, %v2150
        %v2291 = vpack.c.bf16 %v2161, %v2156
        %v2292 = vpack.c.bf16 %v2162, %v2157
        %v2293 = vpack.c.bf16 %v2163, %v2158
        %v2294 = vpack.c.bf16 %v2164, %v2159
        %v2295 = vpack.c.bf16 %v2165, %v2160
        %v2296 = vpack.c.bf16 %v2171, %v2166
        %v2297 = vpack.c.bf16 %v2172, %v2167
        %v2298 = vpack.c.bf16 %v2173, %v2168
        %v2299 = vpack.c.bf16 %v2174, %v2169
        %v2300 = vpack.c.bf16 %v2175, %v2170
        %v2301 = vpack.c.bf16 %v2181, %v2176
        %v2302 = vpack.c.bf16 %v2182, %v2177
        %v2303 = vpack.c.bf16 %v2183, %v2178
        %v2304 = vpack.c.bf16 %v2184, %v2179
        %v2305 = vpack.c.bf16 %v2185, %v2180
        %v2306 = vpack.c.bf16 %v2191, %v2186
        %v2307 = vpack.c.bf16 %v2192, %v2187
        %v2308 = vpack.c.bf16 %v2193, %v2188
        %v2309 = vpack.c.bf16 %v2194, %v2189
        %v2310 = vpack.c.bf16 %v2195, %v2190
        %v2311 = vpack.c.bf16 %v2201, %v2196
        %v2312 = vpack.c.bf16 %v2202, %v2197
        %v2313 = vpack.c.bf16 %v2203, %v2198
        %v2314 = vpack.c.bf16 %v2204, %v2199
        %v2315 = vpack.c.bf16 %v2205, %v2200
        %v2316 = vpack.c.bf16 %v2211, %v2206
        %v2317 = vpack.c.bf16 %v2212, %v2207
        %v2318 = vpack.c.bf16 %v2213, %v2208
        %v2319 = vpack.c.bf16 %v2214, %v2209
        %v2320 = vpack.c.bf16 %v2215, %v2210
        %v2321 = vpack.c.bf16 %v2221, %v2216
        %v2322 = vpack.c.bf16 %v2222, %v2217
        %v2323 = vpack.c.bf16 %v2223, %v2218
        %v2324 = vpack.c.bf16 %v2224, %v2219
        %v2325 = vpack.c.bf16 %v2225, %v2220
        %v2326 = vpack.c.bf16 %v2231, %v2226
        %v2327 = vpack.c.bf16 %v2232, %v2227
        %v2328 = vpack.c.bf16 %v2233, %v2228
        %v2329 = vpack.c.bf16 %v2234, %v2229
        %v2330 = vpack.c.bf16 %v2235, %v2230
        %v2331 = vpack.c.bf16 %v2241, %v2236
        %v2332 = vpack.c.bf16 %v2242, %v2237
        %v2333 = vpack.c.bf16 %v2243, %v2238
        %v2334 = vpack.c.bf16 %v2244, %v2239
        %v2335 = vpack.c.bf16 %v2245, %v2240
        %v2336 = vpack.c.bf16 %v2251, %v2246
        %v2337 = vpack.c.bf16 %v2252, %v2247
        %v2338 = vpack.c.bf16 %v2253, %v2248
        %v2339 = vpack.c.bf16 %v2254, %v2249
        %v2340 = vpack.c.bf16 %v2255, %v2250
        %v2341 = vpack.c.bf16 %v2261, %v2256
        %v2342 = vpack.c.bf16 %v2262, %v2257
        %v2343 = vpack.c.bf16 %v2263, %v2258
        %v2344 = vpack.c.bf16 %v2264, %v2259
        %v2345 = vpack.c.bf16 %v2265, %v2260
        %v2346 = vld [vmem:[#allocation7] sm:$0xf]
        %v2347 = vld [vmem:[#allocation7 + $0x4] sm:$0xf]
        %v2348 = vld [vmem:[#allocation7 + $0x8] sm:$0xf]
        %v2349 = vld [vmem:[#allocation7 + $0xc] sm:$0xf]
        %v2350 = vld [vmem:[#allocation7 + $0x10] sm:$0xf]
        %v2351 = vld [vmem:[#allocation7 + $0x14] sm:$0xf]
        %v2352 = vld [vmem:[#allocation7 + $0x18] sm:$0xf]
        %v2353 = vld [vmem:[#allocation7 + $0x1c] sm:$0xf]
        %v2354 = vld [vmem:[#allocation7 + $0x20] sm:$0xf]
        %v2355 = vld [vmem:[#allocation7 + $0x24] sm:$0xf]
        %v2356 = vld [vmem:[#allocation7 + $0x28] sm:$0xf]
        %v2357 = vld [vmem:[#allocation7 + $0x2c] sm:$0xf]
        %v2358 = vld [vmem:[#allocation7 + $0x30] sm:$0xf]
        %v2359 = vld [vmem:[#allocation7 + $0x34] sm:$0xf]
        %v2360 = vld [vmem:[#allocation7 + $0x38] sm:$0xf]
        %v2361 = vld [vmem:[#allocation7 + $0x3c] sm:$0xf]
        %v2362 = vld [vmem:[#allocation7 + $0x40] sm:$0xf]
        %v2363 = vld [vmem:[#allocation7 + $0x44] sm:$0xf]
        %v2364 = vld [vmem:[#allocation7 + $0x48] sm:$0xf]
        %v2365 = vld [vmem:[#allocation7 + $0x4c] sm:$0xf]
        %v2366 = vld [vmem:[#allocation7 + $0x50] sm:$0xf]
        %v2367 = vld [vmem:[#allocation7 + $0x54] sm:$0xf]
        %v2368 = vld [vmem:[#allocation7 + $0x58] sm:$0xf]
        %v2369 = vld [vmem:[#allocation7 + $0x5c] sm:$0xf]
        %v2370 = vld [vmem:[#allocation7 + $0x60] sm:$0xf]
        %v2371 = vld [vmem:[#allocation7 + $0x64] sm:$0xf]
        %v2372 = vld [vmem:[#allocation7 + $0x68] sm:$0xf]
        %v2373 = vld [vmem:[#allocation7 + $0x6c] sm:$0xf]
        %v2374 = vld [vmem:[#allocation7 + $0x70] sm:$0xf]
        %v2375 = vld [vmem:[#allocation7 + $0x74] sm:$0xf]
        %v2376 = vld [vmem:[#allocation7 + $0x78] sm:$0xf]
        %v2377 = vld [vmem:[#allocation7 + $0x7c] sm:$0xf]
        %v2378 = vld [vmem:[#allocation7 + $0x80] sm:$0xf]
        %v2379 = vld [vmem:[#allocation7 + $0x84] sm:$0xf]
        %v2380 = vld [vmem:[#allocation7 + $0x88] sm:$0xf]
        %v2381 = vld [vmem:[#allocation7 + $0x8c] sm:$0xf]
        %v2382 = vld [vmem:[#allocation7 + $0x90] sm:$0xf]
        %v2383 = vld [vmem:[#allocation7 + $0x94] sm:$0xf]
        %v2384 = vld [vmem:[#allocation7 + $0x98] sm:$0xf]
        %v2385 = vld [vmem:[#allocation7 + $0x9c] sm:$0xf]
        %v2386 = vld [vmem:[#allocation7 + $0xa0] sm:$0xf]
        %v2387 = vld [vmem:[#allocation7 + $0xa4] sm:$0xf]
        %v2388 = vld [vmem:[#allocation7 + $0xa8] sm:$0xf]
        %v2389 = vld [vmem:[#allocation7 + $0xac] sm:$0xf]
        %v2390 = vld [vmem:[#allocation7 + $0xb0] sm:$0xf]
        %v2391 = vld [vmem:[#allocation7 + $0xb4] sm:$0xf]
        %v2392 = vld [vmem:[#allocation7 + $0xb8] sm:$0xf]
        %v2393 = vld [vmem:[#allocation7 + $0xbc] sm:$0xf]
        %v2394 = vld [vmem:[#allocation7 + $0xc0] sm:$0xf]
        %v2395 = vld [vmem:[#allocation7 + $0xc4] sm:$0xf]
        %v2396 = vld [vmem:[#allocation7 + $0xc8] sm:$0xf]
        %v2397 = vld [vmem:[#allocation7 + $0xcc] sm:$0xf]
        %v2398 = vld [vmem:[#allocation7 + $0xd0] sm:$0xf]
        %v2399 = vld [vmem:[#allocation7 + $0xd4] sm:$0xf]
        %v2400 = vld [vmem:[#allocation7 + $0xd8] sm:$0xf]
        %v2401 = vld [vmem:[#allocation7 + $0xdc] sm:$0xf]
        %v2402 = vld [vmem:[#allocation7 + $0xe0] sm:$0xf]
        %v2403 = vld [vmem:[#allocation7 + $0xe4] sm:$0xf]
        %v2404 = vld [vmem:[#allocation7 + $0xe8] sm:$0xf]
        %v2405 = vld [vmem:[#allocation7 + $0xec] sm:$0xf]
        %v2406 = vld [vmem:[#allocation7 + $0xf0] sm:$0xf]
        %v2407 = vld [vmem:[#allocation7 + $0xf4] sm:$0xf]
        %v2408 = vld [vmem:[#allocation7 + $0xf8] sm:$0xf]
        %v2409 = vld [vmem:[#allocation7 + $0xfc] sm:$0xf]
        %v2410 = vld [vmem:[#allocation7 + $0x100] sm:$0xf]
        %v2411 = vld [vmem:[#allocation7 + $0x104] sm:$0xf]
        %v2412 = vld [vmem:[#allocation7 + $0x108] sm:$0xf]
        %v2413 = vld [vmem:[#allocation7 + $0x10c] sm:$0xf]
        %v2414 = vld [vmem:[#allocation7 + $0x110] sm:$0xf]
        %v2415 = vld [vmem:[#allocation7 + $0x114] sm:$0xf]
        %v2416 = vld [vmem:[#allocation7 + $0x118] sm:$0xf]
        %v2417 = vld [vmem:[#allocation7 + $0x11c] sm:$0xf]
        %v2418 = vld [vmem:[#allocation7 + $0x120] sm:$0xf]
        %v2419 = vld [vmem:[#allocation7 + $0x124] sm:$0xf]
        %v2420 = vld [vmem:[#allocation7 + $0x128] sm:$0xf]
        %v2421 = vld [vmem:[#allocation7 + $0x12c] sm:$0xf]
        %v2422 = vld [vmem:[#allocation7 + $0x130] sm:$0xf]
        %v2423 = vld [vmem:[#allocation7 + $0x134] sm:$0xf]
        %v2424 = vld [vmem:[#allocation7 + $0x138] sm:$0xf]
        %v2425 = vld [vmem:[#allocation7 + $0x13c] sm:$0xf]
        %v2506 = vunpack.c.l.b16 %v2346
        %v2507 = vunpack.c.l.b16 %v2347
        %v2508 = vunpack.c.l.b16 %v2348
        %v2509 = vunpack.c.l.b16 %v2349
        %v2510 = vunpack.c.l.b16 %v2350
        %v2511 = vunpack.c.l.b16 %v2351
        %v2512 = vunpack.c.l.b16 %v2352
        %v2513 = vunpack.c.l.b16 %v2353
        %v2514 = vunpack.c.l.b16 %v2354
        %v2515 = vunpack.c.l.b16 %v2355
        %v2516 = vunpack.c.l.b16 %v2356
        %v2517 = vunpack.c.l.b16 %v2357
        %v2518 = vunpack.c.l.b16 %v2358
        %v2519 = vunpack.c.l.b16 %v2359
        %v2520 = vunpack.c.l.b16 %v2360
        %v2521 = vunpack.c.l.b16 %v2361
        %v2522 = vunpack.c.l.b16 %v2362
        %v2523 = vunpack.c.l.b16 %v2363
        %v2524 = vunpack.c.l.b16 %v2364
        %v2525 = vunpack.c.l.b16 %v2365
        %v2526 = vunpack.c.l.b16 %v2366
        %v2527 = vunpack.c.l.b16 %v2367
        %v2528 = vunpack.c.l.b16 %v2368
        %v2529 = vunpack.c.l.b16 %v2369
        %v2530 = vunpack.c.l.b16 %v2370
        %v2531 = vunpack.c.l.b16 %v2371
        %v2532 = vunpack.c.l.b16 %v2372
        %v2533 = vunpack.c.l.b16 %v2373
        %v2534 = vunpack.c.l.b16 %v2374
        %v2535 = vunpack.c.l.b16 %v2375
        %v2536 = vunpack.c.l.b16 %v2376
        %v2537 = vunpack.c.l.b16 %v2377
        %v2538 = vunpack.c.l.b16 %v2378
        %v2539 = vunpack.c.l.b16 %v2379
        %v2540 = vunpack.c.l.b16 %v2380
        %v2541 = vunpack.c.l.b16 %v2381
        %v2542 = vunpack.c.l.b16 %v2382
        %v2543 = vunpack.c.l.b16 %v2383
        %v2544 = vunpack.c.l.b16 %v2384
        %v2545 = vunpack.c.l.b16 %v2385
        %v2546 = vunpack.c.l.b16 %v2386
        %v2547 = vunpack.c.l.b16 %v2387
        %v2548 = vunpack.c.l.b16 %v2388
        %v2549 = vunpack.c.l.b16 %v2389
        %v2550 = vunpack.c.l.b16 %v2390
        %v2551 = vunpack.c.l.b16 %v2391
        %v2552 = vunpack.c.l.b16 %v2392
        %v2553 = vunpack.c.l.b16 %v2393
        %v2554 = vunpack.c.l.b16 %v2394
        %v2555 = vunpack.c.l.b16 %v2395
        %v2556 = vunpack.c.l.b16 %v2396
        %v2557 = vunpack.c.l.b16 %v2397
        %v2558 = vunpack.c.l.b16 %v2398
        %v2559 = vunpack.c.l.b16 %v2399
        %v2560 = vunpack.c.l.b16 %v2400
        %v2561 = vunpack.c.l.b16 %v2401
        %v2562 = vunpack.c.l.b16 %v2402
        %v2563 = vunpack.c.l.b16 %v2403
        %v2564 = vunpack.c.l.b16 %v2404
        %v2565 = vunpack.c.l.b16 %v2405
        %v2566 = vunpack.c.l.b16 %v2406
        %v2567 = vunpack.c.l.b16 %v2407
        %v2568 = vunpack.c.l.b16 %v2408
        %v2569 = vunpack.c.l.b16 %v2409
        %v2570 = vunpack.c.l.b16 %v2410
        %v2571 = vunpack.c.l.b16 %v2411
        %v2572 = vunpack.c.l.b16 %v2412
        %v2573 = vunpack.c.l.b16 %v2413
        %v2574 = vunpack.c.l.b16 %v2414
        %v2575 = vunpack.c.l.b16 %v2415
        %v2576 = vunpack.c.l.b16 %v2416
        %v2577 = vunpack.c.l.b16 %v2417
        %v2578 = vunpack.c.l.b16 %v2418
        %v2579 = vunpack.c.l.b16 %v2419
        %v2580 = vunpack.c.l.b16 %v2420
        %v2581 = vunpack.c.l.b16 %v2421
        %v2582 = vunpack.c.l.b16 %v2422
        %v2583 = vunpack.c.l.b16 %v2423
        %v2584 = vunpack.c.l.b16 %v2424
        %v2585 = vunpack.c.l.b16 %v2425
        %v2586 = vpack.c.b16 %v2507, %v2506
        %v2587 = vpack.c.b16 %v2509, %v2508
        %v2588 = vpack.c.b16 %v2511, %v2510
        %v2589 = vpack.c.b16 %v2513, %v2512
        %v2590 = vpack.c.b16 %v2515, %v2514
        %v2591 = vpack.c.b16 %v2517, %v2516
        %v2592 = vpack.c.b16 %v2519, %v2518
        %v2593 = vpack.c.b16 %v2521, %v2520
        %v2594 = vpack.c.b16 %v2523, %v2522
        %v2595 = vpack.c.b16 %v2525, %v2524
        %v2596 = vpack.c.b16 %v2527, %v2526
        %v2597 = vpack.c.b16 %v2529, %v2528
        %v2598 = vpack.c.b16 %v2531, %v2530
        %v2599 = vpack.c.b16 %v2533, %v2532
        %v2600 = vpack.c.b16 %v2535, %v2534
        %v2601 = vpack.c.b16 %v2537, %v2536
        %v2602 = vpack.c.b16 %v2539, %v2538
        %v2603 = vpack.c.b16 %v2541, %v2540
        %v2604 = vpack.c.b16 %v2543, %v2542
        %v2605 = vpack.c.b16 %v2545, %v2544
        %v2606 = vpack.c.b16 %v2547, %v2546
        %v2607 = vpack.c.b16 %v2549, %v2548
        %v2608 = vpack.c.b16 %v2551, %v2550
        %v2609 = vpack.c.b16 %v2553, %v2552
        %v2610 = vpack.c.b16 %v2555, %v2554
        %v2611 = vpack.c.b16 %v2557, %v2556
        %v2612 = vpack.c.b16 %v2559, %v2558
        %v2613 = vpack.c.b16 %v2561, %v2560
        %v2614 = vpack.c.b16 %v2563, %v2562
        %v2615 = vpack.c.b16 %v2565, %v2564
        %v2616 = vpack.c.b16 %v2567, %v2566
        %v2617 = vpack.c.b16 %v2569, %v2568
        %v2618 = vpack.c.b16 %v2571, %v2570
        %v2619 = vpack.c.b16 %v2573, %v2572
        %v2620 = vpack.c.b16 %v2575, %v2574
        %v2621 = vpack.c.b16 %v2577, %v2576
        %v2622 = vpack.c.b16 %v2579, %v2578
        %v2623 = vpack.c.b16 %v2581, %v2580
        %v2624 = vpack.c.b16 %v2583, %v2582
        %v2625 = vpack.c.b16 %v2585, %v2584
        %2666 = vmatprep.subr.bf16.mxu0 0
        %2667 = vmatpush1.bf16.msra.mxu0 %v2586
        %2668 = vmatprep.subr.bf16.mxu0 0
        %2669 = vmatpush1.bf16.msra.mxu0 %v2587
        %2670 = vmatprep.subr.bf16.mxu0 0
        %2671 = vmatpush1.bf16.msra.mxu0 %v2588
        %2672 = vmatprep.subr.bf16.mxu0 0
        %2673 = vmatpush1.bf16.msra.mxu0 %v2589
        %2674 = vmatprep.subr.bf16.mxu0 0
        %2675 = vmatpush1.bf16.msra.mxu0 %v2590
        %2676 = vmatprep.subr.bf16.mxu0 0
        %2677 = vmatpush1.bf16.msra.mxu0 %v2591
        %2678 = vmatprep.subr.bf16.mxu0 0
        %2679 = vmatpush1.bf16.msra.mxu0 %v2592
        %2680 = vmatprep.subr.bf16.mxu0 0
        %2681 = vmatpush1.bf16.msra.mxu0 %v2593
        %2682 = vmatprep.subr.bf16.mxu0 0
        %2683 = vmatpush1.bf16.msra.mxu0 %v2594
        %2684 = vmatprep.subr.bf16.mxu0 0
        %2685 = vmatpush1.bf16.msra.mxu0 %v2595
        %2686 = vmatprep.subr.bf16.mxu0 0
        %2687 = vmatpush1.bf16.msra.mxu0 %v2596
        %2688 = vmatprep.subr.bf16.mxu0 0
        %2689 = vmatpush1.bf16.msra.mxu0 %v2597
        %2690 = vmatprep.subr.bf16.mxu0 0
        %2691 = vmatpush1.bf16.msra.mxu0 %v2598
        %2692 = vmatprep.subr.bf16.mxu0 0
        %2693 = vmatpush1.bf16.msra.mxu0 %v2599
        %2694 = vmatprep.subr.bf16.mxu0 0
        %2695 = vmatpush1.bf16.msra.mxu0 %v2600
        %2696 = vmatprep.subr.bf16.mxu0 0
        %2697 = vmatpush1.bf16.msra.mxu0 %v2601
        %2698 = vmatprep.mubr.bf16.mxu0 %v2267
        %2699 = vmatmul.mubr.bf16.gmra.mrb[0].mxu0 %v2266
        %v2700 = vpop.f32.mrb[0].mxu0
        %v2701 = vadd.f32 0.0, %v2700
        %v2702 = vpop.f32.mrb[0].mxu0
        %v2703 = vpop.f32.mrb[0].mxu0
        %v2704 = vadd.f32 0.0, %v2703
        %v2705 = vpop.f32.mrb[0].mxu0
        %2706 = vmatprep.mubr.bf16.mxu0 %v2272
        %2707 = vmatmul.mubr.bf16.gmra.mrb[0].mxu0 %v2271
        %v2708 = vpop.f32.mrb[0].mxu0
        %v2709 = vadd.f32 0.0, %v2708
        %v2710 = vpop.f32.mrb[0].mxu0
        %v2711 = vpop.f32.mrb[0].mxu0
        %v2712 = vadd.f32 0.0, %v2711
        %v2713 = vpop.f32.mrb[0].mxu0
        %2714 = vmatprep.mubr.bf16.mxu0 %v2277
        %2715 = vmatmul.mubr.bf16.gmra.mrb[0].mxu0 %v2276
        %v2716 = vpop.f32.mrb[0].mxu0
        %v2717 = vadd.f32 0.0, %v2716
        %v2718 = vpop.f32.mrb[0].mxu0
        %v2719 = vpop.f32.mrb[0].mxu0
        %v2720 = vadd.f32 0.0, %v2719
        %v2721 = vpop.f32.mrb[0].mxu0
        %2722 = vmatprep.mubr.bf16.mxu0 %v2282
        %2723 = vmatmul.mubr.bf16.gmra.mrb[0].mxu0 %v2281
        %v2724 = vpop.f32.mrb[0].mxu0
        %v2725 = vadd.f32 0.0, %v2724
        %v2726 = vpop.f32.mrb[0].mxu0
        %v2727 = vpop.f32.mrb[0].mxu0
        %v2728 = vadd.f32 0.0, %v2727
        %v2729 = vpop.f32.mrb[0].mxu0
        %2730 = vmatprep.mubr.bf16.mxu0 %v2287
        %2731 = vmatmul.mubr.bf16.gmra.mrb[0].mxu0 %v2286
        %v2732 = vpop.f32.mrb[0].mxu0
        %v2733 = vadd.f32 0.0, %v2732
        %v2734 = vpop.f32.mrb[0].mxu0
        %v2735 = vpop.f32.mrb[0].mxu0
        %v2736 = vadd.f32 0.0, %v2735
        %v2737 = vpop.f32.mrb[0].mxu0
        %2738 = vmatprep.mubr.bf16.mxu0 %v2292
        %2739 = vmatmul.mubr.bf16.gmra.mrb[0].mxu0 %v2291
        %v2740 = vpop.f32.mrb[0].mxu0
        %v2741 = vadd.f32 0.0, %v2740
        %v2742 = vpop.f32.mrb[0].mxu0
        %v2743 = vpop.f32.mrb[0].mxu0
        %v2744 = vadd.f32 0.0, %v2743
        %v2745 = vpop.f32.mrb[0].mxu0
        %2746 = vmatprep.mubr.bf16.mxu0 %v2297
        %2747 = vmatmul.mubr.bf16.gmra.mrb[0].mxu0 %v2296
        %v2748 = vpop.f32.mrb[0].mxu0
        %v2749 = vadd.f32 0.0, %v2748
        %v2750 = vpop.f32.mrb[0].mxu0
        %v2751 = vpop.f32.mrb[0].mxu0
        %v2752 = vadd.f32 0.0, %v2751
        %v2753 = vpop.f32.mrb[0].mxu0
        %2754 = vmatprep.mubr.bf16.mxu0 %v2302
        %2755 = vmatmul.mubr.bf16.gmra.mrb[0].mxu0 %v2301
        %v2756 = vpop.f32.mrb[0].mxu0
        %v2757 = vadd.f32 0.0, %v2756
        %v2758 = vpop.f32.mrb[0].mxu0
        %v2759 = vpop.f32.mrb[0].mxu0
        %v2760 = vadd.f32 0.0, %v2759
        %v2761 = vpop.f32.mrb[0].mxu0
        %2762 = vmatprep.mubr.bf16.mxu0 %v2307
        %2763 = vmatmul.mubr.bf16.gmra.mrb[0].mxu0 %v2306
        %v2764 = vpop.f32.mrb[0].mxu0
        %v2765 = vadd.f32 0.0, %v2764
        %v2766 = vpop.f32.mrb[0].mxu0
        %v2767 = vpop.f32.mrb[0].mxu0
        %v2768 = vadd.f32 0.0, %v2767
        %v2769 = vpop.f32.mrb[0].mxu0
        %2770 = vmatprep.mubr.bf16.mxu0 %v2312
        %2771 = vmatmul.mubr.bf16.gmra.mrb[0].mxu0 %v2311
        %v2772 = vpop.f32.mrb[0].mxu0
        %v2773 = vadd.f32 0.0, %v2772
        %v2774 = vpop.f32.mrb[0].mxu0
        %v2775 = vpop.f32.mrb[0].mxu0
        %v2776 = vadd.f32 0.0, %v2775
        %v2777 = vpop.f32.mrb[0].mxu0
        %2778 = vmatprep.mubr.bf16.mxu0 %v2317
        %2779 = vmatmul.mubr.bf16.gmra.mrb[0].mxu0 %v2316
        %v2780 = vpop.f32.mrb[0].mxu0
        %v2781 = vadd.f32 0.0, %v2780
        %v2782 = vpop.f32.mrb[0].mxu0
        %v2783 = vpop.f32.mrb[0].mxu0
        %v2784 = vadd.f32 0.0, %v2783
        %v2785 = vpop.f32.mrb[0].mxu0
        %2786 = vmatprep.mubr.bf16.mxu0 %v2322
        %2787 = vmatmul.mubr.bf16.gmra.mrb[0].mxu0 %v2321
        %v2788 = vpop.f32.mrb[0].mxu0
        %v2789 = vadd.f32 0.0, %v2788
        %v2790 = vpop.f32.mrb[0].mxu0
        %v2791 = vpop.f32.mrb[0].mxu0
        %v2792 = vadd.f32 0.0, %v2791
        %v2793 = vpop.f32.mrb[0].mxu0
        %2794 = vmatprep.mubr.bf16.mxu0 %v2327
        %2795 = vmatmul.mubr.bf16.gmra.mrb[0].mxu0 %v2326
        %v2796 = vpop.f32.mrb[0].mxu0
        %v2797 = vadd.f32 0.0, %v2796
        %v2798 = vpop.f32.mrb[0].mxu0
        %v2799 = vpop.f32.mrb[0].mxu0
        %v2800 = vadd.f32 0.0, %v2799
        %v2801 = vpop.f32.mrb[0].mxu0
        %2802 = vmatprep.mubr.bf16.mxu0 %v2332
        %2803 = vmatmul.mubr.bf16.gmra.mrb[0].mxu0 %v2331
        %v2804 = vpop.f32.mrb[0].mxu0
        %v2805 = vadd.f32 0.0, %v2804
        %v2806 = vpop.f32.mrb[0].mxu0
        %v2807 = vpop.f32.mrb[0].mxu0
        %v2808 = vadd.f32 0.0, %v2807
        %v2809 = vpop.f32.mrb[0].mxu0
        %2810 = vmatprep.mubr.bf16.mxu0 %v2337
        %2811 = vmatmul.mubr.bf16.gmra.mrb[0].mxu0 %v2336
        %v2812 = vpop.f32.mrb[0].mxu0
        %v2813 = vadd.f32 0.0, %v2812
        %v2814 = vpop.f32.mrb[0].mxu0
        %v2815 = vpop.f32.mrb[0].mxu0
        %v2816 = vadd.f32 0.0, %v2815
        %v2817 = vpop.f32.mrb[0].mxu0
        %2818 = vmatprep.mubr.bf16.mxu0 %v2342
        %2819 = vmatmul.mubr.bf16.gmra.mrb[0].mxu0 %v2341
        %v2820 = vpop.f32.mrb[0].mxu0
        %v2821 = vadd.f32 0.0, %v2820
        %v2822 = vpop.f32.mrb[0].mxu0
        %v2823 = vpop.f32.mrb[0].mxu0
        %v2824 = vadd.f32 0.0, %v2823
        %v2825 = vpop.f32.mrb[0].mxu0
        %2826 = vdwg.mxu0
        %2827 = vmatprep.subr.bf16.mxu0 0
        %2828 = vmatpush1.bf16.msra.mxu0 %v2602
        %2829 = vmatprep.subr.bf16.mxu0 0
        %2830 = vmatpush1.bf16.msra.mxu0 %v2603
        %2831 = vmatprep.subr.bf16.mxu0 0
        %2832 = vmatpush1.bf16.msra.mxu0 %v2604
        %2833 = vmatprep.subr.bf16.mxu0 0
        %2834 = vmatpush1.bf16.msra.mxu0 %v2605
        %2835 = vmatprep.subr.bf16.mxu0 0
        %2836 = vmatpush1.bf16.msra.mxu0 %v2606
        %2837 = vmatprep.subr.bf16.mxu0 0
        %2838 = vmatpush1.bf16.msra.mxu0 %v2607
        %2839 = vmatprep.subr.bf16.mxu0 0
        %2840 = vmatpush1.bf16.msra.mxu0 %v2608
        %2841 = vmatprep.subr.bf16.mxu0 0
        %2842 = vmatpush1.bf16.msra.mxu0 %v2609
        %2843 = vmatprep.subr.bf16.mxu0 0
        %2844 = vmatpush1.bf16.msra.mxu0 %v2610
        %2845 = vmatprep.subr.bf16.mxu0 0
        %2846 = vmatpush1.bf16.msra.mxu0 %v2611
        %2847 = vmatprep.subr.bf16.mxu0 0
        %2848 = vmatpush1.bf16.msra.mxu0 %v2612
        %2849 = vmatprep.subr.bf16.mxu0 0
        %2850 = vmatpush1.bf16.msra.mxu0 %v2613
        %2851 = vmatprep.subr.bf16.mxu0 0
        %2852 = vmatpush1.bf16.msra.mxu0 %v2614
        %2853 = vmatprep.subr.bf16.mxu0 0
        %2854 = vmatpush1.bf16.msra.mxu0 %v2615
        %2855 = vmatprep.subr.bf16.mxu0 0
        %2856 = vmatpush1.bf16.msra.mxu0 %v2616
        %2857 = vmatprep.subr.bf16.mxu0 0
        %2858 = vmatpush1.bf16.msra.mxu0 %v2617
        %2859 = vmatprep.mubr.bf16.mxu0 %v2269
        %2860 = vmatmul.mubr.bf16.gmra.mrb[0].mxu0 %v2268
        %v2861 = vpop.f32.mrb[0].mxu0
        %v2862 = vadd.f32 %v2701, %v2861
        %v2863 = vpop.f32.mrb[0].mxu0
        %v2864 = vpop.f32.mrb[0].mxu0
        %v2865 = vadd.f32 %v2704, %v2864
        %v2866 = vpop.f32.mrb[0].mxu0
        %2867 = vmatprep.mubr.bf16.mxu0 %v2274
        %2868 = vmatmul.mubr.bf16.gmra.mrb[0].mxu0 %v2273
        %v2869 = vpop.f32.mrb[0].mxu0
        %v2870 = vadd.f32 %v2709, %v2869
        %v2871 = vpop.f32.mrb[0].mxu0
        %v2872 = vpop.f32.mrb[0].mxu0
        %v2873 = vadd.f32 %v2712, %v2872
        %v2874 = vpop.f32.mrb[0].mxu0
        %2875 = vmatprep.mubr.bf16.mxu0 %v2279
        %2876 = vmatmul.mubr.bf16.gmra.mrb[0].mxu0 %v2278
        %v2877 = vpop.f32.mrb[0].mxu0
        %v2878 = vadd.f32 %v2717, %v2877
        %v2879 = vpop.f32.mrb[0].mxu0
        %v2880 = vpop.f32.mrb[0].mxu0
        %v2881 = vadd.f32 %v2720, %v2880
        %v2882 = vpop.f32.mrb[0].mxu0
        %2883 = vmatprep.mubr.bf16.mxu0 %v2284
        %2884 = vmatmul.mubr.bf16.gmra.mrb[0].mxu0 %v2283
        %v2885 = vpop.f32.mrb[0].mxu0
        %v2886 = vadd.f32 %v2725, %v2885
        %v2887 = vpop.f32.mrb[0].mxu0
        %v2888 = vpop.f32.mrb[0].mxu0
        %v2889 = vadd.f32 %v2728, %v2888
        %v2890 = vpop.f32.mrb[0].mxu0
        %2891 = vmatprep.mubr.bf16.mxu0 %v2289
        %2892 = vmatmul.mubr.bf16.gmra.mrb[0].mxu0 %v2288
        %v2893 = vpop.f32.mrb[0].mxu0
        %v2894 = vadd.f32 %v2733, %v2893
        %v2895 = vpop.f32.mrb[0].mxu0
        %v2896 = vpop.f32.mrb[0].mxu0
        %v2897 = vadd.f32 %v2736, %v2896
        %v2898 = vpop.f32.mrb[0].mxu0
        %2899 = vmatprep.mubr.bf16.mxu0 %v2294
        %2900 = vmatmul.mubr.bf16.gmra.mrb[0].mxu0 %v2293
        %v2901 = vpop.f32.mrb[0].mxu0
        %v2902 = vadd.f32 %v2741, %v2901
        %v2903 = vpop.f32.mrb[0].mxu0
        %v2904 = vpop.f32.mrb[0].mxu0
        %v2905 = vadd.f32 %v2744, %v2904
        %v2906 = vpop.f32.mrb[0].mxu0
        %2907 = vmatprep.mubr.bf16.mxu0 %v2299
        %2908 = vmatmul.mubr.bf16.gmra.mrb[0].mxu0 %v2298
        %v2909 = vpop.f32.mrb[0].mxu0
        %v2910 = vadd.f32 %v2749, %v2909
        %v2911 = vpop.f32.mrb[0].mxu0
        %v2912 = vpop.f32.mrb[0].mxu0
        %v2913 = vadd.f32 %v2752, %v2912
        %v2914 = vpop.f32.mrb[0].mxu0
        %2915 = vmatprep.mubr.bf16.mxu0 %v2304
        %2916 = vmatmul.mubr.bf16.gmra.mrb[0].mxu0 %v2303
        %v2917 = vpop.f32.mrb[0].mxu0
        %v2918 = vadd.f32 %v2757, %v2917
        %v2919 = vpop.f32.mrb[0].mxu0
        %v2920 = vpop.f32.mrb[0].mxu0
        %v2921 = vadd.f32 %v2760, %v2920
        %v2922 = vpop.f32.mrb[0].mxu0
        %2923 = vmatprep.mubr.bf16.mxu0 %v2309
        %2924 = vmatmul.mubr.bf16.gmra.mrb[0].mxu0 %v2308
        %v2925 = vpop.f32.mrb[0].mxu0
        %v2926 = vadd.f32 %v2765, %v2925
        %v2927 = vpop.f32.mrb[0].mxu0
        %v2928 = vpop.f32.mrb[0].mxu0
        %v2929 = vadd.f32 %v2768, %v2928
        %v2930 = vpop.f32.mrb[0].mxu0
        %2931 = vmatprep.mubr.bf16.mxu0 %v2314
        %2932 = vmatmul.mubr.bf16.gmra.mrb[0].mxu0 %v2313
        %v2933 = vpop.f32.mrb[0].mxu0
        %v2934 = vadd.f32 %v2773, %v2933
        %v2935 = vpop.f32.mrb[0].mxu0
        %v2936 = vpop.f32.mrb[0].mxu0
        %v2937 = vadd.f32 %v2776, %v2936
        %v2938 = vpop.f32.mrb[0].mxu0
        %2939 = vmatprep.mubr.bf16.mxu0 %v2319
        %2940 = vmatmul.mubr.bf16.gmra.mrb[0].mxu0 %v2318
        %v2941 = vpop.f32.mrb[0].mxu0
        %v2942 = vadd.f32 %v2781, %v2941
        %v2943 = vpop.f32.mrb[0].mxu0
        %v2944 = vpop.f32.mrb[0].mxu0
        %v2945 = vadd.f32 %v2784, %v2944
        %v2946 = vpop.f32.mrb[0].mxu0
        %2947 = vmatprep.mubr.bf16.mxu0 %v2324
        %2948 = vmatmul.mubr.bf16.gmra.mrb[0].mxu0 %v2323
        %v2949 = vpop.f32.mrb[0].mxu0
        %v2950 = vadd.f32 %v2789, %v2949
        %v2951 = vpop.f32.mrb[0].mxu0
        %v2952 = vpop.f32.mrb[0].mxu0
        %v2953 = vadd.f32 %v2792, %v2952
        %v2954 = vpop.f32.mrb[0].mxu0
        %2955 = vmatprep.mubr.bf16.mxu0 %v2329
        %2956 = vmatmul.mubr.bf16.gmra.mrb[0].mxu0 %v2328
        %v2957 = vpop.f32.mrb[0].mxu0
        %v2958 = vadd.f32 %v2797, %v2957
        %v2959 = vpop.f32.mrb[0].mxu0
        %v2960 = vpop.f32.mrb[0].mxu0
        %v2961 = vadd.f32 %v2800, %v2960
        %v2962 = vpop.f32.mrb[0].mxu0
        %2963 = vmatprep.mubr.bf16.mxu0 %v2334
        %2964 = vmatmul.mubr.bf16.gmra.mrb[0].mxu0 %v2333
        %v2965 = vpop.f32.mrb[0].mxu0
        %v2966 = vadd.f32 %v2805, %v2965
        %v2967 = vpop.f32.mrb[0].mxu0
        %v2968 = vpop.f32.mrb[0].mxu0
        %v2969 = vadd.f32 %v2808, %v2968
        %v2970 = vpop.f32.mrb[0].mxu0
        %2971 = vmatprep.mubr.bf16.mxu0 %v2339
        %2972 = vmatmul.mubr.bf16.gmra.mrb[0].mxu0 %v2338
        %v2973 = vpop.f32.mrb[0].mxu0
        %v2974 = vadd.f32 %v2813, %v2973
        %v2975 = vpop.f32.mrb[0].mxu0
        %v2976 = vpop.f32.mrb[0].mxu0
        %v2977 = vadd.f32 %v2816, %v2976
        %v2978 = vpop.f32.mrb[0].mxu0
        %2979 = vmatprep.mubr.bf16.mxu0 %v2344
        %2980 = vmatmul.mubr.bf16.gmra.mrb[0].mxu0 %v2343
        %v2981 = vpop.f32.mrb[0].mxu0
        %v2982 = vadd.f32 %v2821, %v2981
        %v2983 = vpop.f32.mrb[0].mxu0
        %v2984 = vpop.f32.mrb[0].mxu0
        %v2985 = vadd.f32 %v2824, %v2984
        %v2986 = vpop.f32.mrb[0].mxu0
        %2987 = vdwg.mxu0
        %2988 = vmatprep.subr.bf16.mxu0 0
        %2989 = vmatpush1.bf16.msra.mxu0 %v2618
        %2990 = vmatprep.subr.bf16.mxu0 0
        %2991 = vmatpush1.bf16.msra.mxu0 %v2619
        %2992 = vmatprep.subr.bf16.mxu0 0
        %2993 = vmatpush1.bf16.msra.mxu0 %v2620
        %2994 = vmatprep.subr.bf16.mxu0 0
        %2995 = vmatpush1.bf16.msra.mxu0 %v2621
        %2996 = vmatprep.subr.bf16.mxu0 0
        %2997 = vmatpush1.bf16.msra.mxu0 %v2622
        %2998 = vmatprep.subr.bf16.mxu0 0
        %2999 = vmatpush1.bf16.msra.mxu0 %v2623
        %3000 = vmatprep.subr.bf16.mxu0 0
        %3001 = vmatpush1.bf16.msra.mxu0 %v2624
        %3002 = vmatprep.subr.bf16.mxu0 0
        %3003 = vmatpush1.bf16.msra.mxu0 %v2625
        %3004 = vmatprep.subr.bf16.mxu0 0
        %3005 = vmatpush1.bf16.msra.mxu0 0
        %3006 = vmatprep.subr.bf16.mxu0 0
        %3007 = vmatpush1.bf16.msra.mxu0 0
        %3008 = vmatprep.subr.bf16.mxu0 0
        %3009 = vmatpush1.bf16.msra.mxu0 0
        %3010 = vmatprep.subr.bf16.mxu0 0
        %3011 = vmatpush1.bf16.msra.mxu0 0
        %3012 = vmatprep.subr.bf16.mxu0 0
        %3013 = vmatpush1.bf16.msra.mxu0 0
        %3014 = vmatprep.subr.bf16.mxu0 0
        %3015 = vmatpush1.bf16.msra.mxu0 0
        %3016 = vmatprep.subr.bf16.mxu0 0
        %3017 = vmatpush1.bf16.msra.mxu0 0
        %3018 = vmatprep.subr.bf16.mxu0 0
        %3019 = vmatpush1.bf16.msra.mxu0 0
        %3020 = vmatprep.mubr.bf16.mxu0 0
        %3021 = vmatmul.mubr.bf16.gmra.mrb[0].mxu0 %v2270
        %v3022 = vpop.f32.mrb[0].mxu0
        %v3023 = vadd.f32 %v2862, %v3022
        %v3024 = vpop.f32.mrb[0].mxu0
        %v3025 = vpop.f32.mrb[0].mxu0
        %v3026 = vadd.f32 %v2865, %v3025
        %v3027 = vpop.f32.mrb[0].mxu0
        %3028 = vmatprep.mubr.bf16.mxu0 0
        %3029 = vmatmul.mubr.bf16.gmra.mrb[0].mxu0 %v2275
        %v3030 = vpop.f32.mrb[0].mxu0
        %v3031 = vadd.f32 %v2870, %v3030
        %v3032 = vpop.f32.mrb[0].mxu0
        %v3033 = vpop.f32.mrb[0].mxu0
        %v3034 = vadd.f32 %v2873, %v3033
        %v3035 = vpop.f32.mrb[0].mxu0
        %3036 = vmatprep.mubr.bf16.mxu0 0
        %3037 = vmatmul.mubr.bf16.gmra.mrb[0].mxu0 %v2280
        %v3038 = vpop.f32.mrb[0].mxu0
        %v3039 = vadd.f32 %v2878, %v3038
        %v3040 = vpop.f32.mrb[0].mxu0
        %v3041 = vpop.f32.mrb[0].mxu0
        %v3042 = vadd.f32 %v2881, %v3041
        %v3043 = vpop.f32.mrb[0].mxu0
        %3044 = vmatprep.mubr.bf16.mxu0 0
        %3045 = vmatmul.mubr.bf16.gmra.mrb[0].mxu0 %v2285
        %v3046 = vpop.f32.mrb[0].mxu0
        %v3047 = vadd.f32 %v2886, %v3046
        %v3048 = vpop.f32.mrb[0].mxu0
        %v3049 = vpop.f32.mrb[0].mxu0
        %v3050 = vadd.f32 %v2889, %v3049
        %v3051 = vpop.f32.mrb[0].mxu0
        %3052 = vmatprep.mubr.bf16.mxu0 0
        %3053 = vmatmul.mubr.bf16.gmra.mrb[0].mxu0 %v2290
        %v3054 = vpop.f32.mrb[0].mxu0
        %v3055 = vadd.f32 %v2894, %v3054
        %v3056 = vpop.f32.mrb[0].mxu0
        %v3057 = vpop.f32.mrb[0].mxu0
        %v3058 = vadd.f32 %v2897, %v3057
        %v3059 = vpop.f32.mrb[0].mxu0
        %3060 = vmatprep.mubr.bf16.mxu0 0
        %3061 = vmatmul.mubr.bf16.gmra.mrb[0].mxu0 %v2295
        %v3062 = vpop.f32.mrb[0].mxu0
        %v3063 = vadd.f32 %v2902, %v3062
        %v3064 = vpop.f32.mrb[0].mxu0
        %v3065 = vpop.f32.mrb[0].mxu0
        %v3066 = vadd.f32 %v2905, %v3065
        %v3067 = vpop.f32.mrb[0].mxu0
        %3068 = vmatprep.mubr.bf16.mxu0 0
        %3069 = vmatmul.mubr.bf16.gmra.mrb[0].mxu0 %v2300
        %v3070 = vpop.f32.mrb[0].mxu0
        %v3071 = vadd.f32 %v2910, %v3070
        %v3072 = vpop.f32.mrb[0].mxu0
        %v3073 = vpop.f32.mrb[0].mxu0
        %v3074 = vadd.f32 %v2913, %v3073
        %v3075 = vpop.f32.mrb[0].mxu0
        %3076 = vmatprep.mubr.bf16.mxu0 0
        %3077 = vmatmul.mubr.bf16.gmra.mrb[0].mxu0 %v2305
        %v3078 = vpop.f32.mrb[0].mxu0
        %v3079 = vadd.f32 %v2918, %v3078
        %v3080 = vpop.f32.mrb[0].mxu0
        %v3081 = vpop.f32.mrb[0].mxu0
        %v3082 = vadd.f32 %v2921, %v3081
        %v3083 = vpop.f32.mrb[0].mxu0
        %3084 = vmatprep.mubr.bf16.mxu0 0
        %3085 = vmatmul.mubr.bf16.gmra.mrb[0].mxu0 %v2310
        %v3086 = vpop.f32.mrb[0].mxu0
        %v3087 = vadd.f32 %v2926, %v3086
        %v3088 = vpop.f32.mrb[0].mxu0
        %v3089 = vpop.f32.mrb[0].mxu0
        %v3090 = vadd.f32 %v2929, %v3089
        %v3091 = vpop.f32.mrb[0].mxu0
        %3092 = vmatprep.mubr.bf16.mxu0 0
        %3093 = vmatmul.mubr.bf16.gmra.mrb[0].mxu0 %v2315
        %v3094 = vpop.f32.mrb[0].mxu0
        %v3095 = vadd.f32 %v2934, %v3094
        %v3096 = vpop.f32.mrb[0].mxu0
        %v3097 = vpop.f32.mrb[0].mxu0
        %v3098 = vadd.f32 %v2937, %v3097
        %v3099 = vpop.f32.mrb[0].mxu0
        %3100 = vmatprep.mubr.bf16.mxu0 0
        %3101 = vmatmul.mubr.bf16.gmra.mrb[0].mxu0 %v2320
        %v3102 = vpop.f32.mrb[0].mxu0
        %v3103 = vadd.f32 %v2942, %v3102
        %v3104 = vpop.f32.mrb[0].mxu0
        %v3105 = vpop.f32.mrb[0].mxu0
        %v3106 = vadd.f32 %v2945, %v3105
        %v3107 = vpop.f32.mrb[0].mxu0
        %3108 = vmatprep.mubr.bf16.mxu0 0
        %3109 = vmatmul.mubr.bf16.gmra.mrb[0].mxu0 %v2325
        %v3110 = vpop.f32.mrb[0].mxu0
        %v3111 = vadd.f32 %v2950, %v3110
        %v3112 = vpop.f32.mrb[0].mxu0
        %v3113 = vpop.f32.mrb[0].mxu0
        %v3114 = vadd.f32 %v2953, %v3113
        %v3115 = vpop.f32.mrb[0].mxu0
        %3116 = vmatprep.mubr.bf16.mxu0 0
        %3117 = vmatmul.mubr.bf16.gmra.mrb[0].mxu0 %v2330
        %v3118 = vpop.f32.mrb[0].mxu0
        %v3119 = vadd.f32 %v2958, %v3118
        %v3120 = vpop.f32.mrb[0].mxu0
        %v3121 = vpop.f32.mrb[0].mxu0
        %v3122 = vadd.f32 %v2961, %v3121
        %v3123 = vpop.f32.mrb[0].mxu0
        %3124 = vmatprep.mubr.bf16.mxu0 0
        %3125 = vmatmul.mubr.bf16.gmra.mrb[0].mxu0 %v2335
        %v3126 = vpop.f32.mrb[0].mxu0
        %v3127 = vadd.f32 %v2966, %v3126
        %v3128 = vpop.f32.mrb[0].mxu0
        %v3129 = vpop.f32.mrb[0].mxu0
        %v3130 = vadd.f32 %v2969, %v3129
        %v3131 = vpop.f32.mrb[0].mxu0
        %3132 = vmatprep.mubr.bf16.mxu0 0
        %3133 = vmatmul.mubr.bf16.gmra.mrb[0].mxu0 %v2340
        %v3134 = vpop.f32.mrb[0].mxu0
        %v3135 = vadd.f32 %v2974, %v3134
        %v3136 = vpop.f32.mrb[0].mxu0
        %v3137 = vpop.f32.mrb[0].mxu0
        %v3138 = vadd.f32 %v2977, %v3137
        %v3139 = vpop.f32.mrb[0].mxu0
        %3140 = vmatprep.mubr.bf16.mxu0 0
        %3141 = vmatmul.mubr.bf16.gmra.mrb[0].mxu0 %v2345
        %v3142 = vpop.f32.mrb[0].mxu0
        %v3143 = vadd.f32 %v2982, %v3142
        %v3144 = vpop.f32.mrb[0].mxu0
        %v3145 = vpop.f32.mrb[0].mxu0
        %v3146 = vadd.f32 %v2985, %v3145
        %v3147 = vpop.f32.mrb[0].mxu0
        %3148 = vdwg.mxu0
        %v3149 = vld [vmem:[%s5 + $0x4] ss:$0 sm:$0xff]
        %v3150 = vadd.f32 %v3023, %v3149
        %v3151 = vadd.f32 %v3026, %v3149
        %v3152 = vadd.f32 %v3031, %v3149
        %v3153 = vadd.f32 %v3034, %v3149
        %v3154 = vadd.f32 %v3039, %v3149
        %v3155 = vadd.f32 %v3042, %v3149
        %v3156 = vadd.f32 %v3047, %v3149
        %v3157 = vadd.f32 %v3050, %v3149
        %v3158 = vadd.f32 %v3055, %v3149
        %v3159 = vadd.f32 %v3058, %v3149
        %v3160 = vadd.f32 %v3063, %v3149
        %v3161 = vadd.f32 %v3066, %v3149
        %v3162 = vadd.f32 %v3071, %v3149
        %v3163 = vadd.f32 %v3074, %v3149
        %v3164 = vadd.f32 %v3079, %v3149
        %v3165 = vadd.f32 %v3082, %v3149
        %v3166 = vadd.f32 %v3087, %v3149
        %v3167 = vadd.f32 %v3090, %v3149
        %v3168 = vadd.f32 %v3095, %v3149
        %v3169 = vadd.f32 %v3098, %v3149
        %v3170 = vadd.f32 %v3103, %v3149
        %v3171 = vadd.f32 %v3106, %v3149
        %v3172 = vadd.f32 %v3111, %v3149
        %v3173 = vadd.f32 %v3114, %v3149
        %v3174 = vadd.f32 %v3119, %v3149
        %v3175 = vadd.f32 %v3122, %v3149
        %v3176 = vadd.f32 %v3127, %v3149
        %v3177 = vadd.f32 %v3130, %v3149
        %v3178 = vadd.f32 %v3135, %v3149
        %v3179 = vadd.f32 %v3138, %v3149
        %v3180 = vadd.f32 %v3143, %v3149
        %v3181 = vadd.f32 %v3146, %v3149
        %v3182 = vsub.f32 0.0, %v3150
        %v3183 = vsub.f32 0.0, %v3151
        %v3184 = vsub.f32 0.0, %v3152
        %v3185 = vsub.f32 0.0, %v3153
        %v3186 = vsub.f32 0.0, %v3154
        %v3187 = vsub.f32 0.0, %v3155
        %v3188 = vsub.f32 0.0, %v3156
        %v3189 = vsub.f32 0.0, %v3157
        %v3190 = vsub.f32 0.0, %v3158
        %v3191 = vsub.f32 0.0, %v3159
        %v3192 = vsub.f32 0.0, %v3160
        %v3193 = vsub.f32 0.0, %v3161
        %v3194 = vsub.f32 0.0, %v3162
        %v3195 = vsub.f32 0.0, %v3163
        %v3196 = vsub.f32 0.0, %v3164
        %v3197 = vsub.f32 0.0, %v3165
        %v3198 = vsub.f32 0.0, %v3166
        %v3199 = vsub.f32 0.0, %v3167
        %v3200 = vsub.f32 0.0, %v3168
        %v3201 = vsub.f32 0.0, %v3169
        %v3202 = vsub.f32 0.0, %v3170
        %v3203 = vsub.f32 0.0, %v3171
        %v3204 = vsub.f32 0.0, %v3172
        %v3205 = vsub.f32 0.0, %v3173
        %v3206 = vsub.f32 0.0, %v3174
        %v3207 = vsub.f32 0.0, %v3175
        %v3208 = vsub.f32 0.0, %v3176
        %v3209 = vsub.f32 0.0, %v3177
        %v3210 = vsub.f32 0.0, %v3178
        %v3211 = vsub.f32 0.0, %v3179
        %v3212 = vsub.f32 0.0, %v3180
        %v3213 = vsub.f32 0.0, %v3181
        %v3214 = vmul.f32 %v3182, 1.442695
        %v3215 = vpow.pop %v3214
        %v3216 = vmul.f32 %v3183, 1.442695
        %v3217 = vpow.pop %v3216
        %v3218 = vmul.f32 %v3184, 1.442695
        %v3219 = vpow.pop %v3218
        %v3220 = vmul.f32 %v3185, 1.442695
        %v3221 = vpow.pop %v3220
        %v3222 = vmul.f32 %v3186, 1.442695
        %v3223 = vpow.pop %v3222
        %v3224 = vmul.f32 %v3187, 1.442695
        %v3225 = vpow.pop %v3224
        %v3226 = vmul.f32 %v3188, 1.442695
        %v3227 = vpow.pop %v3226
        %v3228 = vmul.f32 %v3189, 1.442695
        %v3229 = vpow.pop %v3228
        %v3230 = vmul.f32 %v3190, 1.442695
        %v3231 = vpow.pop %v3230
        %v3232 = vmul.f32 %v3191, 1.442695
        %v3233 = vpow.pop %v3232
        %v3234 = vmul.f32 %v3192, 1.442695
        %v3235 = vpow.pop %v3234
        %v3236 = vmul.f32 %v3193, 1.442695
        %v3237 = vpow.pop %v3236
        %v3238 = vmul.f32 %v3194, 1.442695
        %v3239 = vpow.pop %v3238
        %v3240 = vmul.f32 %v3195, 1.442695
        %v3241 = vpow.pop %v3240
        %v3242 = vmul.f32 %v3196, 1.442695
        %v3243 = vpow.pop %v3242
        %v3244 = vmul.f32 %v3197, 1.442695
        %v3245 = vpow.pop %v3244
        %v3246 = vmul.f32 %v3198, 1.442695
        %v3247 = vpow.pop %v3246
        %v3248 = vmul.f32 %v3199, 1.442695
        %v3249 = vpow.pop %v3248
        %v3250 = vmul.f32 %v3200, 1.442695
        %v3251 = vpow.pop %v3250
        %v3252 = vmul.f32 %v3201, 1.442695
        %v3253 = vpow.pop %v3252
        %v3254 = vmul.f32 %v3202, 1.442695
        %v3255 = vpow.pop %v3254
        %v3256 = vmul.f32 %v3203, 1.442695
        %v3257 = vpow.pop %v3256
        %v3258 = vmul.f32 %v3204, 1.442695
        %v3259 = vpow.pop %v3258
        %v3260 = vmul.f32 %v3205, 1.442695
        %v3261 = vpow.pop %v3260
        %v3262 = vmul.f32 %v3206, 1.442695
        %v3263 = vpow.pop %v3262
        %v3264 = vmul.f32 %v3207, 1.442695
        %v3265 = vpow.pop %v3264
        %v3266 = vmul.f32 %v3208, 1.442695
        %v3267 = vpow.pop %v3266
        %v3268 = vmul.f32 %v3209, 1.442695
        %v3269 = vpow.pop %v3268
        %v3270 = vmul.f32 %v3210, 1.442695
        %v3271 = vpow.pop %v3270
        %v3272 = vmul.f32 %v3211, 1.442695
        %v3273 = vpow.pop %v3272
        %v3274 = vmul.f32 %v3212, 1.442695
        %v3275 = vpow.pop %v3274
        %v3276 = vmul.f32 %v3213, 1.442695
        %v3277 = vpow.pop %v3276
        %v3278 = vadd.f32 %v3215, 1.0
        %v3279 = vadd.f32 %v3217, 1.0
        %v3280 = vadd.f32 %v3219, 1.0
        %v3281 = vadd.f32 %v3221, 1.0
        %v3282 = vadd.f32 %v3223, 1.0
        %v3283 = vadd.f32 %v3225, 1.0
        %v3284 = vadd.f32 %v3227, 1.0
        %v3285 = vadd.f32 %v3229, 1.0
        %v3286 = vadd.f32 %v3231, 1.0
        %v3287 = vadd.f32 %v3233, 1.0
        %v3288 = vadd.f32 %v3235, 1.0
        %v3289 = vadd.f32 %v3237, 1.0
        %v3290 = vadd.f32 %v3239, 1.0
        %v3291 = vadd.f32 %v3241, 1.0
        %v3292 = vadd.f32 %v3243, 1.0
        %v3293 = vadd.f32 %v3245, 1.0
        %v3294 = vadd.f32 %v3247, 1.0
        %v3295 = vadd.f32 %v3249, 1.0
        %v3296 = vadd.f32 %v3251, 1.0
        %v3297 = vadd.f32 %v3253, 1.0
        %v3298 = vadd.f32 %v3255, 1.0
        %v3299 = vadd.f32 %v3257, 1.0
        %v3300 = vadd.f32 %v3259, 1.0
        %v3301 = vadd.f32 %v3261, 1.0
        %v3302 = vadd.f32 %v3263, 1.0
        %v3303 = vadd.f32 %v3265, 1.0
        %v3304 = vadd.f32 %v3267, 1.0
        %v3305 = vadd.f32 %v3269, 1.0
        %v3306 = vadd.f32 %v3271, 1.0
        %v3307 = vadd.f32 %v3273, 1.0
        %v3308 = vadd.f32 %v3275, 1.0
        %v3309 = vadd.f32 %v3277, 1.0
        %v3310 = vrcp.pop %v3278
        %v3311 = vmul.f32 1.0, %v3310
        %v3312 = vrcp.pop %v3279
        %v3313 = vmul.f32 1.0, %v3312
        %v3314 = vrcp.pop %v3280
        %v3315 = vmul.f32 1.0, %v3314
        %v3316 = vrcp.pop %v3281
        %v3317 = vmul.f32 1.0, %v3316
        %v3318 = vrcp.pop %v3282
        %v3319 = vmul.f32 1.0, %v3318
        %v3320 = vrcp.pop %v3283
        %v3321 = vmul.f32 1.0, %v3320
        %v3322 = vrcp.pop %v3284
        %v3323 = vmul.f32 1.0, %v3322
        %v3324 = vrcp.pop %v3285
        %v3325 = vmul.f32 1.0, %v3324
        %v3326 = vrcp.pop %v3286
        %v3327 = vmul.f32 1.0, %v3326
        %v3328 = vrcp.pop %v3287
        %v3329 = vmul.f32 1.0, %v3328
        %v3330 = vrcp.pop %v3288
        %v3331 = vmul.f32 1.0, %v3330
        %v3332 = vrcp.pop %v3289
        %v3333 = vmul.f32 1.0, %v3332
        %v3334 = vrcp.pop %v3290
        %v3335 = vmul.f32 1.0, %v3334
        %v3336 = vrcp.pop %v3291
        %v3337 = vmul.f32 1.0, %v3336
        %v3338 = vrcp.pop %v3292
        %v3339 = vmul.f32 1.0, %v3338
        %v3340 = vrcp.pop %v3293
        %v3341 = vmul.f32 1.0, %v3340
        %v3342 = vrcp.pop %v3294
        %v3343 = vmul.f32 1.0, %v3342
        %v3344 = vrcp.pop %v3295
        %v3345 = vmul.f32 1.0, %v3344
        %v3346 = vrcp.pop %v3296
        %v3347 = vmul.f32 1.0, %v3346
        %v3348 = vrcp.pop %v3297
        %v3349 = vmul.f32 1.0, %v3348
        %v3350 = vrcp.pop %v3298
        %v3351 = vmul.f32 1.0, %v3350
        %v3352 = vrcp.pop %v3299
        %v3353 = vmul.f32 1.0, %v3352
        %v3354 = vrcp.pop %v3300
        %v3355 = vmul.f32 1.0, %v3354
        %v3356 = vrcp.pop %v3301
        %v3357 = vmul.f32 1.0, %v3356
        %v3358 = vrcp.pop %v3302
        %v3359 = vmul.f32 1.0, %v3358
        %v3360 = vrcp.pop %v3303
        %v3361 = vmul.f32 1.0, %v3360
        %v3362 = vrcp.pop %v3304
        %v3363 = vmul.f32 1.0, %v3362
        %v3364 = vrcp.pop %v3305
        %v3365 = vmul.f32 1.0, %v3364
        %v3366 = vrcp.pop %v3306
        %v3367 = vmul.f32 1.0, %v3366
        %v3368 = vrcp.pop %v3307
        %v3369 = vmul.f32 1.0, %v3368
        %v3370 = vrcp.pop %v3308
        %v3371 = vmul.f32 1.0, %v3370
        %v3372 = vrcp.pop %v3309
        %v3373 = vmul.f32 1.0, %v3372
        %3375 = vset.pattern.permute.xlu0 0
        %3376 = vperm.xlu0 %3375, %v3311
        %v3377 = vpop.permute.xlu0 %3376
        %3380 = vset.pattern.permute.xlu0 0
        %3381 = vperm.xlu0 %3380, %v3313
        %v3382 = vpop.permute.xlu0 %3381
        %3385 = vset.pattern.permute.xlu0 0
        %3386 = vperm.xlu0 %3385, %v3315
        %v3387 = vpop.permute.xlu0 %3386
        %3390 = vset.pattern.permute.xlu0 0
        %3391 = vperm.xlu0 %3390, %v3317
        %v3392 = vpop.permute.xlu0 %3391
        %3395 = vset.pattern.permute.xlu0 0
        %3396 = vperm.xlu0 %3395, %v3319
        %v3397 = vpop.permute.xlu0 %3396
        %3400 = vset.pattern.permute.xlu0 0
        %3401 = vperm.xlu0 %3400, %v3321
        %v3402 = vpop.permute.xlu0 %3401
        %3405 = vset.pattern.permute.xlu0 0
        %3406 = vperm.xlu0 %3405, %v3323
        %v3407 = vpop.permute.xlu0 %3406
        %3410 = vset.pattern.permute.xlu0 0
        %3411 = vperm.xlu0 %3410, %v3325
        %v3412 = vpop.permute.xlu0 %3411
        %3415 = vset.pattern.permute.xlu0 0
        %3416 = vperm.xlu0 %3415, %v3327
        %v3417 = vpop.permute.xlu0 %3416
        %3420 = vset.pattern.permute.xlu0 0
        %3421 = vperm.xlu0 %3420, %v3329
        %v3422 = vpop.permute.xlu0 %3421
        %3425 = vset.pattern.permute.xlu0 0
        %3426 = vperm.xlu0 %3425, %v3331
        %v3427 = vpop.permute.xlu0 %3426
        %3430 = vset.pattern.permute.xlu0 0
        %3431 = vperm.xlu0 %3430, %v3333
        %v3432 = vpop.permute.xlu0 %3431
        %3435 = vset.pattern.permute.xlu0 0
        %3436 = vperm.xlu0 %3435, %v3335
        %v3437 = vpop.permute.xlu0 %3436
        %3440 = vset.pattern.permute.xlu0 0
        %3441 = vperm.xlu0 %3440, %v3337
        %v3442 = vpop.permute.xlu0 %3441
        %3445 = vset.pattern.permute.xlu0 0
        %3446 = vperm.xlu0 %3445, %v3339
        %v3447 = vpop.permute.xlu0 %3446
        %3450 = vset.pattern.permute.xlu0 0
        %3451 = vperm.xlu0 %3450, %v3341
        %v3452 = vpop.permute.xlu0 %3451
        %3455 = vset.pattern.permute.xlu0 0
        %3456 = vperm.xlu0 %3455, %v3343
        %v3457 = vpop.permute.xlu0 %3456
        %3460 = vset.pattern.permute.xlu0 0
        %3461 = vperm.xlu0 %3460, %v3345
        %v3462 = vpop.permute.xlu0 %3461
        %3465 = vset.pattern.permute.xlu0 0
        %3466 = vperm.xlu0 %3465, %v3347
        %v3467 = vpop.permute.xlu0 %3466
        %3470 = vset.pattern.permute.xlu0 0
        %3471 = vperm.xlu0 %3470, %v3349
        %v3472 = vpop.permute.xlu0 %3471
        %3475 = vset.pattern.permute.xlu0 0
        %3476 = vperm.xlu0 %3475, %v3351
        %v3477 = vpop.permute.xlu0 %3476
        %3480 = vset.pattern.permute.xlu0 0
        %3481 = vperm.xlu0 %3480, %v3353
        %v3482 = vpop.permute.xlu0 %3481
        %3485 = vset.pattern.permute.xlu0 0
        %3486 = vperm.xlu0 %3485, %v3355
        %v3487 = vpop.permute.xlu0 %3486
        %3490 = vset.pattern.permute.xlu0 0
        %3491 = vperm.xlu0 %3490, %v3357
        %v3492 = vpop.permute.xlu0 %3491
        %3495 = vset.pattern.permute.xlu0 0
        %3496 = vperm.xlu0 %3495, %v3359
        %v3497 = vpop.permute.xlu0 %3496
        %3500 = vset.pattern.permute.xlu0 0
        %3501 = vperm.xlu0 %3500, %v3361
        %v3502 = vpop.permute.xlu0 %3501
        %3505 = vset.pattern.permute.xlu0 0
        %3506 = vperm.xlu0 %3505, %v3363
        %v3507 = vpop.permute.xlu0 %3506
        %3510 = vset.pattern.permute.xlu0 0
        %3511 = vperm.xlu0 %3510, %v3365
        %v3512 = vpop.permute.xlu0 %3511
        %3515 = vset.pattern.permute.xlu0 0
        %3516 = vperm.xlu0 %3515, %v3367
        %v3517 = vpop.permute.xlu0 %3516
        %3520 = vset.pattern.permute.xlu0 0
        %3521 = vperm.xlu0 %3520, %v3369
        %v3522 = vpop.permute.xlu0 %3521
        %3525 = vset.pattern.permute.xlu0 0
        %3526 = vperm.xlu0 %3525, %v3371
        %v3527 = vpop.permute.xlu0 %3526
        %3530 = vset.pattern.permute.xlu0 0
        %3531 = vperm.xlu0 %3530, %v3373
        %v3532 = vpop.permute.xlu0 %3531
        %3534 = vset.pattern.permute.xlu0 1
        %3535 = vperm.xlu0 %3534, %v3311
        %v3536 = vpop.permute.xlu0 %3535
        %3538 = vset.pattern.permute.xlu0 1
        %3539 = vperm.xlu0 %3538, %v3313
        %v3540 = vpop.permute.xlu0 %3539
        %3542 = vset.pattern.permute.xlu0 1
        %3543 = vperm.xlu0 %3542, %v3315
        %v3544 = vpop.permute.xlu0 %3543
        %3546 = vset.pattern.permute.xlu0 1
        %3547 = vperm.xlu0 %3546, %v3317
        %v3548 = vpop.permute.xlu0 %3547
        %3550 = vset.pattern.permute.xlu0 1
        %3551 = vperm.xlu0 %3550, %v3319
        %v3552 = vpop.permute.xlu0 %3551
        %3554 = vset.pattern.permute.xlu0 1
        %3555 = vperm.xlu0 %3554, %v3321
        %v3556 = vpop.permute.xlu0 %3555
        %3558 = vset.pattern.permute.xlu0 1
        %3559 = vperm.xlu0 %3558, %v3323
        %v3560 = vpop.permute.xlu0 %3559
        %3562 = vset.pattern.permute.xlu0 1
        %3563 = vperm.xlu0 %3562, %v3325
        %v3564 = vpop.permute.xlu0 %3563
        %3566 = vset.pattern.permute.xlu0 1
        %3567 = vperm.xlu0 %3566, %v3327
        %v3568 = vpop.permute.xlu0 %3567
        %3570 = vset.pattern.permute.xlu0 1
        %3571 = vperm.xlu0 %3570, %v3329
        %v3572 = vpop.permute.xlu0 %3571
        %3574 = vset.pattern.permute.xlu0 1
        %3575 = vperm.xlu0 %3574, %v3331
        %v3576 = vpop.permute.xlu0 %3575
        %3578 = vset.pattern.permute.xlu0 1
        %3579 = vperm.xlu0 %3578, %v3333
        %v3580 = vpop.permute.xlu0 %3579
        %3582 = vset.pattern.permute.xlu0 1
        %3583 = vperm.xlu0 %3582, %v3335
        %v3584 = vpop.permute.xlu0 %3583
        %3586 = vset.pattern.permute.xlu0 1
        %3587 = vperm.xlu0 %3586, %v3337
        %v3588 = vpop.permute.xlu0 %3587
        %3590 = vset.pattern.permute.xlu0 1
        %3591 = vperm.xlu0 %3590, %v3339
        %v3592 = vpop.permute.xlu0 %3591
        %3594 = vset.pattern.permute.xlu0 1
        %3595 = vperm.xlu0 %3594, %v3341
        %v3596 = vpop.permute.xlu0 %3595
        %3598 = vset.pattern.permute.xlu0 1
        %3599 = vperm.xlu0 %3598, %v3343
        %v3600 = vpop.permute.xlu0 %3599
        %3602 = vset.pattern.permute.xlu0 1
        %3603 = vperm.xlu0 %3602, %v3345
        %v3604 = vpop.permute.xlu0 %3603
        %3606 = vset.pattern.permute.xlu0 1
        %3607 = vperm.xlu0 %3606, %v3347
        %v3608 = vpop.permute.xlu0 %3607
        %3610 = vset.pattern.permute.xlu0 1
        %3611 = vperm.xlu0 %3610, %v3349
        %v3612 = vpop.permute.xlu0 %3611
        %3614 = vset.pattern.permute.xlu0 1
        %3615 = vperm.xlu0 %3614, %v3351
        %v3616 = vpop.permute.xlu0 %3615
        %3618 = vset.pattern.permute.xlu0 1
        %3619 = vperm.xlu0 %3618, %v3353
        %v3620 = vpop.permute.xlu0 %3619
        %3622 = vset.pattern.permute.xlu0 1
        %3623 = vperm.xlu0 %3622, %v3355
        %v3624 = vpop.permute.xlu0 %3623
        %3626 = vset.pattern.permute.xlu0 1
        %3627 = vperm.xlu0 %3626, %v3357
        %v3628 = vpop.permute.xlu0 %3627
        %3630 = vset.pattern.permute.xlu0 1
        %3631 = vperm.xlu0 %3630, %v3359
        %v3632 = vpop.permute.xlu0 %3631
        %3634 = vset.pattern.permute.xlu0 1
        %3635 = vperm.xlu0 %3634, %v3361
        %v3636 = vpop.permute.xlu0 %3635
        %3638 = vset.pattern.permute.xlu0 1
        %3639 = vperm.xlu0 %3638, %v3363
        %v3640 = vpop.permute.xlu0 %3639
        %3642 = vset.pattern.permute.xlu0 1
        %3643 = vperm.xlu0 %3642, %v3365
        %v3644 = vpop.permute.xlu0 %3643
        %3646 = vset.pattern.permute.xlu0 1
        %3647 = vperm.xlu0 %3646, %v3367
        %v3648 = vpop.permute.xlu0 %3647
        %3650 = vset.pattern.permute.xlu0 1
        %3651 = vperm.xlu0 %3650, %v3369
        %v3652 = vpop.permute.xlu0 %3651
        %3654 = vset.pattern.permute.xlu0 1
        %3655 = vperm.xlu0 %3654, %v3371
        %v3656 = vpop.permute.xlu0 %3655
        %3658 = vset.pattern.permute.xlu0 1
        %3659 = vperm.xlu0 %3658, %v3373
        %v3660 = vpop.permute.xlu0 %3659
        %3662 = vset.pattern.permute.xlu0 2
        %3663 = vperm.xlu0 %3662, %v3311
        %v3664 = vpop.permute.xlu0 %3663
        %3666 = vset.pattern.permute.xlu0 2
        %3667 = vperm.xlu0 %3666, %v3313
        %v3668 = vpop.permute.xlu0 %3667
        %3670 = vset.pattern.permute.xlu0 2
        %3671 = vperm.xlu0 %3670, %v3315
        %v3672 = vpop.permute.xlu0 %3671
        %3674 = vset.pattern.permute.xlu0 2
        %3675 = vperm.xlu0 %3674, %v3317
        %v3676 = vpop.permute.xlu0 %3675
        %3678 = vset.pattern.permute.xlu0 2
        %3679 = vperm.xlu0 %3678, %v3319
        %v3680 = vpop.permute.xlu0 %3679
        %3682 = vset.pattern.permute.xlu0 2
        %3683 = vperm.xlu0 %3682, %v3321
        %v3684 = vpop.permute.xlu0 %3683
        %3686 = vset.pattern.permute.xlu0 2
        %3687 = vperm.xlu0 %3686, %v3323
        %v3688 = vpop.permute.xlu0 %3687
        %3690 = vset.pattern.permute.xlu0 2
        %3691 = vperm.xlu0 %3690, %v3325
        %v3692 = vpop.permute.xlu0 %3691
        %3694 = vset.pattern.permute.xlu0 2
        %3695 = vperm.xlu0 %3694, %v3327
        %v3696 = vpop.permute.xlu0 %3695
        %3698 = vset.pattern.permute.xlu0 2
        %3699 = vperm.xlu0 %3698, %v3329
        %v3700 = vpop.permute.xlu0 %3699
        %3702 = vset.pattern.permute.xlu0 2
        %3703 = vperm.xlu0 %3702, %v3331
        %v3704 = vpop.permute.xlu0 %3703
        %3706 = vset.pattern.permute.xlu0 2
        %3707 = vperm.xlu0 %3706, %v3333
        %v3708 = vpop.permute.xlu0 %3707
        %3710 = vset.pattern.permute.xlu0 2
        %3711 = vperm.xlu0 %3710, %v3335
        %v3712 = vpop.permute.xlu0 %3711
        %3714 = vset.pattern.permute.xlu0 2
        %3715 = vperm.xlu0 %3714, %v3337
        %v3716 = vpop.permute.xlu0 %3715
        %3718 = vset.pattern.permute.xlu0 2
        %3719 = vperm.xlu0 %3718, %v3339
        %v3720 = vpop.permute.xlu0 %3719
        %3722 = vset.pattern.permute.xlu0 2
        %3723 = vperm.xlu0 %3722, %v3341
        %v3724 = vpop.permute.xlu0 %3723
        %3726 = vset.pattern.permute.xlu0 2
        %3727 = vperm.xlu0 %3726, %v3343
        %v3728 = vpop.permute.xlu0 %3727
        %3730 = vset.pattern.permute.xlu0 2
        %3731 = vperm.xlu0 %3730, %v3345
        %v3732 = vpop.permute.xlu0 %3731
        %3734 = vset.pattern.permute.xlu0 2
        %3735 = vperm.xlu0 %3734, %v3347
        %v3736 = vpop.permute.xlu0 %3735
        %3738 = vset.pattern.permute.xlu0 2
        %3739 = vperm.xlu0 %3738, %v3349
        %v3740 = vpop.permute.xlu0 %3739
        %3742 = vset.pattern.permute.xlu0 2
        %3743 = vperm.xlu0 %3742, %v3351
        %v3744 = vpop.permute.xlu0 %3743
        %3746 = vset.pattern.permute.xlu0 2
        %3747 = vperm.xlu0 %3746, %v3353
        %v3748 = vpop.permute.xlu0 %3747
        %3750 = vset.pattern.permute.xlu0 2
        %3751 = vperm.xlu0 %3750, %v3355
        %v3752 = vpop.permute.xlu0 %3751
        %3754 = vset.pattern.permute.xlu0 2
        %3755 = vperm.xlu0 %3754, %v3357
        %v3756 = vpop.permute.xlu0 %3755
        %3758 = vset.pattern.permute.xlu0 2
        %3759 = vperm.xlu0 %3758, %v3359
        %v3760 = vpop.permute.xlu0 %3759
        %3762 = vset.pattern.permute.xlu0 2
        %3763 = vperm.xlu0 %3762, %v3361
        %v3764 = vpop.permute.xlu0 %3763
        %3766 = vset.pattern.permute.xlu0 2
        %3767 = vperm.xlu0 %3766, %v3363
        %v3768 = vpop.permute.xlu0 %3767
        %3770 = vset.pattern.permute.xlu0 2
        %3771 = vperm.xlu0 %3770, %v3365
        %v3772 = vpop.permute.xlu0 %3771
        %3774 = vset.pattern.permute.xlu0 2
        %3775 = vperm.xlu0 %3774, %v3367
        %v3776 = vpop.permute.xlu0 %3775
        %3778 = vset.pattern.permute.xlu0 2
        %3779 = vperm.xlu0 %3778, %v3369
        %v3780 = vpop.permute.xlu0 %3779
        %3782 = vset.pattern.permute.xlu0 2
        %3783 = vperm.xlu0 %3782, %v3371
        %v3784 = vpop.permute.xlu0 %3783
        %3786 = vset.pattern.permute.xlu0 2
        %3787 = vperm.xlu0 %3786, %v3373
        %v3788 = vpop.permute.xlu0 %3787
        %3790 = vset.pattern.permute.xlu0 3
        %3791 = vperm.xlu0 %3790, %v3311
        %v3792 = vpop.permute.xlu0 %3791
        %3794 = vset.pattern.permute.xlu0 3
        %3795 = vperm.xlu0 %3794, %v3313
        %v3796 = vpop.permute.xlu0 %3795
        %3798 = vset.pattern.permute.xlu0 3
        %3799 = vperm.xlu0 %3798, %v3315
        %v3800 = vpop.permute.xlu0 %3799
        %3802 = vset.pattern.permute.xlu0 3
        %3803 = vperm.xlu0 %3802, %v3317
        %v3804 = vpop.permute.xlu0 %3803
        %3806 = vset.pattern.permute.xlu0 3
        %3807 = vperm.xlu0 %3806, %v3319
        %v3808 = vpop.permute.xlu0 %3807
        %3810 = vset.pattern.permute.xlu0 3
        %3811 = vperm.xlu0 %3810, %v3321
        %v3812 = vpop.permute.xlu0 %3811
        %3814 = vset.pattern.permute.xlu0 3
        %3815 = vperm.xlu0 %3814, %v3323
        %v3816 = vpop.permute.xlu0 %3815
        %3818 = vset.pattern.permute.xlu0 3
        %3819 = vperm.xlu0 %3818, %v3325
        %v3820 = vpop.permute.xlu0 %3819
        %3822 = vset.pattern.permute.xlu0 3
        %3823 = vperm.xlu0 %3822, %v3327
        %v3824 = vpop.permute.xlu0 %3823
        %3826 = vset.pattern.permute.xlu0 3
        %3827 = vperm.xlu0 %3826, %v3329
        %v3828 = vpop.permute.xlu0 %3827
        %3830 = vset.pattern.permute.xlu0 3
        %3831 = vperm.xlu0 %3830, %v3331
        %v3832 = vpop.permute.xlu0 %3831
        %3834 = vset.pattern.permute.xlu0 3
        %3835 = vperm.xlu0 %3834, %v3333
        %v3836 = vpop.permute.xlu0 %3835
        %3838 = vset.pattern.permute.xlu0 3
        %3839 = vperm.xlu0 %3838, %v3335
        %v3840 = vpop.permute.xlu0 %3839
        %3842 = vset.pattern.permute.xlu0 3
        %3843 = vperm.xlu0 %3842, %v3337
        %v3844 = vpop.permute.xlu0 %3843
        %3846 = vset.pattern.permute.xlu0 3
        %3847 = vperm.xlu0 %3846, %v3339
        %v3848 = vpop.permute.xlu0 %3847
        %3850 = vset.pattern.permute.xlu0 3
        %3851 = vperm.xlu0 %3850, %v3341
        %v3852 = vpop.permute.xlu0 %3851
        %3854 = vset.pattern.permute.xlu0 3
        %3855 = vperm.xlu0 %3854, %v3343
        %v3856 = vpop.permute.xlu0 %3855
        %3858 = vset.pattern.permute.xlu0 3
        %3859 = vperm.xlu0 %3858, %v3345
        %v3860 = vpop.permute.xlu0 %3859
        %3862 = vset.pattern.permute.xlu0 3
        %3863 = vperm.xlu0 %3862, %v3347
        %v3864 = vpop.permute.xlu0 %3863
        %3866 = vset.pattern.permute.xlu0 3
        %3867 = vperm.xlu0 %3866, %v3349
        %v3868 = vpop.permute.xlu0 %3867
        %3870 = vset.pattern.permute.xlu0 3
        %3871 = vperm.xlu0 %3870, %v3351
        %v3872 = vpop.permute.xlu0 %3871
        %3874 = vset.pattern.permute.xlu0 3
        %3875 = vperm.xlu0 %3874, %v3353
        %v3876 = vpop.permute.xlu0 %3875
        %3878 = vset.pattern.permute.xlu0 3
        %3879 = vperm.xlu0 %3878, %v3355
        %v3880 = vpop.permute.xlu0 %3879
        %3882 = vset.pattern.permute.xlu0 3
        %3883 = vperm.xlu0 %3882, %v3357
        %v3884 = vpop.permute.xlu0 %3883
        %3886 = vset.pattern.permute.xlu0 3
        %3887 = vperm.xlu0 %3886, %v3359
        %v3888 = vpop.permute.xlu0 %3887
        %3890 = vset.pattern.permute.xlu0 3
        %3891 = vperm.xlu0 %3890, %v3361
        %v3892 = vpop.permute.xlu0 %3891
        %3894 = vset.pattern.permute.xlu0 3
        %3895 = vperm.xlu0 %3894, %v3363
        %v3896 = vpop.permute.xlu0 %3895
        %3898 = vset.pattern.permute.xlu0 3
        %3899 = vperm.xlu0 %3898, %v3365
        %v3900 = vpop.permute.xlu0 %3899
        %3902 = vset.pattern.permute.xlu0 3
        %3903 = vperm.xlu0 %3902, %v3367
        %v3904 = vpop.permute.xlu0 %3903
        %3906 = vset.pattern.permute.xlu0 3
        %3907 = vperm.xlu0 %3906, %v3369
        %v3908 = vpop.permute.xlu0 %3907
        %3910 = vset.pattern.permute.xlu0 3
        %3911 = vperm.xlu0 %3910, %v3371
        %v3912 = vpop.permute.xlu0 %3911
        %3914 = vset.pattern.permute.xlu0 3
        %3915 = vperm.xlu0 %3914, %v3373
        %v3916 = vpop.permute.xlu0 %3915
        %3918 = vset.pattern.permute.xlu0 4
        %3919 = vperm.xlu0 %3918, %v3311
        %v3920 = vpop.permute.xlu0 %3919
        %3922 = vset.pattern.permute.xlu0 4
        %3923 = vperm.xlu0 %3922, %v3313
        %v3924 = vpop.permute.xlu0 %3923
        %3926 = vset.pattern.permute.xlu0 4
        %3927 = vperm.xlu0 %3926, %v3315
        %v3928 = vpop.permute.xlu0 %3927
        %3930 = vset.pattern.permute.xlu0 4
        %3931 = vperm.xlu0 %3930, %v3317
        %v3932 = vpop.permute.xlu0 %3931
        %3934 = vset.pattern.permute.xlu0 4
        %3935 = vperm.xlu0 %3934, %v3319
        %v3936 = vpop.permute.xlu0 %3935
        %3938 = vset.pattern.permute.xlu0 4
        %3939 = vperm.xlu0 %3938, %v3321
        %v3940 = vpop.permute.xlu0 %3939
        %3942 = vset.pattern.permute.xlu0 4
        %3943 = vperm.xlu0 %3942, %v3323
        %v3944 = vpop.permute.xlu0 %3943
        %3946 = vset.pattern.permute.xlu0 4
        %3947 = vperm.xlu0 %3946, %v3325
        %v3948 = vpop.permute.xlu0 %3947
        %3950 = vset.pattern.permute.xlu0 4
        %3951 = vperm.xlu0 %3950, %v3327
        %v3952 = vpop.permute.xlu0 %3951
        %3954 = vset.pattern.permute.xlu0 4
        %3955 = vperm.xlu0 %3954, %v3329
        %v3956 = vpop.permute.xlu0 %3955
        %3958 = vset.pattern.permute.xlu0 4
        %3959 = vperm.xlu0 %3958, %v3331
        %v3960 = vpop.permute.xlu0 %3959
        %3962 = vset.pattern.permute.xlu0 4
        %3963 = vperm.xlu0 %3962, %v3333
        %v3964 = vpop.permute.xlu0 %3963
        %3966 = vset.pattern.permute.xlu0 4
        %3967 = vperm.xlu0 %3966, %v3335
        %v3968 = vpop.permute.xlu0 %3967
        %3970 = vset.pattern.permute.xlu0 4
        %3971 = vperm.xlu0 %3970, %v3337
        %v3972 = vpop.permute.xlu0 %3971
        %3974 = vset.pattern.permute.xlu0 4
        %3975 = vperm.xlu0 %3974, %v3339
        %v3976 = vpop.permute.xlu0 %3975
        %3978 = vset.pattern.permute.xlu0 4
        %3979 = vperm.xlu0 %3978, %v3341
        %v3980 = vpop.permute.xlu0 %3979
        %3982 = vset.pattern.permute.xlu0 4
        %3983 = vperm.xlu0 %3982, %v3343
        %v3984 = vpop.permute.xlu0 %3983
        %3986 = vset.pattern.permute.xlu0 4
        %3987 = vperm.xlu0 %3986, %v3345
        %v3988 = vpop.permute.xlu0 %3987
        %3990 = vset.pattern.permute.xlu0 4
        %3991 = vperm.xlu0 %3990, %v3347
        %v3992 = vpop.permute.xlu0 %3991
        %3994 = vset.pattern.permute.xlu0 4
        %3995 = vperm.xlu0 %3994, %v3349
        %v3996 = vpop.permute.xlu0 %3995
        %3998 = vset.pattern.permute.xlu0 4
        %3999 = vperm.xlu0 %3998, %v3351
        %v4000 = vpop.permute.xlu0 %3999
        %4002 = vset.pattern.permute.xlu0 4
        %4003 = vperm.xlu0 %4002, %v3353
        %v4004 = vpop.permute.xlu0 %4003
        %4006 = vset.pattern.permute.xlu0 4
        %4007 = vperm.xlu0 %4006, %v3355
        %v4008 = vpop.permute.xlu0 %4007
        %4010 = vset.pattern.permute.xlu0 4
        %4011 = vperm.xlu0 %4010, %v3357
        %v4012 = vpop.permute.xlu0 %4011
        %4014 = vset.pattern.permute.xlu0 4
        %4015 = vperm.xlu0 %4014, %v3359
        %v4016 = vpop.permute.xlu0 %4015
        %4018 = vset.pattern.permute.xlu0 4
        %4019 = vperm.xlu0 %4018, %v3361
        %v4020 = vpop.permute.xlu0 %4019
        %4022 = vset.pattern.permute.xlu0 4
        %4023 = vperm.xlu0 %4022, %v3363
        %v4024 = vpop.permute.xlu0 %4023
        %4026 = vset.pattern.permute.xlu0 4
        %4027 = vperm.xlu0 %4026, %v3365
        %v4028 = vpop.permute.xlu0 %4027
        %4030 = vset.pattern.permute.xlu0 4
        %4031 = vperm.xlu0 %4030, %v3367
        %v4032 = vpop.permute.xlu0 %4031
        %4034 = vset.pattern.permute.xlu0 4
        %4035 = vperm.xlu0 %4034, %v3369
        %v4036 = vpop.permute.xlu0 %4035
        %4038 = vset.pattern.permute.xlu0 4
        %4039 = vperm.xlu0 %4038, %v3371
        %v4040 = vpop.permute.xlu0 %4039
        %4042 = vset.pattern.permute.xlu0 4
        %4043 = vperm.xlu0 %4042, %v3373
        %v4044 = vpop.permute.xlu0 %4043
        %4046 = vset.pattern.permute.xlu0 5
        %4047 = vperm.xlu0 %4046, %v3311
        %v4048 = vpop.permute.xlu0 %4047
        %4050 = vset.pattern.permute.xlu0 5
        %4051 = vperm.xlu0 %4050, %v3313
        %v4052 = vpop.permute.xlu0 %4051
        %4054 = vset.pattern.permute.xlu0 5
        %4055 = vperm.xlu0 %4054, %v3315
        %v4056 = vpop.permute.xlu0 %4055
        %4058 = vset.pattern.permute.xlu0 5
        %4059 = vperm.xlu0 %4058, %v3317
        %v4060 = vpop.permute.xlu0 %4059
        %4062 = vset.pattern.permute.xlu0 5
        %4063 = vperm.xlu0 %4062, %v3319
        %v4064 = vpop.permute.xlu0 %4063
        %4066 = vset.pattern.permute.xlu0 5
        %4067 = vperm.xlu0 %4066, %v3321
        %v4068 = vpop.permute.xlu0 %4067
        %4070 = vset.pattern.permute.xlu0 5
        %4071 = vperm.xlu0 %4070, %v3323
        %v4072 = vpop.permute.xlu0 %4071
        %4074 = vset.pattern.permute.xlu0 5
        %4075 = vperm.xlu0 %4074, %v3325
        %v4076 = vpop.permute.xlu0 %4075
        %4078 = vset.pattern.permute.xlu0 5
        %4079 = vperm.xlu0 %4078, %v3327
        %v4080 = vpop.permute.xlu0 %4079
        %4082 = vset.pattern.permute.xlu0 5
        %4083 = vperm.xlu0 %4082, %v3329
        %v4084 = vpop.permute.xlu0 %4083
        %4086 = vset.pattern.permute.xlu0 5
        %4087 = vperm.xlu0 %4086, %v3331
        %v4088 = vpop.permute.xlu0 %4087
        %4090 = vset.pattern.permute.xlu0 5
        %4091 = vperm.xlu0 %4090, %v3333
        %v4092 = vpop.permute.xlu0 %4091
        %4094 = vset.pattern.permute.xlu0 5
        %4095 = vperm.xlu0 %4094, %v3335
        %v4096 = vpop.permute.xlu0 %4095
        %4098 = vset.pattern.permute.xlu0 5
        %4099 = vperm.xlu0 %4098, %v3337
        %v4100 = vpop.permute.xlu0 %4099
        %4102 = vset.pattern.permute.xlu0 5
        %4103 = vperm.xlu0 %4102, %v3339
        %v4104 = vpop.permute.xlu0 %4103
        %4106 = vset.pattern.permute.xlu0 5
        %4107 = vperm.xlu0 %4106, %v3341
        %v4108 = vpop.permute.xlu0 %4107
        %4110 = vset.pattern.permute.xlu0 5
        %4111 = vperm.xlu0 %4110, %v3343
        %v4112 = vpop.permute.xlu0 %4111
        %4114 = vset.pattern.permute.xlu0 5
        %4115 = vperm.xlu0 %4114, %v3345
        %v4116 = vpop.permute.xlu0 %4115
        %4118 = vset.pattern.permute.xlu0 5
        %4119 = vperm.xlu0 %4118, %v3347
        %v4120 = vpop.permute.xlu0 %4119
        %4122 = vset.pattern.permute.xlu0 5
        %4123 = vperm.xlu0 %4122, %v3349
        %v4124 = vpop.permute.xlu0 %4123
        %4126 = vset.pattern.permute.xlu0 5
        %4127 = vperm.xlu0 %4126, %v3351
        %v4128 = vpop.permute.xlu0 %4127
        %4130 = vset.pattern.permute.xlu0 5
        %4131 = vperm.xlu0 %4130, %v3353
        %v4132 = vpop.permute.xlu0 %4131
        %4134 = vset.pattern.permute.xlu0 5
        %4135 = vperm.xlu0 %4134, %v3355
        %v4136 = vpop.permute.xlu0 %4135
        %4138 = vset.pattern.permute.xlu0 5
        %4139 = vperm.xlu0 %4138, %v3357
        %v4140 = vpop.permute.xlu0 %4139
        %4142 = vset.pattern.permute.xlu0 5
        %4143 = vperm.xlu0 %4142, %v3359
        %v4144 = vpop.permute.xlu0 %4143
        %4146 = vset.pattern.permute.xlu0 5
        %4147 = vperm.xlu0 %4146, %v3361
        %v4148 = vpop.permute.xlu0 %4147
        %4150 = vset.pattern.permute.xlu0 5
        %4151 = vperm.xlu0 %4150, %v3363
        %v4152 = vpop.permute.xlu0 %4151
        %4154 = vset.pattern.permute.xlu0 5
        %4155 = vperm.xlu0 %4154, %v3365
        %v4156 = vpop.permute.xlu0 %4155
        %4158 = vset.pattern.permute.xlu0 5
        %4159 = vperm.xlu0 %4158, %v3367
        %v4160 = vpop.permute.xlu0 %4159
        %4162 = vset.pattern.permute.xlu0 5
        %4163 = vperm.xlu0 %4162, %v3369
        %v4164 = vpop.permute.xlu0 %4163
        %4166 = vset.pattern.permute.xlu0 5
        %4167 = vperm.xlu0 %4166, %v3371
        %v4168 = vpop.permute.xlu0 %4167
        %4170 = vset.pattern.permute.xlu0 5
        %4171 = vperm.xlu0 %4170, %v3373
        %v4172 = vpop.permute.xlu0 %4171
        %4174 = vset.pattern.permute.xlu0 6
        %4175 = vperm.xlu0 %4174, %v3311
        %v4176 = vpop.permute.xlu0 %4175
        %4178 = vset.pattern.permute.xlu0 6
        %4179 = vperm.xlu0 %4178, %v3313
        %v4180 = vpop.permute.xlu0 %4179
        %4182 = vset.pattern.permute.xlu0 6
        %4183 = vperm.xlu0 %4182, %v3315
        %v4184 = vpop.permute.xlu0 %4183
        %4186 = vset.pattern.permute.xlu0 6
        %4187 = vperm.xlu0 %4186, %v3317
        %v4188 = vpop.permute.xlu0 %4187
        %4190 = vset.pattern.permute.xlu0 6
        %4191 = vperm.xlu0 %4190, %v3319
        %v4192 = vpop.permute.xlu0 %4191
        %4194 = vset.pattern.permute.xlu0 6
        %4195 = vperm.xlu0 %4194, %v3321
        %v4196 = vpop.permute.xlu0 %4195
        %4198 = vset.pattern.permute.xlu0 6
        %4199 = vperm.xlu0 %4198, %v3323
        %v4200 = vpop.permute.xlu0 %4199
        %4202 = vset.pattern.permute.xlu0 6
        %4203 = vperm.xlu0 %4202, %v3325
        %v4204 = vpop.permute.xlu0 %4203
        %4206 = vset.pattern.permute.xlu0 6
        %4207 = vperm.xlu0 %4206, %v3327
        %v4208 = vpop.permute.xlu0 %4207
        %4210 = vset.pattern.permute.xlu0 6
        %4211 = vperm.xlu0 %4210, %v3329
        %v4212 = vpop.permute.xlu0 %4211
        %4214 = vset.pattern.permute.xlu0 6
        %4215 = vperm.xlu0 %4214, %v3331
        %v4216 = vpop.permute.xlu0 %4215
        %4218 = vset.pattern.permute.xlu0 6
        %4219 = vperm.xlu0 %4218, %v3333
        %v4220 = vpop.permute.xlu0 %4219
        %4222 = vset.pattern.permute.xlu0 6
        %4223 = vperm.xlu0 %4222, %v3335
        %v4224 = vpop.permute.xlu0 %4223
        %4226 = vset.pattern.permute.xlu0 6
        %4227 = vperm.xlu0 %4226, %v3337
        %v4228 = vpop.permute.xlu0 %4227
        %4230 = vset.pattern.permute.xlu0 6
        %4231 = vperm.xlu0 %4230, %v3339
        %v4232 = vpop.permute.xlu0 %4231
        %4234 = vset.pattern.permute.xlu0 6
        %4235 = vperm.xlu0 %4234, %v3341
        %v4236 = vpop.permute.xlu0 %4235
        %4238 = vset.pattern.permute.xlu0 6
        %4239 = vperm.xlu0 %4238, %v3343
        %v4240 = vpop.permute.xlu0 %4239
        %4242 = vset.pattern.permute.xlu0 6
        %4243 = vperm.xlu0 %4242, %v3345
        %v4244 = vpop.permute.xlu0 %4243
        %4246 = vset.pattern.permute.xlu0 6
        %4247 = vperm.xlu0 %4246, %v3347
        %v4248 = vpop.permute.xlu0 %4247
        %4250 = vset.pattern.permute.xlu0 6
        %4251 = vperm.xlu0 %4250, %v3349
        %v4252 = vpop.permute.xlu0 %4251
        %4254 = vset.pattern.permute.xlu0 6
        %4255 = vperm.xlu0 %4254, %v3351
        %v4256 = vpop.permute.xlu0 %4255
        %4258 = vset.pattern.permute.xlu0 6
        %4259 = vperm.xlu0 %4258, %v3353
        %v4260 = vpop.permute.xlu0 %4259
        %4262 = vset.pattern.permute.xlu0 6
        %4263 = vperm.xlu0 %4262, %v3355
        %v4264 = vpop.permute.xlu0 %4263
        %4266 = vset.pattern.permute.xlu0 6
        %4267 = vperm.xlu0 %4266, %v3357
        %v4268 = vpop.permute.xlu0 %4267
        %4270 = vset.pattern.permute.xlu0 6
        %4271 = vperm.xlu0 %4270, %v3359
        %v4272 = vpop.permute.xlu0 %4271
        %4274 = vset.pattern.permute.xlu0 6
        %4275 = vperm.xlu0 %4274, %v3361
        %v4276 = vpop.permute.xlu0 %4275
        %4278 = vset.pattern.permute.xlu0 6
        %4279 = vperm.xlu0 %4278, %v3363
        %v4280 = vpop.permute.xlu0 %4279
        %4282 = vset.pattern.permute.xlu0 6
        %4283 = vperm.xlu0 %4282, %v3365
        %v4284 = vpop.permute.xlu0 %4283
        %4286 = vset.pattern.permute.xlu0 6
        %4287 = vperm.xlu0 %4286, %v3367
        %v4288 = vpop.permute.xlu0 %4287
        %4290 = vset.pattern.permute.xlu0 6
        %4291 = vperm.xlu0 %4290, %v3369
        %v4292 = vpop.permute.xlu0 %4291
        %4294 = vset.pattern.permute.xlu0 6
        %4295 = vperm.xlu0 %4294, %v3371
        %v4296 = vpop.permute.xlu0 %4295
        %4298 = vset.pattern.permute.xlu0 6
        %4299 = vperm.xlu0 %4298, %v3373
        %v4300 = vpop.permute.xlu0 %4299
        %4302 = vset.pattern.permute.xlu0 7
        %4303 = vperm.xlu0 %4302, %v3311
        %v4304 = vpop.permute.xlu0 %4303
        %4306 = vset.pattern.permute.xlu0 7
        %4307 = vperm.xlu0 %4306, %v3313
        %v4308 = vpop.permute.xlu0 %4307
        %4310 = vset.pattern.permute.xlu0 7
        %4311 = vperm.xlu0 %4310, %v3315
        %v4312 = vpop.permute.xlu0 %4311
        %4314 = vset.pattern.permute.xlu0 7
        %4315 = vperm.xlu0 %4314, %v3317
        %v4316 = vpop.permute.xlu0 %4315
        %4318 = vset.pattern.permute.xlu0 7
        %4319 = vperm.xlu0 %4318, %v3319
        %v4320 = vpop.permute.xlu0 %4319
        %4322 = vset.pattern.permute.xlu0 7
        %4323 = vperm.xlu0 %4322, %v3321
        %v4324 = vpop.permute.xlu0 %4323
        %4326 = vset.pattern.permute.xlu0 7
        %4327 = vperm.xlu0 %4326, %v3323
        %v4328 = vpop.permute.xlu0 %4327
        %4330 = vset.pattern.permute.xlu0 7
        %4331 = vperm.xlu0 %4330, %v3325
        %v4332 = vpop.permute.xlu0 %4331
        %4334 = vset.pattern.permute.xlu0 7
        %4335 = vperm.xlu0 %4334, %v3327
        %v4336 = vpop.permute.xlu0 %4335
        %4338 = vset.pattern.permute.xlu0 7
        %4339 = vperm.xlu0 %4338, %v3329
        %v4340 = vpop.permute.xlu0 %4339
        %4342 = vset.pattern.permute.xlu0 7
        %4343 = vperm.xlu0 %4342, %v3331
        %v4344 = vpop.permute.xlu0 %4343
        %4346 = vset.pattern.permute.xlu0 7
        %4347 = vperm.xlu0 %4346, %v3333
        %v4348 = vpop.permute.xlu0 %4347
        %4350 = vset.pattern.permute.xlu0 7
        %4351 = vperm.xlu0 %4350, %v3335
        %v4352 = vpop.permute.xlu0 %4351
        %4354 = vset.pattern.permute.xlu0 7
        %4355 = vperm.xlu0 %4354, %v3337
        %v4356 = vpop.permute.xlu0 %4355
        %4358 = vset.pattern.permute.xlu0 7
        %4359 = vperm.xlu0 %4358, %v3339
        %v4360 = vpop.permute.xlu0 %4359
        %4362 = vset.pattern.permute.xlu0 7
        %4363 = vperm.xlu0 %4362, %v3341
        %v4364 = vpop.permute.xlu0 %4363
        %4366 = vset.pattern.permute.xlu0 7
        %4367 = vperm.xlu0 %4366, %v3343
        %v4368 = vpop.permute.xlu0 %4367
        %4370 = vset.pattern.permute.xlu0 7
        %4371 = vperm.xlu0 %4370, %v3345
        %v4372 = vpop.permute.xlu0 %4371
        %4374 = vset.pattern.permute.xlu0 7
        %4375 = vperm.xlu0 %4374, %v3347
        %v4376 = vpop.permute.xlu0 %4375
        %4378 = vset.pattern.permute.xlu0 7
        %4379 = vperm.xlu0 %4378, %v3349
        %v4380 = vpop.permute.xlu0 %4379
        %4382 = vset.pattern.permute.xlu0 7
        %4383 = vperm.xlu0 %4382, %v3351
        %v4384 = vpop.permute.xlu0 %4383
        %4386 = vset.pattern.permute.xlu0 7
        %4387 = vperm.xlu0 %4386, %v3353
        %v4388 = vpop.permute.xlu0 %4387
        %4390 = vset.pattern.permute.xlu0 7
        %4391 = vperm.xlu0 %4390, %v3355
        %v4392 = vpop.permute.xlu0 %4391
        %4394 = vset.pattern.permute.xlu0 7
        %4395 = vperm.xlu0 %4394, %v3357
        %v4396 = vpop.permute.xlu0 %4395
        %4398 = vset.pattern.permute.xlu0 7
        %4399 = vperm.xlu0 %4398, %v3359
        %v4400 = vpop.permute.xlu0 %4399
        %4402 = vset.pattern.permute.xlu0 7
        %4403 = vperm.xlu0 %4402, %v3361
        %v4404 = vpop.permute.xlu0 %4403
        %4406 = vset.pattern.permute.xlu0 7
        %4407 = vperm.xlu0 %4406, %v3363
        %v4408 = vpop.permute.xlu0 %4407
        %4410 = vset.pattern.permute.xlu0 7
        %4411 = vperm.xlu0 %4410, %v3365
        %v4412 = vpop.permute.xlu0 %4411
        %4414 = vset.pattern.permute.xlu0 7
        %4415 = vperm.xlu0 %4414, %v3367
        %v4416 = vpop.permute.xlu0 %4415
        %4418 = vset.pattern.permute.xlu0 7
        %4419 = vperm.xlu0 %4418, %v3369
        %v4420 = vpop.permute.xlu0 %4419
        %4422 = vset.pattern.permute.xlu0 7
        %4423 = vperm.xlu0 %4422, %v3371
        %v4424 = vpop.permute.xlu0 %4423
        %4426 = vset.pattern.permute.xlu0 7
        %4427 = vperm.xlu0 %4426, %v3373
        %v4428 = vpop.permute.xlu0 %4427
        %4430 = vset.pattern.permute.xlu0 8
        %4431 = vperm.xlu0 %4430, %v3311
        %v4432 = vpop.permute.xlu0 %4431
        %4434 = vset.pattern.permute.xlu0 8
        %4435 = vperm.xlu0 %4434, %v3313
        %v4436 = vpop.permute.xlu0 %4435
        %4438 = vset.pattern.permute.xlu0 8
        %4439 = vperm.xlu0 %4438, %v3315
        %v4440 = vpop.permute.xlu0 %4439
        %4442 = vset.pattern.permute.xlu0 8
        %4443 = vperm.xlu0 %4442, %v3317
        %v4444 = vpop.permute.xlu0 %4443
        %4446 = vset.pattern.permute.xlu0 8
        %4447 = vperm.xlu0 %4446, %v3319
        %v4448 = vpop.permute.xlu0 %4447
        %4450 = vset.pattern.permute.xlu0 8
        %4451 = vperm.xlu0 %4450, %v3321
        %v4452 = vpop.permute.xlu0 %4451
        %4454 = vset.pattern.permute.xlu0 8
        %4455 = vperm.xlu0 %4454, %v3323
        %v4456 = vpop.permute.xlu0 %4455
        %4458 = vset.pattern.permute.xlu0 8
        %4459 = vperm.xlu0 %4458, %v3325
        %v4460 = vpop.permute.xlu0 %4459
        %4462 = vset.pattern.permute.xlu0 8
        %4463 = vperm.xlu0 %4462, %v3327
        %v4464 = vpop.permute.xlu0 %4463
        %4466 = vset.pattern.permute.xlu0 8
        %4467 = vperm.xlu0 %4466, %v3329
        %v4468 = vpop.permute.xlu0 %4467
        %4470 = vset.pattern.permute.xlu0 8
        %4471 = vperm.xlu0 %4470, %v3331
        %v4472 = vpop.permute.xlu0 %4471
        %4474 = vset.pattern.permute.xlu0 8
        %4475 = vperm.xlu0 %4474, %v3333
        %v4476 = vpop.permute.xlu0 %4475
        %4478 = vset.pattern.permute.xlu0 8
        %4479 = vperm.xlu0 %4478, %v3335
        %v4480 = vpop.permute.xlu0 %4479
        %4482 = vset.pattern.permute.xlu0 8
        %4483 = vperm.xlu0 %4482, %v3337
        %v4484 = vpop.permute.xlu0 %4483
        %4486 = vset.pattern.permute.xlu0 8
        %4487 = vperm.xlu0 %4486, %v3339
        %v4488 = vpop.permute.xlu0 %4487
        %4490 = vset.pattern.permute.xlu0 8
        %4491 = vperm.xlu0 %4490, %v3341
        %v4492 = vpop.permute.xlu0 %4491
        %4494 = vset.pattern.permute.xlu0 8
        %4495 = vperm.xlu0 %4494, %v3343
        %v4496 = vpop.permute.xlu0 %4495
        %4498 = vset.pattern.permute.xlu0 8
        %4499 = vperm.xlu0 %4498, %v3345
        %v4500 = vpop.permute.xlu0 %4499
        %4502 = vset.pattern.permute.xlu0 8
        %4503 = vperm.xlu0 %4502, %v3347
        %v4504 = vpop.permute.xlu0 %4503
        %4506 = vset.pattern.permute.xlu0 8
        %4507 = vperm.xlu0 %4506, %v3349
        %v4508 = vpop.permute.xlu0 %4507
        %4510 = vset.pattern.permute.xlu0 8
        %4511 = vperm.xlu0 %4510, %v3351
        %v4512 = vpop.permute.xlu0 %4511
        %4514 = vset.pattern.permute.xlu0 8
        %4515 = vperm.xlu0 %4514, %v3353
        %v4516 = vpop.permute.xlu0 %4515
        %4518 = vset.pattern.permute.xlu0 8
        %4519 = vperm.xlu0 %4518, %v3355
        %v4520 = vpop.permute.xlu0 %4519
        %4522 = vset.pattern.permute.xlu0 8
        %4523 = vperm.xlu0 %4522, %v3357
        %v4524 = vpop.permute.xlu0 %4523
        %4526 = vset.pattern.permute.xlu0 8
        %4527 = vperm.xlu0 %4526, %v3359
        %v4528 = vpop.permute.xlu0 %4527
        %4530 = vset.pattern.permute.xlu0 8
        %4531 = vperm.xlu0 %4530, %v3361
        %v4532 = vpop.permute.xlu0 %4531
        %4534 = vset.pattern.permute.xlu0 8
        %4535 = vperm.xlu0 %4534, %v3363
        %v4536 = vpop.permute.xlu0 %4535
        %4538 = vset.pattern.permute.xlu0 8
        %4539 = vperm.xlu0 %4538, %v3365
        %v4540 = vpop.permute.xlu0 %4539
        %4542 = vset.pattern.permute.xlu0 8
        %4543 = vperm.xlu0 %4542, %v3367
        %v4544 = vpop.permute.xlu0 %4543
        %4546 = vset.pattern.permute.xlu0 8
        %4547 = vperm.xlu0 %4546, %v3369
        %v4548 = vpop.permute.xlu0 %4547
        %4550 = vset.pattern.permute.xlu0 8
        %4551 = vperm.xlu0 %4550, %v3371
        %v4552 = vpop.permute.xlu0 %4551
        %4554 = vset.pattern.permute.xlu0 8
        %4555 = vperm.xlu0 %4554, %v3373
        %v4556 = vpop.permute.xlu0 %4555
        %4558 = vset.pattern.permute.xlu0 9
        %4559 = vperm.xlu0 %4558, %v3311
        %v4560 = vpop.permute.xlu0 %4559
        %4562 = vset.pattern.permute.xlu0 9
        %4563 = vperm.xlu0 %4562, %v3313
        %v4564 = vpop.permute.xlu0 %4563
        %4566 = vset.pattern.permute.xlu0 9
        %4567 = vperm.xlu0 %4566, %v3315
        %v4568 = vpop.permute.xlu0 %4567
        %4570 = vset.pattern.permute.xlu0 9
        %4571 = vperm.xlu0 %4570, %v3317
        %v4572 = vpop.permute.xlu0 %4571
        %4574 = vset.pattern.permute.xlu0 9
        %4575 = vperm.xlu0 %4574, %v3319
        %v4576 = vpop.permute.xlu0 %4575
        %4578 = vset.pattern.permute.xlu0 9
        %4579 = vperm.xlu0 %4578, %v3321
        %v4580 = vpop.permute.xlu0 %4579
        %4582 = vset.pattern.permute.xlu0 9
        %4583 = vperm.xlu0 %4582, %v3323
        %v4584 = vpop.permute.xlu0 %4583
        %4586 = vset.pattern.permute.xlu0 9
        %4587 = vperm.xlu0 %4586, %v3325
        %v4588 = vpop.permute.xlu0 %4587
        %4590 = vset.pattern.permute.xlu0 9
        %4591 = vperm.xlu0 %4590, %v3327
        %v4592 = vpop.permute.xlu0 %4591
        %4594 = vset.pattern.permute.xlu0 9
        %4595 = vperm.xlu0 %4594, %v3329
        %v4596 = vpop.permute.xlu0 %4595
        %4598 = vset.pattern.permute.xlu0 9
        %4599 = vperm.xlu0 %4598, %v3331
        %v4600 = vpop.permute.xlu0 %4599
        %4602 = vset.pattern.permute.xlu0 9
        %4603 = vperm.xlu0 %4602, %v3333
        %v4604 = vpop.permute.xlu0 %4603
        %4606 = vset.pattern.permute.xlu0 9
        %4607 = vperm.xlu0 %4606, %v3335
        %v4608 = vpop.permute.xlu0 %4607
        %4610 = vset.pattern.permute.xlu0 9
        %4611 = vperm.xlu0 %4610, %v3337
        %v4612 = vpop.permute.xlu0 %4611
        %4614 = vset.pattern.permute.xlu0 9
        %4615 = vperm.xlu0 %4614, %v3339
        %v4616 = vpop.permute.xlu0 %4615
        %4618 = vset.pattern.permute.xlu0 9
        %4619 = vperm.xlu0 %4618, %v3341
        %v4620 = vpop.permute.xlu0 %4619
        %4622 = vset.pattern.permute.xlu0 9
        %4623 = vperm.xlu0 %4622, %v3343
        %v4624 = vpop.permute.xlu0 %4623
        %4626 = vset.pattern.permute.xlu0 9
        %4627 = vperm.xlu0 %4626, %v3345
        %v4628 = vpop.permute.xlu0 %4627
        %4630 = vset.pattern.permute.xlu0 9
        %4631 = vperm.xlu0 %4630, %v3347
        %v4632 = vpop.permute.xlu0 %4631
        %4634 = vset.pattern.permute.xlu0 9
        %4635 = vperm.xlu0 %4634, %v3349
        %v4636 = vpop.permute.xlu0 %4635
        %4638 = vset.pattern.permute.xlu0 9
        %4639 = vperm.xlu0 %4638, %v3351
        %v4640 = vpop.permute.xlu0 %4639
        %4642 = vset.pattern.permute.xlu0 9
        %4643 = vperm.xlu0 %4642, %v3353
        %v4644 = vpop.permute.xlu0 %4643
        %4646 = vset.pattern.permute.xlu0 9
        %4647 = vperm.xlu0 %4646, %v3355
        %v4648 = vpop.permute.xlu0 %4647
        %4650 = vset.pattern.permute.xlu0 9
        %4651 = vperm.xlu0 %4650, %v3357
        %v4652 = vpop.permute.xlu0 %4651
        %4654 = vset.pattern.permute.xlu0 9
        %4655 = vperm.xlu0 %4654, %v3359
        %v4656 = vpop.permute.xlu0 %4655
        %4658 = vset.pattern.permute.xlu0 9
        %4659 = vperm.xlu0 %4658, %v3361
        %v4660 = vpop.permute.xlu0 %4659
        %4662 = vset.pattern.permute.xlu0 9
        %4663 = vperm.xlu0 %4662, %v3363
        %v4664 = vpop.permute.xlu0 %4663
        %4666 = vset.pattern.permute.xlu0 9
        %4667 = vperm.xlu0 %4666, %v3365
        %v4668 = vpop.permute.xlu0 %4667
        %4670 = vset.pattern.permute.xlu0 9
        %4671 = vperm.xlu0 %4670, %v3367
        %v4672 = vpop.permute.xlu0 %4671
        %4674 = vset.pattern.permute.xlu0 9
        %4675 = vperm.xlu0 %4674, %v3369
        %v4676 = vpop.permute.xlu0 %4675
        %4678 = vset.pattern.permute.xlu0 9
        %4679 = vperm.xlu0 %4678, %v3371
        %v4680 = vpop.permute.xlu0 %4679
        %4682 = vset.pattern.permute.xlu0 9
        %4683 = vperm.xlu0 %4682, %v3373
        %v4684 = vpop.permute.xlu0 %4683
        %v4686 = vmul.f32 %v3377, %v2107
        %v4687 = vmul.f32 %v3382, %v2112
        %v4688 = vmul.f32 %v3387, %v2117
        %v4689 = vmul.f32 %v3392, %v2122
        %v4690 = vmul.f32 %v3397, %v2127
        %v4691 = vmul.f32 %v3402, %v2132
        %v4692 = vmul.f32 %v3407, %v2137
        %v4693 = vmul.f32 %v3412, %v2142
        %v4694 = vmul.f32 %v3417, %v2147
        %v4695 = vmul.f32 %v3422, %v2152
        %v4696 = vmul.f32 %v3427, %v2157
        %v4697 = vmul.f32 %v3432, %v2162
        %v4698 = vmul.f32 %v3437, %v2167
        %v4699 = vmul.f32 %v3442, %v2172
        %v4700 = vmul.f32 %v3447, %v2177
        %v4701 = vmul.f32 %v3452, %v2182
        %v4702 = vmul.f32 %v3457, %v2187
        %v4703 = vmul.f32 %v3462, %v2192
        %v4704 = vmul.f32 %v3467, %v2197
        %v4705 = vmul.f32 %v3472, %v2202
        %v4706 = vmul.f32 %v3477, %v2207
        %v4707 = vmul.f32 %v3482, %v2212
        %v4708 = vmul.f32 %v3487, %v2217
        %v4709 = vmul.f32 %v3492, %v2222
        %v4710 = vmul.f32 %v3497, %v2227
        %v4711 = vmul.f32 %v3502, %v2232
        %v4712 = vmul.f32 %v3507, %v2237
        %v4713 = vmul.f32 %v3512, %v2242
        %v4714 = vmul.f32 %v3517, %v2247
        %v4715 = vmul.f32 %v3522, %v2252
        %v4716 = vmul.f32 %v3527, %v2257
        %v4717 = vmul.f32 %v3532, %v2262
        %v4718 = vmul.f32 %v3536, %v2108
        %v4719 = vmul.f32 %v3540, %v2113
        %v4720 = vmul.f32 %v3544, %v2118
        %v4721 = vmul.f32 %v3548, %v2123
        %v4722 = vmul.f32 %v3552, %v2128
        %v4723 = vmul.f32 %v3556, %v2133
        %v4724 = vmul.f32 %v3560, %v2138
        %v4725 = vmul.f32 %v3564, %v2143
        %v4726 = vmul.f32 %v3568, %v2148
        %v4727 = vmul.f32 %v3572, %v2153
        %v4728 = vmul.f32 %v3576, %v2158
        %v4729 = vmul.f32 %v3580, %v2163
        %v4730 = vmul.f32 %v3584, %v2168
        %v4731 = vmul.f32 %v3588, %v2173
        %v4732 = vmul.f32 %v3592, %v2178
        %v4733 = vmul.f32 %v3596, %v2183
        %v4734 = vmul.f32 %v3600, %v2188
        %v4735 = vmul.f32 %v3604, %v2193
        %v4736 = vmul.f32 %v3608, %v2198
        %v4737 = vmul.f32 %v3612, %v2203
        %v4738 = vmul.f32 %v3616, %v2208
        %v4739 = vmul.f32 %v3620, %v2213
        %v4740 = vmul.f32 %v3624, %v2218
        %v4741 = vmul.f32 %v3628, %v2223
        %v4742 = vmul.f32 %v3632, %v2228
        %v4743 = vmul.f32 %v3636, %v2233
        %v4744 = vmul.f32 %v3640, %v2238
        %v4745 = vmul.f32 %v3644, %v2243
        %v4746 = vmul.f32 %v3648, %v2248
        %v4747 = vmul.f32 %v3652, %v2253
        %v4748 = vmul.f32 %v3656, %v2258
        %v4749 = vmul.f32 %v3660, %v2263
        %v4750 = vadd.f32 %v4686, %v4718
        %v4751 = vadd.f32 %v4687, %v4719
        %v4752 = vadd.f32 %v4688, %v4720
        %v4753 = vadd.f32 %v4689, %v4721
        %v4754 = vadd.f32 %v4690, %v4722
        %v4755 = vadd.f32 %v4691, %v4723
        %v4756 = vadd.f32 %v4692, %v4724
        %v4757 = vadd.f32 %v4693, %v4725
        %v4758 = vadd.f32 %v4694, %v4726
        %v4759 = vadd.f32 %v4695, %v4727
        %v4760 = vadd.f32 %v4696, %v4728
        %v4761 = vadd.f32 %v4697, %v4729
        %v4762 = vadd.f32 %v4698, %v4730
        %v4763 = vadd.f32 %v4699, %v4731
        %v4764 = vadd.f32 %v4700, %v4732
        %v4765 = vadd.f32 %v4701, %v4733
        %v4766 = vadd.f32 %v4702, %v4734
        %v4767 = vadd.f32 %v4703, %v4735
        %v4768 = vadd.f32 %v4704, %v4736
        %v4769 = vadd.f32 %v4705, %v4737
        %v4770 = vadd.f32 %v4706, %v4738
        %v4771 = vadd.f32 %v4707, %v4739
        %v4772 = vadd.f32 %v4708, %v4740
        %v4773 = vadd.f32 %v4709, %v4741
        %v4774 = vadd.f32 %v4710, %v4742
        %v4775 = vadd.f32 %v4711, %v4743
        %v4776 = vadd.f32 %v4712, %v4744
        %v4777 = vadd.f32 %v4713, %v4745
        %v4778 = vadd.f32 %v4714, %v4746
        %v4779 = vadd.f32 %v4715, %v4747
        %v4780 = vadd.f32 %v4716, %v4748
        %v4781 = vadd.f32 %v4717, %v4749
        %v4782 = vmul.f32 %v3664, %v2109
        %v4783 = vmul.f32 %v3668, %v2114
        %v4784 = vmul.f32 %v3672, %v2119
        %v4785 = vmul.f32 %v3676, %v2124
        %v4786 = vmul.f32 %v3680, %v2129
        %v4787 = vmul.f32 %v3684, %v2134
        %v4788 = vmul.f32 %v3688, %v2139
        %v4789 = vmul.f32 %v3692, %v2144
        %v4790 = vmul.f32 %v3696, %v2149
        %v4791 = vmul.f32 %v3700, %v2154
        %v4792 = vmul.f32 %v3704, %v2159
        %v4793 = vmul.f32 %v3708, %v2164
        %v4794 = vmul.f32 %v3712, %v2169
        %v4795 = vmul.f32 %v3716, %v2174
        %v4796 = vmul.f32 %v3720, %v2179
        %v4797 = vmul.f32 %v3724, %v2184
        %v4798 = vmul.f32 %v3728, %v2189
        %v4799 = vmul.f32 %v3732, %v2194
        %v4800 = vmul.f32 %v3736, %v2199
        %v4801 = vmul.f32 %v3740, %v2204
        %v4802 = vmul.f32 %v3744, %v2209
        %v4803 = vmul.f32 %v3748, %v2214
        %v4804 = vmul.f32 %v3752, %v2219
        %v4805 = vmul.f32 %v3756, %v2224
        %v4806 = vmul.f32 %v3760, %v2229
        %v4807 = vmul.f32 %v3764, %v2234
        %v4808 = vmul.f32 %v3768, %v2239
        %v4809 = vmul.f32 %v3772, %v2244
        %v4810 = vmul.f32 %v3776, %v2249
        %v4811 = vmul.f32 %v3780, %v2254
        %v4812 = vmul.f32 %v3784, %v2259
        %v4813 = vmul.f32 %v3788, %v2264
        %v4814 = vadd.f32 %v4750, %v4782
        %v4815 = vadd.f32 %v4751, %v4783
        %v4816 = vadd.f32 %v4752, %v4784
        %v4817 = vadd.f32 %v4753, %v4785
        %v4818 = vadd.f32 %v4754, %v4786
        %v4819 = vadd.f32 %v4755, %v4787
        %v4820 = vadd.f32 %v4756, %v4788
        %v4821 = vadd.f32 %v4757, %v4789
        %v4822 = vadd.f32 %v4758, %v4790
        %v4823 = vadd.f32 %v4759, %v4791
        %v4824 = vadd.f32 %v4760, %v4792
        %v4825 = vadd.f32 %v4761, %v4793
        %v4826 = vadd.f32 %v4762, %v4794
        %v4827 = vadd.f32 %v4763, %v4795
        %v4828 = vadd.f32 %v4764, %v4796
        %v4829 = vadd.f32 %v4765, %v4797
        %v4830 = vadd.f32 %v4766, %v4798
        %v4831 = vadd.f32 %v4767, %v4799
        %v4832 = vadd.f32 %v4768, %v4800
        %v4833 = vadd.f32 %v4769, %v4801
        %v4834 = vadd.f32 %v4770, %v4802
        %v4835 = vadd.f32 %v4771, %v4803
        %v4836 = vadd.f32 %v4772, %v4804
        %v4837 = vadd.f32 %v4773, %v4805
        %v4838 = vadd.f32 %v4774, %v4806
        %v4839 = vadd.f32 %v4775, %v4807
        %v4840 = vadd.f32 %v4776, %v4808
        %v4841 = vadd.f32 %v4777, %v4809
        %v4842 = vadd.f32 %v4778, %v4810
        %v4843 = vadd.f32 %v4779, %v4811
        %v4844 = vadd.f32 %v4780, %v4812
        %v4845 = vadd.f32 %v4781, %v4813
        %v4846 = vmul.f32 %v3792, %v2110
        %v4847 = vmul.f32 %v3796, %v2115
        %v4848 = vmul.f32 %v3800, %v2120
        %v4849 = vmul.f32 %v3804, %v2125
        %v4850 = vmul.f32 %v3808, %v2130
        %v4851 = vmul.f32 %v3812, %v2135
        %v4852 = vmul.f32 %v3816, %v2140
        %v4853 = vmul.f32 %v3820, %v2145
        %v4854 = vmul.f32 %v3824, %v2150
        %v4855 = vmul.f32 %v3828, %v2155
        %v4856 = vmul.f32 %v3832, %v2160
        %v4857 = vmul.f32 %v3836, %v2165
        %v4858 = vmul.f32 %v3840, %v2170
        %v4859 = vmul.f32 %v3844, %v2175
        %v4860 = vmul.f32 %v3848, %v2180
        %v4861 = vmul.f32 %v3852, %v2185
        %v4862 = vmul.f32 %v3856, %v2190
        %v4863 = vmul.f32 %v3860, %v2195
        %v4864 = vmul.f32 %v3864, %v2200
        %v4865 = vmul.f32 %v3868, %v2205
        %v4866 = vmul.f32 %v3872, %v2210
        %v4867 = vmul.f32 %v3876, %v2215
        %v4868 = vmul.f32 %v3880, %v2220
        %v4869 = vmul.f32 %v3884, %v2225
        %v4870 = vmul.f32 %v3888, %v2230
        %v4871 = vmul.f32 %v3892, %v2235
        %v4872 = vmul.f32 %v3896, %v2240
        %v4873 = vmul.f32 %v3900, %v2245
        %v4874 = vmul.f32 %v3904, %v2250
        %v4875 = vmul.f32 %v3908, %v2255
        %v4876 = vmul.f32 %v3912, %v2260
        %v4877 = vmul.f32 %v3916, %v2265
        %v4878 = vadd.f32 %v4814, %v4846
        %v4879 = vadd.f32 %v4815, %v4847
        %v4880 = vadd.f32 %v4816, %v4848
        %v4881 = vadd.f32 %v4817, %v4849
        %v4882 = vadd.f32 %v4818, %v4850
        %v4883 = vadd.f32 %v4819, %v4851
        %v4884 = vadd.f32 %v4820, %v4852
        %v4885 = vadd.f32 %v4821, %v4853
        %v4886 = vadd.f32 %v4822, %v4854
        %v4887 = vadd.f32 %v4823, %v4855
        %v4888 = vadd.f32 %v4824, %v4856
        %v4889 = vadd.f32 %v4825, %v4857
        %v4890 = vadd.f32 %v4826, %v4858
        %v4891 = vadd.f32 %v4827, %v4859
        %v4892 = vadd.f32 %v4828, %v4860
        %v4893 = vadd.f32 %v4829, %v4861
        %v4894 = vadd.f32 %v4830, %v4862
        %v4895 = vadd.f32 %v4831, %v4863
        %v4896 = vadd.f32 %v4832, %v4864
        %v4897 = vadd.f32 %v4833, %v4865
        %v4898 = vadd.f32 %v4834, %v4866
        %v4899 = vadd.f32 %v4835, %v4867
        %v4900 = vadd.f32 %v4836, %v4868
        %v4901 = vadd.f32 %v4837, %v4869
        %v4902 = vadd.f32 %v4838, %v4870
        %v4903 = vadd.f32 %v4839, %v4871
        %v4904 = vadd.f32 %v4840, %v4872
        %v4905 = vadd.f32 %v4841, %v4873
        %v4906 = vadd.f32 %v4842, %v4874
        %v4907 = vadd.f32 %v4843, %v4875
        %v4908 = vadd.f32 %v4844, %v4876
        %v4909 = vadd.f32 %v4845, %v4877
        %v4910 = vmax.f32 %v4878, 0.0
        %v4911 = vmax.f32 %v4879, 0.0
        %v4912 = vmax.f32 %v4880, 0.0
        %v4913 = vmax.f32 %v4881, 0.0
        %v4914 = vmax.f32 %v4882, 0.0
        %v4915 = vmax.f32 %v4883, 0.0
        %v4916 = vmax.f32 %v4884, 0.0
        %v4917 = vmax.f32 %v4885, 0.0
        %v4918 = vmax.f32 %v4886, 0.0
        %v4919 = vmax.f32 %v4887, 0.0
        %v4920 = vmax.f32 %v4888, 0.0
        %v4921 = vmax.f32 %v4889, 0.0
        %v4922 = vmax.f32 %v4890, 0.0
        %v4923 = vmax.f32 %v4891, 0.0
        %v4924 = vmax.f32 %v4892, 0.0
        %v4925 = vmax.f32 %v4893, 0.0
        %v4926 = vmax.f32 %v4894, 0.0
        %v4927 = vmax.f32 %v4895, 0.0
        %v4928 = vmax.f32 %v4896, 0.0
        %v4929 = vmax.f32 %v4897, 0.0
        %v4930 = vmax.f32 %v4898, 0.0
        %v4931 = vmax.f32 %v4899, 0.0
        %v4932 = vmax.f32 %v4900, 0.0
        %v4933 = vmax.f32 %v4901, 0.0
        %v4934 = vmax.f32 %v4902, 0.0
        %v4935 = vmax.f32 %v4903, 0.0
        %v4936 = vmax.f32 %v4904, 0.0
        %v4937 = vmax.f32 %v4905, 0.0
        %v4938 = vmax.f32 %v4906, 0.0
        %v4939 = vmax.f32 %v4907, 0.0
        %v4940 = vmax.f32 %v4908, 0.0
        %v4941 = vmax.f32 %v4909, 0.0
        %v4942 = vmul.f32 %v3377, %v2106
        %v4943 = vmul.f32 %v3382, %v2111
        %v4944 = vmul.f32 %v3387, %v2116
        %v4945 = vmul.f32 %v3392, %v2121
        %v4946 = vmul.f32 %v3397, %v2126
        %v4947 = vmul.f32 %v3402, %v2131
        %v4948 = vmul.f32 %v3407, %v2136
        %v4949 = vmul.f32 %v3412, %v2141
        %v4950 = vmul.f32 %v3417, %v2146
        %v4951 = vmul.f32 %v3422, %v2151
        %v4952 = vmul.f32 %v3427, %v2156
        %v4953 = vmul.f32 %v3432, %v2161
        %v4954 = vmul.f32 %v3437, %v2166
        %v4955 = vmul.f32 %v3442, %v2171
        %v4956 = vmul.f32 %v3447, %v2176
        %v4957 = vmul.f32 %v3452, %v2181
        %v4958 = vmul.f32 %v3457, %v2186
        %v4959 = vmul.f32 %v3462, %v2191
        %v4960 = vmul.f32 %v3467, %v2196
        %v4961 = vmul.f32 %v3472, %v2201
        %v4962 = vmul.f32 %v3477, %v2206
        %v4963 = vmul.f32 %v3482, %v2211
        %v4964 = vmul.f32 %v3487, %v2216
        %v4965 = vmul.f32 %v3492, %v2221
        %v4966 = vmul.f32 %v3497, %v2226
        %v4967 = vmul.f32 %v3502, %v2231
        %v4968 = vmul.f32 %v3507, %v2236
        %v4969 = vmul.f32 %v3512, %v2241
        %v4970 = vmul.f32 %v3517, %v2246
        %v4971 = vmul.f32 %v3522, %v2251
        %v4972 = vmul.f32 %v3527, %v2256
        %v4973 = vmul.f32 %v3532, %v2261
        %v4974 = vmul.f32 %v3920, %v2108
        %v4975 = vmul.f32 %v3924, %v2113
        %v4976 = vmul.f32 %v3928, %v2118
        %v4977 = vmul.f32 %v3932, %v2123
        %v4978 = vmul.f32 %v3936, %v2128
        %v4979 = vmul.f32 %v3940, %v2133
        %v4980 = vmul.f32 %v3944, %v2138
        %v4981 = vmul.f32 %v3948, %v2143
        %v4982 = vmul.f32 %v3952, %v2148
        %v4983 = vmul.f32 %v3956, %v2153
        %v4984 = vmul.f32 %v3960, %v2158
        %v4985 = vmul.f32 %v3964, %v2163
        %v4986 = vmul.f32 %v3968, %v2168
        %v4987 = vmul.f32 %v3972, %v2173
        %v4988 = vmul.f32 %v3976, %v2178
        %v4989 = vmul.f32 %v3980, %v2183
        %v4990 = vmul.f32 %v3984, %v2188
        %v4991 = vmul.f32 %v3988, %v2193
        %v4992 = vmul.f32 %v3992, %v2198
        %v4993 = vmul.f32 %v3996, %v2203
        %v4994 = vmul.f32 %v4000, %v2208
        %v4995 = vmul.f32 %v4004, %v2213
        %v4996 = vmul.f32 %v4008, %v2218
        %v4997 = vmul.f32 %v4012, %v2223
        %v4998 = vmul.f32 %v4016, %v2228
        %v4999 = vmul.f32 %v4020, %v2233
        %v5000 = vmul.f32 %v4024, %v2238
        %v5001 = vmul.f32 %v4028, %v2243
        %v5002 = vmul.f32 %v4032, %v2248
        %v5003 = vmul.f32 %v4036, %v2253
        %v5004 = vmul.f32 %v4040, %v2258
        %v5005 = vmul.f32 %v4044, %v2263
        %v5006 = vadd.f32 %v4942, %v4974
        %v5007 = vadd.f32 %v4943, %v4975
        %v5008 = vadd.f32 %v4944, %v4976
        %v5009 = vadd.f32 %v4945, %v4977
        %v5010 = vadd.f32 %v4946, %v4978
        %v5011 = vadd.f32 %v4947, %v4979
        %v5012 = vadd.f32 %v4948, %v4980
        %v5013 = vadd.f32 %v4949, %v4981
        %v5014 = vadd.f32 %v4950, %v4982
        %v5015 = vadd.f32 %v4951, %v4983
        %v5016 = vadd.f32 %v4952, %v4984
        %v5017 = vadd.f32 %v4953, %v4985
        %v5018 = vadd.f32 %v4954, %v4986
        %v5019 = vadd.f32 %v4955, %v4987
        %v5020 = vadd.f32 %v4956, %v4988
        %v5021 = vadd.f32 %v4957, %v4989
        %v5022 = vadd.f32 %v4958, %v4990
        %v5023 = vadd.f32 %v4959, %v4991
        %v5024 = vadd.f32 %v4960, %v4992
        %v5025 = vadd.f32 %v4961, %v4993
        %v5026 = vadd.f32 %v4962, %v4994
        %v5027 = vadd.f32 %v4963, %v4995
        %v5028 = vadd.f32 %v4964, %v4996
        %v5029 = vadd.f32 %v4965, %v4997
        %v5030 = vadd.f32 %v4966, %v4998
        %v5031 = vadd.f32 %v4967, %v4999
        %v5032 = vadd.f32 %v4968, %v5000
        %v5033 = vadd.f32 %v4969, %v5001
        %v5034 = vadd.f32 %v4970, %v5002
        %v5035 = vadd.f32 %v4971, %v5003
        %v5036 = vadd.f32 %v4972, %v5004
        %v5037 = vadd.f32 %v4973, %v5005
        %v5038 = vmul.f32 %v4048, %v2109
        %v5039 = vmul.f32 %v4052, %v2114
        %v5040 = vmul.f32 %v4056, %v2119
        %v5041 = vmul.f32 %v4060, %v2124
        %v5042 = vmul.f32 %v4064, %v2129
        %v5043 = vmul.f32 %v4068, %v2134
        %v5044 = vmul.f32 %v4072, %v2139
        %v5045 = vmul.f32 %v4076, %v2144
        %v5046 = vmul.f32 %v4080, %v2149
        %v5047 = vmul.f32 %v4084, %v2154
        %v5048 = vmul.f32 %v4088, %v2159
        %v5049 = vmul.f32 %v4092, %v2164
        %v5050 = vmul.f32 %v4096, %v2169
        %v5051 = vmul.f32 %v4100, %v2174
        %v5052 = vmul.f32 %v4104, %v2179
        %v5053 = vmul.f32 %v4108, %v2184
        %v5054 = vmul.f32 %v4112, %v2189
        %v5055 = vmul.f32 %v4116, %v2194
        %v5056 = vmul.f32 %v4120, %v2199
        %v5057 = vmul.f32 %v4124, %v2204
        %v5058 = vmul.f32 %v4128, %v2209
        %v5059 = vmul.f32 %v4132, %v2214
        %v5060 = vmul.f32 %v4136, %v2219
        %v5061 = vmul.f32 %v4140, %v2224
        %v5062 = vmul.f32 %v4144, %v2229
        %v5063 = vmul.f32 %v4148, %v2234
        %v5064 = vmul.f32 %v4152, %v2239
        %v5065 = vmul.f32 %v4156, %v2244
        %v5066 = vmul.f32 %v4160, %v2249
        %v5067 = vmul.f32 %v4164, %v2254
        %v5068 = vmul.f32 %v4168, %v2259
        %v5069 = vmul.f32 %v4172, %v2264
        %v5070 = vadd.f32 %v5006, %v5038
        %v5071 = vadd.f32 %v5007, %v5039
        %v5072 = vadd.f32 %v5008, %v5040
        %v5073 = vadd.f32 %v5009, %v5041
        %v5074 = vadd.f32 %v5010, %v5042
        %v5075 = vadd.f32 %v5011, %v5043
        %v5076 = vadd.f32 %v5012, %v5044
        %v5077 = vadd.f32 %v5013, %v5045
        %v5078 = vadd.f32 %v5014, %v5046
        %v5079 = vadd.f32 %v5015, %v5047
        %v5080 = vadd.f32 %v5016, %v5048
        %v5081 = vadd.f32 %v5017, %v5049
        %v5082 = vadd.f32 %v5018, %v5050
        %v5083 = vadd.f32 %v5019, %v5051
        %v5084 = vadd.f32 %v5020, %v5052
        %v5085 = vadd.f32 %v5021, %v5053
        %v5086 = vadd.f32 %v5022, %v5054
        %v5087 = vadd.f32 %v5023, %v5055
        %v5088 = vadd.f32 %v5024, %v5056
        %v5089 = vadd.f32 %v5025, %v5057
        %v5090 = vadd.f32 %v5026, %v5058
        %v5091 = vadd.f32 %v5027, %v5059
        %v5092 = vadd.f32 %v5028, %v5060
        %v5093 = vadd.f32 %v5029, %v5061
        %v5094 = vadd.f32 %v5030, %v5062
        %v5095 = vadd.f32 %v5031, %v5063
        %v5096 = vadd.f32 %v5032, %v5064
        %v5097 = vadd.f32 %v5033, %v5065
        %v5098 = vadd.f32 %v5034, %v5066
        %v5099 = vadd.f32 %v5035, %v5067
        %v5100 = vadd.f32 %v5036, %v5068
        %v5101 = vadd.f32 %v5037, %v5069
        %v5102 = vmul.f32 %v4176, %v2110
        %v5103 = vmul.f32 %v4180, %v2115
        %v5104 = vmul.f32 %v4184, %v2120
        %v5105 = vmul.f32 %v4188, %v2125
        %v5106 = vmul.f32 %v4192, %v2130
        %v5107 = vmul.f32 %v4196, %v2135
        %v5108 = vmul.f32 %v4200, %v2140
        %v5109 = vmul.f32 %v4204, %v2145
        %v5110 = vmul.f32 %v4208, %v2150
        %v5111 = vmul.f32 %v4212, %v2155
        %v5112 = vmul.f32 %v4216, %v2160
        %v5113 = vmul.f32 %v4220, %v2165
        %v5114 = vmul.f32 %v4224, %v2170
        %v5115 = vmul.f32 %v4228, %v2175
        %v5116 = vmul.f32 %v4232, %v2180
        %v5117 = vmul.f32 %v4236, %v2185
        %v5118 = vmul.f32 %v4240, %v2190
        %v5119 = vmul.f32 %v4244, %v2195
        %v5120 = vmul.f32 %v4248, %v2200
        %v5121 = vmul.f32 %v4252, %v2205
        %v5122 = vmul.f32 %v4256, %v2210
        %v5123 = vmul.f32 %v4260, %v2215
        %v5124 = vmul.f32 %v4264, %v2220
        %v5125 = vmul.f32 %v4268, %v2225
        %v5126 = vmul.f32 %v4272, %v2230
        %v5127 = vmul.f32 %v4276, %v2235
        %v5128 = vmul.f32 %v4280, %v2240
        %v5129 = vmul.f32 %v4284, %v2245
        %v5130 = vmul.f32 %v4288, %v2250
        %v5131 = vmul.f32 %v4292, %v2255
        %v5132 = vmul.f32 %v4296, %v2260
        %v5133 = vmul.f32 %v4300, %v2265
        %v5134 = vadd.f32 %v5070, %v5102
        %v5135 = vadd.f32 %v5071, %v5103
        %v5136 = vadd.f32 %v5072, %v5104
        %v5137 = vadd.f32 %v5073, %v5105
        %v5138 = vadd.f32 %v5074, %v5106
        %v5139 = vadd.f32 %v5075, %v5107
        %v5140 = vadd.f32 %v5076, %v5108
        %v5141 = vadd.f32 %v5077, %v5109
        %v5142 = vadd.f32 %v5078, %v5110
        %v5143 = vadd.f32 %v5079, %v5111
        %v5144 = vadd.f32 %v5080, %v5112
        %v5145 = vadd.f32 %v5081, %v5113
        %v5146 = vadd.f32 %v5082, %v5114
        %v5147 = vadd.f32 %v5083, %v5115
        %v5148 = vadd.f32 %v5084, %v5116
        %v5149 = vadd.f32 %v5085, %v5117
        %v5150 = vadd.f32 %v5086, %v5118
        %v5151 = vadd.f32 %v5087, %v5119
        %v5152 = vadd.f32 %v5088, %v5120
        %v5153 = vadd.f32 %v5089, %v5121
        %v5154 = vadd.f32 %v5090, %v5122
        %v5155 = vadd.f32 %v5091, %v5123
        %v5156 = vadd.f32 %v5092, %v5124
        %v5157 = vadd.f32 %v5093, %v5125
        %v5158 = vadd.f32 %v5094, %v5126
        %v5159 = vadd.f32 %v5095, %v5127
        %v5160 = vadd.f32 %v5096, %v5128
        %v5161 = vadd.f32 %v5097, %v5129
        %v5162 = vadd.f32 %v5098, %v5130
        %v5163 = vadd.f32 %v5099, %v5131
        %v5164 = vadd.f32 %v5100, %v5132
        %v5165 = vadd.f32 %v5101, %v5133
        %v5166 = vmax.f32 %v5134, 0.0
        %v5167 = vmax.f32 %v5135, 0.0
        %v5168 = vmax.f32 %v5136, 0.0
        %v5169 = vmax.f32 %v5137, 0.0
        %v5170 = vmax.f32 %v5138, 0.0
        %v5171 = vmax.f32 %v5139, 0.0
        %v5172 = vmax.f32 %v5140, 0.0
        %v5173 = vmax.f32 %v5141, 0.0
        %v5174 = vmax.f32 %v5142, 0.0
        %v5175 = vmax.f32 %v5143, 0.0
        %v5176 = vmax.f32 %v5144, 0.0
        %v5177 = vmax.f32 %v5145, 0.0
        %v5178 = vmax.f32 %v5146, 0.0
        %v5179 = vmax.f32 %v5147, 0.0
        %v5180 = vmax.f32 %v5148, 0.0
        %v5181 = vmax.f32 %v5149, 0.0
        %v5182 = vmax.f32 %v5150, 0.0
        %v5183 = vmax.f32 %v5151, 0.0
        %v5184 = vmax.f32 %v5152, 0.0
        %v5185 = vmax.f32 %v5153, 0.0
        %v5186 = vmax.f32 %v5154, 0.0
        %v5187 = vmax.f32 %v5155, 0.0
        %v5188 = vmax.f32 %v5156, 0.0
        %v5189 = vmax.f32 %v5157, 0.0
        %v5190 = vmax.f32 %v5158, 0.0
        %v5191 = vmax.f32 %v5159, 0.0
        %v5192 = vmax.f32 %v5160, 0.0
        %v5193 = vmax.f32 %v5161, 0.0
        %v5194 = vmax.f32 %v5162, 0.0
        %v5195 = vmax.f32 %v5163, 0.0
        %v5196 = vmax.f32 %v5164, 0.0
        %v5197 = vmax.f32 %v5165, 0.0
        %v5198 = vmul.f32 %v3536, %v2106
        %v5199 = vmul.f32 %v3540, %v2111
        %v5200 = vmul.f32 %v3544, %v2116
        %v5201 = vmul.f32 %v3548, %v2121
        %v5202 = vmul.f32 %v3552, %v2126
        %v5203 = vmul.f32 %v3556, %v2131
        %v5204 = vmul.f32 %v3560, %v2136
        %v5205 = vmul.f32 %v3564, %v2141
        %v5206 = vmul.f32 %v3568, %v2146
        %v5207 = vmul.f32 %v3572, %v2151
        %v5208 = vmul.f32 %v3576, %v2156
        %v5209 = vmul.f32 %v3580, %v2161
        %v5210 = vmul.f32 %v3584, %v2166
        %v5211 = vmul.f32 %v3588, %v2171
        %v5212 = vmul.f32 %v3592, %v2176
        %v5213 = vmul.f32 %v3596, %v2181
        %v5214 = vmul.f32 %v3600, %v2186
        %v5215 = vmul.f32 %v3604, %v2191
        %v5216 = vmul.f32 %v3608, %v2196
        %v5217 = vmul.f32 %v3612, %v2201
        %v5218 = vmul.f32 %v3616, %v2206
        %v5219 = vmul.f32 %v3620, %v2211
        %v5220 = vmul.f32 %v3624, %v2216
        %v5221 = vmul.f32 %v3628, %v2221
        %v5222 = vmul.f32 %v3632, %v2226
        %v5223 = vmul.f32 %v3636, %v2231
        %v5224 = vmul.f32 %v3640, %v2236
        %v5225 = vmul.f32 %v3644, %v2241
        %v5226 = vmul.f32 %v3648, %v2246
        %v5227 = vmul.f32 %v3652, %v2251
        %v5228 = vmul.f32 %v3656, %v2256
        %v5229 = vmul.f32 %v3660, %v2261
        %v5230 = vmul.f32 %v3920, %v2107
        %v5231 = vmul.f32 %v3924, %v2112
        %v5232 = vmul.f32 %v3928, %v2117
        %v5233 = vmul.f32 %v3932, %v2122
        %v5234 = vmul.f32 %v3936, %v2127
        %v5235 = vmul.f32 %v3940, %v2132
        %v5236 = vmul.f32 %v3944, %v2137
        %v5237 = vmul.f32 %v3948, %v2142
        %v5238 = vmul.f32 %v3952, %v2147
        %v5239 = vmul.f32 %v3956, %v2152
        %v5240 = vmul.f32 %v3960, %v2157
        %v5241 = vmul.f32 %v3964, %v2162
        %v5242 = vmul.f32 %v3968, %v2167
        %v5243 = vmul.f32 %v3972, %v2172
        %v5244 = vmul.f32 %v3976, %v2177
        %v5245 = vmul.f32 %v3980, %v2182
        %v5246 = vmul.f32 %v3984, %v2187
        %v5247 = vmul.f32 %v3988, %v2192
        %v5248 = vmul.f32 %v3992, %v2197
        %v5249 = vmul.f32 %v3996, %v2202
        %v5250 = vmul.f32 %v4000, %v2207
        %v5251 = vmul.f32 %v4004, %v2212
        %v5252 = vmul.f32 %v4008, %v2217
        %v5253 = vmul.f32 %v4012, %v2222
        %v5254 = vmul.f32 %v4016, %v2227
        %v5255 = vmul.f32 %v4020, %v2232
        %v5256 = vmul.f32 %v4024, %v2237
        %v5257 = vmul.f32 %v4028, %v2242
        %v5258 = vmul.f32 %v4032, %v2247
        %v5259 = vmul.f32 %v4036, %v2252
        %v5260 = vmul.f32 %v4040, %v2257
        %v5261 = vmul.f32 %v4044, %v2262
        %v5262 = vadd.f32 %v5198, %v5230
        %v5263 = vadd.f32 %v5199, %v5231
        %v5264 = vadd.f32 %v5200, %v5232
        %v5265 = vadd.f32 %v5201, %v5233
        %v5266 = vadd.f32 %v5202, %v5234
        %v5267 = vadd.f32 %v5203, %v5235
        %v5268 = vadd.f32 %v5204, %v5236
        %v5269 = vadd.f32 %v5205, %v5237
        %v5270 = vadd.f32 %v5206, %v5238
        %v5271 = vadd.f32 %v5207, %v5239
        %v5272 = vadd.f32 %v5208, %v5240
        %v5273 = vadd.f32 %v5209, %v5241
        %v5274 = vadd.f32 %v5210, %v5242
        %v5275 = vadd.f32 %v5211, %v5243
        %v5276 = vadd.f32 %v5212, %v5244
        %v5277 = vadd.f32 %v5213, %v5245
        %v5278 = vadd.f32 %v5214, %v5246
        %v5279 = vadd.f32 %v5215, %v5247
        %v5280 = vadd.f32 %v5216, %v5248
        %v5281 = vadd.f32 %v5217, %v5249
        %v5282 = vadd.f32 %v5218, %v5250
        %v5283 = vadd.f32 %v5219, %v5251
        %v5284 = vadd.f32 %v5220, %v5252
        %v5285 = vadd.f32 %v5221, %v5253
        %v5286 = vadd.f32 %v5222, %v5254
        %v5287 = vadd.f32 %v5223, %v5255
        %v5288 = vadd.f32 %v5224, %v5256
        %v5289 = vadd.f32 %v5225, %v5257
        %v5290 = vadd.f32 %v5226, %v5258
        %v5291 = vadd.f32 %v5227, %v5259
        %v5292 = vadd.f32 %v5228, %v5260
        %v5293 = vadd.f32 %v5229, %v5261
        %v5294 = vmul.f32 %v4304, %v2109
        %v5295 = vmul.f32 %v4308, %v2114
        %v5296 = vmul.f32 %v4312, %v2119
        %v5297 = vmul.f32 %v4316, %v2124
        %v5298 = vmul.f32 %v4320, %v2129
        %v5299 = vmul.f32 %v4324, %v2134
        %v5300 = vmul.f32 %v4328, %v2139
        %v5301 = vmul.f32 %v4332, %v2144
        %v5302 = vmul.f32 %v4336, %v2149
        %v5303 = vmul.f32 %v4340, %v2154
        %v5304 = vmul.f32 %v4344, %v2159
        %v5305 = vmul.f32 %v4348, %v2164
        %v5306 = vmul.f32 %v4352, %v2169
        %v5307 = vmul.f32 %v4356, %v2174
        %v5308 = vmul.f32 %v4360, %v2179
        %v5309 = vmul.f32 %v4364, %v2184
        %v5310 = vmul.f32 %v4368, %v2189
        %v5311 = vmul.f32 %v4372, %v2194
        %v5312 = vmul.f32 %v4376, %v2199
        %v5313 = vmul.f32 %v4380, %v2204
        %v5314 = vmul.f32 %v4384, %v2209
        %v5315 = vmul.f32 %v4388, %v2214
        %v5316 = vmul.f32 %v4392, %v2219
        %v5317 = vmul.f32 %v4396, %v2224
        %v5318 = vmul.f32 %v4400, %v2229
        %v5319 = vmul.f32 %v4404, %v2234
        %v5320 = vmul.f32 %v4408, %v2239
        %v5321 = vmul.f32 %v4412, %v2244
        %v5322 = vmul.f32 %v4416, %v2249
        %v5323 = vmul.f32 %v4420, %v2254
        %v5324 = vmul.f32 %v4424, %v2259
        %v5325 = vmul.f32 %v4428, %v2264
        %v5326 = vadd.f32 %v5262, %v5294
        %v5327 = vadd.f32 %v5263, %v5295
        %v5328 = vadd.f32 %v5264, %v5296
        %v5329 = vadd.f32 %v5265, %v5297
        %v5330 = vadd.f32 %v5266, %v5298
        %v5331 = vadd.f32 %v5267, %v5299
        %v5332 = vadd.f32 %v5268, %v5300
        %v5333 = vadd.f32 %v5269, %v5301
        %v5334 = vadd.f32 %v5270, %v5302
        %v5335 = vadd.f32 %v5271, %v5303
        %v5336 = vadd.f32 %v5272, %v5304
        %v5337 = vadd.f32 %v5273, %v5305
        %v5338 = vadd.f32 %v5274, %v5306
        %v5339 = vadd.f32 %v5275, %v5307
        %v5340 = vadd.f32 %v5276, %v5308
        %v5341 = vadd.f32 %v5277, %v5309
        %v5342 = vadd.f32 %v5278, %v5310
        %v5343 = vadd.f32 %v5279, %v5311
        %v5344 = vadd.f32 %v5280, %v5312
        %v5345 = vadd.f32 %v5281, %v5313
        %v5346 = vadd.f32 %v5282, %v5314
        %v5347 = vadd.f32 %v5283, %v5315
        %v5348 = vadd.f32 %v5284, %v5316
        %v5349 = vadd.f32 %v5285, %v5317
        %v5350 = vadd.f32 %v5286, %v5318
        %v5351 = vadd.f32 %v5287, %v5319
        %v5352 = vadd.f32 %v5288, %v5320
        %v5353 = vadd.f32 %v5289, %v5321
        %v5354 = vadd.f32 %v5290, %v5322
        %v5355 = vadd.f32 %v5291, %v5323
        %v5356 = vadd.f32 %v5292, %v5324
        %v5357 = vadd.f32 %v5293, %v5325
        %v5358 = vmul.f32 %v4432, %v2110
        %v5359 = vmul.f32 %v4436, %v2115
        %v5360 = vmul.f32 %v4440, %v2120
        %v5361 = vmul.f32 %v4444, %v2125
        %v5362 = vmul.f32 %v4448, %v2130
        %v5363 = vmul.f32 %v4452, %v2135
        %v5364 = vmul.f32 %v4456, %v2140
        %v5365 = vmul.f32 %v4460, %v2145
        %v5366 = vmul.f32 %v4464, %v2150
        %v5367 = vmul.f32 %v4468, %v2155
        %v5368 = vmul.f32 %v4472, %v2160
        %v5369 = vmul.f32 %v4476, %v2165
        %v5370 = vmul.f32 %v4480, %v2170
        %v5371 = vmul.f32 %v4484, %v2175
        %v5372 = vmul.f32 %v4488, %v2180
        %v5373 = vmul.f32 %v4492, %v2185
        %v5374 = vmul.f32 %v4496, %v2190
        %v5375 = vmul.f32 %v4500, %v2195
        %v5376 = vmul.f32 %v4504, %v2200
        %v5377 = vmul.f32 %v4508, %v2205
        %v5378 = vmul.f32 %v4512, %v2210
        %v5379 = vmul.f32 %v4516, %v2215
        %v5380 = vmul.f32 %v4520, %v2220
        %v5381 = vmul.f32 %v4524, %v2225
        %v5382 = vmul.f32 %v4528, %v2230
        %v5383 = vmul.f32 %v4532, %v2235
        %v5384 = vmul.f32 %v4536, %v2240
        %v5385 = vmul.f32 %v4540, %v2245
        %v5386 = vmul.f32 %v4544, %v2250
        %v5387 = vmul.f32 %v4548, %v2255
        %v5388 = vmul.f32 %v4552, %v2260
        %v5389 = vmul.f32 %v4556, %v2265
        %v5390 = vadd.f32 %v5326, %v5358
        %v5391 = vadd.f32 %v5327, %v5359
        %v5392 = vadd.f32 %v5328, %v5360
        %v5393 = vadd.f32 %v5329, %v5361
        %v5394 = vadd.f32 %v5330, %v5362
        %v5395 = vadd.f32 %v5331, %v5363
        %v5396 = vadd.f32 %v5332, %v5364
        %v5397 = vadd.f32 %v5333, %v5365
        %v5398 = vadd.f32 %v5334, %v5366
        %v5399 = vadd.f32 %v5335, %v5367
        %v5400 = vadd.f32 %v5336, %v5368
        %v5401 = vadd.f32 %v5337, %v5369
        %v5402 = vadd.f32 %v5338, %v5370
        %v5403 = vadd.f32 %v5339, %v5371
        %v5404 = vadd.f32 %v5340, %v5372
        %v5405 = vadd.f32 %v5341, %v5373
        %v5406 = vadd.f32 %v5342, %v5374
        %v5407 = vadd.f32 %v5343, %v5375
        %v5408 = vadd.f32 %v5344, %v5376
        %v5409 = vadd.f32 %v5345, %v5377
        %v5410 = vadd.f32 %v5346, %v5378
        %v5411 = vadd.f32 %v5347, %v5379
        %v5412 = vadd.f32 %v5348, %v5380
        %v5413 = vadd.f32 %v5349, %v5381
        %v5414 = vadd.f32 %v5350, %v5382
        %v5415 = vadd.f32 %v5351, %v5383
        %v5416 = vadd.f32 %v5352, %v5384
        %v5417 = vadd.f32 %v5353, %v5385
        %v5418 = vadd.f32 %v5354, %v5386
        %v5419 = vadd.f32 %v5355, %v5387
        %v5420 = vadd.f32 %v5356, %v5388
        %v5421 = vadd.f32 %v5357, %v5389
        %v5422 = vmax.f32 %v5390, 0.0
        %v5423 = vmax.f32 %v5391, 0.0
        %v5424 = vmax.f32 %v5392, 0.0
        %v5425 = vmax.f32 %v5393, 0.0
        %v5426 = vmax.f32 %v5394, 0.0
        %v5427 = vmax.f32 %v5395, 0.0
        %v5428 = vmax.f32 %v5396, 0.0
        %v5429 = vmax.f32 %v5397, 0.0
        %v5430 = vmax.f32 %v5398, 0.0
        %v5431 = vmax.f32 %v5399, 0.0
        %v5432 = vmax.f32 %v5400, 0.0
        %v5433 = vmax.f32 %v5401, 0.0
        %v5434 = vmax.f32 %v5402, 0.0
        %v5435 = vmax.f32 %v5403, 0.0
        %v5436 = vmax.f32 %v5404, 0.0
        %v5437 = vmax.f32 %v5405, 0.0
        %v5438 = vmax.f32 %v5406, 0.0
        %v5439 = vmax.f32 %v5407, 0.0
        %v5440 = vmax.f32 %v5408, 0.0
        %v5441 = vmax.f32 %v5409, 0.0
        %v5442 = vmax.f32 %v5410, 0.0
        %v5443 = vmax.f32 %v5411, 0.0
        %v5444 = vmax.f32 %v5412, 0.0
        %v5445 = vmax.f32 %v5413, 0.0
        %v5446 = vmax.f32 %v5414, 0.0
        %v5447 = vmax.f32 %v5415, 0.0
        %v5448 = vmax.f32 %v5416, 0.0
        %v5449 = vmax.f32 %v5417, 0.0
        %v5450 = vmax.f32 %v5418, 0.0
        %v5451 = vmax.f32 %v5419, 0.0
        %v5452 = vmax.f32 %v5420, 0.0
        %v5453 = vmax.f32 %v5421, 0.0
        %v5454 = vmul.f32 %v3664, %v2106
        %v5455 = vmul.f32 %v3668, %v2111
        %v5456 = vmul.f32 %v3672, %v2116
        %v5457 = vmul.f32 %v3676, %v2121
        %v5458 = vmul.f32 %v3680, %v2126
        %v5459 = vmul.f32 %v3684, %v2131
        %v5460 = vmul.f32 %v3688, %v2136
        %v5461 = vmul.f32 %v3692, %v2141
        %v5462 = vmul.f32 %v3696, %v2146
        %v5463 = vmul.f32 %v3700, %v2151
        %v5464 = vmul.f32 %v3704, %v2156
        %v5465 = vmul.f32 %v3708, %v2161
        %v5466 = vmul.f32 %v3712, %v2166
        %v5467 = vmul.f32 %v3716, %v2171
        %v5468 = vmul.f32 %v3720, %v2176
        %v5469 = vmul.f32 %v3724, %v2181
        %v5470 = vmul.f32 %v3728, %v2186
        %v5471 = vmul.f32 %v3732, %v2191
        %v5472 = vmul.f32 %v3736, %v2196
        %v5473 = vmul.f32 %v3740, %v2201
        %v5474 = vmul.f32 %v3744, %v2206
        %v5475 = vmul.f32 %v3748, %v2211
        %v5476 = vmul.f32 %v3752, %v2216
        %v5477 = vmul.f32 %v3756, %v2221
        %v5478 = vmul.f32 %v3760, %v2226
        %v5479 = vmul.f32 %v3764, %v2231
        %v5480 = vmul.f32 %v3768, %v2236
        %v5481 = vmul.f32 %v3772, %v2241
        %v5482 = vmul.f32 %v3776, %v2246
        %v5483 = vmul.f32 %v3780, %v2251
        %v5484 = vmul.f32 %v3784, %v2256
        %v5485 = vmul.f32 %v3788, %v2261
        %v5486 = vmul.f32 %v4048, %v2107
        %v5487 = vmul.f32 %v4052, %v2112
        %v5488 = vmul.f32 %v4056, %v2117
        %v5489 = vmul.f32 %v4060, %v2122
        %v5490 = vmul.f32 %v4064, %v2127
        %v5491 = vmul.f32 %v4068, %v2132
        %v5492 = vmul.f32 %v4072, %v2137
        %v5493 = vmul.f32 %v4076, %v2142
        %v5494 = vmul.f32 %v4080, %v2147
        %v5495 = vmul.f32 %v4084, %v2152
        %v5496 = vmul.f32 %v4088, %v2157
        %v5497 = vmul.f32 %v4092, %v2162
        %v5498 = vmul.f32 %v4096, %v2167
        %v5499 = vmul.f32 %v4100, %v2172
        %v5500 = vmul.f32 %v4104, %v2177
        %v5501 = vmul.f32 %v4108, %v2182
        %v5502 = vmul.f32 %v4112, %v2187
        %v5503 = vmul.f32 %v4116, %v2192
        %v5504 = vmul.f32 %v4120, %v2197
        %v5505 = vmul.f32 %v4124, %v2202
        %v5506 = vmul.f32 %v4128, %v2207
        %v5507 = vmul.f32 %v4132, %v2212
        %v5508 = vmul.f32 %v4136, %v2217
        %v5509 = vmul.f32 %v4140, %v2222
        %v5510 = vmul.f32 %v4144, %v2227
        %v5511 = vmul.f32 %v4148, %v2232
        %v5512 = vmul.f32 %v4152, %v2237
        %v5513 = vmul.f32 %v4156, %v2242
        %v5514 = vmul.f32 %v4160, %v2247
        %v5515 = vmul.f32 %v4164, %v2252
        %v5516 = vmul.f32 %v4168, %v2257
        %v5517 = vmul.f32 %v4172, %v2262
        %v5518 = vadd.f32 %v5454, %v5486
        %v5519 = vadd.f32 %v5455, %v5487
        %v5520 = vadd.f32 %v5456, %v5488
        %v5521 = vadd.f32 %v5457, %v5489
        %v5522 = vadd.f32 %v5458, %v5490
        %v5523 = vadd.f32 %v5459, %v5491
        %v5524 = vadd.f32 %v5460, %v5492
        %v5525 = vadd.f32 %v5461, %v5493
        %v5526 = vadd.f32 %v5462, %v5494
        %v5527 = vadd.f32 %v5463, %v5495
        %v5528 = vadd.f32 %v5464, %v5496
        %v5529 = vadd.f32 %v5465, %v5497
        %v5530 = vadd.f32 %v5466, %v5498
        %v5531 = vadd.f32 %v5467, %v5499
        %v5532 = vadd.f32 %v5468, %v5500
        %v5533 = vadd.f32 %v5469, %v5501
        %v5534 = vadd.f32 %v5470, %v5502
        %v5535 = vadd.f32 %v5471, %v5503
        %v5536 = vadd.f32 %v5472, %v5504
        %v5537 = vadd.f32 %v5473, %v5505
        %v5538 = vadd.f32 %v5474, %v5506
        %v5539 = vadd.f32 %v5475, %v5507
        %v5540 = vadd.f32 %v5476, %v5508
        %v5541 = vadd.f32 %v5477, %v5509
        %v5542 = vadd.f32 %v5478, %v5510
        %v5543 = vadd.f32 %v5479, %v5511
        %v5544 = vadd.f32 %v5480, %v5512
        %v5545 = vadd.f32 %v5481, %v5513
        %v5546 = vadd.f32 %v5482, %v5514
        %v5547 = vadd.f32 %v5483, %v5515
        %v5548 = vadd.f32 %v5484, %v5516
        %v5549 = vadd.f32 %v5485, %v5517
        %v5550 = vmul.f32 %v4304, %v2108
        %v5551 = vmul.f32 %v4308, %v2113
        %v5552 = vmul.f32 %v4312, %v2118
        %v5553 = vmul.f32 %v4316, %v2123
        %v5554 = vmul.f32 %v4320, %v2128
        %v5555 = vmul.f32 %v4324, %v2133
        %v5556 = vmul.f32 %v4328, %v2138
        %v5557 = vmul.f32 %v4332, %v2143
        %v5558 = vmul.f32 %v4336, %v2148
        %v5559 = vmul.f32 %v4340, %v2153
        %v5560 = vmul.f32 %v4344, %v2158
        %v5561 = vmul.f32 %v4348, %v2163
        %v5562 = vmul.f32 %v4352, %v2168
        %v5563 = vmul.f32 %v4356, %v2173
        %v5564 = vmul.f32 %v4360, %v2178
        %v5565 = vmul.f32 %v4364, %v2183
        %v5566 = vmul.f32 %v4368, %v2188
        %v5567 = vmul.f32 %v4372, %v2193
        %v5568 = vmul.f32 %v4376, %v2198
        %v5569 = vmul.f32 %v4380, %v2203
        %v5570 = vmul.f32 %v4384, %v2208
        %v5571 = vmul.f32 %v4388, %v2213
        %v5572 = vmul.f32 %v4392, %v2218
        %v5573 = vmul.f32 %v4396, %v2223
        %v5574 = vmul.f32 %v4400, %v2228
        %v5575 = vmul.f32 %v4404, %v2233
        %v5576 = vmul.f32 %v4408, %v2238
        %v5577 = vmul.f32 %v4412, %v2243
        %v5578 = vmul.f32 %v4416, %v2248
        %v5579 = vmul.f32 %v4420, %v2253
        %v5580 = vmul.f32 %v4424, %v2258
        %v5581 = vmul.f32 %v4428, %v2263
        %v5582 = vadd.f32 %v5518, %v5550
        %v5583 = vadd.f32 %v5519, %v5551
        %v5584 = vadd.f32 %v5520, %v5552
        %v5585 = vadd.f32 %v5521, %v5553
        %v5586 = vadd.f32 %v5522, %v5554
        %v5587 = vadd.f32 %v5523, %v5555
        %v5588 = vadd.f32 %v5524, %v5556
        %v5589 = vadd.f32 %v5525, %v5557
        %v5590 = vadd.f32 %v5526, %v5558
        %v5591 = vadd.f32 %v5527, %v5559
        %v5592 = vadd.f32 %v5528, %v5560
        %v5593 = vadd.f32 %v5529, %v5561
        %v5594 = vadd.f32 %v5530, %v5562
        %v5595 = vadd.f32 %v5531, %v5563
        %v5596 = vadd.f32 %v5532, %v5564
        %v5597 = vadd.f32 %v5533, %v5565
        %v5598 = vadd.f32 %v5534, %v5566
        %v5599 = vadd.f32 %v5535, %v5567
        %v5600 = vadd.f32 %v5536, %v5568
        %v5601 = vadd.f32 %v5537, %v5569
        %v5602 = vadd.f32 %v5538, %v5570
        %v5603 = vadd.f32 %v5539, %v5571
        %v5604 = vadd.f32 %v5540, %v5572
        %v5605 = vadd.f32 %v5541, %v5573
        %v5606 = vadd.f32 %v5542, %v5574
        %v5607 = vadd.f32 %v5543, %v5575
        %v5608 = vadd.f32 %v5544, %v5576
        %v5609 = vadd.f32 %v5545, %v5577
        %v5610 = vadd.f32 %v5546, %v5578
        %v5611 = vadd.f32 %v5547, %v5579
        %v5612 = vadd.f32 %v5548, %v5580
        %v5613 = vadd.f32 %v5549, %v5581
        %v5614 = vmul.f32 %v4560, %v2110
        %v5615 = vmul.f32 %v4564, %v2115
        %v5616 = vmul.f32 %v4568, %v2120
        %v5617 = vmul.f32 %v4572, %v2125
        %v5618 = vmul.f32 %v4576, %v2130
        %v5619 = vmul.f32 %v4580, %v2135
        %v5620 = vmul.f32 %v4584, %v2140
        %v5621 = vmul.f32 %v4588, %v2145
        %v5622 = vmul.f32 %v4592, %v2150
        %v5623 = vmul.f32 %v4596, %v2155
        %v5624 = vmul.f32 %v4600, %v2160
        %v5625 = vmul.f32 %v4604, %v2165
        %v5626 = vmul.f32 %v4608, %v2170
        %v5627 = vmul.f32 %v4612, %v2175
        %v5628 = vmul.f32 %v4616, %v2180
        %v5629 = vmul.f32 %v4620, %v2185
        %v5630 = vmul.f32 %v4624, %v2190
        %v5631 = vmul.f32 %v4628, %v2195
        %v5632 = vmul.f32 %v4632, %v2200
        %v5633 = vmul.f32 %v4636, %v2205
        %v5634 = vmul.f32 %v4640, %v2210
        %v5635 = vmul.f32 %v4644, %v2215
        %v5636 = vmul.f32 %v4648, %v2220
        %v5637 = vmul.f32 %v4652, %v2225
        %v5638 = vmul.f32 %v4656, %v2230
        %v5639 = vmul.f32 %v4660, %v2235
        %v5640 = vmul.f32 %v4664, %v2240
        %v5641 = vmul.f32 %v4668, %v2245
        %v5642 = vmul.f32 %v4672, %v2250
        %v5643 = vmul.f32 %v4676, %v2255
        %v5644 = vmul.f32 %v4680, %v2260
        %v5645 = vmul.f32 %v4684, %v2265
        %v5646 = vadd.f32 %v5582, %v5614
        %v5647 = vadd.f32 %v5583, %v5615
        %v5648 = vadd.f32 %v5584, %v5616
        %v5649 = vadd.f32 %v5585, %v5617
        %v5650 = vadd.f32 %v5586, %v5618
        %v5651 = vadd.f32 %v5587, %v5619
        %v5652 = vadd.f32 %v5588, %v5620
        %v5653 = vadd.f32 %v5589, %v5621
        %v5654 = vadd.f32 %v5590, %v5622
        %v5655 = vadd.f32 %v5591, %v5623
        %v5656 = vadd.f32 %v5592, %v5624
        %v5657 = vadd.f32 %v5593, %v5625
        %v5658 = vadd.f32 %v5594, %v5626
        %v5659 = vadd.f32 %v5595, %v5627
        %v5660 = vadd.f32 %v5596, %v5628
        %v5661 = vadd.f32 %v5597, %v5629
        %v5662 = vadd.f32 %v5598, %v5630
        %v5663 = vadd.f32 %v5599, %v5631
        %v5664 = vadd.f32 %v5600, %v5632
        %v5665 = vadd.f32 %v5601, %v5633
        %v5666 = vadd.f32 %v5602, %v5634
        %v5667 = vadd.f32 %v5603, %v5635
        %v5668 = vadd.f32 %v5604, %v5636
        %v5669 = vadd.f32 %v5605, %v5637
        %v5670 = vadd.f32 %v5606, %v5638
        %v5671 = vadd.f32 %v5607, %v5639
        %v5672 = vadd.f32 %v5608, %v5640
        %v5673 = vadd.f32 %v5609, %v5641
        %v5674 = vadd.f32 %v5610, %v5642
        %v5675 = vadd.f32 %v5611, %v5643
        %v5676 = vadd.f32 %v5612, %v5644
        %v5677 = vadd.f32 %v5613, %v5645
        %v5678 = vmax.f32 %v5646, 0.0
        %v5679 = vmax.f32 %v5647, 0.0
        %v5680 = vmax.f32 %v5648, 0.0
        %v5681 = vmax.f32 %v5649, 0.0
        %v5682 = vmax.f32 %v5650, 0.0
        %v5683 = vmax.f32 %v5651, 0.0
        %v5684 = vmax.f32 %v5652, 0.0
        %v5685 = vmax.f32 %v5653, 0.0
        %v5686 = vmax.f32 %v5654, 0.0
        %v5687 = vmax.f32 %v5655, 0.0
        %v5688 = vmax.f32 %v5656, 0.0
        %v5689 = vmax.f32 %v5657, 0.0
        %v5690 = vmax.f32 %v5658, 0.0
        %v5691 = vmax.f32 %v5659, 0.0
        %v5692 = vmax.f32 %v5660, 0.0
        %v5693 = vmax.f32 %v5661, 0.0
        %v5694 = vmax.f32 %v5662, 0.0
        %v5695 = vmax.f32 %v5663, 0.0
        %v5696 = vmax.f32 %v5664, 0.0
        %v5697 = vmax.f32 %v5665, 0.0
        %v5698 = vmax.f32 %v5666, 0.0
        %v5699 = vmax.f32 %v5667, 0.0
        %v5700 = vmax.f32 %v5668, 0.0
        %v5701 = vmax.f32 %v5669, 0.0
        %v5702 = vmax.f32 %v5670, 0.0
        %v5703 = vmax.f32 %v5671, 0.0
        %v5704 = vmax.f32 %v5672, 0.0
        %v5705 = vmax.f32 %v5673, 0.0
        %v5706 = vmax.f32 %v5674, 0.0
        %v5707 = vmax.f32 %v5675, 0.0
        %v5708 = vmax.f32 %v5676, 0.0
        %v5709 = vmax.f32 %v5677, 0.0
        %v5710 = vmul.f32 %v3792, %v2106
        %v5711 = vmul.f32 %v3796, %v2111
        %v5712 = vmul.f32 %v3800, %v2116
        %v5713 = vmul.f32 %v3804, %v2121
        %v5714 = vmul.f32 %v3808, %v2126
        %v5715 = vmul.f32 %v3812, %v2131
        %v5716 = vmul.f32 %v3816, %v2136
        %v5717 = vmul.f32 %v3820, %v2141
        %v5718 = vmul.f32 %v3824, %v2146
        %v5719 = vmul.f32 %v3828, %v2151
        %v5720 = vmul.f32 %v3832, %v2156
        %v5721 = vmul.f32 %v3836, %v2161
        %v5722 = vmul.f32 %v3840, %v2166
        %v5723 = vmul.f32 %v3844, %v2171
        %v5724 = vmul.f32 %v3848, %v2176
        %v5725 = vmul.f32 %v3852, %v2181
        %v5726 = vmul.f32 %v3856, %v2186
        %v5727 = vmul.f32 %v3860, %v2191
        %v5728 = vmul.f32 %v3864, %v2196
        %v5729 = vmul.f32 %v3868, %v2201
        %v5730 = vmul.f32 %v3872, %v2206
        %v5731 = vmul.f32 %v3876, %v2211
        %v5732 = vmul.f32 %v3880, %v2216
        %v5733 = vmul.f32 %v3884, %v2221
        %v5734 = vmul.f32 %v3888, %v2226
        %v5735 = vmul.f32 %v3892, %v2231
        %v5736 = vmul.f32 %v3896, %v2236
        %v5737 = vmul.f32 %v3900, %v2241
        %v5738 = vmul.f32 %v3904, %v2246
        %v5739 = vmul.f32 %v3908, %v2251
        %v5740 = vmul.f32 %v3912, %v2256
        %v5741 = vmul.f32 %v3916, %v2261
        %v5742 = vmul.f32 %v4176, %v2107
        %v5743 = vmul.f32 %v4180, %v2112
        %v5744 = vmul.f32 %v4184, %v2117
        %v5745 = vmul.f32 %v4188, %v2122
        %v5746 = vmul.f32 %v4192, %v2127
        %v5747 = vmul.f32 %v4196, %v2132
        %v5748 = vmul.f32 %v4200, %v2137
        %v5749 = vmul.f32 %v4204, %v2142
        %v5750 = vmul.f32 %v4208, %v2147
        %v5751 = vmul.f32 %v4212, %v2152
        %v5752 = vmul.f32 %v4216, %v2157
        %v5753 = vmul.f32 %v4220, %v2162
        %v5754 = vmul.f32 %v4224, %v2167
        %v5755 = vmul.f32 %v4228, %v2172
        %v5756 = vmul.f32 %v4232, %v2177
        %v5757 = vmul.f32 %v4236, %v2182
        %v5758 = vmul.f32 %v4240, %v2187
        %v5759 = vmul.f32 %v4244, %v2192
        %v5760 = vmul.f32 %v4248, %v2197
        %v5761 = vmul.f32 %v4252, %v2202
        %v5762 = vmul.f32 %v4256, %v2207
        %v5763 = vmul.f32 %v4260, %v2212
        %v5764 = vmul.f32 %v4264, %v2217
        %v5765 = vmul.f32 %v4268, %v2222
        %v5766 = vmul.f32 %v4272, %v2227
        %v5767 = vmul.f32 %v4276, %v2232
        %v5768 = vmul.f32 %v4280, %v2237
        %v5769 = vmul.f32 %v4284, %v2242
        %v5770 = vmul.f32 %v4288, %v2247
        %v5771 = vmul.f32 %v4292, %v2252
        %v5772 = vmul.f32 %v4296, %v2257
        %v5773 = vmul.f32 %v4300, %v2262
        %v5774 = vadd.f32 %v5710, %v5742
        %v5775 = vadd.f32 %v5711, %v5743
        %v5776 = vadd.f32 %v5712, %v5744
        %v5777 = vadd.f32 %v5713, %v5745
        %v5778 = vadd.f32 %v5714, %v5746
        %v5779 = vadd.f32 %v5715, %v5747
        %v5780 = vadd.f32 %v5716, %v5748
        %v5781 = vadd.f32 %v5717, %v5749
        %v5782 = vadd.f32 %v5718, %v5750
        %v5783 = vadd.f32 %v5719, %v5751
        %v5784 = vadd.f32 %v5720, %v5752
        %v5785 = vadd.f32 %v5721, %v5753
        %v5786 = vadd.f32 %v5722, %v5754
        %v5787 = vadd.f32 %v5723, %v5755
        %v5788 = vadd.f32 %v5724, %v5756
        %v5789 = vadd.f32 %v5725, %v5757
        %v5790 = vadd.f32 %v5726, %v5758
        %v5791 = vadd.f32 %v5727, %v5759
        %v5792 = vadd.f32 %v5728, %v5760
        %v5793 = vadd.f32 %v5729, %v5761
        %v5794 = vadd.f32 %v5730, %v5762
        %v5795 = vadd.f32 %v5731, %v5763
        %v5796 = vadd.f32 %v5732, %v5764
        %v5797 = vadd.f32 %v5733, %v5765
        %v5798 = vadd.f32 %v5734, %v5766
        %v5799 = vadd.f32 %v5735, %v5767
        %v5800 = vadd.f32 %v5736, %v5768
        %v5801 = vadd.f32 %v5737, %v5769
        %v5802 = vadd.f32 %v5738, %v5770
        %v5803 = vadd.f32 %v5739, %v5771
        %v5804 = vadd.f32 %v5740, %v5772
        %v5805 = vadd.f32 %v5741, %v5773
        %v5806 = vmul.f32 %v4432, %v2108
        %v5807 = vmul.f32 %v4436, %v2113
        %v5808 = vmul.f32 %v4440, %v2118
        %v5809 = vmul.f32 %v4444, %v2123
        %v5810 = vmul.f32 %v4448, %v2128
        %v5811 = vmul.f32 %v4452, %v2133
        %v5812 = vmul.f32 %v4456, %v2138
        %v5813 = vmul.f32 %v4460, %v2143
        %v5814 = vmul.f32 %v4464, %v2148
        %v5815 = vmul.f32 %v4468, %v2153
        %v5816 = vmul.f32 %v4472, %v2158
        %v5817 = vmul.f32 %v4476, %v2163
        %v5818 = vmul.f32 %v4480, %v2168
        %v5819 = vmul.f32 %v4484, %v2173
        %v5820 = vmul.f32 %v4488, %v2178
        %v5821 = vmul.f32 %v4492, %v2183
        %v5822 = vmul.f32 %v4496, %v2188
        %v5823 = vmul.f32 %v4500, %v2193
        %v5824 = vmul.f32 %v4504, %v2198
        %v5825 = vmul.f32 %v4508, %v2203
        %v5826 = vmul.f32 %v4512, %v2208
        %v5827 = vmul.f32 %v4516, %v2213
        %v5828 = vmul.f32 %v4520, %v2218
        %v5829 = vmul.f32 %v4524, %v2223
        %v5830 = vmul.f32 %v4528, %v2228
        %v5831 = vmul.f32 %v4532, %v2233
        %v5832 = vmul.f32 %v4536, %v2238
        %v5833 = vmul.f32 %v4540, %v2243
        %v5834 = vmul.f32 %v4544, %v2248
        %v5835 = vmul.f32 %v4548, %v2253
        %v5836 = vmul.f32 %v4552, %v2258
        %v5837 = vmul.f32 %v4556, %v2263
        %v5838 = vadd.f32 %v5774, %v5806
        %v5839 = vadd.f32 %v5775, %v5807
        %v5840 = vadd.f32 %v5776, %v5808
        %v5841 = vadd.f32 %v5777, %v5809
        %v5842 = vadd.f32 %v5778, %v5810
        %v5843 = vadd.f32 %v5779, %v5811
        %v5844 = vadd.f32 %v5780, %v5812
        %v5845 = vadd.f32 %v5781, %v5813
        %v5846 = vadd.f32 %v5782, %v5814
        %v5847 = vadd.f32 %v5783, %v5815
        %v5848 = vadd.f32 %v5784, %v5816
        %v5849 = vadd.f32 %v5785, %v5817
        %v5850 = vadd.f32 %v5786, %v5818
        %v5851 = vadd.f32 %v5787, %v5819
        %v5852 = vadd.f32 %v5788, %v5820
        %v5853 = vadd.f32 %v5789, %v5821
        %v5854 = vadd.f32 %v5790, %v5822
        %v5855 = vadd.f32 %v5791, %v5823
        %v5856 = vadd.f32 %v5792, %v5824
        %v5857 = vadd.f32 %v5793, %v5825
        %v5858 = vadd.f32 %v5794, %v5826
        %v5859 = vadd.f32 %v5795, %v5827
        %v5860 = vadd.f32 %v5796, %v5828
        %v5861 = vadd.f32 %v5797, %v5829
        %v5862 = vadd.f32 %v5798, %v5830
        %v5863 = vadd.f32 %v5799, %v5831
        %v5864 = vadd.f32 %v5800, %v5832
        %v5865 = vadd.f32 %v5801, %v5833
        %v5866 = vadd.f32 %v5802, %v5834
        %v5867 = vadd.f32 %v5803, %v5835
        %v5868 = vadd.f32 %v5804, %v5836
        %v5869 = vadd.f32 %v5805, %v5837
        %v5870 = vmul.f32 %v4560, %v2109
        %v5871 = vmul.f32 %v4564, %v2114
        %v5872 = vmul.f32 %v4568, %v2119
        %v5873 = vmul.f32 %v4572, %v2124
        %v5874 = vmul.f32 %v4576, %v2129
        %v5875 = vmul.f32 %v4580, %v2134
        %v5876 = vmul.f32 %v4584, %v2139
        %v5877 = vmul.f32 %v4588, %v2144
        %v5878 = vmul.f32 %v4592, %v2149
        %v5879 = vmul.f32 %v4596, %v2154
        %v5880 = vmul.f32 %v4600, %v2159
        %v5881 = vmul.f32 %v4604, %v2164
        %v5882 = vmul.f32 %v4608, %v2169
        %v5883 = vmul.f32 %v4612, %v2174
        %v5884 = vmul.f32 %v4616, %v2179
        %v5885 = vmul.f32 %v4620, %v2184
        %v5886 = vmul.f32 %v4624, %v2189
        %v5887 = vmul.f32 %v4628, %v2194
        %v5888 = vmul.f32 %v4632, %v2199
        %v5889 = vmul.f32 %v4636, %v2204
        %v5890 = vmul.f32 %v4640, %v2209
        %v5891 = vmul.f32 %v4644, %v2214
        %v5892 = vmul.f32 %v4648, %v2219
        %v5893 = vmul.f32 %v4652, %v2224
        %v5894 = vmul.f32 %v4656, %v2229
        %v5895 = vmul.f32 %v4660, %v2234
        %v5896 = vmul.f32 %v4664, %v2239
        %v5897 = vmul.f32 %v4668, %v2244
        %v5898 = vmul.f32 %v4672, %v2249
        %v5899 = vmul.f32 %v4676, %v2254
        %v5900 = vmul.f32 %v4680, %v2259
        %v5901 = vmul.f32 %v4684, %v2264
        %v5902 = vadd.f32 %v5838, %v5870
        %v5903 = vadd.f32 %v5839, %v5871
        %v5904 = vadd.f32 %v5840, %v5872
        %v5905 = vadd.f32 %v5841, %v5873
        %v5906 = vadd.f32 %v5842, %v5874
        %v5907 = vadd.f32 %v5843, %v5875
        %v5908 = vadd.f32 %v5844, %v5876
        %v5909 = vadd.f32 %v5845, %v5877
        %v5910 = vadd.f32 %v5846, %v5878
        %v5911 = vadd.f32 %v5847, %v5879
        %v5912 = vadd.f32 %v5848, %v5880
        %v5913 = vadd.f32 %v5849, %v5881
        %v5914 = vadd.f32 %v5850, %v5882
        %v5915 = vadd.f32 %v5851, %v5883
        %v5916 = vadd.f32 %v5852, %v5884
        %v5917 = vadd.f32 %v5853, %v5885
        %v5918 = vadd.f32 %v5854, %v5886
        %v5919 = vadd.f32 %v5855, %v5887
        %v5920 = vadd.f32 %v5856, %v5888
        %v5921 = vadd.f32 %v5857, %v5889
        %v5922 = vadd.f32 %v5858, %v5890
        %v5923 = vadd.f32 %v5859, %v5891
        %v5924 = vadd.f32 %v5860, %v5892
        %v5925 = vadd.f32 %v5861, %v5893
        %v5926 = vadd.f32 %v5862, %v5894
        %v5927 = vadd.f32 %v5863, %v5895
        %v5928 = vadd.f32 %v5864, %v5896
        %v5929 = vadd.f32 %v5865, %v5897
        %v5930 = vadd.f32 %v5866, %v5898
        %v5931 = vadd.f32 %v5867, %v5899
        %v5932 = vadd.f32 %v5868, %v5900
        %v5933 = vadd.f32 %v5869, %v5901
        %v5934 = vmax.f32 %v5902, 0.0
        %v5935 = vmax.f32 %v5903, 0.0
        %v5936 = vmax.f32 %v5904, 0.0
        %v5937 = vmax.f32 %v5905, 0.0
        %v5938 = vmax.f32 %v5906, 0.0
        %v5939 = vmax.f32 %v5907, 0.0
        %v5940 = vmax.f32 %v5908, 0.0
        %v5941 = vmax.f32 %v5909, 0.0
        %v5942 = vmax.f32 %v5910, 0.0
        %v5943 = vmax.f32 %v5911, 0.0
        %v5944 = vmax.f32 %v5912, 0.0
        %v5945 = vmax.f32 %v5913, 0.0
        %v5946 = vmax.f32 %v5914, 0.0
        %v5947 = vmax.f32 %v5915, 0.0
        %v5948 = vmax.f32 %v5916, 0.0
        %v5949 = vmax.f32 %v5917, 0.0
        %v5950 = vmax.f32 %v5918, 0.0
        %v5951 = vmax.f32 %v5919, 0.0
        %v5952 = vmax.f32 %v5920, 0.0
        %v5953 = vmax.f32 %v5921, 0.0
        %v5954 = vmax.f32 %v5922, 0.0
        %v5955 = vmax.f32 %v5923, 0.0
        %v5956 = vmax.f32 %v5924, 0.0
        %v5957 = vmax.f32 %v5925, 0.0
        %v5958 = vmax.f32 %v5926, 0.0
        %v5959 = vmax.f32 %v5927, 0.0
        %v5960 = vmax.f32 %v5928, 0.0
        %v5961 = vmax.f32 %v5929, 0.0
        %v5962 = vmax.f32 %v5930, 0.0
        %v5963 = vmax.f32 %v5931, 0.0
        %v5964 = vmax.f32 %v5932, 0.0
        %v5965 = vmax.f32 %v5933, 0.0
        %s5966 = scalar_lea.vmem %s5, 5
        %v5967 = vld [vmem:[%s5966] ss:$8 sm:$0xf]
        %v5968 = vld [vmem:[%s5966] ss:$8 sm:$0x10]
        %v5969 = vor.u32 %v5967, %v5968
        %v5970 = vsub.f32 %v4910, %v2106
        %v5971 = vsub.f32 %v5166, %v2107
        %v5972 = vsub.f32 %v5422, %v2108
        %v5973 = vsub.f32 %v5678, %v2109
        %v5974 = vsub.f32 %v5934, %v2110
        %v5975 = vsub.f32 %v4911, %v2111
        %v5976 = vsub.f32 %v5167, %v2112
        %v5977 = vsub.f32 %v5423, %v2113
        %v5978 = vsub.f32 %v5679, %v2114
        %v5979 = vsub.f32 %v5935, %v2115
        %v5980 = vsub.f32 %v4912, %v2116
        %v5981 = vsub.f32 %v5168, %v2117
        %v5982 = vsub.f32 %v5424, %v2118
        %v5983 = vsub.f32 %v5680, %v2119
        %v5984 = vsub.f32 %v5936, %v2120
        %v5985 = vsub.f32 %v4913, %v2121
        %v5986 = vsub.f32 %v5169, %v2122
        %v5987 = vsub.f32 %v5425, %v2123
        %v5988 = vsub.f32 %v5681, %v2124
        %v5989 = vsub.f32 %v5937, %v2125
        %v5990 = vsub.f32 %v4914, %v2126
        %v5991 = vsub.f32 %v5170, %v2127
        %v5992 = vsub.f32 %v5426, %v2128
        %v5993 = vsub.f32 %v5682, %v2129
        %v5994 = vsub.f32 %v5938, %v2130
        %v5995 = vsub.f32 %v4915, %v2131
        %v5996 = vsub.f32 %v5171, %v2132
        %v5997 = vsub.f32 %v5427, %v2133
        %v5998 = vsub.f32 %v5683, %v2134
        %v5999 = vsub.f32 %v5939, %v2135
        %v6000 = vsub.f32 %v4916, %v2136
        %v6001 = vsub.f32 %v5172, %v2137
        %v6002 = vsub.f32 %v5428, %v2138
        %v6003 = vsub.f32 %v5684, %v2139
        %v6004 = vsub.f32 %v5940, %v2140
        %v6005 = vsub.f32 %v4917, %v2141
        %v6006 = vsub.f32 %v5173, %v2142
        %v6007 = vsub.f32 %v5429, %v2143
        %v6008 = vsub.f32 %v5685, %v2144
        %v6009 = vsub.f32 %v5941, %v2145
        %v6010 = vsub.f32 %v4918, %v2146
        %v6011 = vsub.f32 %v5174, %v2147
        %v6012 = vsub.f32 %v5430, %v2148
        %v6013 = vsub.f32 %v5686, %v2149
        %v6014 = vsub.f32 %v5942, %v2150
        %v6015 = vsub.f32 %v4919, %v2151
        %v6016 = vsub.f32 %v5175, %v2152
        %v6017 = vsub.f32 %v5431, %v2153
        %v6018 = vsub.f32 %v5687, %v2154
        %v6019 = vsub.f32 %v5943, %v2155
        %v6020 = vsub.f32 %v4920, %v2156
        %v6021 = vsub.f32 %v5176, %v2157
        %v6022 = vsub.f32 %v5432, %v2158
        %v6023 = vsub.f32 %v5688, %v2159
        %v6024 = vsub.f32 %v5944, %v2160
        %v6025 = vsub.f32 %v4921, %v2161
        %v6026 = vsub.f32 %v5177, %v2162
        %v6027 = vsub.f32 %v5433, %v2163
        %v6028 = vsub.f32 %v5689, %v2164
        %v6029 = vsub.f32 %v5945, %v2165
        %v6030 = vsub.f32 %v4922, %v2166
        %v6031 = vsub.f32 %v5178, %v2167
        %v6032 = vsub.f32 %v5434, %v2168
        %v6033 = vsub.f32 %v5690, %v2169
        %v6034 = vsub.f32 %v5946, %v2170
        %v6035 = vsub.f32 %v4923, %v2171
        %v6036 = vsub.f32 %v5179, %v2172
        %v6037 = vsub.f32 %v5435, %v2173
        %v6038 = vsub.f32 %v5691, %v2174
        %v6039 = vsub.f32 %v5947, %v2175
        %v6040 = vsub.f32 %v4924, %v2176
        %v6041 = vsub.f32 %v5180, %v2177
        %v6042 = vsub.f32 %v5436, %v2178
        %v6043 = vsub.f32 %v5692, %v2179
        %v6044 = vsub.f32 %v5948, %v2180
        %v6045 = vsub.f32 %v4925, %v2181
        %v6046 = vsub.f32 %v5181, %v2182
        %v6047 = vsub.f32 %v5437, %v2183
        %v6048 = vsub.f32 %v5693, %v2184
        %v6049 = vsub.f32 %v5949, %v2185
        %v6050 = vsub.f32 %v4926, %v2186
        %v6051 = vsub.f32 %v5182, %v2187
        %v6052 = vsub.f32 %v5438, %v2188
        %v6053 = vsub.f32 %v5694, %v2189
        %v6054 = vsub.f32 %v5950, %v2190
        %v6055 = vsub.f32 %v4927, %v2191
        %v6056 = vsub.f32 %v5183, %v2192
        %v6057 = vsub.f32 %v5439, %v2193
        %v6058 = vsub.f32 %v5695, %v2194
        %v6059 = vsub.f32 %v5951, %v2195
        %v6060 = vsub.f32 %v4928, %v2196
        %v6061 = vsub.f32 %v5184, %v2197
        %v6062 = vsub.f32 %v5440, %v2198
        %v6063 = vsub.f32 %v5696, %v2199
        %v6064 = vsub.f32 %v5952, %v2200
        %v6065 = vsub.f32 %v4929, %v2201
        %v6066 = vsub.f32 %v5185, %v2202
        %v6067 = vsub.f32 %v5441, %v2203
        %v6068 = vsub.f32 %v5697, %v2204
        %v6069 = vsub.f32 %v5953, %v2205
        %v6070 = vsub.f32 %v4930, %v2206
        %v6071 = vsub.f32 %v5186, %v2207
        %v6072 = vsub.f32 %v5442, %v2208
        %v6073 = vsub.f32 %v5698, %v2209
        %v6074 = vsub.f32 %v5954, %v2210
        %v6075 = vsub.f32 %v4931, %v2211
        %v6076 = vsub.f32 %v5187, %v2212
        %v6077 = vsub.f32 %v5443, %v2213
        %v6078 = vsub.f32 %v5699, %v2214
        %v6079 = vsub.f32 %v5955, %v2215
        %v6080 = vsub.f32 %v4932, %v2216
        %v6081 = vsub.f32 %v5188, %v2217
        %v6082 = vsub.f32 %v5444, %v2218
        %v6083 = vsub.f32 %v5700, %v2219
        %v6084 = vsub.f32 %v5956, %v2220
        %v6085 = vsub.f32 %v4933, %v2221
        %v6086 = vsub.f32 %v5189, %v2222
        %v6087 = vsub.f32 %v5445, %v2223
        %v6088 = vsub.f32 %v5701, %v2224
        %v6089 = vsub.f32 %v5957, %v2225
        %v6090 = vsub.f32 %v4934, %v2226
        %v6091 = vsub.f32 %v5190, %v2227
        %v6092 = vsub.f32 %v5446, %v2228
        %v6093 = vsub.f32 %v5702, %v2229
        %v6094 = vsub.f32 %v5958, %v2230
        %v6095 = vsub.f32 %v4935, %v2231
        %v6096 = vsub.f32 %v5191, %v2232
        %v6097 = vsub.f32 %v5447, %v2233
        %v6098 = vsub.f32 %v5703, %v2234
        %v6099 = vsub.f32 %v5959, %v2235
        %v6100 = vsub.f32 %v4936, %v2236
        %v6101 = vsub.f32 %v5192, %v2237
        %v6102 = vsub.f32 %v5448, %v2238
        %v6103 = vsub.f32 %v5704, %v2239
        %v6104 = vsub.f32 %v5960, %v2240
        %v6105 = vsub.f32 %v4937, %v2241
        %v6106 = vsub.f32 %v5193, %v2242
        %v6107 = vsub.f32 %v5449, %v2243
        %v6108 = vsub.f32 %v5705, %v2244
        %v6109 = vsub.f32 %v5961, %v2245
        %v6110 = vsub.f32 %v4938, %v2246
        %v6111 = vsub.f32 %v5194, %v2247
        %v6112 = vsub.f32 %v5450, %v2248
        %v6113 = vsub.f32 %v5706, %v2249
        %v6114 = vsub.f32 %v5962, %v2250
        %v6115 = vsub.f32 %v4939, %v2251
        %v6116 = vsub.f32 %v5195, %v2252
        %v6117 = vsub.f32 %v5451, %v2253
        %v6118 = vsub.f32 %v5707, %v2254
        %v6119 = vsub.f32 %v5963, %v2255
        %v6120 = vsub.f32 %v4940, %v2256
        %v6121 = vsub.f32 %v5196, %v2257
        %v6122 = vsub.f32 %v5452, %v2258
        %v6123 = vsub.f32 %v5708, %v2259
        %v6124 = vsub.f32 %v5964, %v2260
        %v6125 = vsub.f32 %v4941, %v2261
        %v6126 = vsub.f32 %v5197, %v2262
        %v6127 = vsub.f32 %v5453, %v2263
        %v6128 = vsub.f32 %v5709, %v2264
        %v6129 = vsub.f32 %v5965, %v2265
        %v6131 = vlaneseq
        %v6132 = vshrl.u32 %v6131, 7
        %v6133 = vsub.s32 0, %v6132
        %v6134 = vrot.slane %v5969, %v6133
        %v6135 = vlaneseq
        %v6136 = vshrl.u32 %v6135, 7
        %v6137 = vsub.s32 1, %v6136
        %v6138 = vrot.slane %v5969, %v6137
        %v6139 = vlaneseq
        %v6140 = vshrl.u32 %v6139, 7
        %v6141 = vsub.s32 2, %v6140
        %v6142 = vrot.slane %v5969, %v6141
        %v6143 = vlaneseq
        %v6144 = vshrl.u32 %v6143, 7
        %v6145 = vsub.s32 3, %v6144
        %v6146 = vrot.slane %v5969, %v6145
        %v6147 = vlaneseq
        %v6148 = vshrl.u32 %v6147, 7
        %v6149 = vsub.s32 4, %v6148
        %v6150 = vrot.slane %v5969, %v6149
        %v6156 = vmul.f32 %v6134, %v5970
        %v6157 = vmul.f32 %v6138, %v5971
        %v6158 = vmul.f32 %v6142, %v5972
        %v6159 = vmul.f32 %v6146, %v5973
        %v6160 = vmul.f32 %v6150, %v5974
        %v6161 = vmul.f32 %v6134, %v5975
        %v6162 = vmul.f32 %v6138, %v5976
        %v6163 = vmul.f32 %v6142, %v5977
        %v6164 = vmul.f32 %v6146, %v5978
        %v6165 = vmul.f32 %v6150, %v5979
        %v6166 = vmul.f32 %v6134, %v5980
        %v6167 = vmul.f32 %v6138, %v5981
        %v6168 = vmul.f32 %v6142, %v5982
        %v6169 = vmul.f32 %v6146, %v5983
        %v6170 = vmul.f32 %v6150, %v5984
        %v6171 = vmul.f32 %v6134, %v5985
        %v6172 = vmul.f32 %v6138, %v5986
        %v6173 = vmul.f32 %v6142, %v5987
        %v6174 = vmul.f32 %v6146, %v5988
        %v6175 = vmul.f32 %v6150, %v5989
        %v6176 = vmul.f32 %v6134, %v5990
        %v6177 = vmul.f32 %v6138, %v5991
        %v6178 = vmul.f32 %v6142, %v5992
        %v6179 = vmul.f32 %v6146, %v5993
        %v6180 = vmul.f32 %v6150, %v5994
        %v6181 = vmul.f32 %v6134, %v5995
        %v6182 = vmul.f32 %v6138, %v5996
        %v6183 = vmul.f32 %v6142, %v5997
        %v6184 = vmul.f32 %v6146, %v5998
        %v6185 = vmul.f32 %v6150, %v5999
        %v6186 = vmul.f32 %v6134, %v6000
        %v6187 = vmul.f32 %v6138, %v6001
        %v6188 = vmul.f32 %v6142, %v6002
        %v6189 = vmul.f32 %v6146, %v6003
        %v6190 = vmul.f32 %v6150, %v6004
        %v6191 = vmul.f32 %v6134, %v6005
        %v6192 = vmul.f32 %v6138, %v6006
        %v6193 = vmul.f32 %v6142, %v6007
        %v6194 = vmul.f32 %v6146, %v6008
        %v6195 = vmul.f32 %v6150, %v6009
        %v6196 = vmul.f32 %v6134, %v6010
        %v6197 = vmul.f32 %v6138, %v6011
        %v6198 = vmul.f32 %v6142, %v6012
        %v6199 = vmul.f32 %v6146, %v6013
        %v6200 = vmul.f32 %v6150, %v6014
        %v6201 = vmul.f32 %v6134, %v6015
        %v6202 = vmul.f32 %v6138, %v6016
        %v6203 = vmul.f32 %v6142, %v6017
        %v6204 = vmul.f32 %v6146, %v6018
        %v6205 = vmul.f32 %v6150, %v6019
        %v6206 = vmul.f32 %v6134, %v6020
        %v6207 = vmul.f32 %v6138, %v6021
        %v6208 = vmul.f32 %v6142, %v6022
        %v6209 = vmul.f32 %v6146, %v6023
        %v6210 = vmul.f32 %v6150, %v6024
        %v6211 = vmul.f32 %v6134, %v6025
        %v6212 = vmul.f32 %v6138, %v6026
        %v6213 = vmul.f32 %v6142, %v6027
        %v6214 = vmul.f32 %v6146, %v6028
        %v6215 = vmul.f32 %v6150, %v6029
        %v6216 = vmul.f32 %v6134, %v6030
        %v6217 = vmul.f32 %v6138, %v6031
        %v6218 = vmul.f32 %v6142, %v6032
        %v6219 = vmul.f32 %v6146, %v6033
        %v6220 = vmul.f32 %v6150, %v6034
        %v6221 = vmul.f32 %v6134, %v6035
        %v6222 = vmul.f32 %v6138, %v6036
        %v6223 = vmul.f32 %v6142, %v6037
        %v6224 = vmul.f32 %v6146, %v6038
        %v6225 = vmul.f32 %v6150, %v6039
        %v6226 = vmul.f32 %v6134, %v6040
        %v6227 = vmul.f32 %v6138, %v6041
        %v6228 = vmul.f32 %v6142, %v6042
        %v6229 = vmul.f32 %v6146, %v6043
        %v6230 = vmul.f32 %v6150, %v6044
        %v6231 = vmul.f32 %v6134, %v6045
        %v6232 = vmul.f32 %v6138, %v6046
        %v6233 = vmul.f32 %v6142, %v6047
        %v6234 = vmul.f32 %v6146, %v6048
        %v6235 = vmul.f32 %v6150, %v6049
        %v6236 = vmul.f32 %v6134, %v6050
        %v6237 = vmul.f32 %v6138, %v6051
        %v6238 = vmul.f32 %v6142, %v6052
        %v6239 = vmul.f32 %v6146, %v6053
        %v6240 = vmul.f32 %v6150, %v6054
        %v6241 = vmul.f32 %v6134, %v6055
        %v6242 = vmul.f32 %v6138, %v6056
        %v6243 = vmul.f32 %v6142, %v6057
        %v6244 = vmul.f32 %v6146, %v6058
        %v6245 = vmul.f32 %v6150, %v6059
        %v6246 = vmul.f32 %v6134, %v6060
        %v6247 = vmul.f32 %v6138, %v6061
        %v6248 = vmul.f32 %v6142, %v6062
        %v6249 = vmul.f32 %v6146, %v6063
        %v6250 = vmul.f32 %v6150, %v6064
        %v6251 = vmul.f32 %v6134, %v6065
        %v6252 = vmul.f32 %v6138, %v6066
        %v6253 = vmul.f32 %v6142, %v6067
        %v6254 = vmul.f32 %v6146, %v6068
        %v6255 = vmul.f32 %v6150, %v6069
        %v6256 = vmul.f32 %v6134, %v6070
        %v6257 = vmul.f32 %v6138, %v6071
        %v6258 = vmul.f32 %v6142, %v6072
        %v6259 = vmul.f32 %v6146, %v6073
        %v6260 = vmul.f32 %v6150, %v6074
        %v6261 = vmul.f32 %v6134, %v6075
        %v6262 = vmul.f32 %v6138, %v6076
        %v6263 = vmul.f32 %v6142, %v6077
        %v6264 = vmul.f32 %v6146, %v6078
        %v6265 = vmul.f32 %v6150, %v6079
        %v6266 = vmul.f32 %v6134, %v6080
        %v6267 = vmul.f32 %v6138, %v6081
        %v6268 = vmul.f32 %v6142, %v6082
        %v6269 = vmul.f32 %v6146, %v6083
        %v6270 = vmul.f32 %v6150, %v6084
        %v6271 = vmul.f32 %v6134, %v6085
        %v6272 = vmul.f32 %v6138, %v6086
        %v6273 = vmul.f32 %v6142, %v6087
        %v6274 = vmul.f32 %v6146, %v6088
        %v6275 = vmul.f32 %v6150, %v6089
        %v6276 = vmul.f32 %v6134, %v6090
        %v6277 = vmul.f32 %v6138, %v6091
        %v6278 = vmul.f32 %v6142, %v6092
        %v6279 = vmul.f32 %v6146, %v6093
        %v6280 = vmul.f32 %v6150, %v6094
        %v6281 = vmul.f32 %v6134, %v6095
        %v6282 = vmul.f32 %v6138, %v6096
        %v6283 = vmul.f32 %v6142, %v6097
        %v6284 = vmul.f32 %v6146, %v6098
        %v6285 = vmul.f32 %v6150, %v6099
        %v6286 = vmul.f32 %v6134, %v6100
        %v6287 = vmul.f32 %v6138, %v6101
        %v6288 = vmul.f32 %v6142, %v6102
        %v6289 = vmul.f32 %v6146, %v6103
        %v6290 = vmul.f32 %v6150, %v6104
        %v6291 = vmul.f32 %v6134, %v6105
        %v6292 = vmul.f32 %v6138, %v6106
        %v6293 = vmul.f32 %v6142, %v6107
        %v6294 = vmul.f32 %v6146, %v6108
        %v6295 = vmul.f32 %v6150, %v6109
        %v6296 = vmul.f32 %v6134, %v6110
        %v6297 = vmul.f32 %v6138, %v6111
        %v6298 = vmul.f32 %v6142, %v6112
        %v6299 = vmul.f32 %v6146, %v6113
        %v6300 = vmul.f32 %v6150, %v6114
        %v6301 = vmul.f32 %v6134, %v6115
        %v6302 = vmul.f32 %v6138, %v6116
        %v6303 = vmul.f32 %v6142, %v6117
        %v6304 = vmul.f32 %v6146, %v6118
        %v6305 = vmul.f32 %v6150, %v6119
        %v6306 = vmul.f32 %v6134, %v6120
        %v6307 = vmul.f32 %v6138, %v6121
        %v6308 = vmul.f32 %v6142, %v6122
        %v6309 = vmul.f32 %v6146, %v6123
        %v6310 = vmul.f32 %v6150, %v6124
        %v6311 = vmul.f32 %v6134, %v6125
        %v6312 = vmul.f32 %v6138, %v6126
        %v6313 = vmul.f32 %v6142, %v6127
        %v6314 = vmul.f32 %v6146, %v6128
        %v6315 = vmul.f32 %v6150, %v6129
        %v6316 = vadd.f32 %v2106, %v6156
        %v6317 = vadd.f32 %v2107, %v6157
        %v6318 = vadd.f32 %v2108, %v6158
        %v6319 = vadd.f32 %v2109, %v6159
        %v6320 = vadd.f32 %v2110, %v6160
        %v6321 = vadd.f32 %v2111, %v6161
        %v6322 = vadd.f32 %v2112, %v6162
        %v6323 = vadd.f32 %v2113, %v6163
        %v6324 = vadd.f32 %v2114, %v6164
        %v6325 = vadd.f32 %v2115, %v6165
        %v6326 = vadd.f32 %v2116, %v6166
        %v6327 = vadd.f32 %v2117, %v6167
        %v6328 = vadd.f32 %v2118, %v6168
        %v6329 = vadd.f32 %v2119, %v6169
        %v6330 = vadd.f32 %v2120, %v6170
        %v6331 = vadd.f32 %v2121, %v6171
        %v6332 = vadd.f32 %v2122, %v6172
        %v6333 = vadd.f32 %v2123, %v6173
        %v6334 = vadd.f32 %v2124, %v6174
        %v6335 = vadd.f32 %v2125, %v6175
        %v6336 = vadd.f32 %v2126, %v6176
        %v6337 = vadd.f32 %v2127, %v6177
        %v6338 = vadd.f32 %v2128, %v6178
        %v6339 = vadd.f32 %v2129, %v6179
        %v6340 = vadd.f32 %v2130, %v6180
        %v6341 = vadd.f32 %v2131, %v6181
        %v6342 = vadd.f32 %v2132, %v6182
        %v6343 = vadd.f32 %v2133, %v6183
        %v6344 = vadd.f32 %v2134, %v6184
        %v6345 = vadd.f32 %v2135, %v6185
        %v6346 = vadd.f32 %v2136, %v6186
        %v6347 = vadd.f32 %v2137, %v6187
        %v6348 = vadd.f32 %v2138, %v6188
        %v6349 = vadd.f32 %v2139, %v6189
        %v6350 = vadd.f32 %v2140, %v6190
        %v6351 = vadd.f32 %v2141, %v6191
        %v6352 = vadd.f32 %v2142, %v6192
        %v6353 = vadd.f32 %v2143, %v6193
        %v6354 = vadd.f32 %v2144, %v6194
        %v6355 = vadd.f32 %v2145, %v6195
        %v6356 = vadd.f32 %v2146, %v6196
        %v6357 = vadd.f32 %v2147, %v6197
        %v6358 = vadd.f32 %v2148, %v6198
        %v6359 = vadd.f32 %v2149, %v6199
        %v6360 = vadd.f32 %v2150, %v6200
        %v6361 = vadd.f32 %v2151, %v6201
        %v6362 = vadd.f32 %v2152, %v6202
        %v6363 = vadd.f32 %v2153, %v6203
        %v6364 = vadd.f32 %v2154, %v6204
        %v6365 = vadd.f32 %v2155, %v6205
        %v6366 = vadd.f32 %v2156, %v6206
        %v6367 = vadd.f32 %v2157, %v6207
        %v6368 = vadd.f32 %v2158, %v6208
        %v6369 = vadd.f32 %v2159, %v6209
        %v6370 = vadd.f32 %v2160, %v6210
        %v6371 = vadd.f32 %v2161, %v6211
        %v6372 = vadd.f32 %v2162, %v6212
        %v6373 = vadd.f32 %v2163, %v6213
        %v6374 = vadd.f32 %v2164, %v6214
        %v6375 = vadd.f32 %v2165, %v6215
        %v6376 = vadd.f32 %v2166, %v6216
        %v6377 = vadd.f32 %v2167, %v6217
        %v6378 = vadd.f32 %v2168, %v6218
        %v6379 = vadd.f32 %v2169, %v6219
        %v6380 = vadd.f32 %v2170, %v6220
        %v6381 = vadd.f32 %v2171, %v6221
        %v6382 = vadd.f32 %v2172, %v6222
        %v6383 = vadd.f32 %v2173, %v6223
        %v6384 = vadd.f32 %v2174, %v6224
        %v6385 = vadd.f32 %v2175, %v6225
        %v6386 = vadd.f32 %v2176, %v6226
        %v6387 = vadd.f32 %v2177, %v6227
        %v6388 = vadd.f32 %v2178, %v6228
        %v6389 = vadd.f32 %v2179, %v6229
        %v6390 = vadd.f32 %v2180, %v6230
        %v6391 = vadd.f32 %v2181, %v6231
        %v6392 = vadd.f32 %v2182, %v6232
        %v6393 = vadd.f32 %v2183, %v6233
        %v6394 = vadd.f32 %v2184, %v6234
        %v6395 = vadd.f32 %v2185, %v6235
        %v6396 = vadd.f32 %v2186, %v6236
        %v6397 = vadd.f32 %v2187, %v6237
        %v6398 = vadd.f32 %v2188, %v6238
        %v6399 = vadd.f32 %v2189, %v6239
        %v6400 = vadd.f32 %v2190, %v6240
        %v6401 = vadd.f32 %v2191, %v6241
        %v6402 = vadd.f32 %v2192, %v6242
        %v6403 = vadd.f32 %v2193, %v6243
        %v6404 = vadd.f32 %v2194, %v6244
        %v6405 = vadd.f32 %v2195, %v6245
        %v6406 = vadd.f32 %v2196, %v6246
        %v6407 = vadd.f32 %v2197, %v6247
        %v6408 = vadd.f32 %v2198, %v6248
        %v6409 = vadd.f32 %v2199, %v6249
        %v6410 = vadd.f32 %v2200, %v6250
        %v6411 = vadd.f32 %v2201, %v6251
        %v6412 = vadd.f32 %v2202, %v6252
        %v6413 = vadd.f32 %v2203, %v6253
        %v6414 = vadd.f32 %v2204, %v6254
        %v6415 = vadd.f32 %v2205, %v6255
        %v6416 = vadd.f32 %v2206, %v6256
        %v6417 = vadd.f32 %v2207, %v6257
        %v6418 = vadd.f32 %v2208, %v6258
        %v6419 = vadd.f32 %v2209, %v6259
        %v6420 = vadd.f32 %v2210, %v6260
        %v6421 = vadd.f32 %v2211, %v6261
        %v6422 = vadd.f32 %v2212, %v6262
        %v6423 = vadd.f32 %v2213, %v6263
        %v6424 = vadd.f32 %v2214, %v6264
        %v6425 = vadd.f32 %v2215, %v6265
        %v6426 = vadd.f32 %v2216, %v6266
        %v6427 = vadd.f32 %v2217, %v6267
        %v6428 = vadd.f32 %v2218, %v6268
        %v6429 = vadd.f32 %v2219, %v6269
        %v6430 = vadd.f32 %v2220, %v6270
        %v6431 = vadd.f32 %v2221, %v6271
        %v6432 = vadd.f32 %v2222, %v6272
        %v6433 = vadd.f32 %v2223, %v6273
        %v6434 = vadd.f32 %v2224, %v6274
        %v6435 = vadd.f32 %v2225, %v6275
        %v6436 = vadd.f32 %v2226, %v6276
        %v6437 = vadd.f32 %v2227, %v6277
        %v6438 = vadd.f32 %v2228, %v6278
        %v6439 = vadd.f32 %v2229, %v6279
        %v6440 = vadd.f32 %v2230, %v6280
        %v6441 = vadd.f32 %v2231, %v6281
        %v6442 = vadd.f32 %v2232, %v6282
        %v6443 = vadd.f32 %v2233, %v6283
        %v6444 = vadd.f32 %v2234, %v6284
        %v6445 = vadd.f32 %v2235, %v6285
        %v6446 = vadd.f32 %v2236, %v6286
        %v6447 = vadd.f32 %v2237, %v6287
        %v6448 = vadd.f32 %v2238, %v6288
        %v6449 = vadd.f32 %v2239, %v6289
        %v6450 = vadd.f32 %v2240, %v6290
        %v6451 = vadd.f32 %v2241, %v6291
        %v6452 = vadd.f32 %v2242, %v6292
        %v6453 = vadd.f32 %v2243, %v6293
        %v6454 = vadd.f32 %v2244, %v6294
        %v6455 = vadd.f32 %v2245, %v6295
        %v6456 = vadd.f32 %v2246, %v6296
        %v6457 = vadd.f32 %v2247, %v6297
        %v6458 = vadd.f32 %v2248, %v6298
        %v6459 = vadd.f32 %v2249, %v6299
        %v6460 = vadd.f32 %v2250, %v6300
        %v6461 = vadd.f32 %v2251, %v6301
        %v6462 = vadd.f32 %v2252, %v6302
        %v6463 = vadd.f32 %v2253, %v6303
        %v6464 = vadd.f32 %v2254, %v6304
        %v6465 = vadd.f32 %v2255, %v6305
        %v6466 = vadd.f32 %v2256, %v6306
        %v6467 = vadd.f32 %v2257, %v6307
        %v6468 = vadd.f32 %v2258, %v6308
        %v6469 = vadd.f32 %v2259, %v6309
        %v6470 = vadd.f32 %v2260, %v6310
        %v6471 = vadd.f32 %v2261, %v6311
        %v6472 = vadd.f32 %v2262, %v6312
        %v6473 = vadd.f32 %v2263, %v6313
        %v6474 = vadd.f32 %v2264, %v6314
        %v6475 = vadd.f32 %v2265, %v6315
        %v6476 = vadd.f32 %v6316, %v539
        %v6477 = vadd.f32 %v6317, %v541
        %v6478 = vadd.f32 %v6318, %v732
        %v6479 = vadd.f32 %v6319, %v734
        %v6480 = vadd.f32 %v6320, %v925
        %v6481 = vadd.f32 %v6321, %v543
        %v6482 = vadd.f32 %v6322, %v545
        %v6483 = vadd.f32 %v6323, %v736
        %v6484 = vadd.f32 %v6324, %v738
        %v6485 = vadd.f32 %v6325, %v929
        %v6486 = vadd.f32 %v6326, %v549
        %v6487 = vadd.f32 %v6327, %v551
        %v6488 = vadd.f32 %v6328, %v742
        %v6489 = vadd.f32 %v6329, %v744
        %v6490 = vadd.f32 %v6330, %v935
        %v6491 = vadd.f32 %v6331, %v553
        %v6492 = vadd.f32 %v6332, %v555
        %v6493 = vadd.f32 %v6333, %v746
        %v6494 = vadd.f32 %v6334, %v748
        %v6495 = vadd.f32 %v6335, %v939
        %v6496 = vadd.f32 %v6336, %v559
        %v6497 = vadd.f32 %v6337, %v561
        %v6498 = vadd.f32 %v6338, %v752
        %v6499 = vadd.f32 %v6339, %v754
        %v6500 = vadd.f32 %v6340, %v945
        %v6501 = vadd.f32 %v6341, %v563
        %v6502 = vadd.f32 %v6342, %v565
        %v6503 = vadd.f32 %v6343, %v756
        %v6504 = vadd.f32 %v6344, %v758
        %v6505 = vadd.f32 %v6345, %v949
        %v6506 = vadd.f32 %v6346, %v569
        %v6507 = vadd.f32 %v6347, %v571
        %v6508 = vadd.f32 %v6348, %v762
        %v6509 = vadd.f32 %v6349, %v764
        %v6510 = vadd.f32 %v6350, %v955
        %v6511 = vadd.f32 %v6351, %v573
        %v6512 = vadd.f32 %v6352, %v575
        %v6513 = vadd.f32 %v6353, %v766
        %v6514 = vadd.f32 %v6354, %v768
        %v6515 = vadd.f32 %v6355, %v959
        %v6516 = vadd.f32 %v6356, %v579
        %v6517 = vadd.f32 %v6357, %v581
        %v6518 = vadd.f32 %v6358, %v772
        %v6519 = vadd.f32 %v6359, %v774
        %v6520 = vadd.f32 %v6360, %v965
        %v6521 = vadd.f32 %v6361, %v583
        %v6522 = vadd.f32 %v6362, %v585
        %v6523 = vadd.f32 %v6363, %v776
        %v6524 = vadd.f32 %v6364, %v778
        %v6525 = vadd.f32 %v6365, %v969
        %v6526 = vadd.f32 %v6366, %v589
        %v6527 = vadd.f32 %v6367, %v591
        %v6528 = vadd.f32 %v6368, %v782
        %v6529 = vadd.f32 %v6369, %v784
        %v6530 = vadd.f32 %v6370, %v975
        %v6531 = vadd.f32 %v6371, %v593
        %v6532 = vadd.f32 %v6372, %v595
        %v6533 = vadd.f32 %v6373, %v786
        %v6534 = vadd.f32 %v6374, %v788
        %v6535 = vadd.f32 %v6375, %v979
        %v6536 = vadd.f32 %v6376, %v599
        %v6537 = vadd.f32 %v6377, %v601
        %v6538 = vadd.f32 %v6378, %v792
        %v6539 = vadd.f32 %v6379, %v794
        %v6540 = vadd.f32 %v6380, %v985
        %v6541 = vadd.f32 %v6381, %v603
        %v6542 = vadd.f32 %v6382, %v605
        %v6543 = vadd.f32 %v6383, %v796
        %v6544 = vadd.f32 %v6384, %v798
        %v6545 = vadd.f32 %v6385, %v989
        %v6546 = vadd.f32 %v6386, %v609
        %v6547 = vadd.f32 %v6387, %v611
        %v6548 = vadd.f32 %v6388, %v802
        %v6549 = vadd.f32 %v6389, %v804
        %v6550 = vadd.f32 %v6390, %v995
        %v6551 = vadd.f32 %v6391, %v613
        %v6552 = vadd.f32 %v6392, %v615
        %v6553 = vadd.f32 %v6393, %v806
        %v6554 = vadd.f32 %v6394, %v808
        %v6555 = vadd.f32 %v6395, %v999
        %v6556 = vadd.f32 %v6396, %v619
        %v6557 = vadd.f32 %v6397, %v621
        %v6558 = vadd.f32 %v6398, %v812
        %v6559 = vadd.f32 %v6399, %v814
        %v6560 = vadd.f32 %v6400, %v1005
        %v6561 = vadd.f32 %v6401, %v623
        %v6562 = vadd.f32 %v6402, %v625
        %v6563 = vadd.f32 %v6403, %v816
        %v6564 = vadd.f32 %v6404, %v818
        %v6565 = vadd.f32 %v6405, %v1009
        %v6566 = vadd.f32 %v6406, %v629
        %v6567 = vadd.f32 %v6407, %v631
        %v6568 = vadd.f32 %v6408, %v822
        %v6569 = vadd.f32 %v6409, %v824
        %v6570 = vadd.f32 %v6410, %v1015
        %v6571 = vadd.f32 %v6411, %v633
        %v6572 = vadd.f32 %v6412, %v635
        %v6573 = vadd.f32 %v6413, %v826
        %v6574 = vadd.f32 %v6414, %v828
        %v6575 = vadd.f32 %v6415, %v1019
        %v6576 = vadd.f32 %v6416, %v639
        %v6577 = vadd.f32 %v6417, %v641
        %v6578 = vadd.f32 %v6418, %v832
        %v6579 = vadd.f32 %v6419, %v834
        %v6580 = vadd.f32 %v6420, %v1025
        %v6581 = vadd.f32 %v6421, %v643
        %v6582 = vadd.f32 %v6422, %v645
        %v6583 = vadd.f32 %v6423, %v836
        %v6584 = vadd.f32 %v6424, %v838
        %v6585 = vadd.f32 %v6425, %v1029
        %v6586 = vadd.f32 %v6426, %v649
        %v6587 = vadd.f32 %v6427, %v651
        %v6588 = vadd.f32 %v6428, %v842
        %v6589 = vadd.f32 %v6429, %v844
        %v6590 = vadd.f32 %v6430, %v1035
        %v6591 = vadd.f32 %v6431, %v653
        %v6592 = vadd.f32 %v6432, %v655
        %v6593 = vadd.f32 %v6433, %v846
        %v6594 = vadd.f32 %v6434, %v848
        %v6595 = vadd.f32 %v6435, %v1039
        %v6596 = vadd.f32 %v6436, %v659
        %v6597 = vadd.f32 %v6437, %v661
        %v6598 = vadd.f32 %v6438, %v852
        %v6599 = vadd.f32 %v6439, %v854
        %v6600 = vadd.f32 %v6440, %v1045
        %v6601 = vadd.f32 %v6441, %v663
        %v6602 = vadd.f32 %v6442, %v665
        %v6603 = vadd.f32 %v6443, %v856
        %v6604 = vadd.f32 %v6444, %v858
        %v6605 = vadd.f32 %v6445, %v1049
        %v6606 = vadd.f32 %v6446, %v669
        %v6607 = vadd.f32 %v6447, %v671
        %v6608 = vadd.f32 %v6448, %v862
        %v6609 = vadd.f32 %v6449, %v864
        %v6610 = vadd.f32 %v6450, %v1055
        %v6611 = vadd.f32 %v6451, %v673
        %v6612 = vadd.f32 %v6452, %v675
        %v6613 = vadd.f32 %v6453, %v866
        %v6614 = vadd.f32 %v6454, %v868
        %v6615 = vadd.f32 %v6455, %v1059
        %v6616 = vadd.f32 %v6456, %v679
        %v6617 = vadd.f32 %v6457, %v681
        %v6618 = vadd.f32 %v6458, %v872
        %v6619 = vadd.f32 %v6459, %v874
        %v6620 = vadd.f32 %v6460, %v1065
        %v6621 = vadd.f32 %v6461, %v683
        %v6622 = vadd.f32 %v6462, %v685
        %v6623 = vadd.f32 %v6463, %v876
        %v6624 = vadd.f32 %v6464, %v878
        %v6625 = vadd.f32 %v6465, %v1069
        %v6626 = vadd.f32 %v6466, %v689
        %v6627 = vadd.f32 %v6467, %v691
        %v6628 = vadd.f32 %v6468, %v882
        %v6629 = vadd.f32 %v6469, %v884
        %v6630 = vadd.f32 %v6470, %v1075
        %v6631 = vadd.f32 %v6471, %v693
        %v6632 = vadd.f32 %v6472, %v695
        %v6633 = vadd.f32 %v6473, %v886
        %v6634 = vadd.f32 %v6474, %v888
        %v6635 = vadd.f32 %v6475, %v1079
        %s6636 = scalar_lea.vmem %s5, 2
        %v6637 = vld [vmem:[%s6636] ss:$8 sm:$0xf]
        %v6638 = vld [vmem:[%s6636] ss:$8 sm:$0x10]
        %v6639 = vor.u32 %v6637, %v6638
        %v6640 = vadd.f32 %v6476, %v6477
        %v6641 = vadd.f32 %v6640, %v6478
        %v6642 = vadd.f32 %v6641, %v6479
        %v6643 = vadd.f32 %v6642, %v6480
        %6644 = vadd.xlane.f32.xlu0 %v6643
        %v6645 = vpop.xlane.xlu0 %6644
        %v6646 = vadd.f32 %v6481, %v6482
        %v6647 = vadd.f32 %v6646, %v6483
        %v6648 = vadd.f32 %v6647, %v6484
        %v6649 = vadd.f32 %v6648, %v6485
        %6650 = vadd.xlane.f32.xlu0 %v6649
        %v6651 = vpop.xlane.xlu0 %6650
        %v6652 = vadd.f32 %v6486, %v6487
        %v6653 = vadd.f32 %v6652, %v6488
        %v6654 = vadd.f32 %v6653, %v6489
        %v6655 = vadd.f32 %v6654, %v6490
        %6656 = vadd.xlane.f32.xlu0 %v6655
        %v6657 = vpop.xlane.xlu0 %6656
        %v6658 = vadd.f32 %v6491, %v6492
        %v6659 = vadd.f32 %v6658, %v6493
        %v6660 = vadd.f32 %v6659, %v6494
        %v6661 = vadd.f32 %v6660, %v6495
        %6662 = vadd.xlane.f32.xlu0 %v6661
        %v6663 = vpop.xlane.xlu0 %6662
        %v6664 = vadd.f32 %v6496, %v6497
        %v6665 = vadd.f32 %v6664, %v6498
        %v6666 = vadd.f32 %v6665, %v6499
        %v6667 = vadd.f32 %v6666, %v6500
        %6668 = vadd.xlane.f32.xlu0 %v6667
        %v6669 = vpop.xlane.xlu0 %6668
        %v6670 = vadd.f32 %v6501, %v6502
        %v6671 = vadd.f32 %v6670, %v6503
        %v6672 = vadd.f32 %v6671, %v6504
        %v6673 = vadd.f32 %v6672, %v6505
        %6674 = vadd.xlane.f32.xlu0 %v6673
        %v6675 = vpop.xlane.xlu0 %6674
        %v6676 = vadd.f32 %v6506, %v6507
        %v6677 = vadd.f32 %v6676, %v6508
        %v6678 = vadd.f32 %v6677, %v6509
        %v6679 = vadd.f32 %v6678, %v6510
        %6680 = vadd.xlane.f32.xlu0 %v6679
        %v6681 = vpop.xlane.xlu0 %6680
        %v6682 = vadd.f32 %v6511, %v6512
        %v6683 = vadd.f32 %v6682, %v6513
        %v6684 = vadd.f32 %v6683, %v6514
        %v6685 = vadd.f32 %v6684, %v6515
        %6686 = vadd.xlane.f32.xlu0 %v6685
        %v6687 = vpop.xlane.xlu0 %6686
        %v6688 = vadd.f32 %v6516, %v6517
        %v6689 = vadd.f32 %v6688, %v6518
        %v6690 = vadd.f32 %v6689, %v6519
        %v6691 = vadd.f32 %v6690, %v6520
        %6692 = vadd.xlane.f32.xlu0 %v6691
        %v6693 = vpop.xlane.xlu0 %6692
        %v6694 = vadd.f32 %v6521, %v6522
        %v6695 = vadd.f32 %v6694, %v6523
        %v6696 = vadd.f32 %v6695, %v6524
        %v6697 = vadd.f32 %v6696, %v6525
        %6698 = vadd.xlane.f32.xlu0 %v6697
        %v6699 = vpop.xlane.xlu0 %6698
        %v6700 = vadd.f32 %v6526, %v6527
        %v6701 = vadd.f32 %v6700, %v6528
        %v6702 = vadd.f32 %v6701, %v6529
        %v6703 = vadd.f32 %v6702, %v6530
        %6704 = vadd.xlane.f32.xlu0 %v6703
        %v6705 = vpop.xlane.xlu0 %6704
        %v6706 = vadd.f32 %v6531, %v6532
        %v6707 = vadd.f32 %v6706, %v6533
        %v6708 = vadd.f32 %v6707, %v6534
        %v6709 = vadd.f32 %v6708, %v6535
        %6710 = vadd.xlane.f32.xlu0 %v6709
        %v6711 = vpop.xlane.xlu0 %6710
        %v6712 = vadd.f32 %v6536, %v6537
        %v6713 = vadd.f32 %v6712, %v6538
        %v6714 = vadd.f32 %v6713, %v6539
        %v6715 = vadd.f32 %v6714, %v6540
        %6716 = vadd.xlane.f32.xlu0 %v6715
        %v6717 = vpop.xlane.xlu0 %6716
        %v6718 = vadd.f32 %v6541, %v6542
        %v6719 = vadd.f32 %v6718, %v6543
        %v6720 = vadd.f32 %v6719, %v6544
        %v6721 = vadd.f32 %v6720, %v6545
        %6722 = vadd.xlane.f32.xlu0 %v6721
        %v6723 = vpop.xlane.xlu0 %6722
        %v6724 = vadd.f32 %v6546, %v6547
        %v6725 = vadd.f32 %v6724, %v6548
        %v6726 = vadd.f32 %v6725, %v6549
        %v6727 = vadd.f32 %v6726, %v6550
        %6728 = vadd.xlane.f32.xlu0 %v6727
        %v6729 = vpop.xlane.xlu0 %6728
        %v6730 = vadd.f32 %v6551, %v6552
        %v6731 = vadd.f32 %v6730, %v6553
        %v6732 = vadd.f32 %v6731, %v6554
        %v6733 = vadd.f32 %v6732, %v6555
        %6734 = vadd.xlane.f32.xlu0 %v6733
        %v6735 = vpop.xlane.xlu0 %6734
        %v6736 = vadd.f32 %v6556, %v6557
        %v6737 = vadd.f32 %v6736, %v6558
        %v6738 = vadd.f32 %v6737, %v6559
        %v6739 = vadd.f32 %v6738, %v6560
        %6740 = vadd.xlane.f32.xlu0 %v6739
        %v6741 = vpop.xlane.xlu0 %6740
        %v6742 = vadd.f32 %v6561, %v6562
        %v6743 = vadd.f32 %v6742, %v6563
        %v6744 = vadd.f32 %v6743, %v6564
        %v6745 = vadd.f32 %v6744, %v6565
        %6746 = vadd.xlane.f32.xlu0 %v6745
        %v6747 = vpop.xlane.xlu0 %6746
        %v6748 = vadd.f32 %v6566, %v6567
        %v6749 = vadd.f32 %v6748, %v6568
        %v6750 = vadd.f32 %v6749, %v6569
        %v6751 = vadd.f32 %v6750, %v6570
        %6752 = vadd.xlane.f32.xlu0 %v6751
        %v6753 = vpop.xlane.xlu0 %6752
        %v6754 = vadd.f32 %v6571, %v6572
        %v6755 = vadd.f32 %v6754, %v6573
        %v6756 = vadd.f32 %v6755, %v6574
        %v6757 = vadd.f32 %v6756, %v6575
        %6758 = vadd.xlane.f32.xlu0 %v6757
        %v6759 = vpop.xlane.xlu0 %6758
        %v6760 = vadd.f32 %v6576, %v6577
        %v6761 = vadd.f32 %v6760, %v6578
        %v6762 = vadd.f32 %v6761, %v6579
        %v6763 = vadd.f32 %v6762, %v6580
        %6764 = vadd.xlane.f32.xlu0 %v6763
        %v6765 = vpop.xlane.xlu0 %6764
        %v6766 = vadd.f32 %v6581, %v6582
        %v6767 = vadd.f32 %v6766, %v6583
        %v6768 = vadd.f32 %v6767, %v6584
        %v6769 = vadd.f32 %v6768, %v6585
        %6770 = vadd.xlane.f32.xlu0 %v6769
        %v6771 = vpop.xlane.xlu0 %6770
        %v6772 = vadd.f32 %v6586, %v6587
        %v6773 = vadd.f32 %v6772, %v6588
        %v6774 = vadd.f32 %v6773, %v6589
        %v6775 = vadd.f32 %v6774, %v6590
        %6776 = vadd.xlane.f32.xlu0 %v6775
        %v6777 = vpop.xlane.xlu0 %6776
        %v6778 = vadd.f32 %v6591, %v6592
        %v6779 = vadd.f32 %v6778, %v6593
        %v6780 = vadd.f32 %v6779, %v6594
        %v6781 = vadd.f32 %v6780, %v6595
        %6782 = vadd.xlane.f32.xlu0 %v6781
        %v6783 = vpop.xlane.xlu0 %6782
        %v6784 = vadd.f32 %v6596, %v6597
        %v6785 = vadd.f32 %v6784, %v6598
        %v6786 = vadd.f32 %v6785, %v6599
        %v6787 = vadd.f32 %v6786, %v6600
        %6788 = vadd.xlane.f32.xlu0 %v6787
        %v6789 = vpop.xlane.xlu0 %6788
        %v6790 = vadd.f32 %v6601, %v6602
        %v6791 = vadd.f32 %v6790, %v6603
        %v6792 = vadd.f32 %v6791, %v6604
        %v6793 = vadd.f32 %v6792, %v6605
        %6794 = vadd.xlane.f32.xlu0 %v6793
        %v6795 = vpop.xlane.xlu0 %6794
        %v6796 = vadd.f32 %v6606, %v6607
        %v6797 = vadd.f32 %v6796, %v6608
        %v6798 = vadd.f32 %v6797, %v6609
        %v6799 = vadd.f32 %v6798, %v6610
        %6800 = vadd.xlane.f32.xlu0 %v6799
        %v6801 = vpop.xlane.xlu0 %6800
        %v6802 = vadd.f32 %v6611, %v6612
        %v6803 = vadd.f32 %v6802, %v6613
        %v6804 = vadd.f32 %v6803, %v6614
        %v6805 = vadd.f32 %v6804, %v6615
        %6806 = vadd.xlane.f32.xlu0 %v6805
        %v6807 = vpop.xlane.xlu0 %6806
        %v6808 = vadd.f32 %v6616, %v6617
        %v6809 = vadd.f32 %v6808, %v6618
        %v6810 = vadd.f32 %v6809, %v6619
        %v6811 = vadd.f32 %v6810, %v6620
        %6812 = vadd.xlane.f32.xlu0 %v6811
        %v6813 = vpop.xlane.xlu0 %6812
        %v6814 = vadd.f32 %v6621, %v6622
        %v6815 = vadd.f32 %v6814, %v6623
        %v6816 = vadd.f32 %v6815, %v6624
        %v6817 = vadd.f32 %v6816, %v6625
        %6818 = vadd.xlane.f32.xlu0 %v6817
        %v6819 = vpop.xlane.xlu0 %6818
        %v6820 = vadd.f32 %v6626, %v6627
        %v6821 = vadd.f32 %v6820, %v6628
        %v6822 = vadd.f32 %v6821, %v6629
        %v6823 = vadd.f32 %v6822, %v6630
        %6824 = vadd.xlane.f32.xlu0 %v6823
        %v6825 = vpop.xlane.xlu0 %6824
        %v6826 = vadd.f32 %v6631, %v6632
        %v6827 = vadd.f32 %v6826, %v6633
        %v6828 = vadd.f32 %v6827, %v6634
        %v6829 = vadd.f32 %v6828, %v6635
        %6830 = vadd.xlane.f32.xlu0 %v6829
        %v6831 = vpop.xlane.xlu0 %6830
        %v6832 = vmul.f32 %v6645, 0.0019607844
        %v6833 = vmul.f32 %v6651, 0.0019607844
        %v6834 = vmul.f32 %v6657, 0.0019607844
        %v6835 = vmul.f32 %v6663, 0.0019607844
        %v6836 = vmul.f32 %v6669, 0.0019607844
        %v6837 = vmul.f32 %v6675, 0.0019607844
        %v6838 = vmul.f32 %v6681, 0.0019607844
        %v6839 = vmul.f32 %v6687, 0.0019607844
        %v6840 = vmul.f32 %v6693, 0.0019607844
        %v6841 = vmul.f32 %v6699, 0.0019607844
        %v6842 = vmul.f32 %v6705, 0.0019607844
        %v6843 = vmul.f32 %v6711, 0.0019607844
        %v6844 = vmul.f32 %v6717, 0.0019607844
        %v6845 = vmul.f32 %v6723, 0.0019607844
        %v6846 = vmul.f32 %v6729, 0.0019607844
        %v6847 = vmul.f32 %v6735, 0.0019607844
        %v6848 = vmul.f32 %v6741, 0.0019607844
        %v6849 = vmul.f32 %v6747, 0.0019607844
        %v6850 = vmul.f32 %v6753, 0.0019607844
        %v6851 = vmul.f32 %v6759, 0.0019607844
        %v6852 = vmul.f32 %v6765, 0.0019607844
        %v6853 = vmul.f32 %v6771, 0.0019607844
        %v6854 = vmul.f32 %v6777, 0.0019607844
        %v6855 = vmul.f32 %v6783, 0.0019607844
        %v6856 = vmul.f32 %v6789, 0.0019607844
        %v6857 = vmul.f32 %v6795, 0.0019607844
        %v6858 = vmul.f32 %v6801, 0.0019607844
        %v6859 = vmul.f32 %v6807, 0.0019607844
        %v6860 = vmul.f32 %v6813, 0.0019607844
        %v6861 = vmul.f32 %v6819, 0.0019607844
        %v6862 = vmul.f32 %v6825, 0.0019607844
        %v6863 = vmul.f32 %v6831, 0.0019607844
        %v6865 = vlaneseq
        %v6866 = vshrl.u32 %v6865, 7
        %v6867 = vsub.s32 0, %v6866
        %v6868 = vrot.slane %v6639, %v6867
        %v6869 = vlaneseq
        %v6870 = vshrl.u32 %v6869, 7
        %v6871 = vsub.s32 1, %v6870
        %v6872 = vrot.slane %v6639, %v6871
        %v6873 = vlaneseq
        %v6874 = vshrl.u32 %v6873, 7
        %v6875 = vsub.s32 2, %v6874
        %v6876 = vrot.slane %v6639, %v6875
        %v6877 = vlaneseq
        %v6878 = vshrl.u32 %v6877, 7
        %v6879 = vsub.s32 3, %v6878
        %v6880 = vrot.slane %v6639, %v6879
        %v6881 = vlaneseq
        %v6882 = vshrl.u32 %v6881, 7
        %v6883 = vsub.s32 4, %v6882
        %v6884 = vrot.slane %v6639, %v6883
        %v6890 = vmul.f32 %v6832, %v6868
        %v6891 = vmul.f32 %v6832, %v6872
        %v6892 = vmul.f32 %v6832, %v6876
        %v6893 = vmul.f32 %v6832, %v6880
        %v6894 = vmul.f32 %v6832, %v6884
        %v6895 = vmul.f32 %v6833, %v6868
        %v6896 = vmul.f32 %v6833, %v6872
        %v6897 = vmul.f32 %v6833, %v6876
        %v6898 = vmul.f32 %v6833, %v6880
        %v6899 = vmul.f32 %v6833, %v6884
        %v6900 = vmul.f32 %v6834, %v6868
        %v6901 = vmul.f32 %v6834, %v6872
        %v6902 = vmul.f32 %v6834, %v6876
        %v6903 = vmul.f32 %v6834, %v6880
        %v6904 = vmul.f32 %v6834, %v6884
        %v6905 = vmul.f32 %v6835, %v6868
        %v6906 = vmul.f32 %v6835, %v6872
        %v6907 = vmul.f32 %v6835, %v6876
        %v6908 = vmul.f32 %v6835, %v6880
        %v6909 = vmul.f32 %v6835, %v6884
        %v6910 = vmul.f32 %v6836, %v6868
        %v6911 = vmul.f32 %v6836, %v6872
        %v6912 = vmul.f32 %v6836, %v6876
        %v6913 = vmul.f32 %v6836, %v6880
        %v6914 = vmul.f32 %v6836, %v6884
        %v6915 = vmul.f32 %v6837, %v6868
        %v6916 = vmul.f32 %v6837, %v6872
        %v6917 = vmul.f32 %v6837, %v6876
        %v6918 = vmul.f32 %v6837, %v6880
        %v6919 = vmul.f32 %v6837, %v6884
        %v6920 = vmul.f32 %v6838, %v6868
        %v6921 = vmul.f32 %v6838, %v6872
        %v6922 = vmul.f32 %v6838, %v6876
        %v6923 = vmul.f32 %v6838, %v6880
        %v6924 = vmul.f32 %v6838, %v6884
        %v6925 = vmul.f32 %v6839, %v6868
        %v6926 = vmul.f32 %v6839, %v6872
        %v6927 = vmul.f32 %v6839, %v6876
        %v6928 = vmul.f32 %v6839, %v6880
        %v6929 = vmul.f32 %v6839, %v6884
        %v6930 = vmul.f32 %v6840, %v6868
        %v6931 = vmul.f32 %v6840, %v6872
        %v6932 = vmul.f32 %v6840, %v6876
        %v6933 = vmul.f32 %v6840, %v6880
        %v6934 = vmul.f32 %v6840, %v6884
        %v6935 = vmul.f32 %v6841, %v6868
        %v6936 = vmul.f32 %v6841, %v6872
        %v6937 = vmul.f32 %v6841, %v6876
        %v6938 = vmul.f32 %v6841, %v6880
        %v6939 = vmul.f32 %v6841, %v6884
        %v6940 = vmul.f32 %v6842, %v6868
        %v6941 = vmul.f32 %v6842, %v6872
        %v6942 = vmul.f32 %v6842, %v6876
        %v6943 = vmul.f32 %v6842, %v6880
        %v6944 = vmul.f32 %v6842, %v6884
        %v6945 = vmul.f32 %v6843, %v6868
        %v6946 = vmul.f32 %v6843, %v6872
        %v6947 = vmul.f32 %v6843, %v6876
        %v6948 = vmul.f32 %v6843, %v6880
        %v6949 = vmul.f32 %v6843, %v6884
        %v6950 = vmul.f32 %v6844, %v6868
        %v6951 = vmul.f32 %v6844, %v6872
        %v6952 = vmul.f32 %v6844, %v6876
        %v6953 = vmul.f32 %v6844, %v6880
        %v6954 = vmul.f32 %v6844, %v6884
        %v6955 = vmul.f32 %v6845, %v6868
        %v6956 = vmul.f32 %v6845, %v6872
        %v6957 = vmul.f32 %v6845, %v6876
        %v6958 = vmul.f32 %v6845, %v6880
        %v6959 = vmul.f32 %v6845, %v6884
        %v6960 = vmul.f32 %v6846, %v6868
        %v6961 = vmul.f32 %v6846, %v6872
        %v6962 = vmul.f32 %v6846, %v6876
        %v6963 = vmul.f32 %v6846, %v6880
        %v6964 = vmul.f32 %v6846, %v6884
        %v6965 = vmul.f32 %v6847, %v6868
        %v6966 = vmul.f32 %v6847, %v6872
        %v6967 = vmul.f32 %v6847, %v6876
        %v6968 = vmul.f32 %v6847, %v6880
        %v6969 = vmul.f32 %v6847, %v6884
        %v6970 = vmul.f32 %v6848, %v6868
        %v6971 = vmul.f32 %v6848, %v6872
        %v6972 = vmul.f32 %v6848, %v6876
        %v6973 = vmul.f32 %v6848, %v6880
        %v6974 = vmul.f32 %v6848, %v6884
        %v6975 = vmul.f32 %v6849, %v6868
        %v6976 = vmul.f32 %v6849, %v6872
        %v6977 = vmul.f32 %v6849, %v6876
        %v6978 = vmul.f32 %v6849, %v6880
        %v6979 = vmul.f32 %v6849, %v6884
        %v6980 = vmul.f32 %v6850, %v6868
        %v6981 = vmul.f32 %v6850, %v6872
        %v6982 = vmul.f32 %v6850, %v6876
        %v6983 = vmul.f32 %v6850, %v6880
        %v6984 = vmul.f32 %v6850, %v6884
        %v6985 = vmul.f32 %v6851, %v6868
        %v6986 = vmul.f32 %v6851, %v6872
        %v6987 = vmul.f32 %v6851, %v6876
        %v6988 = vmul.f32 %v6851, %v6880
        %v6989 = vmul.f32 %v6851, %v6884
        %v6990 = vmul.f32 %v6852, %v6868
        %v6991 = vmul.f32 %v6852, %v6872
        %v6992 = vmul.f32 %v6852, %v6876
        %v6993 = vmul.f32 %v6852, %v6880
        %v6994 = vmul.f32 %v6852, %v6884
        %v6995 = vmul.f32 %v6853, %v6868
        %v6996 = vmul.f32 %v6853, %v6872
        %v6997 = vmul.f32 %v6853, %v6876
        %v6998 = vmul.f32 %v6853, %v6880
        %v6999 = vmul.f32 %v6853, %v6884
        %v7000 = vmul.f32 %v6854, %v6868
        %v7001 = vmul.f32 %v6854, %v6872
        %v7002 = vmul.f32 %v6854, %v6876
        %v7003 = vmul.f32 %v6854, %v6880
        %v7004 = vmul.f32 %v6854, %v6884
        %v7005 = vmul.f32 %v6855, %v6868
        %v7006 = vmul.f32 %v6855, %v6872
        %v7007 = vmul.f32 %v6855, %v6876
        %v7008 = vmul.f32 %v6855, %v6880
        %v7009 = vmul.f32 %v6855, %v6884
        %v7010 = vmul.f32 %v6856, %v6868
        %v7011 = vmul.f32 %v6856, %v6872
        %v7012 = vmul.f32 %v6856, %v6876
        %v7013 = vmul.f32 %v6856, %v6880
        %v7014 = vmul.f32 %v6856, %v6884
        %v7015 = vmul.f32 %v6857, %v6868
        %v7016 = vmul.f32 %v6857, %v6872
        %v7017 = vmul.f32 %v6857, %v6876
        %v7018 = vmul.f32 %v6857, %v6880
        %v7019 = vmul.f32 %v6857, %v6884
        %v7020 = vmul.f32 %v6858, %v6868
        %v7021 = vmul.f32 %v6858, %v6872
        %v7022 = vmul.f32 %v6858, %v6876
        %v7023 = vmul.f32 %v6858, %v6880
        %v7024 = vmul.f32 %v6858, %v6884
        %v7025 = vmul.f32 %v6859, %v6868
        %v7026 = vmul.f32 %v6859, %v6872
        %v7027 = vmul.f32 %v6859, %v6876
        %v7028 = vmul.f32 %v6859, %v6880
        %v7029 = vmul.f32 %v6859, %v6884
        %v7030 = vmul.f32 %v6860, %v6868
        %v7031 = vmul.f32 %v6860, %v6872
        %v7032 = vmul.f32 %v6860, %v6876
        %v7033 = vmul.f32 %v6860, %v6880
        %v7034 = vmul.f32 %v6860, %v6884
        %v7035 = vmul.f32 %v6861, %v6868
        %v7036 = vmul.f32 %v6861, %v6872
        %v7037 = vmul.f32 %v6861, %v6876
        %v7038 = vmul.f32 %v6861, %v6880
        %v7039 = vmul.f32 %v6861, %v6884
        %v7040 = vmul.f32 %v6862, %v6868
        %v7041 = vmul.f32 %v6862, %v6872
        %v7042 = vmul.f32 %v6862, %v6876
        %v7043 = vmul.f32 %v6862, %v6880
        %v7044 = vmul.f32 %v6862, %v6884
        %v7045 = vmul.f32 %v6863, %v6868
        %v7046 = vmul.f32 %v6863, %v6872
        %v7047 = vmul.f32 %v6863, %v6876
        %v7048 = vmul.f32 %v6863, %v6880
        %v7049 = vmul.f32 %v6863, %v6884
        %v7050 = vsub.f32 %v6476, %v6890
        %v7051 = vsub.f32 %v6477, %v6891
        %v7052 = vsub.f32 %v6478, %v6892
        %v7053 = vsub.f32 %v6479, %v6893
        %v7054 = vsub.f32 %v6480, %v6894
        %v7055 = vsub.f32 %v6481, %v6895
        %v7056 = vsub.f32 %v6482, %v6896
        %v7057 = vsub.f32 %v6483, %v6897
        %v7058 = vsub.f32 %v6484, %v6898
        %v7059 = vsub.f32 %v6485, %v6899
        %v7060 = vsub.f32 %v6486, %v6900
        %v7061 = vsub.f32 %v6487, %v6901
        %v7062 = vsub.f32 %v6488, %v6902
        %v7063 = vsub.f32 %v6489, %v6903
        %v7064 = vsub.f32 %v6490, %v6904
        %v7065 = vsub.f32 %v6491, %v6905
        %v7066 = vsub.f32 %v6492, %v6906
        %v7067 = vsub.f32 %v6493, %v6907
        %v7068 = vsub.f32 %v6494, %v6908
        %v7069 = vsub.f32 %v6495, %v6909
        %v7070 = vsub.f32 %v6496, %v6910
        %v7071 = vsub.f32 %v6497, %v6911
        %v7072 = vsub.f32 %v6498, %v6912
        %v7073 = vsub.f32 %v6499, %v6913
        %v7074 = vsub.f32 %v6500, %v6914
        %v7075 = vsub.f32 %v6501, %v6915
        %v7076 = vsub.f32 %v6502, %v6916
        %v7077 = vsub.f32 %v6503, %v6917
        %v7078 = vsub.f32 %v6504, %v6918
        %v7079 = vsub.f32 %v6505, %v6919
        %v7080 = vsub.f32 %v6506, %v6920
        %v7081 = vsub.f32 %v6507, %v6921
        %v7082 = vsub.f32 %v6508, %v6922
        %v7083 = vsub.f32 %v6509, %v6923
        %v7084 = vsub.f32 %v6510, %v6924
        %v7085 = vsub.f32 %v6511, %v6925
        %v7086 = vsub.f32 %v6512, %v6926
        %v7087 = vsub.f32 %v6513, %v6927
        %v7088 = vsub.f32 %v6514, %v6928
        %v7089 = vsub.f32 %v6515, %v6929
        %v7090 = vsub.f32 %v6516, %v6930
        %v7091 = vsub.f32 %v6517, %v6931
        %v7092 = vsub.f32 %v6518, %v6932
        %v7093 = vsub.f32 %v6519, %v6933
        %v7094 = vsub.f32 %v6520, %v6934
        %v7095 = vsub.f32 %v6521, %v6935
        %v7096 = vsub.f32 %v6522, %v6936
        %v7097 = vsub.f32 %v6523, %v6937
        %v7098 = vsub.f32 %v6524, %v6938
        %v7099 = vsub.f32 %v6525, %v6939
        %v7100 = vsub.f32 %v6526, %v6940
        %v7101 = vsub.f32 %v6527, %v6941
        %v7102 = vsub.f32 %v6528, %v6942
        %v7103 = vsub.f32 %v6529, %v6943
        %v7104 = vsub.f32 %v6530, %v6944
        %v7105 = vsub.f32 %v6531, %v6945
        %v7106 = vsub.f32 %v6532, %v6946
        %v7107 = vsub.f32 %v6533, %v6947
        %v7108 = vsub.f32 %v6534, %v6948
        %v7109 = vsub.f32 %v6535, %v6949
        %v7110 = vsub.f32 %v6536, %v6950
        %v7111 = vsub.f32 %v6537, %v6951
        %v7112 = vsub.f32 %v6538, %v6952
        %v7113 = vsub.f32 %v6539, %v6953
        %v7114 = vsub.f32 %v6540, %v6954
        %v7115 = vsub.f32 %v6541, %v6955
        %v7116 = vsub.f32 %v6542, %v6956
        %v7117 = vsub.f32 %v6543, %v6957
        %v7118 = vsub.f32 %v6544, %v6958
        %v7119 = vsub.f32 %v6545, %v6959
        %v7120 = vsub.f32 %v6546, %v6960
        %v7121 = vsub.f32 %v6547, %v6961
        %v7122 = vsub.f32 %v6548, %v6962
        %v7123 = vsub.f32 %v6549, %v6963
        %v7124 = vsub.f32 %v6550, %v6964
        %v7125 = vsub.f32 %v6551, %v6965
        %v7126 = vsub.f32 %v6552, %v6966
        %v7127 = vsub.f32 %v6553, %v6967
        %v7128 = vsub.f32 %v6554, %v6968
        %v7129 = vsub.f32 %v6555, %v6969
        %v7130 = vsub.f32 %v6556, %v6970
        %v7131 = vsub.f32 %v6557, %v6971
        %v7132 = vsub.f32 %v6558, %v6972
        %v7133 = vsub.f32 %v6559, %v6973
        %v7134 = vsub.f32 %v6560, %v6974
        %v7135 = vsub.f32 %v6561, %v6975
        %v7136 = vsub.f32 %v6562, %v6976
        %v7137 = vsub.f32 %v6563, %v6977
        %v7138 = vsub.f32 %v6564, %v6978
        %v7139 = vsub.f32 %v6565, %v6979
        %v7140 = vsub.f32 %v6566, %v6980
        %v7141 = vsub.f32 %v6567, %v6981
        %v7142 = vsub.f32 %v6568, %v6982
        %v7143 = vsub.f32 %v6569, %v6983
        %v7144 = vsub.f32 %v6570, %v6984
        %v7145 = vsub.f32 %v6571, %v6985
        %v7146 = vsub.f32 %v6572, %v6986
        %v7147 = vsub.f32 %v6573, %v6987
        %v7148 = vsub.f32 %v6574, %v6988
        %v7149 = vsub.f32 %v6575, %v6989
        %v7150 = vsub.f32 %v6576, %v6990
        %v7151 = vsub.f32 %v6577, %v6991
        %v7152 = vsub.f32 %v6578, %v6992
        %v7153 = vsub.f32 %v6579, %v6993
        %v7154 = vsub.f32 %v6580, %v6994
        %v7155 = vsub.f32 %v6581, %v6995
        %v7156 = vsub.f32 %v6582, %v6996
        %v7157 = vsub.f32 %v6583, %v6997
        %v7158 = vsub.f32 %v6584, %v6998
        %v7159 = vsub.f32 %v6585, %v6999
        %v7160 = vsub.f32 %v6586, %v7000
        %v7161 = vsub.f32 %v6587, %v7001
        %v7162 = vsub.f32 %v6588, %v7002
        %v7163 = vsub.f32 %v6589, %v7003
        %v7164 = vsub.f32 %v6590, %v7004
        %v7165 = vsub.f32 %v6591, %v7005
        %v7166 = vsub.f32 %v6592, %v7006
        %v7167 = vsub.f32 %v6593, %v7007
        %v7168 = vsub.f32 %v6594, %v7008
        %v7169 = vsub.f32 %v6595, %v7009
        %v7170 = vsub.f32 %v6596, %v7010
        %v7171 = vsub.f32 %v6597, %v7011
        %v7172 = vsub.f32 %v6598, %v7012
        %v7173 = vsub.f32 %v6599, %v7013
        %v7174 = vsub.f32 %v6600, %v7014
        %v7175 = vsub.f32 %v6601, %v7015
        %v7176 = vsub.f32 %v6602, %v7016
        %v7177 = vsub.f32 %v6603, %v7017
        %v7178 = vsub.f32 %v6604, %v7018
        %v7179 = vsub.f32 %v6605, %v7019
        %v7180 = vsub.f32 %v6606, %v7020
        %v7181 = vsub.f32 %v6607, %v7021
        %v7182 = vsub.f32 %v6608, %v7022
        %v7183 = vsub.f32 %v6609, %v7023
        %v7184 = vsub.f32 %v6610, %v7024
        %v7185 = vsub.f32 %v6611, %v7025
        %v7186 = vsub.f32 %v6612, %v7026
        %v7187 = vsub.f32 %v6613, %v7027
        %v7188 = vsub.f32 %v6614, %v7028
        %v7189 = vsub.f32 %v6615, %v7029
        %v7190 = vsub.f32 %v6616, %v7030
        %v7191 = vsub.f32 %v6617, %v7031
        %v7192 = vsub.f32 %v6618, %v7032
        %v7193 = vsub.f32 %v6619, %v7033
        %v7194 = vsub.f32 %v6620, %v7034
        %v7195 = vsub.f32 %v6621, %v7035
        %v7196 = vsub.f32 %v6622, %v7036
        %v7197 = vsub.f32 %v6623, %v7037
        %v7198 = vsub.f32 %v6624, %v7038
        %v7199 = vsub.f32 %v6625, %v7039
        %v7200 = vsub.f32 %v6626, %v7040
        %v7201 = vsub.f32 %v6627, %v7041
        %v7202 = vsub.f32 %v6628, %v7042
        %v7203 = vsub.f32 %v6629, %v7043
        %v7204 = vsub.f32 %v6630, %v7044
        %v7205 = vsub.f32 %v6631, %v7045
        %v7206 = vsub.f32 %v6632, %v7046
        %v7207 = vsub.f32 %v6633, %v7047
        %v7208 = vsub.f32 %v6634, %v7048
        %v7209 = vsub.f32 %v6635, %v7049
        %v7210 = vmul.f32 %v7050, %v7050
        %v7211 = vmul.f32 %v7051, %v7051
        %v7212 = vmul.f32 %v7052, %v7052
        %v7213 = vmul.f32 %v7053, %v7053
        %v7214 = vmul.f32 %v7054, %v7054
        %v7215 = vmul.f32 %v7055, %v7055
        %v7216 = vmul.f32 %v7056, %v7056
        %v7217 = vmul.f32 %v7057, %v7057
        %v7218 = vmul.f32 %v7058, %v7058
        %v7219 = vmul.f32 %v7059, %v7059
        %v7220 = vmul.f32 %v7060, %v7060
        %v7221 = vmul.f32 %v7061, %v7061
        %v7222 = vmul.f32 %v7062, %v7062
        %v7223 = vmul.f32 %v7063, %v7063
        %v7224 = vmul.f32 %v7064, %v7064
        %v7225 = vmul.f32 %v7065, %v7065
        %v7226 = vmul.f32 %v7066, %v7066
        %v7227 = vmul.f32 %v7067, %v7067
        %v7228 = vmul.f32 %v7068, %v7068
        %v7229 = vmul.f32 %v7069, %v7069
        %v7230 = vmul.f32 %v7070, %v7070
        %v7231 = vmul.f32 %v7071, %v7071
        %v7232 = vmul.f32 %v7072, %v7072
        %v7233 = vmul.f32 %v7073, %v7073
        %v7234 = vmul.f32 %v7074, %v7074
        %v7235 = vmul.f32 %v7075, %v7075
        %v7236 = vmul.f32 %v7076, %v7076
        %v7237 = vmul.f32 %v7077, %v7077
        %v7238 = vmul.f32 %v7078, %v7078
        %v7239 = vmul.f32 %v7079, %v7079
        %v7240 = vmul.f32 %v7080, %v7080
        %v7241 = vmul.f32 %v7081, %v7081
        %v7242 = vmul.f32 %v7082, %v7082
        %v7243 = vmul.f32 %v7083, %v7083
        %v7244 = vmul.f32 %v7084, %v7084
        %v7245 = vmul.f32 %v7085, %v7085
        %v7246 = vmul.f32 %v7086, %v7086
        %v7247 = vmul.f32 %v7087, %v7087
        %v7248 = vmul.f32 %v7088, %v7088
        %v7249 = vmul.f32 %v7089, %v7089
        %v7250 = vmul.f32 %v7090, %v7090
        %v7251 = vmul.f32 %v7091, %v7091
        %v7252 = vmul.f32 %v7092, %v7092
        %v7253 = vmul.f32 %v7093, %v7093
        %v7254 = vmul.f32 %v7094, %v7094
        %v7255 = vmul.f32 %v7095, %v7095
        %v7256 = vmul.f32 %v7096, %v7096
        %v7257 = vmul.f32 %v7097, %v7097
        %v7258 = vmul.f32 %v7098, %v7098
        %v7259 = vmul.f32 %v7099, %v7099
        %v7260 = vmul.f32 %v7100, %v7100
        %v7261 = vmul.f32 %v7101, %v7101
        %v7262 = vmul.f32 %v7102, %v7102
        %v7263 = vmul.f32 %v7103, %v7103
        %v7264 = vmul.f32 %v7104, %v7104
        %v7265 = vmul.f32 %v7105, %v7105
        %v7266 = vmul.f32 %v7106, %v7106
        %v7267 = vmul.f32 %v7107, %v7107
        %v7268 = vmul.f32 %v7108, %v7108
        %v7269 = vmul.f32 %v7109, %v7109
        %v7270 = vmul.f32 %v7110, %v7110
        %v7271 = vmul.f32 %v7111, %v7111
        %v7272 = vmul.f32 %v7112, %v7112
        %v7273 = vmul.f32 %v7113, %v7113
        %v7274 = vmul.f32 %v7114, %v7114
        %v7275 = vmul.f32 %v7115, %v7115
        %v7276 = vmul.f32 %v7116, %v7116
        %v7277 = vmul.f32 %v7117, %v7117
        %v7278 = vmul.f32 %v7118, %v7118
        %v7279 = vmul.f32 %v7119, %v7119
        %v7280 = vmul.f32 %v7120, %v7120
        %v7281 = vmul.f32 %v7121, %v7121
        %v7282 = vmul.f32 %v7122, %v7122
        %v7283 = vmul.f32 %v7123, %v7123
        %v7284 = vmul.f32 %v7124, %v7124
        %v7285 = vmul.f32 %v7125, %v7125
        %v7286 = vmul.f32 %v7126, %v7126
        %v7287 = vmul.f32 %v7127, %v7127
        %v7288 = vmul.f32 %v7128, %v7128
        %v7289 = vmul.f32 %v7129, %v7129
        %v7290 = vmul.f32 %v7130, %v7130
        %v7291 = vmul.f32 %v7131, %v7131
        %v7292 = vmul.f32 %v7132, %v7132
        %v7293 = vmul.f32 %v7133, %v7133
        %v7294 = vmul.f32 %v7134, %v7134
        %v7295 = vmul.f32 %v7135, %v7135
        %v7296 = vmul.f32 %v7136, %v7136
        %v7297 = vmul.f32 %v7137, %v7137
        %v7298 = vmul.f32 %v7138, %v7138
        %v7299 = vmul.f32 %v7139, %v7139
        %v7300 = vmul.f32 %v7140, %v7140
        %v7301 = vmul.f32 %v7141, %v7141
        %v7302 = vmul.f32 %v7142, %v7142
        %v7303 = vmul.f32 %v7143, %v7143
        %v7304 = vmul.f32 %v7144, %v7144
        %v7305 = vmul.f32 %v7145, %v7145
        %v7306 = vmul.f32 %v7146, %v7146
        %v7307 = vmul.f32 %v7147, %v7147
        %v7308 = vmul.f32 %v7148, %v7148
        %v7309 = vmul.f32 %v7149, %v7149
        %v7310 = vmul.f32 %v7150, %v7150
        %v7311 = vmul.f32 %v7151, %v7151
        %v7312 = vmul.f32 %v7152, %v7152
        %v7313 = vmul.f32 %v7153, %v7153
        %v7314 = vmul.f32 %v7154, %v7154
        %v7315 = vmul.f32 %v7155, %v7155
        %v7316 = vmul.f32 %v7156, %v7156
        %v7317 = vmul.f32 %v7157, %v7157
        %v7318 = vmul.f32 %v7158, %v7158
        %v7319 = vmul.f32 %v7159, %v7159
        %v7320 = vmul.f32 %v7160, %v7160
        %v7321 = vmul.f32 %v7161, %v7161
        %v7322 = vmul.f32 %v7162, %v7162
        %v7323 = vmul.f32 %v7163, %v7163
        %v7324 = vmul.f32 %v7164, %v7164
        %v7325 = vmul.f32 %v7165, %v7165
        %v7326 = vmul.f32 %v7166, %v7166
        %v7327 = vmul.f32 %v7167, %v7167
        %v7328 = vmul.f32 %v7168, %v7168
        %v7329 = vmul.f32 %v7169, %v7169
        %v7330 = vmul.f32 %v7170, %v7170
        %v7331 = vmul.f32 %v7171, %v7171
        %v7332 = vmul.f32 %v7172, %v7172
        %v7333 = vmul.f32 %v7173, %v7173
        %v7334 = vmul.f32 %v7174, %v7174
        %v7335 = vmul.f32 %v7175, %v7175
        %v7336 = vmul.f32 %v7176, %v7176
        %v7337 = vmul.f32 %v7177, %v7177
        %v7338 = vmul.f32 %v7178, %v7178
        %v7339 = vmul.f32 %v7179, %v7179
        %v7340 = vmul.f32 %v7180, %v7180
        %v7341 = vmul.f32 %v7181, %v7181
        %v7342 = vmul.f32 %v7182, %v7182
        %v7343 = vmul.f32 %v7183, %v7183
        %v7344 = vmul.f32 %v7184, %v7184
        %v7345 = vmul.f32 %v7185, %v7185
        %v7346 = vmul.f32 %v7186, %v7186
        %v7347 = vmul.f32 %v7187, %v7187
        %v7348 = vmul.f32 %v7188, %v7188
        %v7349 = vmul.f32 %v7189, %v7189
        %v7350 = vmul.f32 %v7190, %v7190
        %v7351 = vmul.f32 %v7191, %v7191
        %v7352 = vmul.f32 %v7192, %v7192
        %v7353 = vmul.f32 %v7193, %v7193
        %v7354 = vmul.f32 %v7194, %v7194
        %v7355 = vmul.f32 %v7195, %v7195
        %v7356 = vmul.f32 %v7196, %v7196
        %v7357 = vmul.f32 %v7197, %v7197
        %v7358 = vmul.f32 %v7198, %v7198
        %v7359 = vmul.f32 %v7199, %v7199
        %v7360 = vmul.f32 %v7200, %v7200
        %v7361 = vmul.f32 %v7201, %v7201
        %v7362 = vmul.f32 %v7202, %v7202
        %v7363 = vmul.f32 %v7203, %v7203
        %v7364 = vmul.f32 %v7204, %v7204
        %v7365 = vmul.f32 %v7205, %v7205
        %v7366 = vmul.f32 %v7206, %v7206
        %v7367 = vmul.f32 %v7207, %v7207
        %v7368 = vmul.f32 %v7208, %v7208
        %v7369 = vmul.f32 %v7209, %v7209
        %v7370 = vadd.f32 %v7210, %v7211
        %v7371 = vadd.f32 %v7370, %v7212
        %v7372 = vadd.f32 %v7371, %v7213
        %v7373 = vadd.f32 %v7372, %v7214
        %7374 = vadd.xlane.f32.xlu0 %v7373
        %v7375 = vpop.xlane.xlu0 %7374
        %v7376 = vadd.f32 %v7215, %v7216
        %v7377 = vadd.f32 %v7376, %v7217
        %v7378 = vadd.f32 %v7377, %v7218
        %v7379 = vadd.f32 %v7378, %v7219
        %7380 = vadd.xlane.f32.xlu0 %v7379
        %v7381 = vpop.xlane.xlu0 %7380
        %v7382 = vadd.f32 %v7220, %v7221
        %v7383 = vadd.f32 %v7382, %v7222
        %v7384 = vadd.f32 %v7383, %v7223
        %v7385 = vadd.f32 %v7384, %v7224
        %7386 = vadd.xlane.f32.xlu0 %v7385
        %v7387 = vpop.xlane.xlu0 %7386
        %v7388 = vadd.f32 %v7225, %v7226
        %v7389 = vadd.f32 %v7388, %v7227
        %v7390 = vadd.f32 %v7389, %v7228
        %v7391 = vadd.f32 %v7390, %v7229
        %7392 = vadd.xlane.f32.xlu0 %v7391
        %v7393 = vpop.xlane.xlu0 %7392
        %v7394 = vadd.f32 %v7230, %v7231
        %v7395 = vadd.f32 %v7394, %v7232
        %v7396 = vadd.f32 %v7395, %v7233
        %v7397 = vadd.f32 %v7396, %v7234
        %7398 = vadd.xlane.f32.xlu0 %v7397
        %v7399 = vpop.xlane.xlu0 %7398
        %v7400 = vadd.f32 %v7235, %v7236
        %v7401 = vadd.f32 %v7400, %v7237
        %v7402 = vadd.f32 %v7401, %v7238
        %v7403 = vadd.f32 %v7402, %v7239
        %7404 = vadd.xlane.f32.xlu0 %v7403
        %v7405 = vpop.xlane.xlu0 %7404
        %v7406 = vadd.f32 %v7240, %v7241
        %v7407 = vadd.f32 %v7406, %v7242
        %v7408 = vadd.f32 %v7407, %v7243
        %v7409 = vadd.f32 %v7408, %v7244
        %7410 = vadd.xlane.f32.xlu0 %v7409
        %v7411 = vpop.xlane.xlu0 %7410
        %v7412 = vadd.f32 %v7245, %v7246
        %v7413 = vadd.f32 %v7412, %v7247
        %v7414 = vadd.f32 %v7413, %v7248
        %v7415 = vadd.f32 %v7414, %v7249
        %7416 = vadd.xlane.f32.xlu0 %v7415
        %v7417 = vpop.xlane.xlu0 %7416
        %v7418 = vadd.f32 %v7250, %v7251
        %v7419 = vadd.f32 %v7418, %v7252
        %v7420 = vadd.f32 %v7419, %v7253
        %v7421 = vadd.f32 %v7420, %v7254
        %7422 = vadd.xlane.f32.xlu0 %v7421
        %v7423 = vpop.xlane.xlu0 %7422
        %v7424 = vadd.f32 %v7255, %v7256
        %v7425 = vadd.f32 %v7424, %v7257
        %v7426 = vadd.f32 %v7425, %v7258
        %v7427 = vadd.f32 %v7426, %v7259
        %7428 = vadd.xlane.f32.xlu0 %v7427
        %v7429 = vpop.xlane.xlu0 %7428
        %v7430 = vadd.f32 %v7260, %v7261
        %v7431 = vadd.f32 %v7430, %v7262
        %v7432 = vadd.f32 %v7431, %v7263
        %v7433 = vadd.f32 %v7432, %v7264
        %7434 = vadd.xlane.f32.xlu0 %v7433
        %v7435 = vpop.xlane.xlu0 %7434
        %v7436 = vadd.f32 %v7265, %v7266
        %v7437 = vadd.f32 %v7436, %v7267
        %v7438 = vadd.f32 %v7437, %v7268
        %v7439 = vadd.f32 %v7438, %v7269
        %7440 = vadd.xlane.f32.xlu0 %v7439
        %v7441 = vpop.xlane.xlu0 %7440
        %v7442 = vadd.f32 %v7270, %v7271
        %v7443 = vadd.f32 %v7442, %v7272
        %v7444 = vadd.f32 %v7443, %v7273
        %v7445 = vadd.f32 %v7444, %v7274
        %7446 = vadd.xlane.f32.xlu0 %v7445
        %v7447 = vpop.xlane.xlu0 %7446
        %v7448 = vadd.f32 %v7275, %v7276
        %v7449 = vadd.f32 %v7448, %v7277
        %v7450 = vadd.f32 %v7449, %v7278
        %v7451 = vadd.f32 %v7450, %v7279
        %7452 = vadd.xlane.f32.xlu0 %v7451
        %v7453 = vpop.xlane.xlu0 %7452
        %v7454 = vadd.f32 %v7280, %v7281
        %v7455 = vadd.f32 %v7454, %v7282
        %v7456 = vadd.f32 %v7455, %v7283
        %v7457 = vadd.f32 %v7456, %v7284
        %7458 = vadd.xlane.f32.xlu0 %v7457
        %v7459 = vpop.xlane.xlu0 %7458
        %v7460 = vadd.f32 %v7285, %v7286
        %v7461 = vadd.f32 %v7460, %v7287
        %v7462 = vadd.f32 %v7461, %v7288
        %v7463 = vadd.f32 %v7462, %v7289
        %7464 = vadd.xlane.f32.xlu0 %v7463
        %v7465 = vpop.xlane.xlu0 %7464
        %v7466 = vadd.f32 %v7290, %v7291
        %v7467 = vadd.f32 %v7466, %v7292
        %v7468 = vadd.f32 %v7467, %v7293
        %v7469 = vadd.f32 %v7468, %v7294
        %7470 = vadd.xlane.f32.xlu0 %v7469
        %v7471 = vpop.xlane.xlu0 %7470
        %v7472 = vadd.f32 %v7295, %v7296
        %v7473 = vadd.f32 %v7472, %v7297
        %v7474 = vadd.f32 %v7473, %v7298
        %v7475 = vadd.f32 %v7474, %v7299
        %7476 = vadd.xlane.f32.xlu0 %v7475
        %v7477 = vpop.xlane.xlu0 %7476
        %v7478 = vadd.f32 %v7300, %v7301
        %v7479 = vadd.f32 %v7478, %v7302
        %v7480 = vadd.f32 %v7479, %v7303
        %v7481 = vadd.f32 %v7480, %v7304
        %7482 = vadd.xlane.f32.xlu0 %v7481
        %v7483 = vpop.xlane.xlu0 %7482
        %v7484 = vadd.f32 %v7305, %v7306
        %v7485 = vadd.f32 %v7484, %v7307
        %v7486 = vadd.f32 %v7485, %v7308
        %v7487 = vadd.f32 %v7486, %v7309
        %7488 = vadd.xlane.f32.xlu0 %v7487
        %v7489 = vpop.xlane.xlu0 %7488
        %v7490 = vadd.f32 %v7310, %v7311
        %v7491 = vadd.f32 %v7490, %v7312
        %v7492 = vadd.f32 %v7491, %v7313
        %v7493 = vadd.f32 %v7492, %v7314
        %7494 = vadd.xlane.f32.xlu0 %v7493
        %v7495 = vpop.xlane.xlu0 %7494
        %v7496 = vadd.f32 %v7315, %v7316
        %v7497 = vadd.f32 %v7496, %v7317
        %v7498 = vadd.f32 %v7497, %v7318
        %v7499 = vadd.f32 %v7498, %v7319
        %7500 = vadd.xlane.f32.xlu0 %v7499
        %v7501 = vpop.xlane.xlu0 %7500
        %v7502 = vadd.f32 %v7320, %v7321
        %v7503 = vadd.f32 %v7502, %v7322
        %v7504 = vadd.f32 %v7503, %v7323
        %v7505 = vadd.f32 %v7504, %v7324
        %7506 = vadd.xlane.f32.xlu0 %v7505
        %v7507 = vpop.xlane.xlu0 %7506
        %v7508 = vadd.f32 %v7325, %v7326
        %v7509 = vadd.f32 %v7508, %v7327
        %v7510 = vadd.f32 %v7509, %v7328
        %v7511 = vadd.f32 %v7510, %v7329
        %7512 = vadd.xlane.f32.xlu0 %v7511
        %v7513 = vpop.xlane.xlu0 %7512
        %v7514 = vadd.f32 %v7330, %v7331
        %v7515 = vadd.f32 %v7514, %v7332
        %v7516 = vadd.f32 %v7515, %v7333
        %v7517 = vadd.f32 %v7516, %v7334
        %7518 = vadd.xlane.f32.xlu0 %v7517
        %v7519 = vpop.xlane.xlu0 %7518
        %v7520 = vadd.f32 %v7335, %v7336
        %v7521 = vadd.f32 %v7520, %v7337
        %v7522 = vadd.f32 %v7521, %v7338
        %v7523 = vadd.f32 %v7522, %v7339
        %7524 = vadd.xlane.f32.xlu0 %v7523
        %v7525 = vpop.xlane.xlu0 %7524
        %v7526 = vadd.f32 %v7340, %v7341
        %v7527 = vadd.f32 %v7526, %v7342
        %v7528 = vadd.f32 %v7527, %v7343
        %v7529 = vadd.f32 %v7528, %v7344
        %7530 = vadd.xlane.f32.xlu0 %v7529
        %v7531 = vpop.xlane.xlu0 %7530
        %v7532 = vadd.f32 %v7345, %v7346
        %v7533 = vadd.f32 %v7532, %v7347
        %v7534 = vadd.f32 %v7533, %v7348
        %v7535 = vadd.f32 %v7534, %v7349
        %7536 = vadd.xlane.f32.xlu0 %v7535
        %v7537 = vpop.xlane.xlu0 %7536
        %v7538 = vadd.f32 %v7350, %v7351
        %v7539 = vadd.f32 %v7538, %v7352
        %v7540 = vadd.f32 %v7539, %v7353
        %v7541 = vadd.f32 %v7540, %v7354
        %7542 = vadd.xlane.f32.xlu0 %v7541
        %v7543 = vpop.xlane.xlu0 %7542
        %v7544 = vadd.f32 %v7355, %v7356
        %v7545 = vadd.f32 %v7544, %v7357
        %v7546 = vadd.f32 %v7545, %v7358
        %v7547 = vadd.f32 %v7546, %v7359
        %7548 = vadd.xlane.f32.xlu0 %v7547
        %v7549 = vpop.xlane.xlu0 %7548
        %v7550 = vadd.f32 %v7360, %v7361
        %v7551 = vadd.f32 %v7550, %v7362
        %v7552 = vadd.f32 %v7551, %v7363
        %v7553 = vadd.f32 %v7552, %v7364
        %7554 = vadd.xlane.f32.xlu0 %v7553
        %v7555 = vpop.xlane.xlu0 %7554
        %v7556 = vadd.f32 %v7365, %v7366
        %v7557 = vadd.f32 %v7556, %v7367
        %v7558 = vadd.f32 %v7557, %v7368
        %v7559 = vadd.f32 %v7558, %v7369
        %7560 = vadd.xlane.f32.xlu0 %v7559
        %v7561 = vpop.xlane.xlu0 %7560
        %v7562 = vmul.f32 %v7375, 0.0019646366
        %v7563 = vmul.f32 %v7381, 0.0019646366
        %v7564 = vmul.f32 %v7387, 0.0019646366
        %v7565 = vmul.f32 %v7393, 0.0019646366
        %v7566 = vmul.f32 %v7399, 0.0019646366
        %v7567 = vmul.f32 %v7405, 0.0019646366
        %v7568 = vmul.f32 %v7411, 0.0019646366
        %v7569 = vmul.f32 %v7417, 0.0019646366
        %v7570 = vmul.f32 %v7423, 0.0019646366
        %v7571 = vmul.f32 %v7429, 0.0019646366
        %v7572 = vmul.f32 %v7435, 0.0019646366
        %v7573 = vmul.f32 %v7441, 0.0019646366
        %v7574 = vmul.f32 %v7447, 0.0019646366
        %v7575 = vmul.f32 %v7453, 0.0019646366
        %v7576 = vmul.f32 %v7459, 0.0019646366
        %v7577 = vmul.f32 %v7465, 0.0019646366
        %v7578 = vmul.f32 %v7471, 0.0019646366
        %v7579 = vmul.f32 %v7477, 0.0019646366
        %v7580 = vmul.f32 %v7483, 0.0019646366
        %v7581 = vmul.f32 %v7489, 0.0019646366
        %v7582 = vmul.f32 %v7495, 0.0019646366
        %v7583 = vmul.f32 %v7501, 0.0019646366
        %v7584 = vmul.f32 %v7507, 0.0019646366
        %v7585 = vmul.f32 %v7513, 0.0019646366
        %v7586 = vmul.f32 %v7519, 0.0019646366
        %v7587 = vmul.f32 %v7525, 0.0019646366
        %v7588 = vmul.f32 %v7531, 0.0019646366
        %v7589 = vmul.f32 %v7537, 0.0019646366
        %v7590 = vmul.f32 %v7543, 0.0019646366
        %v7591 = vmul.f32 %v7549, 0.0019646366
        %v7592 = vmul.f32 %v7555, 0.0019646366
        %v7593 = vmul.f32 %v7561, 0.0019646366
        %v7594 = vrsqrt.pop %v7562
        %v7595 = vmul.f32 %v7562, %v7594
        %vm7596 = vcmp.eq.f32.partialorder %v7562, inf
        %v7597 = vsel %vm7596, %v7562, %v7595
        %vm7598 = vcmp.eq.f32.partialorder %v7562, 0.0
        %v7599 = vand.u32 %v7562, 2147483648
        %v7600 = vsel %vm7598, %v7599, %v7597
        %v7601 = vrsqrt.pop %v7563
        %v7602 = vmul.f32 %v7563, %v7601
        %vm7603 = vcmp.eq.f32.partialorder %v7563, inf
        %v7604 = vsel %vm7603, %v7563, %v7602
        %vm7605 = vcmp.eq.f32.partialorder %v7563, 0.0
        %v7606 = vand.u32 %v7563, 2147483648
        %v7607 = vsel %vm7605, %v7606, %v7604
        %v7608 = vrsqrt.pop %v7564
        %v7609 = vmul.f32 %v7564, %v7608
        %vm7610 = vcmp.eq.f32.partialorder %v7564, inf
        %v7611 = vsel %vm7610, %v7564, %v7609
        %vm7612 = vcmp.eq.f32.partialorder %v7564, 0.0
        %v7613 = vand.u32 %v7564, 2147483648
        %v7614 = vsel %vm7612, %v7613, %v7611
        %v7615 = vrsqrt.pop %v7565
        %v7616 = vmul.f32 %v7565, %v7615
        %vm7617 = vcmp.eq.f32.partialorder %v7565, inf
        %v7618 = vsel %vm7617, %v7565, %v7616
        %vm7619 = vcmp.eq.f32.partialorder %v7565, 0.0
        %v7620 = vand.u32 %v7565, 2147483648
        %v7621 = vsel %vm7619, %v7620, %v7618
        %v7622 = vrsqrt.pop %v7566
        %v7623 = vmul.f32 %v7566, %v7622
        %vm7624 = vcmp.eq.f32.partialorder %v7566, inf
        %v7625 = vsel %vm7624, %v7566, %v7623
        %vm7626 = vcmp.eq.f32.partialorder %v7566, 0.0
        %v7627 = vand.u32 %v7566, 2147483648
        %v7628 = vsel %vm7626, %v7627, %v7625
        %v7629 = vrsqrt.pop %v7567
        %v7630 = vmul.f32 %v7567, %v7629
        %vm7631 = vcmp.eq.f32.partialorder %v7567, inf
        %v7632 = vsel %vm7631, %v7567, %v7630
        %vm7633 = vcmp.eq.f32.partialorder %v7567, 0.0
        %v7634 = vand.u32 %v7567, 2147483648
        %v7635 = vsel %vm7633, %v7634, %v7632
        %v7636 = vrsqrt.pop %v7568
        %v7637 = vmul.f32 %v7568, %v7636
        %vm7638 = vcmp.eq.f32.partialorder %v7568, inf
        %v7639 = vsel %vm7638, %v7568, %v7637
        %vm7640 = vcmp.eq.f32.partialorder %v7568, 0.0
        %v7641 = vand.u32 %v7568, 2147483648
        %v7642 = vsel %vm7640, %v7641, %v7639
        %v7643 = vrsqrt.pop %v7569
        %v7644 = vmul.f32 %v7569, %v7643
        %vm7645 = vcmp.eq.f32.partialorder %v7569, inf
        %v7646 = vsel %vm7645, %v7569, %v7644
        %vm7647 = vcmp.eq.f32.partialorder %v7569, 0.0
        %v7648 = vand.u32 %v7569, 2147483648
        %v7649 = vsel %vm7647, %v7648, %v7646
        %v7650 = vrsqrt.pop %v7570
        %v7651 = vmul.f32 %v7570, %v7650
        %vm7652 = vcmp.eq.f32.partialorder %v7570, inf
        %v7653 = vsel %vm7652, %v7570, %v7651
        %vm7654 = vcmp.eq.f32.partialorder %v7570, 0.0
        %v7655 = vand.u32 %v7570, 2147483648
        %v7656 = vsel %vm7654, %v7655, %v7653
        %v7657 = vrsqrt.pop %v7571
        %v7658 = vmul.f32 %v7571, %v7657
        %vm7659 = vcmp.eq.f32.partialorder %v7571, inf
        %v7660 = vsel %vm7659, %v7571, %v7658
        %vm7661 = vcmp.eq.f32.partialorder %v7571, 0.0
        %v7662 = vand.u32 %v7571, 2147483648
        %v7663 = vsel %vm7661, %v7662, %v7660
        %v7664 = vrsqrt.pop %v7572
        %v7665 = vmul.f32 %v7572, %v7664
        %vm7666 = vcmp.eq.f32.partialorder %v7572, inf
        %v7667 = vsel %vm7666, %v7572, %v7665
        %vm7668 = vcmp.eq.f32.partialorder %v7572, 0.0
        %v7669 = vand.u32 %v7572, 2147483648
        %v7670 = vsel %vm7668, %v7669, %v7667
        %v7671 = vrsqrt.pop %v7573
        %v7672 = vmul.f32 %v7573, %v7671
        %vm7673 = vcmp.eq.f32.partialorder %v7573, inf
        %v7674 = vsel %vm7673, %v7573, %v7672
        %vm7675 = vcmp.eq.f32.partialorder %v7573, 0.0
        %v7676 = vand.u32 %v7573, 2147483648
        %v7677 = vsel %vm7675, %v7676, %v7674
        %v7678 = vrsqrt.pop %v7574
        %v7679 = vmul.f32 %v7574, %v7678
        %vm7680 = vcmp.eq.f32.partialorder %v7574, inf
        %v7681 = vsel %vm7680, %v7574, %v7679
        %vm7682 = vcmp.eq.f32.partialorder %v7574, 0.0
        %v7683 = vand.u32 %v7574, 2147483648
        %v7684 = vsel %vm7682, %v7683, %v7681
        %v7685 = vrsqrt.pop %v7575
        %v7686 = vmul.f32 %v7575, %v7685
        %vm7687 = vcmp.eq.f32.partialorder %v7575, inf
        %v7688 = vsel %vm7687, %v7575, %v7686
        %vm7689 = vcmp.eq.f32.partialorder %v7575, 0.0
        %v7690 = vand.u32 %v7575, 2147483648
        %v7691 = vsel %vm7689, %v7690, %v7688
        %v7692 = vrsqrt.pop %v7576
        %v7693 = vmul.f32 %v7576, %v7692
        %vm7694 = vcmp.eq.f32.partialorder %v7576, inf
        %v7695 = vsel %vm7694, %v7576, %v7693
        %vm7696 = vcmp.eq.f32.partialorder %v7576, 0.0
        %v7697 = vand.u32 %v7576, 2147483648
        %v7698 = vsel %vm7696, %v7697, %v7695
        %v7699 = vrsqrt.pop %v7577
        %v7700 = vmul.f32 %v7577, %v7699
        %vm7701 = vcmp.eq.f32.partialorder %v7577, inf
        %v7702 = vsel %vm7701, %v7577, %v7700
        %vm7703 = vcmp.eq.f32.partialorder %v7577, 0.0
        %v7704 = vand.u32 %v7577, 2147483648
        %v7705 = vsel %vm7703, %v7704, %v7702
        %v7706 = vrsqrt.pop %v7578
        %v7707 = vmul.f32 %v7578, %v7706
        %vm7708 = vcmp.eq.f32.partialorder %v7578, inf
        %v7709 = vsel %vm7708, %v7578, %v7707
        %vm7710 = vcmp.eq.f32.partialorder %v7578, 0.0
        %v7711 = vand.u32 %v7578, 2147483648
        %v7712 = vsel %vm7710, %v7711, %v7709
        %v7713 = vrsqrt.pop %v7579
        %v7714 = vmul.f32 %v7579, %v7713
        %vm7715 = vcmp.eq.f32.partialorder %v7579, inf
        %v7716 = vsel %vm7715, %v7579, %v7714
        %vm7717 = vcmp.eq.f32.partialorder %v7579, 0.0
        %v7718 = vand.u32 %v7579, 2147483648
        %v7719 = vsel %vm7717, %v7718, %v7716
        %v7720 = vrsqrt.pop %v7580
        %v7721 = vmul.f32 %v7580, %v7720
        %vm7722 = vcmp.eq.f32.partialorder %v7580, inf
        %v7723 = vsel %vm7722, %v7580, %v7721
        %vm7724 = vcmp.eq.f32.partialorder %v7580, 0.0
        %v7725 = vand.u32 %v7580, 2147483648
        %v7726 = vsel %vm7724, %v7725, %v7723
        %v7727 = vrsqrt.pop %v7581
        %v7728 = vmul.f32 %v7581, %v7727
        %vm7729 = vcmp.eq.f32.partialorder %v7581, inf
        %v7730 = vsel %vm7729, %v7581, %v7728
        %vm7731 = vcmp.eq.f32.partialorder %v7581, 0.0
        %v7732 = vand.u32 %v7581, 2147483648
        %v7733 = vsel %vm7731, %v7732, %v7730
        %v7734 = vrsqrt.pop %v7582
        %v7735 = vmul.f32 %v7582, %v7734
        %vm7736 = vcmp.eq.f32.partialorder %v7582, inf
        %v7737 = vsel %vm7736, %v7582, %v7735
        %vm7738 = vcmp.eq.f32.partialorder %v7582, 0.0
        %v7739 = vand.u32 %v7582, 2147483648
        %v7740 = vsel %vm7738, %v7739, %v7737
        %v7741 = vrsqrt.pop %v7583
        %v7742 = vmul.f32 %v7583, %v7741
        %vm7743 = vcmp.eq.f32.partialorder %v7583, inf
        %v7744 = vsel %vm7743, %v7583, %v7742
        %vm7745 = vcmp.eq.f32.partialorder %v7583, 0.0
        %v7746 = vand.u32 %v7583, 2147483648
        %v7747 = vsel %vm7745, %v7746, %v7744
        %v7748 = vrsqrt.pop %v7584
        %v7749 = vmul.f32 %v7584, %v7748
        %vm7750 = vcmp.eq.f32.partialorder %v7584, inf
        %v7751 = vsel %vm7750, %v7584, %v7749
        %vm7752 = vcmp.eq.f32.partialorder %v7584, 0.0
        %v7753 = vand.u32 %v7584, 2147483648
        %v7754 = vsel %vm7752, %v7753, %v7751
        %v7755 = vrsqrt.pop %v7585
        %v7756 = vmul.f32 %v7585, %v7755
        %vm7757 = vcmp.eq.f32.partialorder %v7585, inf
        %v7758 = vsel %vm7757, %v7585, %v7756
        %vm7759 = vcmp.eq.f32.partialorder %v7585, 0.0
        %v7760 = vand.u32 %v7585, 2147483648
        %v7761 = vsel %vm7759, %v7760, %v7758
        %v7762 = vrsqrt.pop %v7586
        %v7763 = vmul.f32 %v7586, %v7762
        %vm7764 = vcmp.eq.f32.partialorder %v7586, inf
        %v7765 = vsel %vm7764, %v7586, %v7763
        %vm7766 = vcmp.eq.f32.partialorder %v7586, 0.0
        %v7767 = vand.u32 %v7586, 2147483648
        %v7768 = vsel %vm7766, %v7767, %v7765
        %v7769 = vrsqrt.pop %v7587
        %v7770 = vmul.f32 %v7587, %v7769
        %vm7771 = vcmp.eq.f32.partialorder %v7587, inf
        %v7772 = vsel %vm7771, %v7587, %v7770
        %vm7773 = vcmp.eq.f32.partialorder %v7587, 0.0
        %v7774 = vand.u32 %v7587, 2147483648
        %v7775 = vsel %vm7773, %v7774, %v7772
        %v7776 = vrsqrt.pop %v7588
        %v7777 = vmul.f32 %v7588, %v7776
        %vm7778 = vcmp.eq.f32.partialorder %v7588, inf
        %v7779 = vsel %vm7778, %v7588, %v7777
        %vm7780 = vcmp.eq.f32.partialorder %v7588, 0.0
        %v7781 = vand.u32 %v7588, 2147483648
        %v7782 = vsel %vm7780, %v7781, %v7779
        %v7783 = vrsqrt.pop %v7589
        %v7784 = vmul.f32 %v7589, %v7783
        %vm7785 = vcmp.eq.f32.partialorder %v7589, inf
        %v7786 = vsel %vm7785, %v7589, %v7784
        %vm7787 = vcmp.eq.f32.partialorder %v7589, 0.0
        %v7788 = vand.u32 %v7589, 2147483648
        %v7789 = vsel %vm7787, %v7788, %v7786
        %v7790 = vrsqrt.pop %v7590
        %v7791 = vmul.f32 %v7590, %v7790
        %vm7792 = vcmp.eq.f32.partialorder %v7590, inf
        %v7793 = vsel %vm7792, %v7590, %v7791
        %vm7794 = vcmp.eq.f32.partialorder %v7590, 0.0
        %v7795 = vand.u32 %v7590, 2147483648
        %v7796 = vsel %vm7794, %v7795, %v7793
        %v7797 = vrsqrt.pop %v7591
        %v7798 = vmul.f32 %v7591, %v7797
        %vm7799 = vcmp.eq.f32.partialorder %v7591, inf
        %v7800 = vsel %vm7799, %v7591, %v7798
        %vm7801 = vcmp.eq.f32.partialorder %v7591, 0.0
        %v7802 = vand.u32 %v7591, 2147483648
        %v7803 = vsel %vm7801, %v7802, %v7800
        %v7804 = vrsqrt.pop %v7592
        %v7805 = vmul.f32 %v7592, %v7804
        %vm7806 = vcmp.eq.f32.partialorder %v7592, inf
        %v7807 = vsel %vm7806, %v7592, %v7805
        %vm7808 = vcmp.eq.f32.partialorder %v7592, 0.0
        %v7809 = vand.u32 %v7592, 2147483648
        %v7810 = vsel %vm7808, %v7809, %v7807
        %v7811 = vrsqrt.pop %v7593
        %v7812 = vmul.f32 %v7593, %v7811
        %vm7813 = vcmp.eq.f32.partialorder %v7593, inf
        %v7814 = vsel %vm7813, %v7593, %v7812
        %vm7815 = vcmp.eq.f32.partialorder %v7593, 0.0
        %v7816 = vand.u32 %v7593, 2147483648
        %v7817 = vsel %vm7815, %v7816, %v7814
        %v7818 = vadd.f32 %v7600, 1e-06
        %v7819 = vadd.f32 %v7607, 1e-06
        %v7820 = vadd.f32 %v7614, 1e-06
        %v7821 = vadd.f32 %v7621, 1e-06
        %v7822 = vadd.f32 %v7628, 1e-06
        %v7823 = vadd.f32 %v7635, 1e-06
        %v7824 = vadd.f32 %v7642, 1e-06
        %v7825 = vadd.f32 %v7649, 1e-06
        %v7826 = vadd.f32 %v7656, 1e-06
        %v7827 = vadd.f32 %v7663, 1e-06
        %v7828 = vadd.f32 %v7670, 1e-06
        %v7829 = vadd.f32 %v7677, 1e-06
        %v7830 = vadd.f32 %v7684, 1e-06
        %v7831 = vadd.f32 %v7691, 1e-06
        %v7832 = vadd.f32 %v7698, 1e-06
        %v7833 = vadd.f32 %v7705, 1e-06
        %v7834 = vadd.f32 %v7712, 1e-06
        %v7835 = vadd.f32 %v7719, 1e-06
        %v7836 = vadd.f32 %v7726, 1e-06
        %v7837 = vadd.f32 %v7733, 1e-06
        %v7838 = vadd.f32 %v7740, 1e-06
        %v7839 = vadd.f32 %v7747, 1e-06
        %v7840 = vadd.f32 %v7754, 1e-06
        %v7841 = vadd.f32 %v7761, 1e-06
        %v7842 = vadd.f32 %v7768, 1e-06
        %v7843 = vadd.f32 %v7775, 1e-06
        %v7844 = vadd.f32 %v7782, 1e-06
        %v7845 = vadd.f32 %v7789, 1e-06
        %v7846 = vadd.f32 %v7796, 1e-06
        %v7847 = vadd.f32 %v7803, 1e-06
        %v7848 = vadd.f32 %v7810, 1e-06
        %v7849 = vadd.f32 %v7817, 1e-06
        %v7850 = vrcp.pop %v7818
        %v7851 = vmul.f32 1.0, %v7850
        %v7852 = vrcp.pop %v7819
        %v7853 = vmul.f32 1.0, %v7852
        %v7854 = vrcp.pop %v7820
        %v7855 = vmul.f32 1.0, %v7854
        %v7856 = vrcp.pop %v7821
        %v7857 = vmul.f32 1.0, %v7856
        %v7858 = vrcp.pop %v7822
        %v7859 = vmul.f32 1.0, %v7858
        %v7860 = vrcp.pop %v7823
        %v7861 = vmul.f32 1.0, %v7860
        %v7862 = vrcp.pop %v7824
        %v7863 = vmul.f32 1.0, %v7862
        %v7864 = vrcp.pop %v7825
        %v7865 = vmul.f32 1.0, %v7864
        %v7866 = vrcp.pop %v7826
        %v7867 = vmul.f32 1.0, %v7866
        %v7868 = vrcp.pop %v7827
        %v7869 = vmul.f32 1.0, %v7868
        %v7870 = vrcp.pop %v7828
        %v7871 = vmul.f32 1.0, %v7870
        %v7872 = vrcp.pop %v7829
        %v7873 = vmul.f32 1.0, %v7872
        %v7874 = vrcp.pop %v7830
        %v7875 = vmul.f32 1.0, %v7874
        %v7876 = vrcp.pop %v7831
        %v7877 = vmul.f32 1.0, %v7876
        %v7878 = vrcp.pop %v7832
        %v7879 = vmul.f32 1.0, %v7878
        %v7880 = vrcp.pop %v7833
        %v7881 = vmul.f32 1.0, %v7880
        %v7882 = vrcp.pop %v7834
        %v7883 = vmul.f32 1.0, %v7882
        %v7884 = vrcp.pop %v7835
        %v7885 = vmul.f32 1.0, %v7884
        %v7886 = vrcp.pop %v7836
        %v7887 = vmul.f32 1.0, %v7886
        %v7888 = vrcp.pop %v7837
        %v7889 = vmul.f32 1.0, %v7888
        %v7890 = vrcp.pop %v7838
        %v7891 = vmul.f32 1.0, %v7890
        %v7892 = vrcp.pop %v7839
        %v7893 = vmul.f32 1.0, %v7892
        %v7894 = vrcp.pop %v7840
        %v7895 = vmul.f32 1.0, %v7894
        %v7896 = vrcp.pop %v7841
        %v7897 = vmul.f32 1.0, %v7896
        %v7898 = vrcp.pop %v7842
        %v7899 = vmul.f32 1.0, %v7898
        %v7900 = vrcp.pop %v7843
        %v7901 = vmul.f32 1.0, %v7900
        %v7902 = vrcp.pop %v7844
        %v7903 = vmul.f32 1.0, %v7902
        %v7904 = vrcp.pop %v7845
        %v7905 = vmul.f32 1.0, %v7904
        %v7906 = vrcp.pop %v7846
        %v7907 = vmul.f32 1.0, %v7906
        %v7908 = vrcp.pop %v7847
        %v7909 = vmul.f32 1.0, %v7908
        %v7910 = vrcp.pop %v7848
        %v7911 = vmul.f32 1.0, %v7910
        %v7912 = vrcp.pop %v7849
        %v7913 = vmul.f32 1.0, %v7912
        %v7914 = vpack.c.bf16 %v7055, %v7050
        %v7915 = vpack.c.bf16 %v7056, %v7051
        %v7916 = vpack.c.bf16 %v7057, %v7052
        %v7917 = vpack.c.bf16 %v7058, %v7053
        %v7918 = vpack.c.bf16 %v7059, %v7054
        %v7919 = vpack.c.bf16 %v7065, %v7060
        %v7920 = vpack.c.bf16 %v7066, %v7061
        %v7921 = vpack.c.bf16 %v7067, %v7062
        %v7922 = vpack.c.bf16 %v7068, %v7063
        %v7923 = vpack.c.bf16 %v7069, %v7064
        %v7924 = vpack.c.bf16 %v7075, %v7070
        %v7925 = vpack.c.bf16 %v7076, %v7071
        %v7926 = vpack.c.bf16 %v7077, %v7072
        %v7927 = vpack.c.bf16 %v7078, %v7073
        %v7928 = vpack.c.bf16 %v7079, %v7074
        %v7929 = vpack.c.bf16 %v7085, %v7080
        %v7930 = vpack.c.bf16 %v7086, %v7081
        %v7931 = vpack.c.bf16 %v7087, %v7082
        %v7932 = vpack.c.bf16 %v7088, %v7083
        %v7933 = vpack.c.bf16 %v7089, %v7084
        %v7934 = vpack.c.bf16 %v7095, %v7090
        %v7935 = vpack.c.bf16 %v7096, %v7091
        %v7936 = vpack.c.bf16 %v7097, %v7092
        %v7937 = vpack.c.bf16 %v7098, %v7093
        %v7938 = vpack.c.bf16 %v7099, %v7094
        %v7939 = vpack.c.bf16 %v7105, %v7100
        %v7940 = vpack.c.bf16 %v7106, %v7101
        %v7941 = vpack.c.bf16 %v7107, %v7102
        %v7942 = vpack.c.bf16 %v7108, %v7103
        %v7943 = vpack.c.bf16 %v7109, %v7104
        %v7944 = vpack.c.bf16 %v7115, %v7110
        %v7945 = vpack.c.bf16 %v7116, %v7111
        %v7946 = vpack.c.bf16 %v7117, %v7112
        %v7947 = vpack.c.bf16 %v7118, %v7113
        %v7948 = vpack.c.bf16 %v7119, %v7114
        %v7949 = vpack.c.bf16 %v7125, %v7120
        %v7950 = vpack.c.bf16 %v7126, %v7121
        %v7951 = vpack.c.bf16 %v7127, %v7122
        %v7952 = vpack.c.bf16 %v7128, %v7123
        %v7953 = vpack.c.bf16 %v7129, %v7124
        %v7954 = vpack.c.bf16 %v7135, %v7130
        %v7955 = vpack.c.bf16 %v7136, %v7131
        %v7956 = vpack.c.bf16 %v7137, %v7132
        %v7957 = vpack.c.bf16 %v7138, %v7133
        %v7958 = vpack.c.bf16 %v7139, %v7134
        %v7959 = vpack.c.bf16 %v7145, %v7140
        %v7960 = vpack.c.bf16 %v7146, %v7141
        %v7961 = vpack.c.bf16 %v7147, %v7142
        %v7962 = vpack.c.bf16 %v7148, %v7143
        %v7963 = vpack.c.bf16 %v7149, %v7144
        %v7964 = vpack.c.bf16 %v7155, %v7150
        %v7965 = vpack.c.bf16 %v7156, %v7151
        %v7966 = vpack.c.bf16 %v7157, %v7152
        %v7967 = vpack.c.bf16 %v7158, %v7153
        %v7968 = vpack.c.bf16 %v7159, %v7154
        %v7969 = vpack.c.bf16 %v7165, %v7160
        %v7970 = vpack.c.bf16 %v7166, %v7161
        %v7971 = vpack.c.bf16 %v7167, %v7162
        %v7972 = vpack.c.bf16 %v7168, %v7163
        %v7973 = vpack.c.bf16 %v7169, %v7164
        %v7974 = vpack.c.bf16 %v7175, %v7170
        %v7975 = vpack.c.bf16 %v7176, %v7171
        %v7976 = vpack.c.bf16 %v7177, %v7172
        %v7977 = vpack.c.bf16 %v7178, %v7173
        %v7978 = vpack.c.bf16 %v7179, %v7174
        %v7979 = vpack.c.bf16 %v7185, %v7180
        %v7980 = vpack.c.bf16 %v7186, %v7181
        %v7981 = vpack.c.bf16 %v7187, %v7182
        %v7982 = vpack.c.bf16 %v7188, %v7183
        %v7983 = vpack.c.bf16 %v7189, %v7184
        %v7984 = vpack.c.bf16 %v7195, %v7190
        %v7985 = vpack.c.bf16 %v7196, %v7191
        %v7986 = vpack.c.bf16 %v7197, %v7192
        %v7987 = vpack.c.bf16 %v7198, %v7193
        %v7988 = vpack.c.bf16 %v7199, %v7194
        %v7989 = vpack.c.bf16 %v7205, %v7200
        %v7990 = vpack.c.bf16 %v7206, %v7201
        %v7991 = vpack.c.bf16 %v7207, %v7202
        %v7992 = vpack.c.bf16 %v7208, %v7203
        %v7993 = vpack.c.bf16 %v7209, %v7204
        %v7994 = vld [vmem:[%s4] sm:$0xff]
        %v7995 = vld [vmem:[%s4 + $0x8] sm:$0xff]
        %v7996 = vld [vmem:[%s4 + $0x10] sm:$0xff]
        %v7997 = vld [vmem:[%s4 + $0x18] sm:$0xff]
        %v7998 = vld [vmem:[%s4 + $0x20] sm:$0xff]
        %v7999 = vld [vmem:[%s4 + $0x28] sm:$0xff]
        %v8000 = vld [vmem:[%s4 + $0x30] sm:$0xff]
        %v8001 = vld [vmem:[%s4 + $0x38] sm:$0xff]
        %v8002 = vld [vmem:[%s4 + $0x40] sm:$0xff]
        %v8003 = vld [vmem:[%s4 + $0x48] sm:$0xff]
        %v8004 = vld [vmem:[%s4 + $0x50] sm:$0xff]
        %v8005 = vld [vmem:[%s4 + $0x58] sm:$0xff]
        %v8006 = vld [vmem:[%s4 + $0x60] sm:$0xff]
        %v8007 = vld [vmem:[%s4 + $0x68] sm:$0xff]
        %v8008 = vld [vmem:[%s4 + $0x70] sm:$0xff]
        %v8009 = vld [vmem:[%s4 + $0x78] sm:$0xff]
        %v8010 = vld [vmem:[%s4 + $0x80] sm:$0xff]
        %v8011 = vld [vmem:[%s4 + $0x88] sm:$0xff]
        %v8012 = vld [vmem:[%s4 + $0x90] sm:$0xff]
        %v8013 = vld [vmem:[%s4 + $0x98] sm:$0xff]
        %v8014 = vld [vmem:[%s4 + $0xa0] sm:$0xff]
        %v8015 = vld [vmem:[%s4 + $0xa8] sm:$0xff]
        %v8016 = vld [vmem:[%s4 + $0xb0] sm:$0xff]
        %v8017 = vld [vmem:[%s4 + $0xb8] sm:$0xff]
        %v8018 = vld [vmem:[%s4 + $0xc0] sm:$0xff]
        %v8019 = vld [vmem:[%s4 + $0xc8] sm:$0xff]
        %v8020 = vld [vmem:[%s4 + $0xd0] sm:$0xff]
        %v8021 = vld [vmem:[%s4 + $0xd8] sm:$0xff]
        %v8022 = vld [vmem:[%s4 + $0xe0] sm:$0xff]
        %v8023 = vld [vmem:[%s4 + $0xe8] sm:$0xff]
        %v8024 = vld [vmem:[%s4 + $0xf0] sm:$0xff]
        %v8025 = vld [vmem:[%s4 + $0xf8] sm:$0xff]
        %v8026 = vld [vmem:[%s4 + $0x100] sm:$0xff]
        %v8027 = vld [vmem:[%s4 + $0x108] sm:$0xff]
        %v8028 = vld [vmem:[%s4 + $0x110] sm:$0xff]
        %v8029 = vld [vmem:[%s4 + $0x118] sm:$0xff]
        %v8030 = vld [vmem:[%s4 + $0x120] sm:$0xff]
        %v8031 = vld [vmem:[%s4 + $0x128] sm:$0xff]
        %v8032 = vld [vmem:[%s4 + $0x130] sm:$0xff]
        %v8033 = vld [vmem:[%s4 + $0x138] sm:$0xff]
        %v8034 = vld [vmem:[%s4 + $0x140] sm:$0xff]
        %v8035 = vld [vmem:[%s4 + $0x148] sm:$0xff]
        %v8036 = vld [vmem:[%s4 + $0x150] sm:$0xff]
        %v8037 = vld [vmem:[%s4 + $0x158] sm:$0xff]
        %v8038 = vld [vmem:[%s4 + $0x160] sm:$0xff]
        %v8039 = vld [vmem:[%s4 + $0x168] sm:$0xff]
        %v8040 = vld [vmem:[%s4 + $0x170] sm:$0xff]
        %v8041 = vld [vmem:[%s4 + $0x178] sm:$0xff]
        %v8042 = vld [vmem:[%s4 + $0x180] sm:$0xff]
        %v8043 = vld [vmem:[%s4 + $0x188] sm:$0xff]
        %v8044 = vld [vmem:[%s4 + $0x190] sm:$0xff]
        %v8045 = vld [vmem:[%s4 + $0x198] sm:$0xff]
        %v8046 = vld [vmem:[%s4 + $0x1a0] sm:$0xff]
        %v8047 = vld [vmem:[%s4 + $0x1a8] sm:$0xff]
        %v8048 = vld [vmem:[%s4 + $0x1b0] sm:$0xff]
        %v8049 = vld [vmem:[%s4 + $0x1b8] sm:$0xff]
        %v8050 = vld [vmem:[%s4 + $0x1c0] sm:$0xff]
        %v8051 = vld [vmem:[%s4 + $0x1c8] sm:$0xff]
        %v8052 = vld [vmem:[%s4 + $0x1d0] sm:$0xff]
        %v8053 = vld [vmem:[%s4 + $0x1d8] sm:$0xff]
        %v8054 = vld [vmem:[%s4 + $0x1e0] sm:$0xff]
        %v8055 = vld [vmem:[%s4 + $0x1e8] sm:$0xff]
        %v8056 = vld [vmem:[%s4 + $0x1f0] sm:$0xff]
        %v8057 = vld [vmem:[%s4 + $0x1f8] sm:$0xff]
        %v8058 = vld [vmem:[%s4 + $0x200] sm:$0xff]
        %v8059 = vld [vmem:[%s4 + $0x208] sm:$0xff]
        %v8060 = vld [vmem:[%s4 + $0x210] sm:$0xff]
        %v8061 = vld [vmem:[%s4 + $0x218] sm:$0xff]
        %v8062 = vld [vmem:[%s4 + $0x220] sm:$0xff]
        %v8063 = vld [vmem:[%s4 + $0x228] sm:$0xff]
        %v8064 = vld [vmem:[%s4 + $0x230] sm:$0xff]
        %v8065 = vld [vmem:[%s4 + $0x238] sm:$0xff]
        %v8066 = vld [vmem:[%s4 + $0x240] sm:$0xff]
        %v8067 = vld [vmem:[%s4 + $0x248] sm:$0xff]
        %v8068 = vld [vmem:[%s4 + $0x250] sm:$0xff]
        %v8069 = vld [vmem:[%s4 + $0x258] sm:$0xff]
        %v8070 = vld [vmem:[%s4 + $0x260] sm:$0xff]
        %v8071 = vld [vmem:[%s4 + $0x268] sm:$0xff]
        %v8072 = vld [vmem:[%s4 + $0x270] sm:$0xff]
        %v8073 = vld [vmem:[%s4 + $0x278] sm:$0xff]
        %v8154 = vunpack.c.l.b16 %v7994
        %v8155 = vunpack.c.h.b16 %v7994
        %v8156 = vunpack.c.l.b16 %v7995
        %v8157 = vunpack.c.h.b16 %v7995
        %v8158 = vunpack.c.l.b16 %v7996
        %v8159 = vunpack.c.h.b16 %v7996
        %v8160 = vunpack.c.l.b16 %v7997
        %v8161 = vunpack.c.h.b16 %v7997
        %v8162 = vunpack.c.l.b16 %v7998
        %v8163 = vunpack.c.h.b16 %v7998
        %v8164 = vunpack.c.l.b16 %v7999
        %v8165 = vunpack.c.h.b16 %v7999
        %v8166 = vunpack.c.l.b16 %v8000
        %v8167 = vunpack.c.h.b16 %v8000
        %v8168 = vunpack.c.l.b16 %v8001
        %v8169 = vunpack.c.h.b16 %v8001
        %v8170 = vunpack.c.l.b16 %v8002
        %v8171 = vunpack.c.h.b16 %v8002
        %v8172 = vunpack.c.l.b16 %v8003
        %v8173 = vunpack.c.h.b16 %v8003
        %v8174 = vunpack.c.l.b16 %v8004
        %v8175 = vunpack.c.h.b16 %v8004
        %v8176 = vunpack.c.l.b16 %v8005
        %v8177 = vunpack.c.h.b16 %v8005
        %v8178 = vunpack.c.l.b16 %v8006
        %v8179 = vunpack.c.h.b16 %v8006
        %v8180 = vunpack.c.l.b16 %v8007
        %v8181 = vunpack.c.h.b16 %v8007
        %v8182 = vunpack.c.l.b16 %v8008
        %v8183 = vunpack.c.h.b16 %v8008
        %v8184 = vunpack.c.l.b16 %v8009
        %v8185 = vunpack.c.h.b16 %v8009
        %v8186 = vunpack.c.l.b16 %v8010
        %v8187 = vunpack.c.h.b16 %v8010
        %v8188 = vunpack.c.l.b16 %v8011
        %v8189 = vunpack.c.h.b16 %v8011
        %v8190 = vunpack.c.l.b16 %v8012
        %v8191 = vunpack.c.h.b16 %v8012
        %v8192 = vunpack.c.l.b16 %v8013
        %v8193 = vunpack.c.h.b16 %v8013
        %v8194 = vunpack.c.l.b16 %v8014
        %v8195 = vunpack.c.h.b16 %v8014
        %v8196 = vunpack.c.l.b16 %v8015
        %v8197 = vunpack.c.h.b16 %v8015
        %v8198 = vunpack.c.l.b16 %v8016
        %v8199 = vunpack.c.h.b16 %v8016
        %v8200 = vunpack.c.l.b16 %v8017
        %v8201 = vunpack.c.h.b16 %v8017
        %v8202 = vunpack.c.l.b16 %v8018
        %v8203 = vunpack.c.h.b16 %v8018
        %v8204 = vunpack.c.l.b16 %v8019
        %v8205 = vunpack.c.h.b16 %v8019
        %v8206 = vunpack.c.l.b16 %v8020
        %v8207 = vunpack.c.h.b16 %v8020
        %v8208 = vunpack.c.l.b16 %v8021
        %v8209 = vunpack.c.h.b16 %v8021
        %v8210 = vunpack.c.l.b16 %v8022
        %v8211 = vunpack.c.h.b16 %v8022
        %v8212 = vunpack.c.l.b16 %v8023
        %v8213 = vunpack.c.h.b16 %v8023
        %v8214 = vunpack.c.l.b16 %v8024
        %v8215 = vunpack.c.h.b16 %v8024
        %v8216 = vunpack.c.l.b16 %v8025
        %v8217 = vunpack.c.h.b16 %v8025
        %v8218 = vunpack.c.l.b16 %v8026
        %v8219 = vunpack.c.h.b16 %v8026
        %v8220 = vunpack.c.l.b16 %v8027
        %v8221 = vunpack.c.h.b16 %v8027
        %v8222 = vunpack.c.l.b16 %v8028
        %v8223 = vunpack.c.h.b16 %v8028
        %v8224 = vunpack.c.l.b16 %v8029
        %v8225 = vunpack.c.h.b16 %v8029
        %v8226 = vunpack.c.l.b16 %v8030
        %v8227 = vunpack.c.h.b16 %v8030
        %v8228 = vunpack.c.l.b16 %v8031
        %v8229 = vunpack.c.h.b16 %v8031
        %v8230 = vunpack.c.l.b16 %v8032
        %v8231 = vunpack.c.h.b16 %v8032
        %v8232 = vunpack.c.l.b16 %v8033
        %v8233 = vunpack.c.h.b16 %v8033
        %v8234 = vunpack.c.l.b16 %v8034
        %v8235 = vunpack.c.h.b16 %v8034
        %v8236 = vunpack.c.l.b16 %v8035
        %v8237 = vunpack.c.h.b16 %v8035
        %v8238 = vunpack.c.l.b16 %v8036
        %v8239 = vunpack.c.h.b16 %v8036
        %v8240 = vunpack.c.l.b16 %v8037
        %v8241 = vunpack.c.h.b16 %v8037
        %v8242 = vunpack.c.l.b16 %v8038
        %v8243 = vunpack.c.h.b16 %v8038
        %v8244 = vunpack.c.l.b16 %v8039
        %v8245 = vunpack.c.h.b16 %v8039
        %v8246 = vunpack.c.l.b16 %v8040
        %v8247 = vunpack.c.h.b16 %v8040
        %v8248 = vunpack.c.l.b16 %v8041
        %v8249 = vunpack.c.h.b16 %v8041
        %v8250 = vunpack.c.l.b16 %v8042
        %v8251 = vunpack.c.h.b16 %v8042
        %v8252 = vunpack.c.l.b16 %v8043
        %v8253 = vunpack.c.h.b16 %v8043
        %v8254 = vunpack.c.l.b16 %v8044
        %v8255 = vunpack.c.h.b16 %v8044
        %v8256 = vunpack.c.l.b16 %v8045
        %v8257 = vunpack.c.h.b16 %v8045
        %v8258 = vunpack.c.l.b16 %v8046
        %v8259 = vunpack.c.h.b16 %v8046
        %v8260 = vunpack.c.l.b16 %v8047
        %v8261 = vunpack.c.h.b16 %v8047
        %v8262 = vunpack.c.l.b16 %v8048
        %v8263 = vunpack.c.h.b16 %v8048
        %v8264 = vunpack.c.l.b16 %v8049
        %v8265 = vunpack.c.h.b16 %v8049
        %v8266 = vunpack.c.l.b16 %v8050
        %v8267 = vunpack.c.h.b16 %v8050
        %v8268 = vunpack.c.l.b16 %v8051
        %v8269 = vunpack.c.h.b16 %v8051
        %v8270 = vunpack.c.l.b16 %v8052
        %v8271 = vunpack.c.h.b16 %v8052
        %v8272 = vunpack.c.l.b16 %v8053
        %v8273 = vunpack.c.h.b16 %v8053
        %v8274 = vunpack.c.l.b16 %v8054
        %v8275 = vunpack.c.h.b16 %v8054
        %v8276 = vunpack.c.l.b16 %v8055
        %v8277 = vunpack.c.h.b16 %v8055
        %v8278 = vunpack.c.l.b16 %v8056
        %v8279 = vunpack.c.h.b16 %v8056
        %v8280 = vunpack.c.l.b16 %v8057
        %v8281 = vunpack.c.h.b16 %v8057
        %v8282 = vunpack.c.l.b16 %v8058
        %v8283 = vunpack.c.h.b16 %v8058
        %v8284 = vunpack.c.l.b16 %v8059
        %v8285 = vunpack.c.h.b16 %v8059
        %v8286 = vunpack.c.l.b16 %v8060
        %v8287 = vunpack.c.h.b16 %v8060
        %v8288 = vunpack.c.l.b16 %v8061
        %v8289 = vunpack.c.h.b16 %v8061
        %v8290 = vunpack.c.l.b16 %v8062
        %v8291 = vunpack.c.h.b16 %v8062
        %v8292 = vunpack.c.l.b16 %v8063
        %v8293 = vunpack.c.h.b16 %v8063
        %v8294 = vunpack.c.l.b16 %v8064
        %v8295 = vunpack.c.h.b16 %v8064
        %v8296 = vunpack.c.l.b16 %v8065
        %v8297 = vunpack.c.h.b16 %v8065
        %v8298 = vunpack.c.l.b16 %v8066
        %v8299 = vunpack.c.h.b16 %v8066
        %v8300 = vunpack.c.l.b16 %v8067
        %v8301 = vunpack.c.h.b16 %v8067
        %v8302 = vunpack.c.l.b16 %v8068
        %v8303 = vunpack.c.h.b16 %v8068
        %v8304 = vunpack.c.l.b16 %v8069
        %v8305 = vunpack.c.h.b16 %v8069
        %v8306 = vunpack.c.l.b16 %v8070
        %v8307 = vunpack.c.h.b16 %v8070
        %v8308 = vunpack.c.l.b16 %v8071
        %v8309 = vunpack.c.h.b16 %v8071
        %v8310 = vunpack.c.l.b16 %v8072
        %v8311 = vunpack.c.h.b16 %v8072
        %v8312 = vunpack.c.l.b16 %v8073
        %v8313 = vunpack.c.h.b16 %v8073
        %v8314 = vpack.c.b16 %v8156, %v8154
        %v8315 = vpack.c.b16 %v8157, %v8155
        %v8316 = vpack.c.b16 %v8160, %v8158
        %v8317 = vpack.c.b16 %v8161, %v8159
        %v8318 = vpack.c.b16 %v8164, %v8162
        %v8319 = vpack.c.b16 %v8165, %v8163
        %v8320 = vpack.c.b16 %v8168, %v8166
        %v8321 = vpack.c.b16 %v8169, %v8167
        %v8322 = vpack.c.b16 %v8172, %v8170
        %v8323 = vpack.c.b16 %v8173, %v8171
        %v8324 = vpack.c.b16 %v8176, %v8174
        %v8325 = vpack.c.b16 %v8177, %v8175
        %v8326 = vpack.c.b16 %v8180, %v8178
        %v8327 = vpack.c.b16 %v8181, %v8179
        %v8328 = vpack.c.b16 %v8184, %v8182
        %v8329 = vpack.c.b16 %v8185, %v8183
        %v8330 = vpack.c.b16 %v8188, %v8186
        %v8331 = vpack.c.b16 %v8189, %v8187
        %v8332 = vpack.c.b16 %v8192, %v8190
        %v8333 = vpack.c.b16 %v8193, %v8191
        %v8334 = vpack.c.b16 %v8196, %v8194
        %v8335 = vpack.c.b16 %v8197, %v8195
        %v8336 = vpack.c.b16 %v8200, %v8198
        %v8337 = vpack.c.b16 %v8201, %v8199
        %v8338 = vpack.c.b16 %v8204, %v8202
        %v8339 = vpack.c.b16 %v8205, %v8203
        %v8340 = vpack.c.b16 %v8208, %v8206
        %v8341 = vpack.c.b16 %v8209, %v8207
        %v8342 = vpack.c.b16 %v8212, %v8210
        %v8343 = vpack.c.b16 %v8213, %v8211
        %v8344 = vpack.c.b16 %v8216, %v8214
        %v8345 = vpack.c.b16 %v8217, %v8215
        %v8346 = vpack.c.b16 %v8220, %v8218
        %v8347 = vpack.c.b16 %v8221, %v8219
        %v8348 = vpack.c.b16 %v8224, %v8222
        %v8349 = vpack.c.b16 %v8225, %v8223
        %v8350 = vpack.c.b16 %v8228, %v8226
        %v8351 = vpack.c.b16 %v8229, %v8227
        %v8352 = vpack.c.b16 %v8232, %v8230
        %v8353 = vpack.c.b16 %v8233, %v8231
        %v8354 = vpack.c.b16 %v8236, %v8234
        %v8355 = vpack.c.b16 %v8237, %v8235
        %v8356 = vpack.c.b16 %v8240, %v8238
        %v8357 = vpack.c.b16 %v8241, %v8239
        %v8358 = vpack.c.b16 %v8244, %v8242
        %v8359 = vpack.c.b16 %v8245, %v8243
        %v8360 = vpack.c.b16 %v8248, %v8246
        %v8361 = vpack.c.b16 %v8249, %v8247
        %v8362 = vpack.c.b16 %v8252, %v8250
        %v8363 = vpack.c.b16 %v8253, %v8251
        %v8364 = vpack.c.b16 %v8256, %v8254
        %v8365 = vpack.c.b16 %v8257, %v8255
        %v8366 = vpack.c.b16 %v8260, %v8258
        %v8367 = vpack.c.b16 %v8261, %v8259
        %v8368 = vpack.c.b16 %v8264, %v8262
        %v8369 = vpack.c.b16 %v8265, %v8263
        %v8370 = vpack.c.b16 %v8268, %v8266
        %v8371 = vpack.c.b16 %v8269, %v8267
        %v8372 = vpack.c.b16 %v8272, %v8270
        %v8373 = vpack.c.b16 %v8273, %v8271
        %v8374 = vpack.c.b16 %v8276, %v8274
        %v8375 = vpack.c.b16 %v8277, %v8275
        %v8376 = vpack.c.b16 %v8280, %v8278
        %v8377 = vpack.c.b16 %v8281, %v8279
        %v8378 = vpack.c.b16 %v8284, %v8282
        %v8379 = vpack.c.b16 %v8285, %v8283
        %v8380 = vpack.c.b16 %v8288, %v8286
        %v8381 = vpack.c.b16 %v8289, %v8287
        %v8382 = vpack.c.b16 %v8292, %v8290
        %v8383 = vpack.c.b16 %v8293, %v8291
        %v8384 = vpack.c.b16 %v8296, %v8294
        %v8385 = vpack.c.b16 %v8297, %v8295
        %v8386 = vpack.c.b16 %v8300, %v8298
        %v8387 = vpack.c.b16 %v8301, %v8299
        %v8388 = vpack.c.b16 %v8304, %v8302
        %v8389 = vpack.c.b16 %v8305, %v8303
        %v8390 = vpack.c.b16 %v8308, %v8306
        %v8391 = vpack.c.b16 %v8309, %v8307
        %v8392 = vpack.c.b16 %v8312, %v8310
        %v8393 = vpack.c.b16 %v8313, %v8311
        %8474 = vmatprep.subr.bf16.mxu0 %v8315
        %8475 = vmatpush1.bf16.msra.mxu0 %v8314
        %8476 = vmatprep.subr.bf16.mxu0 %v8317
        %8477 = vmatpush1.bf16.msra.mxu0 %v8316
        %8478 = vmatprep.subr.bf16.mxu0 %v8319
        %8479 = vmatpush1.bf16.msra.mxu0 %v8318
        %8480 = vmatprep.subr.bf16.mxu0 %v8321
        %8481 = vmatpush1.bf16.msra.mxu0 %v8320
        %8482 = vmatprep.subr.bf16.mxu0 %v8323
        %8483 = vmatpush1.bf16.msra.mxu0 %v8322
        %8484 = vmatprep.subr.bf16.mxu0 %v8325
        %8485 = vmatpush1.bf16.msra.mxu0 %v8324
        %8486 = vmatprep.subr.bf16.mxu0 %v8327
        %8487 = vmatpush1.bf16.msra.mxu0 %v8326
        %8488 = vmatprep.subr.bf16.mxu0 %v8329
        %8489 = vmatpush1.bf16.msra.mxu0 %v8328
        %8490 = vmatprep.subr.bf16.mxu0 %v8331
        %8491 = vmatpush1.bf16.msra.mxu0 %v8330
        %8492 = vmatprep.subr.bf16.mxu0 %v8333
        %8493 = vmatpush1.bf16.msra.mxu0 %v8332
        %8494 = vmatprep.subr.bf16.mxu0 %v8335
        %8495 = vmatpush1.bf16.msra.mxu0 %v8334
        %8496 = vmatprep.subr.bf16.mxu0 %v8337
        %8497 = vmatpush1.bf16.msra.mxu0 %v8336
        %8498 = vmatprep.subr.bf16.mxu0 %v8339
        %8499 = vmatpush1.bf16.msra.mxu0 %v8338
        %8500 = vmatprep.subr.bf16.mxu0 %v8341
        %8501 = vmatpush1.bf16.msra.mxu0 %v8340
        %8502 = vmatprep.subr.bf16.mxu0 %v8343
        %8503 = vmatpush1.bf16.msra.mxu0 %v8342
        %8504 = vmatprep.subr.bf16.mxu0 %v8345
        %8505 = vmatpush1.bf16.msra.mxu0 %v8344
        %8506 = vmatprep.mubr.bf16.mxu0 %v7915
        %8507 = vmatmul.mubr.bf16.gmra.mrb[0].mxu0 %v7914
        %v8508 = vpop.f32.mrb[0].mxu0
        %v8509 = vadd.f32 0.0, %v8508
        %v8510 = vpop.f32.mrb[0].mxu0
        %v8511 = vadd.f32 0.0, %v8510
        %v8512 = vpop.f32.mrb[0].mxu0
        %v8513 = vadd.f32 0.0, %v8512
        %v8514 = vpop.f32.mrb[0].mxu0
        %v8515 = vadd.f32 0.0, %v8514
        %8516 = vmatprep.mubr.bf16.mxu0 %v7920
        %8517 = vmatmul.mubr.bf16.gmra.mrb[0].mxu0 %v7919
        %v8518 = vpop.f32.mrb[0].mxu0
        %v8519 = vadd.f32 0.0, %v8518
        %v8520 = vpop.f32.mrb[0].mxu0
        %v8521 = vadd.f32 0.0, %v8520
        %v8522 = vpop.f32.mrb[0].mxu0
        %v8523 = vadd.f32 0.0, %v8522
        %v8524 = vpop.f32.mrb[0].mxu0
        %v8525 = vadd.f32 0.0, %v8524
        %8526 = vmatprep.mubr.bf16.mxu0 %v7925
        %8527 = vmatmul.mubr.bf16.gmra.mrb[0].mxu0 %v7924
        %v8528 = vpop.f32.mrb[0].mxu0
        %v8529 = vadd.f32 0.0, %v8528
        %v8530 = vpop.f32.mrb[0].mxu0
        %v8531 = vadd.f32 0.0, %v8530
        %v8532 = vpop.f32.mrb[0].mxu0
        %v8533 = vadd.f32 0.0, %v8532
        %v8534 = vpop.f32.mrb[0].mxu0
        %v8535 = vadd.f32 0.0, %v8534
        %8536 = vmatprep.mubr.bf16.mxu0 %v7930
        %8537 = vmatmul.mubr.bf16.gmra.mrb[0].mxu0 %v7929
        %v8538 = vpop.f32.mrb[0].mxu0
        %v8539 = vadd.f32 0.0, %v8538
        %v8540 = vpop.f32.mrb[0].mxu0
        %v8541 = vadd.f32 0.0, %v8540
        %v8542 = vpop.f32.mrb[0].mxu0
        %v8543 = vadd.f32 0.0, %v8542
        %v8544 = vpop.f32.mrb[0].mxu0
        %v8545 = vadd.f32 0.0, %v8544
        %8546 = vmatprep.mubr.bf16.mxu0 %v7935
        %8547 = vmatmul.mubr.bf16.gmra.mrb[0].mxu0 %v7934
        %v8548 = vpop.f32.mrb[0].mxu0
        %v8549 = vadd.f32 0.0, %v8548
        %v8550 = vpop.f32.mrb[0].mxu0
        %v8551 = vadd.f32 0.0, %v8550
        %v8552 = vpop.f32.mrb[0].mxu0
        %v8553 = vadd.f32 0.0, %v8552
        %v8554 = vpop.f32.mrb[0].mxu0
        %v8555 = vadd.f32 0.0, %v8554
        %8556 = vmatprep.mubr.bf16.mxu0 %v7940
        %8557 = vmatmul.mubr.bf16.gmra.mrb[0].mxu0 %v7939
        %v8558 = vpop.f32.mrb[0].mxu0
        %v8559 = vadd.f32 0.0, %v8558
        %v8560 = vpop.f32.mrb[0].mxu0
        %v8561 = vadd.f32 0.0, %v8560
        %v8562 = vpop.f32.mrb[0].mxu0
        %v8563 = vadd.f32 0.0, %v8562
        %v8564 = vpop.f32.mrb[0].mxu0
        %v8565 = vadd.f32 0.0, %v8564
        %8566 = vmatprep.mubr.bf16.mxu0 %v7945
        %8567 = vmatmul.mubr.bf16.gmra.mrb[0].mxu0 %v7944
        %v8568 = vpop.f32.mrb[0].mxu0
        %v8569 = vadd.f32 0.0, %v8568
        %v8570 = vpop.f32.mrb[0].mxu0
        %v8571 = vadd.f32 0.0, %v8570
        %v8572 = vpop.f32.mrb[0].mxu0
        %v8573 = vadd.f32 0.0, %v8572
        %v8574 = vpop.f32.mrb[0].mxu0
        %v8575 = vadd.f32 0.0, %v8574
        %8576 = vmatprep.mubr.bf16.mxu0 %v7950
        %8577 = vmatmul.mubr.bf16.gmra.mrb[0].mxu0 %v7949
        %v8578 = vpop.f32.mrb[0].mxu0
        %v8579 = vadd.f32 0.0, %v8578
        %v8580 = vpop.f32.mrb[0].mxu0
        %v8581 = vadd.f32 0.0, %v8580
        %v8582 = vpop.f32.mrb[0].mxu0
        %v8583 = vadd.f32 0.0, %v8582
        %v8584 = vpop.f32.mrb[0].mxu0
        %v8585 = vadd.f32 0.0, %v8584
        %8586 = vmatprep.mubr.bf16.mxu0 %v7955
        %8587 = vmatmul.mubr.bf16.gmra.mrb[0].mxu0 %v7954
        %v8588 = vpop.f32.mrb[0].mxu0
        %v8589 = vadd.f32 0.0, %v8588
        %v8590 = vpop.f32.mrb[0].mxu0
        %v8591 = vadd.f32 0.0, %v8590
        %v8592 = vpop.f32.mrb[0].mxu0
        %v8593 = vadd.f32 0.0, %v8592
        %v8594 = vpop.f32.mrb[0].mxu0
        %v8595 = vadd.f32 0.0, %v8594
        %8596 = vmatprep.mubr.bf16.mxu0 %v7960
        %8597 = vmatmul.mubr.bf16.gmra.mrb[0].mxu0 %v7959
        %v8598 = vpop.f32.mrb[0].mxu0
        %v8599 = vadd.f32 0.0, %v8598
        %v8600 = vpop.f32.mrb[0].mxu0
        %v8601 = vadd.f32 0.0, %v8600
        %v8602 = vpop.f32.mrb[0].mxu0
        %v8603 = vadd.f32 0.0, %v8602
        %v8604 = vpop.f32.mrb[0].mxu0
        %v8605 = vadd.f32 0.0, %v8604
        %8606 = vmatprep.mubr.bf16.mxu0 %v7965
        %8607 = vmatmul.mubr.bf16.gmra.mrb[0].mxu0 %v7964
        %v8608 = vpop.f32.mrb[0].mxu0
        %v8609 = vadd.f32 0.0, %v8608
        %v8610 = vpop.f32.mrb[0].mxu0
        %v8611 = vadd.f32 0.0, %v8610
        %v8612 = vpop.f32.mrb[0].mxu0
        %v8613 = vadd.f32 0.0, %v8612
        %v8614 = vpop.f32.mrb[0].mxu0
        %v8615 = vadd.f32 0.0, %v8614
        %8616 = vmatprep.mubr.bf16.mxu0 %v7970
        %8617 = vmatmul.mubr.bf16.gmra.mrb[0].mxu0 %v7969
        %v8618 = vpop.f32.mrb[0].mxu0
        %v8619 = vadd.f32 0.0, %v8618
        %v8620 = vpop.f32.mrb[0].mxu0
        %v8621 = vadd.f32 0.0, %v8620
        %v8622 = vpop.f32.mrb[0].mxu0
        %v8623 = vadd.f32 0.0, %v8622
        %v8624 = vpop.f32.mrb[0].mxu0
        %v8625 = vadd.f32 0.0, %v8624
        %8626 = vmatprep.mubr.bf16.mxu0 %v7975
        %8627 = vmatmul.mubr.bf16.gmra.mrb[0].mxu0 %v7974
        %v8628 = vpop.f32.mrb[0].mxu0
        %v8629 = vadd.f32 0.0, %v8628
        %v8630 = vpop.f32.mrb[0].mxu0
        %v8631 = vadd.f32 0.0, %v8630
        %v8632 = vpop.f32.mrb[0].mxu0
        %v8633 = vadd.f32 0.0, %v8632
        %v8634 = vpop.f32.mrb[0].mxu0
        %v8635 = vadd.f32 0.0, %v8634
        %8636 = vmatprep.mubr.bf16.mxu0 %v7980
        %8637 = vmatmul.mubr.bf16.gmra.mrb[0].mxu0 %v7979
        %v8638 = vpop.f32.mrb[0].mxu0
        %v8639 = vadd.f32 0.0, %v8638
        %v8640 = vpop.f32.mrb[0].mxu0
        %v8641 = vadd.f32 0.0, %v8640
        %v8642 = vpop.f32.mrb[0].mxu0
        %v8643 = vadd.f32 0.0, %v8642
        %v8644 = vpop.f32.mrb[0].mxu0
        %v8645 = vadd.f32 0.0, %v8644
        %8646 = vmatprep.mubr.bf16.mxu0 %v7985
        %8647 = vmatmul.mubr.bf16.gmra.mrb[0].mxu0 %v7984
        %v8648 = vpop.f32.mrb[0].mxu0
        %v8649 = vadd.f32 0.0, %v8648
        %v8650 = vpop.f32.mrb[0].mxu0
        %v8651 = vadd.f32 0.0, %v8650
        %v8652 = vpop.f32.mrb[0].mxu0
        %v8653 = vadd.f32 0.0, %v8652
        %v8654 = vpop.f32.mrb[0].mxu0
        %v8655 = vadd.f32 0.0, %v8654
        %8656 = vmatprep.mubr.bf16.mxu0 %v7990
        %8657 = vmatmul.mubr.bf16.gmra.mrb[0].mxu0 %v7989
        %v8658 = vpop.f32.mrb[0].mxu0
        %v8659 = vadd.f32 0.0, %v8658
        %v8660 = vpop.f32.mrb[0].mxu0
        %v8661 = vadd.f32 0.0, %v8660
        %v8662 = vpop.f32.mrb[0].mxu0
        %v8663 = vadd.f32 0.0, %v8662
        %v8664 = vpop.f32.mrb[0].mxu0
        %v8665 = vadd.f32 0.0, %v8664
        %8666 = vdwg.mxu0
        %8667 = vmatprep.subr.bf16.mxu0 %v8347
        %8668 = vmatpush1.bf16.msra.mxu0 %v8346
        %8669 = vmatprep.subr.bf16.mxu0 %v8349
        %8670 = vmatpush1.bf16.msra.mxu0 %v8348
        %8671 = vmatprep.subr.bf16.mxu0 %v8351
        %8672 = vmatpush1.bf16.msra.mxu0 %v8350
        %8673 = vmatprep.subr.bf16.mxu0 %v8353
        %8674 = vmatpush1.bf16.msra.mxu0 %v8352
        %8675 = vmatprep.subr.bf16.mxu0 %v8355
        %8676 = vmatpush1.bf16.msra.mxu0 %v8354
        %8677 = vmatprep.subr.bf16.mxu0 %v8357
        %8678 = vmatpush1.bf16.msra.mxu0 %v8356
        %8679 = vmatprep.subr.bf16.mxu0 %v8359
        %8680 = vmatpush1.bf16.msra.mxu0 %v8358
        %8681 = vmatprep.subr.bf16.mxu0 %v8361
        %8682 = vmatpush1.bf16.msra.mxu0 %v8360
        %8683 = vmatprep.subr.bf16.mxu0 %v8363
        %8684 = vmatpush1.bf16.msra.mxu0 %v8362
        %8685 = vmatprep.subr.bf16.mxu0 %v8365
        %8686 = vmatpush1.bf16.msra.mxu0 %v8364
        %8687 = vmatprep.subr.bf16.mxu0 %v8367
        %8688 = vmatpush1.bf16.msra.mxu0 %v8366
        %8689 = vmatprep.subr.bf16.mxu0 %v8369
        %8690 = vmatpush1.bf16.msra.mxu0 %v8368
        %8691 = vmatprep.subr.bf16.mxu0 %v8371
        %8692 = vmatpush1.bf16.msra.mxu0 %v8370
        %8693 = vmatprep.subr.bf16.mxu0 %v8373
        %8694 = vmatpush1.bf16.msra.mxu0 %v8372
        %8695 = vmatprep.subr.bf16.mxu0 %v8375
        %8696 = vmatpush1.bf16.msra.mxu0 %v8374
        %8697 = vmatprep.subr.bf16.mxu0 %v8377
        %8698 = vmatpush1.bf16.msra.mxu0 %v8376
        %8699 = vmatprep.mubr.bf16.mxu0 %v7917
        %8700 = vmatmul.mubr.bf16.gmra.mrb[0].mxu0 %v7916
        %v8701 = vpop.f32.mrb[0].mxu0
        %v8702 = vadd.f32 %v8509, %v8701
        %v8703 = vpop.f32.mrb[0].mxu0
        %v8704 = vadd.f32 %v8511, %v8703
        %v8705 = vpop.f32.mrb[0].mxu0
        %v8706 = vadd.f32 %v8513, %v8705
        %v8707 = vpop.f32.mrb[0].mxu0
        %v8708 = vadd.f32 %v8515, %v8707
        %8709 = vmatprep.mubr.bf16.mxu0 %v7922
        %8710 = vmatmul.mubr.bf16.gmra.mrb[0].mxu0 %v7921
        %v8711 = vpop.f32.mrb[0].mxu0
        %v8712 = vadd.f32 %v8519, %v8711
        %v8713 = vpop.f32.mrb[0].mxu0
        %v8714 = vadd.f32 %v8521, %v8713
        %v8715 = vpop.f32.mrb[0].mxu0
        %v8716 = vadd.f32 %v8523, %v8715
        %v8717 = vpop.f32.mrb[0].mxu0
        %v8718 = vadd.f32 %v8525, %v8717
        %8719 = vmatprep.mubr.bf16.mxu0 %v7927
        %8720 = vmatmul.mubr.bf16.gmra.mrb[0].mxu0 %v7926
        %v8721 = vpop.f32.mrb[0].mxu0
        %v8722 = vadd.f32 %v8529, %v8721
        %v8723 = vpop.f32.mrb[0].mxu0
        %v8724 = vadd.f32 %v8531, %v8723
        %v8725 = vpop.f32.mrb[0].mxu0
        %v8726 = vadd.f32 %v8533, %v8725
        %v8727 = vpop.f32.mrb[0].mxu0
        %v8728 = vadd.f32 %v8535, %v8727
        %8729 = vmatprep.mubr.bf16.mxu0 %v7932
        %8730 = vmatmul.mubr.bf16.gmra.mrb[0].mxu0 %v7931
        %v8731 = vpop.f32.mrb[0].mxu0
        %v8732 = vadd.f32 %v8539, %v8731
        %v8733 = vpop.f32.mrb[0].mxu0
        %v8734 = vadd.f32 %v8541, %v8733
        %v8735 = vpop.f32.mrb[0].mxu0
        %v8736 = vadd.f32 %v8543, %v8735
        %v8737 = vpop.f32.mrb[0].mxu0
        %v8738 = vadd.f32 %v8545, %v8737
        %8739 = vmatprep.mubr.bf16.mxu0 %v7937
        %8740 = vmatmul.mubr.bf16.gmra.mrb[0].mxu0 %v7936
        %v8741 = vpop.f32.mrb[0].mxu0
        %v8742 = vadd.f32 %v8549, %v8741
        %v8743 = vpop.f32.mrb[0].mxu0
        %v8744 = vadd.f32 %v8551, %v8743
        %v8745 = vpop.f32.mrb[0].mxu0
        %v8746 = vadd.f32 %v8553, %v8745
        %v8747 = vpop.f32.mrb[0].mxu0
        %v8748 = vadd.f32 %v8555, %v8747
        %8749 = vmatprep.mubr.bf16.mxu0 %v7942
        %8750 = vmatmul.mubr.bf16.gmra.mrb[0].mxu0 %v7941
        %v8751 = vpop.f32.mrb[0].mxu0
        %v8752 = vadd.f32 %v8559, %v8751
        %v8753 = vpop.f32.mrb[0].mxu0
        %v8754 = vadd.f32 %v8561, %v8753
        %v8755 = vpop.f32.mrb[0].mxu0
        %v8756 = vadd.f32 %v8563, %v8755
        %v8757 = vpop.f32.mrb[0].mxu0
        %v8758 = vadd.f32 %v8565, %v8757
        %8759 = vmatprep.mubr.bf16.mxu0 %v7947
        %8760 = vmatmul.mubr.bf16.gmra.mrb[0].mxu0 %v7946
        %v8761 = vpop.f32.mrb[0].mxu0
        %v8762 = vadd.f32 %v8569, %v8761
        %v8763 = vpop.f32.mrb[0].mxu0
        %v8764 = vadd.f32 %v8571, %v8763
        %v8765 = vpop.f32.mrb[0].mxu0
        %v8766 = vadd.f32 %v8573, %v8765
        %v8767 = vpop.f32.mrb[0].mxu0
        %v8768 = vadd.f32 %v8575, %v8767
        %8769 = vmatprep.mubr.bf16.mxu0 %v7952
        %8770 = vmatmul.mubr.bf16.gmra.mrb[0].mxu0 %v7951
        %v8771 = vpop.f32.mrb[0].mxu0
        %v8772 = vadd.f32 %v8579, %v8771
        %v8773 = vpop.f32.mrb[0].mxu0
        %v8774 = vadd.f32 %v8581, %v8773
        %v8775 = vpop.f32.mrb[0].mxu0
        %v8776 = vadd.f32 %v8583, %v8775
        %v8777 = vpop.f32.mrb[0].mxu0
        %v8778 = vadd.f32 %v8585, %v8777
        %8779 = vmatprep.mubr.bf16.mxu0 %v7957
        %8780 = vmatmul.mubr.bf16.gmra.mrb[0].mxu0 %v7956
        %v8781 = vpop.f32.mrb[0].mxu0
        %v8782 = vadd.f32 %v8589, %v8781
        %v8783 = vpop.f32.mrb[0].mxu0
        %v8784 = vadd.f32 %v8591, %v8783
        %v8785 = vpop.f32.mrb[0].mxu0
        %v8786 = vadd.f32 %v8593, %v8785
        %v8787 = vpop.f32.mrb[0].mxu0
        %v8788 = vadd.f32 %v8595, %v8787
        %8789 = vmatprep.mubr.bf16.mxu0 %v7962
        %8790 = vmatmul.mubr.bf16.gmra.mrb[0].mxu0 %v7961
        %v8791 = vpop.f32.mrb[0].mxu0
        %v8792 = vadd.f32 %v8599, %v8791
        %v8793 = vpop.f32.mrb[0].mxu0
        %v8794 = vadd.f32 %v8601, %v8793
        %v8795 = vpop.f32.mrb[0].mxu0
        %v8796 = vadd.f32 %v8603, %v8795
        %v8797 = vpop.f32.mrb[0].mxu0
        %v8798 = vadd.f32 %v8605, %v8797
        %8799 = vmatprep.mubr.bf16.mxu0 %v7967
        %8800 = vmatmul.mubr.bf16.gmra.mrb[0].mxu0 %v7966
        %v8801 = vpop.f32.mrb[0].mxu0
        %v8802 = vadd.f32 %v8609, %v8801
        %v8803 = vpop.f32.mrb[0].mxu0
        %v8804 = vadd.f32 %v8611, %v8803
        %v8805 = vpop.f32.mrb[0].mxu0
        %v8806 = vadd.f32 %v8613, %v8805
        %v8807 = vpop.f32.mrb[0].mxu0
        %v8808 = vadd.f32 %v8615, %v8807
        %8809 = vmatprep.mubr.bf16.mxu0 %v7972
        %8810 = vmatmul.mubr.bf16.gmra.mrb[0].mxu0 %v7971
        %v8811 = vpop.f32.mrb[0].mxu0
        %v8812 = vadd.f32 %v8619, %v8811
        %v8813 = vpop.f32.mrb[0].mxu0
        %v8814 = vadd.f32 %v8621, %v8813
        %v8815 = vpop.f32.mrb[0].mxu0
        %v8816 = vadd.f32 %v8623, %v8815
        %v8817 = vpop.f32.mrb[0].mxu0
        %v8818 = vadd.f32 %v8625, %v8817
        %8819 = vmatprep.mubr.bf16.mxu0 %v7977
        %8820 = vmatmul.mubr.bf16.gmra.mrb[0].mxu0 %v7976
        %v8821 = vpop.f32.mrb[0].mxu0
        %v8822 = vadd.f32 %v8629, %v8821
        %v8823 = vpop.f32.mrb[0].mxu0
        %v8824 = vadd.f32 %v8631, %v8823
        %v8825 = vpop.f32.mrb[0].mxu0
        %v8826 = vadd.f32 %v8633, %v8825
        %v8827 = vpop.f32.mrb[0].mxu0
        %v8828 = vadd.f32 %v8635, %v8827
        %8829 = vmatprep.mubr.bf16.mxu0 %v7982
        %8830 = vmatmul.mubr.bf16.gmra.mrb[0].mxu0 %v7981
        %v8831 = vpop.f32.mrb[0].mxu0
        %v8832 = vadd.f32 %v8639, %v8831
        %v8833 = vpop.f32.mrb[0].mxu0
        %v8834 = vadd.f32 %v8641, %v8833
        %v8835 = vpop.f32.mrb[0].mxu0
        %v8836 = vadd.f32 %v8643, %v8835
        %v8837 = vpop.f32.mrb[0].mxu0
        %v8838 = vadd.f32 %v8645, %v8837
        %8839 = vmatprep.mubr.bf16.mxu0 %v7987
        %8840 = vmatmul.mubr.bf16.gmra.mrb[0].mxu0 %v7986
        %v8841 = vpop.f32.mrb[0].mxu0
        %v8842 = vadd.f32 %v8649, %v8841
        %v8843 = vpop.f32.mrb[0].mxu0
        %v8844 = vadd.f32 %v8651, %v8843
        %v8845 = vpop.f32.mrb[0].mxu0
        %v8846 = vadd.f32 %v8653, %v8845
        %v8847 = vpop.f32.mrb[0].mxu0
        %v8848 = vadd.f32 %v8655, %v8847
        %8849 = vmatprep.mubr.bf16.mxu0 %v7992
        %8850 = vmatmul.mubr.bf16.gmra.mrb[0].mxu0 %v7991
        %v8851 = vpop.f32.mrb[0].mxu0
        %v8852 = vadd.f32 %v8659, %v8851
        %v8853 = vpop.f32.mrb[0].mxu0
        %v8854 = vadd.f32 %v8661, %v8853
        %v8855 = vpop.f32.mrb[0].mxu0
        %v8856 = vadd.f32 %v8663, %v8855
        %v8857 = vpop.f32.mrb[0].mxu0
        %v8858 = vadd.f32 %v8665, %v8857
        %8859 = vdwg.mxu0
        %8860 = vmatprep.subr.bf16.mxu0 %v8379
        %8861 = vmatpush1.bf16.msra.mxu0 %v8378
        %8862 = vmatprep.subr.bf16.mxu0 %v8381
        %8863 = vmatpush1.bf16.msra.mxu0 %v8380
        %8864 = vmatprep.subr.bf16.mxu0 %v8383
        %8865 = vmatpush1.bf16.msra.mxu0 %v8382
        %8866 = vmatprep.subr.bf16.mxu0 %v8385
        %8867 = vmatpush1.bf16.msra.mxu0 %v8384
        %8868 = vmatprep.subr.bf16.mxu0 %v8387
        %8869 = vmatpush1.bf16.msra.mxu0 %v8386
        %8870 = vmatprep.subr.bf16.mxu0 %v8389
        %8871 = vmatpush1.bf16.msra.mxu0 %v8388
        %8872 = vmatprep.subr.bf16.mxu0 %v8391
        %8873 = vmatpush1.bf16.msra.mxu0 %v8390
        %8874 = vmatprep.subr.bf16.mxu0 %v8393
        %8875 = vmatpush1.bf16.msra.mxu0 %v8392
        %8876 = vmatprep.subr.bf16.mxu0 0
        %8877 = vmatpush1.bf16.msra.mxu0 0
        %8878 = vmatprep.subr.bf16.mxu0 0
        %8879 = vmatpush1.bf16.msra.mxu0 0
        %8880 = vmatprep.subr.bf16.mxu0 0
        %8881 = vmatpush1.bf16.msra.mxu0 0
        %8882 = vmatprep.subr.bf16.mxu0 0
        %8883 = vmatpush1.bf16.msra.mxu0 0
        %8884 = vmatprep.subr.bf16.mxu0 0
        %8885 = vmatpush1.bf16.msra.mxu0 0
        %8886 = vmatprep.subr.bf16.mxu0 0
        %8887 = vmatpush1.bf16.msra.mxu0 0
        %8888 = vmatprep.subr.bf16.mxu0 0
        %8889 = vmatpush1.bf16.msra.mxu0 0
        %8890 = vmatprep.subr.bf16.mxu0 0
        %8891 = vmatpush1.bf16.msra.mxu0 0
        %8892 = vmatprep.mubr.bf16.mxu0 0
        %8893 = vmatmul.mubr.bf16.gmra.mrb[0].mxu0 %v7918
        %v8894 = vpop.f32.mrb[0].mxu0
        %v8895 = vadd.f32 %v8702, %v8894
        %v8896 = vpop.f32.mrb[0].mxu0
        %v8897 = vadd.f32 %v8704, %v8896
        %v8898 = vpop.f32.mrb[0].mxu0
        %v8899 = vadd.f32 %v8706, %v8898
        %v8900 = vpop.f32.mrb[0].mxu0
        %v8901 = vadd.f32 %v8708, %v8900
        %8902 = vmatprep.mubr.bf16.mxu0 0
        %8903 = vmatmul.mubr.bf16.gmra.mrb[0].mxu0 %v7923
        %v8904 = vpop.f32.mrb[0].mxu0
        %v8905 = vadd.f32 %v8712, %v8904
        %v8906 = vpop.f32.mrb[0].mxu0
        %v8907 = vadd.f32 %v8714, %v8906
        %v8908 = vpop.f32.mrb[0].mxu0
        %v8909 = vadd.f32 %v8716, %v8908
        %v8910 = vpop.f32.mrb[0].mxu0
        %v8911 = vadd.f32 %v8718, %v8910
        %8912 = vmatprep.mubr.bf16.mxu0 0
        %8913 = vmatmul.mubr.bf16.gmra.mrb[0].mxu0 %v7928
        %v8914 = vpop.f32.mrb[0].mxu0
        %v8915 = vadd.f32 %v8722, %v8914
        %v8916 = vpop.f32.mrb[0].mxu0
        %v8917 = vadd.f32 %v8724, %v8916
        %v8918 = vpop.f32.mrb[0].mxu0
        %v8919 = vadd.f32 %v8726, %v8918
        %v8920 = vpop.f32.mrb[0].mxu0
        %v8921 = vadd.f32 %v8728, %v8920
        %8922 = vmatprep.mubr.bf16.mxu0 0
        %8923 = vmatmul.mubr.bf16.gmra.mrb[0].mxu0 %v7933
        %v8924 = vpop.f32.mrb[0].mxu0
        %v8925 = vadd.f32 %v8732, %v8924
        %v8926 = vpop.f32.mrb[0].mxu0
        %v8927 = vadd.f32 %v8734, %v8926
        %v8928 = vpop.f32.mrb[0].mxu0
        %v8929 = vadd.f32 %v8736, %v8928
        %v8930 = vpop.f32.mrb[0].mxu0
        %v8931 = vadd.f32 %v8738, %v8930
        %8932 = vmatprep.mubr.bf16.mxu0 0
        %8933 = vmatmul.mubr.bf16.gmra.mrb[0].mxu0 %v7938
        %v8934 = vpop.f32.mrb[0].mxu0
        %v8935 = vadd.f32 %v8742, %v8934
        %v8936 = vpop.f32.mrb[0].mxu0
        %v8937 = vadd.f32 %v8744, %v8936
        %v8938 = vpop.f32.mrb[0].mxu0
        %v8939 = vadd.f32 %v8746, %v8938
        %v8940 = vpop.f32.mrb[0].mxu0
        %v8941 = vadd.f32 %v8748, %v8940
        %8942 = vmatprep.mubr.bf16.mxu0 0
        %8943 = vmatmul.mubr.bf16.gmra.mrb[0].mxu0 %v7943
        %v8944 = vpop.f32.mrb[0].mxu0
        %v8945 = vadd.f32 %v8752, %v8944
        %v8946 = vpop.f32.mrb[0].mxu0
        %v8947 = vadd.f32 %v8754, %v8946
        %v8948 = vpop.f32.mrb[0].mxu0
        %v8949 = vadd.f32 %v8756, %v8948
        %v8950 = vpop.f32.mrb[0].mxu0
        %v8951 = vadd.f32 %v8758, %v8950
        %8952 = vmatprep.mubr.bf16.mxu0 0
        %8953 = vmatmul.mubr.bf16.gmra.mrb[0].mxu0 %v7948
        %v8954 = vpop.f32.mrb[0].mxu0
        %v8955 = vadd.f32 %v8762, %v8954
        %v8956 = vpop.f32.mrb[0].mxu0
        %v8957 = vadd.f32 %v8764, %v8956
        %v8958 = vpop.f32.mrb[0].mxu0
        %v8959 = vadd.f32 %v8766, %v8958
        %v8960 = vpop.f32.mrb[0].mxu0
        %v8961 = vadd.f32 %v8768, %v8960
        %8962 = vmatprep.mubr.bf16.mxu0 0
        %8963 = vmatmul.mubr.bf16.gmra.mrb[0].mxu0 %v7953
        %v8964 = vpop.f32.mrb[0].mxu0
        %v8965 = vadd.f32 %v8772, %v8964
        %v8966 = vpop.f32.mrb[0].mxu0
        %v8967 = vadd.f32 %v8774, %v8966
        %v8968 = vpop.f32.mrb[0].mxu0
        %v8969 = vadd.f32 %v8776, %v8968
        %v8970 = vpop.f32.mrb[0].mxu0
        %v8971 = vadd.f32 %v8778, %v8970
        %8972 = vmatprep.mubr.bf16.mxu0 0
        %8973 = vmatmul.mubr.bf16.gmra.mrb[0].mxu0 %v7958
        %v8974 = vpop.f32.mrb[0].mxu0
        %v8975 = vadd.f32 %v8782, %v8974
        %v8976 = vpop.f32.mrb[0].mxu0
        %v8977 = vadd.f32 %v8784, %v8976
        %v8978 = vpop.f32.mrb[0].mxu0
        %v8979 = vadd.f32 %v8786, %v8978
        %v8980 = vpop.f32.mrb[0].mxu0
        %v8981 = vadd.f32 %v8788, %v8980
        %8982 = vmatprep.mubr.bf16.mxu0 0
        %8983 = vmatmul.mubr.bf16.gmra.mrb[0].mxu0 %v7963
        %v8984 = vpop.f32.mrb[0].mxu0
        %v8985 = vadd.f32 %v8792, %v8984
        %v8986 = vpop.f32.mrb[0].mxu0
        %v8987 = vadd.f32 %v8794, %v8986
        %v8988 = vpop.f32.mrb[0].mxu0
        %v8989 = vadd.f32 %v8796, %v8988
        %v8990 = vpop.f32.mrb[0].mxu0
        %v8991 = vadd.f32 %v8798, %v8990
        %8992 = vmatprep.mubr.bf16.mxu0 0
        %8993 = vmatmul.mubr.bf16.gmra.mrb[0].mxu0 %v7968
        %v8994 = vpop.f32.mrb[0].mxu0
        %v8995 = vadd.f32 %v8802, %v8994
        %v8996 = vpop.f32.mrb[0].mxu0
        %v8997 = vadd.f32 %v8804, %v8996
        %v8998 = vpop.f32.mrb[0].mxu0
        %v8999 = vadd.f32 %v8806, %v8998
        %v9000 = vpop.f32.mrb[0].mxu0
        %v9001 = vadd.f32 %v8808, %v9000
        %9002 = vmatprep.mubr.bf16.mxu0 0
        %9003 = vmatmul.mubr.bf16.gmra.mrb[0].mxu0 %v7973
        %v9004 = vpop.f32.mrb[0].mxu0
        %v9005 = vadd.f32 %v8812, %v9004
        %v9006 = vpop.f32.mrb[0].mxu0
        %v9007 = vadd.f32 %v8814, %v9006
        %v9008 = vpop.f32.mrb[0].mxu0
        %v9009 = vadd.f32 %v8816, %v9008
        %v9010 = vpop.f32.mrb[0].mxu0
        %v9011 = vadd.f32 %v8818, %v9010
        %9012 = vmatprep.mubr.bf16.mxu0 0
        %9013 = vmatmul.mubr.bf16.gmra.mrb[0].mxu0 %v7978
        %v9014 = vpop.f32.mrb[0].mxu0
        %v9015 = vadd.f32 %v8822, %v9014
        %v9016 = vpop.f32.mrb[0].mxu0
        %v9017 = vadd.f32 %v8824, %v9016
        %v9018 = vpop.f32.mrb[0].mxu0
        %v9019 = vadd.f32 %v8826, %v9018
        %v9020 = vpop.f32.mrb[0].mxu0
        %v9021 = vadd.f32 %v8828, %v9020
        %9022 = vmatprep.mubr.bf16.mxu0 0
        %9023 = vmatmul.mubr.bf16.gmra.mrb[0].mxu0 %v7983
        %v9024 = vpop.f32.mrb[0].mxu0
        %v9025 = vadd.f32 %v8832, %v9024
        %v9026 = vpop.f32.mrb[0].mxu0
        %v9027 = vadd.f32 %v8834, %v9026
        %v9028 = vpop.f32.mrb[0].mxu0
        %v9029 = vadd.f32 %v8836, %v9028
        %v9030 = vpop.f32.mrb[0].mxu0
        %v9031 = vadd.f32 %v8838, %v9030
        %9032 = vmatprep.mubr.bf16.mxu0 0
        %9033 = vmatmul.mubr.bf16.gmra.mrb[0].mxu0 %v7988
        %v9034 = vpop.f32.mrb[0].mxu0
        %v9035 = vadd.f32 %v8842, %v9034
        %v9036 = vpop.f32.mrb[0].mxu0
        %v9037 = vadd.f32 %v8844, %v9036
        %v9038 = vpop.f32.mrb[0].mxu0
        %v9039 = vadd.f32 %v8846, %v9038
        %v9040 = vpop.f32.mrb[0].mxu0
        %v9041 = vadd.f32 %v8848, %v9040
        %9042 = vmatprep.mubr.bf16.mxu0 0
        %9043 = vmatmul.mubr.bf16.gmra.mrb[0].mxu0 %v7993
        %v9044 = vpop.f32.mrb[0].mxu0
        %v9045 = vadd.f32 %v8852, %v9044
        %v9046 = vpop.f32.mrb[0].mxu0
        %v9047 = vadd.f32 %v8854, %v9046
        %v9048 = vpop.f32.mrb[0].mxu0
        %v9049 = vadd.f32 %v8856, %v9048
        %v9050 = vpop.f32.mrb[0].mxu0
        %v9051 = vadd.f32 %v8858, %v9050
        %9052 = vdwg.mxu0
        %v9053 = vmul.f32 %v7851, %v8895
        %v9054 = vmul.f32 %v7851, %v8897
        %v9055 = vmul.f32 %v7853, %v8899
        %v9056 = vmul.f32 %v7853, %v8901
        %v9057 = vmul.f32 %v7855, %v8905
        %v9058 = vmul.f32 %v7855, %v8907
        %v9059 = vmul.f32 %v7857, %v8909
        %v9060 = vmul.f32 %v7857, %v8911
        %v9061 = vmul.f32 %v7859, %v8915
        %v9062 = vmul.f32 %v7859, %v8917
        %v9063 = vmul.f32 %v7861, %v8919
        %v9064 = vmul.f32 %v7861, %v8921
        %v9065 = vmul.f32 %v7863, %v8925
        %v9066 = vmul.f32 %v7863, %v8927
        %v9067 = vmul.f32 %v7865, %v8929
        %v9068 = vmul.f32 %v7865, %v8931
        %v9069 = vmul.f32 %v7867, %v8935
        %v9070 = vmul.f32 %v7867, %v8937
        %v9071 = vmul.f32 %v7869, %v8939
        %v9072 = vmul.f32 %v7869, %v8941
        %v9073 = vmul.f32 %v7871, %v8945
        %v9074 = vmul.f32 %v7871, %v8947
        %v9075 = vmul.f32 %v7873, %v8949
        %v9076 = vmul.f32 %v7873, %v8951
        %v9077 = vmul.f32 %v7875, %v8955
        %v9078 = vmul.f32 %v7875, %v8957
        %v9079 = vmul.f32 %v7877, %v8959
        %v9080 = vmul.f32 %v7877, %v8961
        %v9081 = vmul.f32 %v7879, %v8965
        %v9082 = vmul.f32 %v7879, %v8967
        %v9083 = vmul.f32 %v7881, %v8969
        %v9084 = vmul.f32 %v7881, %v8971
        %v9085 = vmul.f32 %v7883, %v8975
        %v9086 = vmul.f32 %v7883, %v8977
        %v9087 = vmul.f32 %v7885, %v8979
        %v9088 = vmul.f32 %v7885, %v8981
        %v9089 = vmul.f32 %v7887, %v8985
        %v9090 = vmul.f32 %v7887, %v8987
        %v9091 = vmul.f32 %v7889, %v8989
        %v9092 = vmul.f32 %v7889, %v8991
        %v9093 = vmul.f32 %v7891, %v8995
        %v9094 = vmul.f32 %v7891, %v8997
        %v9095 = vmul.f32 %v7893, %v8999
        %v9096 = vmul.f32 %v7893, %v9001
        %v9097 = vmul.f32 %v7895, %v9005
        %v9098 = vmul.f32 %v7895, %v9007
        %v9099 = vmul.f32 %v7897, %v9009
        %v9100 = vmul.f32 %v7897, %v9011
        %v9101 = vmul.f32 %v7899, %v9015
        %v9102 = vmul.f32 %v7899, %v9017
        %v9103 = vmul.f32 %v7901, %v9019
        %v9104 = vmul.f32 %v7901, %v9021
        %v9105 = vmul.f32 %v7903, %v9025
        %v9106 = vmul.f32 %v7903, %v9027
        %v9107 = vmul.f32 %v7905, %v9029
        %v9108 = vmul.f32 %v7905, %v9031
        %v9109 = vmul.f32 %v7907, %v9035
        %v9110 = vmul.f32 %v7907, %v9037
        %v9111 = vmul.f32 %v7909, %v9039
        %v9112 = vmul.f32 %v7909, %v9041
        %v9113 = vmul.f32 %v7911, %v9045
        %v9114 = vmul.f32 %v7911, %v9047
        %v9115 = vmul.f32 %v7913, %v9049
        %v9116 = vmul.f32 %v7913, %v9051
        %s9117 = scalar_lea.vmem %s5, 3
        %v9118 = vld [vmem:[%s9117] ss:$8 sm:$0x3]
        %v9120 = vlaneseq
        %v9121 = vshrl.u32 %v9120, 7
        %v9122 = vsub.s32 0, %v9121
        %v9123 = vrot.slane %v9118, %v9122
        %v9124 = vlaneseq
        %v9125 = vshrl.u32 %v9124, 7
        %v9126 = vsub.s32 1, %v9125
        %v9127 = vrot.slane %v9118, %v9126
        %v9130 = vadd.f32 %v9053, %v9123
        %v9131 = vadd.f32 %v9054, %v9127
        %v9132 = vadd.f32 %v9055, %v9123
        %v9133 = vadd.f32 %v9056, %v9127
        %v9134 = vadd.f32 %v9057, %v9123
        %v9135 = vadd.f32 %v9058, %v9127
        %v9136 = vadd.f32 %v9059, %v9123
        %v9137 = vadd.f32 %v9060, %v9127
        %v9138 = vadd.f32 %v9061, %v9123
        %v9139 = vadd.f32 %v9062, %v9127
        %v9140 = vadd.f32 %v9063, %v9123
        %v9141 = vadd.f32 %v9064, %v9127
        %v9142 = vadd.f32 %v9065, %v9123
        %v9143 = vadd.f32 %v9066, %v9127
        %v9144 = vadd.f32 %v9067, %v9123
        %v9145 = vadd.f32 %v9068, %v9127
        %v9146 = vadd.f32 %v9069, %v9123
        %v9147 = vadd.f32 %v9070, %v9127
        %v9148 = vadd.f32 %v9071, %v9123
        %v9149 = vadd.f32 %v9072, %v9127
        %v9150 = vadd.f32 %v9073, %v9123
        %v9151 = vadd.f32 %v9074, %v9127
        %v9152 = vadd.f32 %v9075, %v9123
        %v9153 = vadd.f32 %v9076, %v9127
        %v9154 = vadd.f32 %v9077, %v9123
        %v9155 = vadd.f32 %v9078, %v9127
        %v9156 = vadd.f32 %v9079, %v9123
        %v9157 = vadd.f32 %v9080, %v9127
        %v9158 = vadd.f32 %v9081, %v9123
        %v9159 = vadd.f32 %v9082, %v9127
        %v9160 = vadd.f32 %v9083, %v9123
        %v9161 = vadd.f32 %v9084, %v9127
        %v9162 = vadd.f32 %v9085, %v9123
        %v9163 = vadd.f32 %v9086, %v9127
        %v9164 = vadd.f32 %v9087, %v9123
        %v9165 = vadd.f32 %v9088, %v9127
        %v9166 = vadd.f32 %v9089, %v9123
        %v9167 = vadd.f32 %v9090, %v9127
        %v9168 = vadd.f32 %v9091, %v9123
        %v9169 = vadd.f32 %v9092, %v9127
        %v9170 = vadd.f32 %v9093, %v9123
        %v9171 = vadd.f32 %v9094, %v9127
        %v9172 = vadd.f32 %v9095, %v9123
        %v9173 = vadd.f32 %v9096, %v9127
        %v9174 = vadd.f32 %v9097, %v9123
        %v9175 = vadd.f32 %v9098, %v9127
        %v9176 = vadd.f32 %v9099, %v9123
        %v9177 = vadd.f32 %v9100, %v9127
        %v9178 = vadd.f32 %v9101, %v9123
        %v9179 = vadd.f32 %v9102, %v9127
        %v9180 = vadd.f32 %v9103, %v9123
        %v9181 = vadd.f32 %v9104, %v9127
        %v9182 = vadd.f32 %v9105, %v9123
        %v9183 = vadd.f32 %v9106, %v9127
        %v9184 = vadd.f32 %v9107, %v9123
        %v9185 = vadd.f32 %v9108, %v9127
        %v9186 = vadd.f32 %v9109, %v9123
        %v9187 = vadd.f32 %v9110, %v9127
        %v9188 = vadd.f32 %v9111, %v9123
        %v9189 = vadd.f32 %v9112, %v9127
        %v9190 = vadd.f32 %v9113, %v9123
        %v9191 = vadd.f32 %v9114, %v9127
        %v9192 = vadd.f32 %v9115, %v9123
        %v9193 = vadd.f32 %v9116, %v9127
        %9194 = vst [vmem:[%s289] sm:$0xff] %v9130
        %9195 = vst [vmem:[%s289 + $0x8] sm:$0xff] %v9131
        %9196 = vst [vmem:[%s289 + $0x10] sm:$0xff] %v9132
        %9197 = vst [vmem:[%s289 + $0x18] sm:$0xff] %v9133
        %9198 = vst [vmem:[%s289 + $0x20] sm:$0xff] %v9134
        %9199 = vst [vmem:[%s289 + $0x28] sm:$0xff] %v9135
        %9200 = vst [vmem:[%s289 + $0x30] sm:$0xff] %v9136
        %9201 = vst [vmem:[%s289 + $0x38] sm:$0xff] %v9137
        %9202 = vst [vmem:[%s289 + $0x40] sm:$0xff] %v9138
        %9203 = vst [vmem:[%s289 + $0x48] sm:$0xff] %v9139
        %9204 = vst [vmem:[%s289 + $0x50] sm:$0xff] %v9140
        %9205 = vst [vmem:[%s289 + $0x58] sm:$0xff] %v9141
        %9206 = vst [vmem:[%s289 + $0x60] sm:$0xff] %v9142
        %9207 = vst [vmem:[%s289 + $0x68] sm:$0xff] %v9143
        %9208 = vst [vmem:[%s289 + $0x70] sm:$0xff] %v9144
        %9209 = vst [vmem:[%s289 + $0x78] sm:$0xff] %v9145
        %9210 = vst [vmem:[%s289 + $0x80] sm:$0xff] %v9146
        %9211 = vst [vmem:[%s289 + $0x88] sm:$0xff] %v9147
        %9212 = vst [vmem:[%s289 + $0x90] sm:$0xff] %v9148
        %9213 = vst [vmem:[%s289 + $0x98] sm:$0xff] %v9149
        %9214 = vst [vmem:[%s289 + $0xa0] sm:$0xff] %v9150
        %9215 = vst [vmem:[%s289 + $0xa8] sm:$0xff] %v9151
        %9216 = vst [vmem:[%s289 + $0xb0] sm:$0xff] %v9152
        %9217 = vst [vmem:[%s289 + $0xb8] sm:$0xff] %v9153
        %9218 = vst [vmem:[%s289 + $0xc0] sm:$0xff] %v9154
        %9219 = vst [vmem:[%s289 + $0xc8] sm:$0xff] %v9155
        %9220 = vst [vmem:[%s289 + $0xd0] sm:$0xff] %v9156
        %9221 = vst [vmem:[%s289 + $0xd8] sm:$0xff] %v9157
        %9222 = vst [vmem:[%s289 + $0xe0] sm:$0xff] %v9158
        %9223 = vst [vmem:[%s289 + $0xe8] sm:$0xff] %v9159
        %9224 = vst [vmem:[%s289 + $0xf0] sm:$0xff] %v9160
        %9225 = vst [vmem:[%s289 + $0xf8] sm:$0xff] %v9161
        %9226 = vst [vmem:[%s289 + $0x100] sm:$0xff] %v9162
        %9227 = vst [vmem:[%s289 + $0x108] sm:$0xff] %v9163
        %9228 = vst [vmem:[%s289 + $0x110] sm:$0xff] %v9164
        %9229 = vst [vmem:[%s289 + $0x118] sm:$0xff] %v9165
        %9230 = vst [vmem:[%s289 + $0x120] sm:$0xff] %v9166
        %9231 = vst [vmem:[%s289 + $0x128] sm:$0xff] %v9167
        %9232 = vst [vmem:[%s289 + $0x130] sm:$0xff] %v9168
        %9233 = vst [vmem:[%s289 + $0x138] sm:$0xff] %v9169
        %9234 = vst [vmem:[%s289 + $0x140] sm:$0xff] %v9170
        %9235 = vst [vmem:[%s289 + $0x148] sm:$0xff] %v9171
        %9236 = vst [vmem:[%s289 + $0x150] sm:$0xff] %v9172
        %9237 = vst [vmem:[%s289 + $0x158] sm:$0xff] %v9173
        %9238 = vst [vmem:[%s289 + $0x160] sm:$0xff] %v9174
        %9239 = vst [vmem:[%s289 + $0x168] sm:$0xff] %v9175
        %9240 = vst [vmem:[%s289 + $0x170] sm:$0xff] %v9176
        %9241 = vst [vmem:[%s289 + $0x178] sm:$0xff] %v9177
        %9242 = vst [vmem:[%s289 + $0x180] sm:$0xff] %v9178
        %9243 = vst [vmem:[%s289 + $0x188] sm:$0xff] %v9179
        %9244 = vst [vmem:[%s289 + $0x190] sm:$0xff] %v9180
        %9245 = vst [vmem:[%s289 + $0x198] sm:$0xff] %v9181
        %9246 = vst [vmem:[%s289 + $0x1a0] sm:$0xff] %v9182
        %9247 = vst [vmem:[%s289 + $0x1a8] sm:$0xff] %v9183
        %9248 = vst [vmem:[%s289 + $0x1b0] sm:$0xff] %v9184
        %9249 = vst [vmem:[%s289 + $0x1b8] sm:$0xff] %v9185
        %9250 = vst [vmem:[%s289 + $0x1c0] sm:$0xff] %v9186
        %9251 = vst [vmem:[%s289 + $0x1c8] sm:$0xff] %v9187
        %9252 = vst [vmem:[%s289 + $0x1d0] sm:$0xff] %v9188
        %9253 = vst [vmem:[%s289 + $0x1d8] sm:$0xff] %v9189
        %9254 = vst [vmem:[%s289 + $0x1e0] sm:$0xff] %v9190
        %9255 = vst [vmem:[%s289 + $0x1e8] sm:$0xff] %v9191
        %9256 = vst [vmem:[%s289 + $0x1f0] sm:$0xff] %v9192
        %9257 = vst [vmem:[%s289 + $0x1f8] sm:$0xff] %v9193
        %s9258 = sand.u32 %s161, 1
        %s9259 = scalar_lea.sflag [#allocation4], %s9258
        %s9260 = sand.u32 %s161, 1
        %s9261 = smul.addr %s9260, 512
        %s9262 = scalar_lea.vmem [#allocation8], %s9261
        // Predicated region
        $region57: #{tpu_custom_call.1} parent=43 // pred_check
          %p9263 = pneg %p171
        $region58: #{tpu_custom_call.1} parent=43 // pred_check_branch
          %9265 = sbr.rel (%p9263) target = $region60
        $region59: #{tpu_custom_call.1} parent=43 // pred_region
          %s9266 = smul.u32 32, %s22
          %s9268 = ssub.s32 8192, 8192
          %9269 = vsyncadd %s9259, %s9268
          %s9270 = smul.addr %s9266, 2
          %s9271 = smul.addr %s9270, 128
          %s9272 = scalar_lea.hbm %s6, %s9271
          %s9273 = sshll.u32 %s9262, 4
          %s9274 = int_to_ptr.vmem [resolvable:$true] %s9273
          %9279 = dma.vmem_to_hbm [thread:$0]  %s9274, 8192, %s9272, %s9259, 256, 256, 16
        $region60: #{tpu_custom_call.1} parent=43 // pred_fallthru
          _
      $region44: #{tpu_custom_call.1} parent=5 // pred_fallthru
        _
      %p9280 = scmp.le.s32.totalorder 2, %s17
      // Predicated region
      $region61: #{tpu_custom_call.1} parent=5 // pred_check
        %p9281 = pneg %p9280
      $region62: #{tpu_custom_call.1} parent=5 // pred_check_branch
        %9283 = sbr.rel (%p9281) target = $region64
      $region63: #{tpu_custom_call.1} parent=5 // pred_region
        %s9284 = ssub.s32 %s17, 2
        // Predicated region
        $region65: #{tpu_custom_call.1} parent=63 // pred_check
          %p9285 = pneg %p177
        $region66: #{tpu_custom_call.1} parent=63 // pred_check_branch
          %9287 = sbr.rel (%p9285) target = $region68
        $region67: #{tpu_custom_call.1} parent=63 // pred_region
          %s9288 = sand.u32 %s162, 1
          %s9289 = scalar_lea.sflag [#allocation4], %s9288
          %s9290 = sand.u32 %s162, 1
          %s9291 = smul.addr %s9290, 512
          %s9292 = scalar_lea.vmem [#allocation8], %s9291
          %9293 = dma.done %s9289, 8192
        $region68: #{tpu_custom_call.1} parent=63 // pred_fallthru
          _
      $region64: #{tpu_custom_call.1} parent=5 // pred_fallthru
        _
    $region6: #{tpu_custom_call.1} parent=1 // loop_footer
      %s21 = sadd.s32 1, %s17
    $region7: #{tpu_custom_call.1} parent=1 // loop_footer_branch
      %16 = sbr.rel target = $region3
    $region8: #{tpu_custom_call.1} parent=1 // loop_exit
      _
    %9294 = vsyncpa [#allocation3], 1
    %s9295 = scalar_lea.sflag [#allocation3], 1
    %9296 = vsyncpa %s9295, 1
    %9297 = vsyncpa [#allocation6], 1
    %9298 = vsyncpa [#allocation4], 1
    %s9299 = scalar_lea.sflag [#allocation4], 1
    %9300 = vsyncpa %s9299, 1

</llo_original>
